<compile_context>
chip_gen: v7x
topology: tpu7x:2x2x1
jax: 0.10.0
libtpu: 0.0.40
codegen_flags: <defaults>
</compile_context>

<pallas_src>
import functools
import random

import jax
import jax.numpy as jnp
from jax.experimental import pallas as pl
from jax.experimental.pallas import tpu as pltpu


# ----------------------------------------------------------------------------
# Fused kernel: encoder sweep then decoder loop, everything VMEM-resident.
# Gate order is PyTorch's [i, f, g, o]; all gate weights arrive pre-split as
# (4, in, hid) so every per-gate result is lane-aligned with h and c.
# ----------------------------------------------------------------------------
def _seq2seq_kernel(tf_ref,                      # SMEM (trg_len,) int32
                    src_ref, trg_ref,            # (seq*bpad, in), (trg_len*bpad, out)
                    enc_wx_ref, enc_wh_ref, enc_b_ref,
                    dec_wx_ref, dec_wh_ref, dec_b_ref,
                    p2g_w_ref, p2g_b_ref,        # pred -> gate-space fold
                    wfc_ref, bfc_ref,
                    out_ref,                     # (trg_len*bpad, out)
                    *, seq, trg_len, bpad):
    hid = enc_wh_ref.shape[-1]
    out_dim = wfc_ref.shape[-1]

    # ---- hoisted, loop-invariant weight loads (per gate k = i, f, g, o) ----
    enc_wh = [enc_wh_ref[k] for k in range(4)]
    dec_wh = [dec_wh_ref[k] for k in range(4)]
    p2g_w = [p2g_w_ref[k] for k in range(4)]
    # Biases pre-broadcast ONCE (JAX does not CSE broadcast_in_dim).
    enc_b = [jnp.broadcast_to(enc_b_ref[k], (bpad, hid)) for k in range(4)]
    dec_b = [jnp.broadcast_to(dec_b_ref[k], (bpad, hid)) for k in range(4)]
    p2g_b = [jnp.broadcast_to(p2g_b_ref[k], (bpad, hid)) for k in range(4)]
    wfc = wfc_ref[...]
    bfc = bfc_ref[...]

    # ---- hoisted input projections: off the recurrent critical path --------
    src2d = src_ref[...]                              # (seq*bpad, in_dim)
    trg2d = trg_ref[...]                              # (trg_len*bpad, out_dim)
    src_proj = [jnp.dot(src2d, enc_wx_ref[k],
                        preferred_element_type=jnp.float32) for k in range(4)]
    trg_proj = [jnp.dot(trg2d, dec_wx_ref[k],
                        preferred_element_type=jnp.float32) for k in range(4)]

    def cell(x_gate, h, c, wh, b):
        # gates_k = x_gate_k + h @ Wh_k + b_k   (each (bpad, hid), lane-aligned)
        gates = [x_gate[k]
                 + jnp.dot(h, wh[k], preferred_element_type=jnp.float32)
                 + b[k] for k in range(4)]
        i = jax.nn.sigmoid(gates[0])
        f = jax.nn.sigmoid(gates[1])
        g = jnp.tanh(gates[2])                 # tanh only on the g gate
        o = jax.nn.sigmoid(gates[3])
        c_new = f * c + i * g
        h_new = o * jnp.tanh(c_new)
        return h_new, c_new

    h = jnp.zeros((bpad, hid), jnp.float32)
    c = jnp.zeros((bpad, hid), jnp.float32)

    # ------------------- encoder sweep (fully unrolled) ---------------------
    for t in range(seq):
        x_gate = [src_proj[k][t * bpad:(t + 1) * bpad] for k in range(4)]
        h, c = cell(x_gate, h, c, enc_wh, enc_b)

    # ------------------- decoder loop (fully unrolled) ----------------------
    # First decoder input is all-zeros (matches the reference seq2seq loop;
    # outputs[0] stays zero).
    zero_gate = jnp.zeros((bpad, hid), jnp.float32)
    x_gate = [zero_gate] * 4
    hs = []
    for t in range(1, trg_len):
        h, c = cell(x_gate, h, c, dec_wh, dec_b)
        hs.append(h)
        if t < trg_len - 1:
            # Next step's input in gate space:
            #   teacher forcing -> trg[t] @ Wx  (precomputed trg_proj[t])
            #   otherwise       -> pred_t @ Wx = h @ (wfc@Wx) + bfc@Wx
            teacher = tf_ref[t] != 0
            x_gate = [jnp.where(
                teacher,
                trg_proj[k][t * bpad:(t + 1) * bpad],
                jnp.dot(h, p2g_w[k], preferred_element_type=jnp.float32)
                + p2g_b[k]) for k in range(4)]

    # ---- deferred fc_out: one stacked matmul, one store of the whole output
    h_all = jnp.concatenate(hs, axis=0)               # ((trg_len-1)*bpad, hid)
    preds = jnp.dot(h_all, wfc, preferred_element_type=jnp.float32) + bfc
    out_ref[...] = jnp.concatenate(
        [jnp.zeros((bpad, out_dim), jnp.float32), preds], axis=0)


# ----------------------------------------------------------------------------
# Host-side parameter preparation: split gate columns, fold fc_out into gates.
# ----------------------------------------------------------------------------
def _prepare_kernel_params(params, hid):
    def split_gates(w):                     # (rows, 4H) -> (4, rows, H)
        return jnp.stack([w[:, k * hid:(k + 1) * hid] for k in range(4)], 0)

    dec_wx = split_gates(params["dec_wih_t"])
    wfc = params["dec_wfc_t"]
    bfc = params["dec_bfc"]
    return {
        "enc_wx": split_gates(params["enc_wih_t"]),
        "enc_wh": split_gates(params["enc_whh_t"]),
        "enc_b": split_gates(params["enc_b"]),
        "dec_wx": dec_wx,
        "dec_wh": split_gates(params["dec_whh_t"]),
        "dec_b": split_gates(params["dec_b"]),
        # pred_t @ Wx_k  ==  h_t @ (wfc @ Wx_k) + bfc @ Wx_k
        "p2g_w": jnp.stack([wfc @ dec_wx[k] for k in range(4)], 0),
        "p2g_b": jnp.stack([bfc @ dec_wx[k] for k in range(4)], 0),
        "wfc": wfc,
        "bfc": bfc,
    }


# ----------------------------------------------------------------------------
# Wrapper: single pallas_call, grid=(1,), full-array blocks (one DMA each).
# ----------------------------------------------------------------------------
def seq2seq_forward(src, trg, params, tf_mask):
    batch, in_dim, seq = src.shape
    _, out_dim, trg_len = trg.shape
    hid = params["dec_wfc_t"].shape[0]
    assert tf_mask.shape[0] == trg_len, "tf_mask must cover every decoder step"

    bpad = -(-batch // 8) * 8               # pad batch to a full sublane tile

    def to_rows(x):                         # (B, F, T) -> (T*bpad, F)
        x_tm = jnp.transpose(x, (2, 0, 1))
        x_tm = jnp.pad(x_tm, ((0, 0), (0, bpad - batch), (0, 0)))
        return x_tm.reshape(x_tm.shape[0] * bpad, x_tm.shape[2])

    src_rows = to_rows(src)                 # (seq*bpad, in_dim)
    trg_rows = to_rows(trg)                 # (trg_len*bpad, out_dim)
    kp = _prepare_kernel_params(params, hid)

    kernel = functools.partial(_seq2seq_kernel,
                               seq=seq, trg_len=trg_len, bpad=bpad)

    def full(shape, rank3=False):
        if rank3:
            return pl.BlockSpec(shape, lambda i, tf: (0, 0, 0))
        return pl.BlockSpec(shape, lambda i, tf: (0, 0))

    grid_spec = pltpu.PrefetchScalarGridSpec(
        num_scalar_prefetch=1,              # tf_mask -> SMEM
        grid=(1,),
        in_specs=[
            full(src_rows.shape),
            full(trg_rows.shape),
            full(kp["enc_wx"].shape, True),
            full(kp["enc_wh"].shape, True),
            full(kp["enc_b"].shape, True),
            full(kp["dec_wx"].shape, True),
            full(kp["dec_wh"].shape, True),
            full(kp["dec_b"].shape, True),
            full(kp["p2g_w"].shape, True),
            full(kp["p2g_b"].shape, True),
            full(kp["wfc"].shape),
            full(kp["bfc"].shape),
        ],
        out_specs=pl.BlockSpec((trg_len * bpad, out_dim), lambda i, tf: (0, 0)),
    )

    out_rows = pl.pallas_call(
        kernel,
        out_shape=jax.ShapeDtypeStruct((trg_len * bpad, out_dim), jnp.float32),
        grid_spec=grid_spec,
        compiler_params=pltpu.CompilerParams(
            dimension_semantics=("arbitrary",)),
    )(tf_mask, src_rows, trg_rows,
      kp["enc_wx"], kp["enc_wh"], kp["enc_b"],
      kp["dec_wx"], kp["dec_wh"], kp["dec_b"],
      kp["p2g_w"], kp["p2g_b"], kp["wfc"], kp["bfc"])

    out_tm = out_rows.reshape(trg_len, bpad, out_dim)[:, :batch, :]
    return jnp.transpose(out_tm, (1, 2, 0))            # (batch, out_dim, trg_len)


# ----------------------------------------------------------------------------
# Pure-JAX reference (independent math path: concatenated gates, full-width
# activations) — correctness check only.
# ----------------------------------------------------------------------------
def _lstm_cell_ref(x, h, c, wih_t, whh_t, b, hid):
    gates = x @ wih_t + h @ whh_t + b
    i = jax.nn.sigmoid(gates[:, 0 * hid:1 * hid])
    f = jax.nn.sigmoid(gates[:, 1 * hid:2 * hid])
    g = jnp.tanh(gates[:, 2 * hid:3 * hid])
    o = jax.nn.sigmoid(gates[:, 3 * hid:4 * hid])
    c_new = f * c + i * g
    return o * jnp.tanh(c_new), c_new


def _ref_forward(src, trg, params, tf_mask):
    src_tm = jnp.transpose(src, (2, 0, 1))
    trg_tm = jnp.transpose(trg, (2, 0, 1))
    hid = params["dec_wfc_t"].shape[0]
    batch = src.shape[0]
    h = jnp.zeros((batch, hid), jnp.float32)
    c = jnp.zeros((batch, hid), jnp.float32)
    for t in range(src_tm.shape[0]):
        h, c = _lstm_cell_ref(src_tm[t], h, c, params["enc_wih_t"],
                              params["enc_whh_t"], params["enc_b"], hid)
    trg_len, _, out_dim = trg_tm.shape
    outs = [jnp.zeros((batch, out_dim), jnp.float32)]
    x = jnp.zeros((batch, out_dim), jnp.float32)
    for t in range(1, trg_len):
        h, c = _lstm_cell_ref(x, h, c, params["dec_wih_t"],
                              params["dec_whh_t"], params["dec_b"], hid)
        pred = h @ params["dec_wfc_t"] + params["dec_bfc"]
        outs.append(pred)
        x = jnp.where(tf_mask[t] != 0, trg_tm[t], pred)
    return jnp.transpose(jnp.stack(outs, 0), (1, 2, 0))


# ----------------------------------------------------------------------------
# Deterministic parameter construction (standard PyTorch LSTM/Linear layout).
# ----------------------------------------------------------------------------
def make_params(key, in_dim, out_dim, hid):
    ks = jax.random.split(key, 10)
    s = 1.0 / jnp.sqrt(hid)

    def u(k, shape):
        return jax.random.uniform(k, shape, jnp.float32, -s, s)

    return {
        "enc_wih_t": u(ks[0], (in_dim, 4 * hid)),
        "enc_whh_t": u(ks[1], (hid, 4 * hid)),
        "enc_b": u(ks[2], (1, 4 * hid)) + u(ks[3], (1, 4 * hid)),
        "dec_wih_t": u(ks[4], (out_dim, 4 * hid)),
        "dec_whh_t": u(ks[5], (hid, 4 * hid)),
        "dec_b": u(ks[6], (1, 4 * hid)) + u(ks[7], (1, 4 * hid)),
        "dec_wfc_t": u(ks[8], (hid, out_dim)),
        "dec_bfc": u(ks[9], (1, out_dim)),
    }


if __name__ == "__main__":
    batch, h_in, h_out, seq, hid = 2, 4, 4, 8, 32
    train, teacher_forcing_ratio = True, 0.5
    trg_len = seq

    key = jax.random.PRNGKey(0)
    k_src, k_trg, k_par = jax.random.split(key, 3)
    src = jax.random.normal(k_src, (batch, h_in, seq), jnp.float32)
    trg = jax.random.normal(k_trg, (batch, h_out, trg_len), jnp.float32)
    params = make_params(k_par, h_in, h_out, hid)

    # TODO(synk): the per-step python `random.random()` teacher-forcing draw has
    # no in-kernel equivalent; draws are made host-side and passed as an SMEM
    # int32 mask of length trg_len.
    rng = random.Random(0)
    tf_list = [0] + [
        int(train and (rng.random() < teacher_forcing_ratio))
        for _ in range(1, trg_len)
    ]
    tf_mask = jnp.asarray(tf_list, dtype=jnp.int32)

    out = jax.block_until_ready(seq2seq_forward(src, trg, params, tf_mask))
    assert out.shape == (batch, h_out, trg_len), out.shape

    ref = jax.block_until_ready(_ref_forward(src, trg, params, tf_mask))
    assert jnp.allclose(out, ref, rtol=1e-3, atol=5e-3), float(
        jnp.max(jnp.abs(out - ref)))

    print("KERNEL_OK")
</pallas_src>

<mosaic_0001>
module attributes {stable_mosaic.version = 11 : i64} {
  func.func @_seq2seq_kernel(%arg0: i32, %arg1: memref<8xi32, #tpu.memory_space<smem>>, %arg2: memref<64x4xf32, #tpu.memory_space<vmem>>, %arg3: memref<64x4xf32, #tpu.memory_space<vmem>>, %arg4: memref<4x4x32xf32, #tpu.memory_space<vmem>>, %arg5: memref<4x32x32xf32, #tpu.memory_space<vmem>>, %arg6: memref<4x1x32xf32, #tpu.memory_space<vmem>>, %arg7: memref<4x4x32xf32, #tpu.memory_space<vmem>>, %arg8: memref<4x32x32xf32, #tpu.memory_space<vmem>>, %arg9: memref<4x1x32xf32, #tpu.memory_space<vmem>>, %arg10: memref<4x32x32xf32, #tpu.memory_space<vmem>>, %arg11: memref<4x1x32xf32, #tpu.memory_space<vmem>>, %arg12: memref<32x4xf32, #tpu.memory_space<vmem>>, %arg13: memref<1x4xf32, #tpu.memory_space<vmem>>, %arg14: memref<64x4xf32, #tpu.memory_space<vmem>>) attributes {dimension_semantics = [#tpu.dimension_semantics<arbitrary>], iteration_bounds = array<i64: 1>, scalar_prefetch = 1 : i64, scratch_operands = 0 : i64, tpu.core_type = #tpu.core_type<tc>, window_params = [{pipeline_mode = #tpu.pipeline_mode<synchronous>, transform_indices = @transform_0, window_bounds = array<i64: 64, 4>}, {pipeline_mode = #tpu.pipeline_mode<synchronous>, transform_indices = @transform_1, window_bounds = array<i64: 64, 4>}, {pipeline_mode = #tpu.pipeline_mode<synchronous>, transform_indices = @transform_2, window_bounds = array<i64: 4, 4, 32>}, {pipeline_mode = #tpu.pipeline_mode<synchronous>, transform_indices = @transform_3, window_bounds = array<i64: 4, 32, 32>}, {pipeline_mode = #tpu.pipeline_mode<synchronous>, transform_indices = @transform_4, window_bounds = array<i64: 4, 1, 32>}, {pipeline_mode = #tpu.pipeline_mode<synchronous>, transform_indices = @transform_5, window_bounds = array<i64: 4, 4, 32>}, {pipeline_mode = #tpu.pipeline_mode<synchronous>, transform_indices = @transform_6, window_bounds = array<i64: 4, 32, 32>}, {pipeline_mode = #tpu.pipeline_mode<synchronous>, transform_indices = @transform_7, window_bounds = array<i64: 4, 1, 32>}, {pipeline_mode = #tpu.pipeline_mode<synchronous>, transform_indices = @transform_8, window_bounds = array<i64: 4, 32, 32>}, {pipeline_mode = #tpu.pipeline_mode<synchronous>, transform_indices = @transform_9, window_bounds = array<i64: 4, 1, 32>}, {pipeline_mode = #tpu.pipeline_mode<synchronous>, transform_indices = @transform_10, window_bounds = array<i64: 32, 4>}, {pipeline_mode = #tpu.pipeline_mode<synchronous>, transform_indices = @transform_11, window_bounds = array<i64: 1, 4>}, {pipeline_mode = #tpu.pipeline_mode<synchronous>, transform_indices = @transform_12, window_bounds = array<i64: 64, 4>}]} {
    %c0 = arith.constant 0 : index
    %c0_0 = arith.constant 0 : index
    %c0_1 = arith.constant 0 : index
    %0 = vector.load %arg5[%c0, %c0_0, %c0_1] : memref<4x32x32xf32, #tpu.memory_space<vmem>>, vector<1x32x32xf32>
    %1 = vector.shape_cast %0 : vector<1x32x32xf32> to vector<32x32xf32>
    %c1 = arith.constant 1 : index
    %c0_2 = arith.constant 0 : index
    %c0_3 = arith.constant 0 : index
    %2 = vector.load %arg5[%c1, %c0_2, %c0_3] : memref<4x32x32xf32, #tpu.memory_space<vmem>>, vector<1x32x32xf32>
    %3 = vector.shape_cast %2 : vector<1x32x32xf32> to vector<32x32xf32>
    %c2 = arith.constant 2 : index
    %c0_4 = arith.constant 0 : index
    %c0_5 = arith.constant 0 : index
    %4 = vector.load %arg5[%c2, %c0_4, %c0_5] : memref<4x32x32xf32, #tpu.memory_space<vmem>>, vector<1x32x32xf32>
    %5 = vector.shape_cast %4 : vector<1x32x32xf32> to vector<32x32xf32>
    %c3 = arith.constant 3 : index
    %c0_6 = arith.constant 0 : index
    %c0_7 = arith.constant 0 : index
    %6 = vector.load %arg5[%c3, %c0_6, %c0_7] : memref<4x32x32xf32, #tpu.memory_space<vmem>>, vector<1x32x32xf32>
    %7 = vector.shape_cast %6 : vector<1x32x32xf32> to vector<32x32xf32>
    %c0_8 = arith.constant 0 : index
    %c0_9 = arith.constant 0 : index
    %c0_10 = arith.constant 0 : index
    %8 = vector.load %arg8[%c0_8, %c0_9, %c0_10] : memref<4x32x32xf32, #tpu.memory_space<vmem>>, vector<1x32x32xf32>
    %9 = vector.shape_cast %8 : vector<1x32x32xf32> to vector<32x32xf32>
    %c1_11 = arith.constant 1 : index
    %c0_12 = arith.constant 0 : index
    %c0_13 = arith.constant 0 : index
    %10 = vector.load %arg8[%c1_11, %c0_12, %c0_13] : memref<4x32x32xf32, #tpu.memory_space<vmem>>, vector<1x32x32xf32>
    %11 = vector.shape_cast %10 : vector<1x32x32xf32> to vector<32x32xf32>
    %c2_14 = arith.constant 2 : index
    %c0_15 = arith.constant 0 : index
    %c0_16 = arith.constant 0 : index
    %12 = vector.load %arg8[%c2_14, %c0_15, %c0_16] : memref<4x32x32xf32, #tpu.memory_space<vmem>>, vector<1x32x32xf32>
    %13 = vector.shape_cast %12 : vector<1x32x32xf32> to vector<32x32xf32>
    %c3_17 = arith.constant 3 : index
    %c0_18 = arith.constant 0 : index
    %c0_19 = arith.constant 0 : index
    %14 = vector.load %arg8[%c3_17, %c0_18, %c0_19] : memref<4x32x32xf32, #tpu.memory_space<vmem>>, vector<1x32x32xf32>
    %15 = vector.shape_cast %14 : vector<1x32x32xf32> to vector<32x32xf32>
    %c0_20 = arith.constant 0 : index
    %c0_21 = arith.constant 0 : index
    %c0_22 = arith.constant 0 : index
    %16 = vector.load %arg10[%c0_20, %c0_21, %c0_22] : memref<4x32x32xf32, #tpu.memory_space<vmem>>, vector<1x32x32xf32>
    %17 = vector.shape_cast %16 : vector<1x32x32xf32> to vector<32x32xf32>
    %c1_23 = arith.constant 1 : index
    %c0_24 = arith.constant 0 : index
    %c0_25 = arith.constant 0 : index
    %18 = vector.load %arg10[%c1_23, %c0_24, %c0_25] : memref<4x32x32xf32, #tpu.memory_space<vmem>>, vector<1x32x32xf32>
    %19 = vector.shape_cast %18 : vector<1x32x32xf32> to vector<32x32xf32>
    %c2_26 = arith.constant 2 : index
    %c0_27 = arith.constant 0 : index
    %c0_28 = arith.constant 0 : index
    %20 = vector.load %arg10[%c2_26, %c0_27, %c0_28] : memref<4x32x32xf32, #tpu.memory_space<vmem>>, vector<1x32x32xf32>
    %21 = vector.shape_cast %20 : vector<1x32x32xf32> to vector<32x32xf32>
    %c3_29 = arith.constant 3 : index
    %c0_30 = arith.constant 0 : index
    %c0_31 = arith.constant 0 : index
    %22 = vector.load %arg10[%c3_29, %c0_30, %c0_31] : memref<4x32x32xf32, #tpu.memory_space<vmem>>, vector<1x32x32xf32>
    %23 = vector.shape_cast %22 : vector<1x32x32xf32> to vector<32x32xf32>
    %c0_32 = arith.constant 0 : index
    %c0_33 = arith.constant 0 : index
    %c0_34 = arith.constant 0 : index
    %24 = vector.load %arg6[%c0_32, %c0_33, %c0_34] : memref<4x1x32xf32, #tpu.memory_space<vmem>>, vector<1x1x32xf32>
    %25 = vector.shape_cast %24 : vector<1x1x32xf32> to vector<1x32xf32>
    %26 = vector.shape_cast %25 : vector<1x32xf32> to vector<1x32xf32>
    %27 = vector.broadcast %26 : vector<1x32xf32> to vector<8x32xf32>
    %c1_35 = arith.constant 1 : index
    %c0_36 = arith.constant 0 : index
    %c0_37 = arith.constant 0 : index
    %28 = vector.load %arg6[%c1_35, %c0_36, %c0_37] : memref<4x1x32xf32, #tpu.memory_space<vmem>>, vector<1x1x32xf32>
    %29 = vector.shape_cast %28 : vector<1x1x32xf32> to vector<1x32xf32>
    %30 = vector.shape_cast %29 : vector<1x32xf32> to vector<1x32xf32>
    %31 = vector.broadcast %30 : vector<1x32xf32> to vector<8x32xf32>
    %c2_38 = arith.constant 2 : index
    %c0_39 = arith.constant 0 : index
    %c0_40 = arith.constant 0 : index
    %32 = vector.load %arg6[%c2_38, %c0_39, %c0_40] : memref<4x1x32xf32, #tpu.memory_space<vmem>>, vector<1x1x32xf32>
    %33 = vector.shape_cast %32 : vector<1x1x32xf32> to vector<1x32xf32>
    %34 = vector.shape_cast %33 : vector<1x32xf32> to vector<1x32xf32>
    %35 = vector.broadcast %34 : vector<1x32xf32> to vector<8x32xf32>
    %c3_41 = arith.constant 3 : index
    %c0_42 = arith.constant 0 : index
    %c0_43 = arith.constant 0 : index
    %36 = vector.load %arg6[%c3_41, %c0_42, %c0_43] : memref<4x1x32xf32, #tpu.memory_space<vmem>>, vector<1x1x32xf32>
    %37 = vector.shape_cast %36 : vector<1x1x32xf32> to vector<1x32xf32>
    %38 = vector.shape_cast %37 : vector<1x32xf32> to vector<1x32xf32>
    %39 = vector.broadcast %38 : vector<1x32xf32> to vector<8x32xf32>
    %c0_44 = arith.constant 0 : index
    %c0_45 = arith.constant 0 : index
    %c0_46 = arith.constant 0 : index
    %40 = vector.load %arg9[%c0_44, %c0_45, %c0_46] : memref<4x1x32xf32, #tpu.memory_space<vmem>>, vector<1x1x32xf32>
    %41 = vector.shape_cast %40 : vector<1x1x32xf32> to vector<1x32xf32>
    %42 = vector.shape_cast %41 : vector<1x32xf32> to vector<1x32xf32>
    %43 = vector.broadcast %42 : vector<1x32xf32> to vector<8x32xf32>
    %c1_47 = arith.constant 1 : index
    %c0_48 = arith.constant 0 : index
    %c0_49 = arith.constant 0 : index
    %44 = vector.load %arg9[%c1_47, %c0_48, %c0_49] : memref<4x1x32xf32, #tpu.memory_space<vmem>>, vector<1x1x32xf32>
    %45 = vector.shape_cast %44 : vector<1x1x32xf32> to vector<1x32xf32>
    %46 = vector.shape_cast %45 : vector<1x32xf32> to vector<1x32xf32>
    %47 = vector.broadcast %46 : vector<1x32xf32> to vector<8x32xf32>
    %c2_50 = arith.constant 2 : index
    %c0_51 = arith.constant 0 : index
    %c0_52 = arith.constant 0 : index
    %48 = vector.load %arg9[%c2_50, %c0_51, %c0_52] : memref<4x1x32xf32, #tpu.memory_space<vmem>>, vector<1x1x32xf32>
    %49 = vector.shape_cast %48 : vector<1x1x32xf32> to vector<1x32xf32>
    %50 = vector.shape_cast %49 : vector<1x32xf32> to vector<1x32xf32>
    %51 = vector.broadcast %50 : vector<1x32xf32> to vector<8x32xf32>
    %c3_53 = arith.constant 3 : index
    %c0_54 = arith.constant 0 : index
    %c0_55 = arith.constant 0 : index
    %52 = vector.load %arg9[%c3_53, %c0_54, %c0_55] : memref<4x1x32xf32, #tpu.memory_space<vmem>>, vector<1x1x32xf32>
    %53 = vector.shape_cast %52 : vector<1x1x32xf32> to vector<1x32xf32>
    %54 = vector.shape_cast %53 : vector<1x32xf32> to vector<1x32xf32>
    %55 = vector.broadcast %54 : vector<1x32xf32> to vector<8x32xf32>
    %c0_56 = arith.constant 0 : index
    %c0_57 = arith.constant 0 : index
    %c0_58 = arith.constant 0 : index
    %56 = vector.load %arg11[%c0_56, %c0_57, %c0_58] : memref<4x1x32xf32, #tpu.memory_space<vmem>>, vector<1x1x32xf32>
    %57 = vector.shape_cast %56 : vector<1x1x32xf32> to vector<1x32xf32>
    %58 = vector.shape_cast %57 : vector<1x32xf32> to vector<1x32xf32>
    %59 = vector.broadcast %58 : vector<1x32xf32> to vector<8x32xf32>
    %c1_59 = arith.constant 1 : index
    %c0_60 = arith.constant 0 : index
    %c0_61 = arith.constant 0 : index
    %60 = vector.load %arg11[%c1_59, %c0_60, %c0_61] : memref<4x1x32xf32, #tpu.memory_space<vmem>>, vector<1x1x32xf32>
    %61 = vector.shape_cast %60 : vector<1x1x32xf32> to vector<1x32xf32>
    %62 = vector.shape_cast %61 : vector<1x32xf32> to vector<1x32xf32>
    %63 = vector.broadcast %62 : vector<1x32xf32> to vector<8x32xf32>
    %c2_62 = arith.constant 2 : index
    %c0_63 = arith.constant 0 : index
    %c0_64 = arith.constant 0 : index
    %64 = vector.load %arg11[%c2_62, %c0_63, %c0_64] : memref<4x1x32xf32, #tpu.memory_space<vmem>>, vector<1x1x32xf32>
    %65 = vector.shape_cast %64 : vector<1x1x32xf32> to vector<1x32xf32>
    %66 = vector.shape_cast %65 : vector<1x32xf32> to vector<1x32xf32>
    %67 = vector.broadcast %66 : vector<1x32xf32> to vector<8x32xf32>
    %c3_65 = arith.constant 3 : index
    %c0_66 = arith.constant 0 : index
    %c0_67 = arith.constant 0 : index
    %68 = vector.load %arg11[%c3_65, %c0_66, %c0_67] : memref<4x1x32xf32, #tpu.memory_space<vmem>>, vector<1x1x32xf32>
    %69 = vector.shape_cast %68 : vector<1x1x32xf32> to vector<1x32xf32>
    %70 = vector.shape_cast %69 : vector<1x32xf32> to vector<1x32xf32>
    %71 = vector.broadcast %70 : vector<1x32xf32> to vector<8x32xf32>
    %c0_68 = arith.constant 0 : index
    %c0_69 = arith.constant 0 : index
    %72 = vector.load %arg12[%c0_68, %c0_69] : memref<32x4xf32, #tpu.memory_space<vmem>>, vector<32x4xf32>
    %c0_70 = arith.constant 0 : index
    %c0_71 = arith.constant 0 : index
    %73 = vector.load %arg13[%c0_70, %c0_71] : memref<1x4xf32, #tpu.memory_space<vmem>>, vector<1x4xf32>
    %c0_72 = arith.constant 0 : index
    %c0_73 = arith.constant 0 : index
    %74 = vector.load %arg2[%c0_72, %c0_73] : memref<64x4xf32, #tpu.memory_space<vmem>>, vector<64x4xf32>
    %c0_74 = arith.constant 0 : index
    %c0_75 = arith.constant 0 : index
    %75 = vector.load %arg3[%c0_74, %c0_75] : memref<64x4xf32, #tpu.memory_space<vmem>>, vector<64x4xf32>
    %c0_76 = arith.constant 0 : index
    %c0_77 = arith.constant 0 : index
    %c0_78 = arith.constant 0 : index
    %76 = vector.load %arg4[%c0_76, %c0_77, %c0_78] : memref<4x4x32xf32, #tpu.memory_space<vmem>>, vector<1x4x32xf32>
    %77 = vector.shape_cast %76 : vector<1x4x32xf32> to vector<4x32xf32>
    %cst = arith.constant dense<0.000000e+00> : vector<64x32xf32>
    %78 = tpu.matmul %74, %77, %cst {dimension_numbers = #tpu.dot_dimension_numbers<[1], [0], [0], [1], [0, 0, 1, 1], [], []>} : vector<64x4xf32>, vector<4x32xf32>, vector<64x32xf32> -> vector<64x32xf32>
    %c1_79 = arith.constant 1 : index
    %c0_80 = arith.constant 0 : index
    %c0_81 = arith.constant 0 : index
    %79 = vector.load %arg4[%c1_79, %c0_80, %c0_81] : memref<4x4x32xf32, #tpu.memory_space<vmem>>, vector<1x4x32xf32>
    %80 = vector.shape_cast %79 : vector<1x4x32xf32> to vector<4x32xf32>
    %cst_82 = arith.constant dense<0.000000e+00> : vector<64x32xf32>
    %81 = tpu.matmul %74, %80, %cst_82 {dimension_numbers = #tpu.dot_dimension_numbers<[1], [0], [0], [1], [0, 0, 1, 1], [], []>} : vector<64x4xf32>, vector<4x32xf32>, vector<64x32xf32> -> vector<64x32xf32>
    %c2_83 = arith.constant 2 : index
    %c0_84 = arith.constant 0 : index
    %c0_85 = arith.constant 0 : index
    %82 = vector.load %arg4[%c2_83, %c0_84, %c0_85] : memref<4x4x32xf32, #tpu.memory_space<vmem>>, vector<1x4x32xf32>
    %83 = vector.shape_cast %82 : vector<1x4x32xf32> to vector<4x32xf32>
    %cst_86 = arith.constant dense<0.000000e+00> : vector<64x32xf32>
    %84 = tpu.matmul %74, %83, %cst_86 {dimension_numbers = #tpu.dot_dimension_numbers<[1], [0], [0], [1], [0, 0, 1, 1], [], []>} : vector<64x4xf32>, vector<4x32xf32>, vector<64x32xf32> -> vector<64x32xf32>
    %c3_87 = arith.constant 3 : index
    %c0_88 = arith.constant 0 : index
    %c0_89 = arith.constant 0 : index
    %85 = vector.load %arg4[%c3_87, %c0_88, %c0_89] : memref<4x4x32xf32, #tpu.memory_space<vmem>>, vector<1x4x32xf32>
    %86 = vector.shape_cast %85 : vector<1x4x32xf32> to vector<4x32xf32>
    %cst_90 = arith.constant dense<0.000000e+00> : vector<64x32xf32>
    %87 = tpu.matmul %74, %86, %cst_90 {dimension_numbers = #tpu.dot_dimension_numbers<[1], [0], [0], [1], [0, 0, 1, 1], [], []>} : vector<64x4xf32>, vector<4x32xf32>, vector<64x32xf32> -> vector<64x32xf32>
    %c0_91 = arith.constant 0 : index
    %c0_92 = arith.constant 0 : index
    %c0_93 = arith.constant 0 : index
    %88 = vector.load %arg7[%c0_91, %c0_92, %c0_93] : memref<4x4x32xf32, #tpu.memory_space<vmem>>, vector<1x4x32xf32>
    %89 = vector.shape_cast %88 : vector<1x4x32xf32> to vector<4x32xf32>
    %cst_94 = arith.constant dense<0.000000e+00> : vector<64x32xf32>
    %90 = tpu.matmul %75, %89, %cst_94 {dimension_numbers = #tpu.dot_dimension_numbers<[1], [0], [0], [1], [0, 0, 1, 1], [], []>} : vector<64x4xf32>, vector<4x32xf32>, vector<64x32xf32> -> vector<64x32xf32>
    %c1_95 = arith.constant 1 : index
    %c0_96 = arith.constant 0 : index
    %c0_97 = arith.constant 0 : index
    %91 = vector.load %arg7[%c1_95, %c0_96, %c0_97] : memref<4x4x32xf32, #tpu.memory_space<vmem>>, vector<1x4x32xf32>
    %92 = vector.shape_cast %91 : vector<1x4x32xf32> to vector<4x32xf32>
    %cst_98 = arith.constant dense<0.000000e+00> : vector<64x32xf32>
    %93 = tpu.matmul %75, %92, %cst_98 {dimension_numbers = #tpu.dot_dimension_numbers<[1], [0], [0], [1], [0, 0, 1, 1], [], []>} : vector<64x4xf32>, vector<4x32xf32>, vector<64x32xf32> -> vector<64x32xf32>
    %c2_99 = arith.constant 2 : index
    %c0_100 = arith.constant 0 : index
    %c0_101 = arith.constant 0 : index
    %94 = vector.load %arg7[%c2_99, %c0_100, %c0_101] : memref<4x4x32xf32, #tpu.memory_space<vmem>>, vector<1x4x32xf32>
    %95 = vector.shape_cast %94 : vector<1x4x32xf32> to vector<4x32xf32>
    %cst_102 = arith.constant dense<0.000000e+00> : vector<64x32xf32>
    %96 = tpu.matmul %75, %95, %cst_102 {dimension_numbers = #tpu.dot_dimension_numbers<[1], [0], [0], [1], [0, 0, 1, 1], [], []>} : vector<64x4xf32>, vector<4x32xf32>, vector<64x32xf32> -> vector<64x32xf32>
    %c3_103 = arith.constant 3 : index
    %c0_104 = arith.constant 0 : index
    %c0_105 = arith.constant 0 : index
    %97 = vector.load %arg7[%c3_103, %c0_104, %c0_105] : memref<4x4x32xf32, #tpu.memory_space<vmem>>, vector<1x4x32xf32>
    %98 = vector.shape_cast %97 : vector<1x4x32xf32> to vector<4x32xf32>
    %cst_106 = arith.constant dense<0.000000e+00> : vector<64x32xf32>
    %99 = tpu.matmul %75, %98, %cst_106 {dimension_numbers = #tpu.dot_dimension_numbers<[1], [0], [0], [1], [0, 0, 1, 1], [], []>} : vector<64x4xf32>, vector<4x32xf32>, vector<64x32xf32> -> vector<64x32xf32>
    %cst_107 = arith.constant 0.000000e+00 : f32
    %100 = vector.broadcast %cst_107 : f32 to vector<8x32xf32>
    %cst_108 = arith.constant 0.000000e+00 : f32
    %101 = vector.broadcast %cst_108 : f32 to vector<8x32xf32>
    %102 = vector.extract_strided_slice %78 {offsets = [0, 0], sizes = [8, 32], strides = [1, 1]} : vector<64x32xf32> to vector<8x32xf32>
    %103 = vector.extract_strided_slice %81 {offsets = [0, 0], sizes = [8, 32], strides = [1, 1]} : vector<64x32xf32> to vector<8x32xf32>
    %104 = vector.extract_strided_slice %84 {offsets = [0, 0], sizes = [8, 32], strides = [1, 1]} : vector<64x32xf32> to vector<8x32xf32>
    %105 = vector.extract_strided_slice %87 {offsets = [0, 0], sizes = [8, 32], strides = [1, 1]} : vector<64x32xf32> to vector<8x32xf32>
    %cst_109 = arith.constant dense<0.000000e+00> : vector<8x32xf32>
    %106 = tpu.matmul %100, %1, %cst_109 {dimension_numbers = #tpu.dot_dimension_numbers<[1], [0], [0], [1], [0, 0, 1, 1], [], []>} : vector<8x32xf32>, vector<32x32xf32>, vector<8x32xf32> -> vector<8x32xf32>
    %107 = arith.addf %102, %106 : vector<8x32xf32>
    %108 = arith.addf %107, %27 : vector<8x32xf32>
    %cst_110 = arith.constant dense<0.000000e+00> : vector<8x32xf32>
    %109 = tpu.matmul %100, %3, %cst_110 {dimension_numbers = #tpu.dot_dimension_numbers<[1], [0], [0], [1], [0, 0, 1, 1], [], []>} : vector<8x32xf32>, vector<32x32xf32>, vector<8x32xf32> -> vector<8x32xf32>
    %110 = arith.addf %103, %109 : vector<8x32xf32>
    %111 = arith.addf %110, %31 : vector<8x32xf32>
    %cst_111 = arith.constant dense<0.000000e+00> : vector<8x32xf32>
    %112 = tpu.matmul %100, %5, %cst_111 {dimension_numbers = #tpu.dot_dimension_numbers<[1], [0], [0], [1], [0, 0, 1, 1], [], []>} : vector<8x32xf32>, vector<32x32xf32>, vector<8x32xf32> -> vector<8x32xf32>
    %113 = arith.addf %104, %112 : vector<8x32xf32>
    %114 = arith.addf %113, %35 : vector<8x32xf32>
    %cst_112 = arith.constant dense<0.000000e+00> : vector<8x32xf32>
    %115 = tpu.matmul %100, %7, %cst_112 {dimension_numbers = #tpu.dot_dimension_numbers<[1], [0], [0], [1], [0, 0, 1, 1], [], []>} : vector<8x32xf32>, vector<32x32xf32>, vector<8x32xf32> -> vector<8x32xf32>
    %116 = arith.addf %105, %115 : vector<8x32xf32>
    %117 = arith.addf %116, %39 : vector<8x32xf32>
    %118 = arith.negf %108 : vector<8x32xf32>
    %119 = math.exp %118 : vector<8x32xf32>
    %cst_113 = arith.constant 1.000000e+00 : f32
    %120 = vector.broadcast %cst_113 : f32 to vector<8x32xf32>
    %121 = arith.addf %120, %119 : vector<8x32xf32>
    %122 = arith.divf %120, %121 : vector<8x32xf32>
    %123 = arith.negf %111 : vector<8x32xf32>
    %124 = math.exp %123 : vector<8x32xf32>
    %cst_114 = arith.constant 1.000000e+00 : f32
    %125 = vector.broadcast %cst_114 : f32 to vector<8x32xf32>
    %126 = arith.addf %125, %124 : vector<8x32xf32>
    %127 = arith.divf %125, %126 : vector<8x32xf32>
    %128 = math.tanh %114 : vector<8x32xf32>
    %129 = arith.negf %117 : vector<8x32xf32>
    %130 = math.exp %129 : vector<8x32xf32>
    %cst_115 = arith.constant 1.000000e+00 : f32
    %131 = vector.broadcast %cst_115 : f32 to vector<8x32xf32>
    %132 = arith.addf %131, %130 : vector<8x32xf32>
    %133 = arith.divf %131, %132 : vector<8x32xf32>
    %134 = arith.mulf %127, %101 : vector<8x32xf32>
    %135 = arith.mulf %122, %128 : vector<8x32xf32>
    %136 = arith.addf %134, %135 : vector<8x32xf32>
    %137 = math.tanh %136 : vector<8x32xf32>
    %138 = arith.mulf %133, %137 : vector<8x32xf32>
    %139 = vector.extract_strided_slice %78 {offsets = [8, 0], sizes = [8, 32], strides = [1, 1]} : vector<64x32xf32> to vector<8x32xf32>
    %140 = vector.extract_strided_slice %81 {offsets = [8, 0], sizes = [8, 32], strides = [1, 1]} : vector<64x32xf32> to vector<8x32xf32>
    %141 = vector.extract_strided_slice %84 {offsets = [8, 0], sizes = [8, 32], strides = [1, 1]} : vector<64x32xf32> to vector<8x32xf32>
    %142 = vector.extract_strided_slice %87 {offsets = [8, 0], sizes = [8, 32], strides = [1, 1]} : vector<64x32xf32> to vector<8x32xf32>
    %cst_116 = arith.constant dense<0.000000e+00> : vector<8x32xf32>
    %143 = tpu.matmul %138, %1, %cst_116 {dimension_numbers = #tpu.dot_dimension_numbers<[1], [0], [0], [1], [0, 0, 1, 1], [], []>} : vector<8x32xf32>, vector<32x32xf32>, vector<8x32xf32> -> vector<8x32xf32>
    %144 = arith.addf %139, %143 : vector<8x32xf32>
    %145 = arith.addf %144, %27 : vector<8x32xf32>
    %cst_117 = arith.constant dense<0.000000e+00> : vector<8x32xf32>
    %146 = tpu.matmul %138, %3, %cst_117 {dimension_numbers = #tpu.dot_dimension_numbers<[1], [0], [0], [1], [0, 0, 1, 1], [], []>} : vector<8x32xf32>, vector<32x32xf32>, vector<8x32xf32> -> vector<8x32xf32>
    %147 = arith.addf %140, %146 : vector<8x32xf32>
    %148 = arith.addf %147, %31 : vector<8x32xf32>
    %cst_118 = arith.constant dense<0.000000e+00> : vector<8x32xf32>
    %149 = tpu.matmul %138, %5, %cst_118 {dimension_numbers = #tpu.dot_dimension_numbers<[1], [0], [0], [1], [0, 0, 1, 1], [], []>} : vector<8x32xf32>, vector<32x32xf32>, vector<8x32xf32> -> vector<8x32xf32>
    %150 = arith.addf %141, %149 : vector<8x32xf32>
    %151 = arith.addf %150, %35 : vector<8x32xf32>
    %cst_119 = arith.constant dense<0.000000e+00> : vector<8x32xf32>
    %152 = tpu.matmul %138, %7, %cst_119 {dimension_numbers = #tpu.dot_dimension_numbers<[1], [0], [0], [1], [0, 0, 1, 1], [], []>} : vector<8x32xf32>, vector<32x32xf32>, vector<8x32xf32> -> vector<8x32xf32>
    %153 = arith.addf %142, %152 : vector<8x32xf32>
    %154 = arith.addf %153, %39 : vector<8x32xf32>
    %155 = arith.negf %145 : vector<8x32xf32>
    %156 = math.exp %155 : vector<8x32xf32>
    %cst_120 = arith.constant 1.000000e+00 : f32
    %157 = vector.broadcast %cst_120 : f32 to vector<8x32xf32>
    %158 = arith.addf %157, %156 : vector<8x32xf32>
    %159 = arith.divf %157, %158 : vector<8x32xf32>
    %160 = arith.negf %148 : vector<8x32xf32>
    %161 = math.exp %160 : vector<8x32xf32>
    %cst_121 = arith.constant 1.000000e+00 : f32
    %162 = vector.broadcast %cst_121 : f32 to vector<8x32xf32>
    %163 = arith.addf %162, %161 : vector<8x32xf32>
    %164 = arith.divf %162, %163 : vector<8x32xf32>
    %165 = math.tanh %151 : vector<8x32xf32>
    %166 = arith.negf %154 : vector<8x32xf32>
    %167 = math.exp %166 : vector<8x32xf32>
    %cst_122 = arith.constant 1.000000e+00 : f32
    %168 = vector.broadcast %cst_122 : f32 to vector<8x32xf32>
    %169 = arith.addf %168, %167 : vector<8x32xf32>
    %170 = arith.divf %168, %169 : vector<8x32xf32>
    %171 = arith.mulf %164, %136 : vector<8x32xf32>
    %172 = arith.mulf %159, %165 : vector<8x32xf32>
    %173 = arith.addf %171, %172 : vector<8x32xf32>
    %174 = math.tanh %173 : vector<8x32xf32>
    %175 = arith.mulf %170, %174 : vector<8x32xf32>
    %176 = vector.extract_strided_slice %78 {offsets = [16, 0], sizes = [8, 32], strides = [1, 1]} : vector<64x32xf32> to vector<8x32xf32>
    %177 = vector.extract_strided_slice %81 {offsets = [16, 0], sizes = [8, 32], strides = [1, 1]} : vector<64x32xf32> to vector<8x32xf32>
    %178 = vector.extract_strided_slice %84 {offsets = [16, 0], sizes = [8, 32], strides = [1, 1]} : vector<64x32xf32> to vector<8x32xf32>
    %179 = vector.extract_strided_slice %87 {offsets = [16, 0], sizes = [8, 32], strides = [1, 1]} : vector<64x32xf32> to vector<8x32xf32>
    %cst_123 = arith.constant dense<0.000000e+00> : vector<8x32xf32>
    %180 = tpu.matmul %175, %1, %cst_123 {dimension_numbers = #tpu.dot_dimension_numbers<[1], [0], [0], [1], [0, 0, 1, 1], [], []>} : vector<8x32xf32>, vector<32x32xf32>, vector<8x32xf32> -> vector<8x32xf32>
    %181 = arith.addf %176, %180 : vector<8x32xf32>
    %182 = arith.addf %181, %27 : vector<8x32xf32>
    %cst_124 = arith.constant dense<0.000000e+00> : vector<8x32xf32>
    %183 = tpu.matmul %175, %3, %cst_124 {dimension_numbers = #tpu.dot_dimension_numbers<[1], [0], [0], [1], [0, 0, 1, 1], [], []>} : vector<8x32xf32>, vector<32x32xf32>, vector<8x32xf32> -> vector<8x32xf32>
    %184 = arith.addf %177, %183 : vector<8x32xf32>
    %185 = arith.addf %184, %31 : vector<8x32xf32>
    %cst_125 = arith.constant dense<0.000000e+00> : vector<8x32xf32>
    %186 = tpu.matmul %175, %5, %cst_125 {dimension_numbers = #tpu.dot_dimension_numbers<[1], [0], [0], [1], [0, 0, 1, 1], [], []>} : vector<8x32xf32>, vector<32x32xf32>, vector<8x32xf32> -> vector<8x32xf32>
    %187 = arith.addf %178, %186 : vector<8x32xf32>
    %188 = arith.addf %187, %35 : vector<8x32xf32>
    %cst_126 = arith.constant dense<0.000000e+00> : vector<8x32xf32>
    %189 = tpu.matmul %175, %7, %cst_126 {dimension_numbers = #tpu.dot_dimension_numbers<[1], [0], [0], [1], [0, 0, 1, 1], [], []>} : vector<8x32xf32>, vector<32x32xf32>, vector<8x32xf32> -> vector<8x32xf32>
    %190 = arith.addf %179, %189 : vector<8x32xf32>
    %191 = arith.addf %190, %39 : vector<8x32xf32>
    %192 = arith.negf %182 : vector<8x32xf32>
    %193 = math.exp %192 : vector<8x32xf32>
    %cst_127 = arith.constant 1.000000e+00 : f32
    %194 = vector.broadcast %cst_127 : f32 to vector<8x32xf32>
    %195 = arith.addf %194, %193 : vector<8x32xf32>
    %196 = arith.divf %194, %195 : vector<8x32xf32>
    %197 = arith.negf %185 : vector<8x32xf32>
    %198 = math.exp %197 : vector<8x32xf32>
    %cst_128 = arith.constant 1.000000e+00 : f32
    %199 = vector.broadcast %cst_128 : f32 to vector<8x32xf32>
    %200 = arith.addf %199, %198 : vector<8x32xf32>
    %201 = arith.divf %199, %200 : vector<8x32xf32>
    %202 = math.tanh %188 : vector<8x32xf32>
    %203 = arith.negf %191 : vector<8x32xf32>
    %204 = math.exp %203 : vector<8x32xf32>
    %cst_129 = arith.constant 1.000000e+00 : f32
    %205 = vector.broadcast %cst_129 : f32 to vector<8x32xf32>
    %206 = arith.addf %205, %204 : vector<8x32xf32>
    %207 = arith.divf %205, %206 : vector<8x32xf32>
    %208 = arith.mulf %201, %173 : vector<8x32xf32>
    %209 = arith.mulf %196, %202 : vector<8x32xf32>
    %210 = arith.addf %208, %209 : vector<8x32xf32>
    %211 = math.tanh %210 : vector<8x32xf32>
    %212 = arith.mulf %207, %211 : vector<8x32xf32>
    %213 = vector.extract_strided_slice %78 {offsets = [24, 0], sizes = [8, 32], strides = [1, 1]} : vector<64x32xf32> to vector<8x32xf32>
    %214 = vector.extract_strided_slice %81 {offsets = [24, 0], sizes = [8, 32], strides = [1, 1]} : vector<64x32xf32> to vector<8x32xf32>
    %215 = vector.extract_strided_slice %84 {offsets = [24, 0], sizes = [8, 32], strides = [1, 1]} : vector<64x32xf32> to vector<8x32xf32>
    %216 = vector.extract_strided_slice %87 {offsets = [24, 0], sizes = [8, 32], strides = [1, 1]} : vector<64x32xf32> to vector<8x32xf32>
    %cst_130 = arith.constant dense<0.000000e+00> : vector<8x32xf32>
    %217 = tpu.matmul %212, %1, %cst_130 {dimension_numbers = #tpu.dot_dimension_numbers<[1], [0], [0], [1], [0, 0, 1, 1], [], []>} : vector<8x32xf32>, vector<32x32xf32>, vector<8x32xf32> -> vector<8x32xf32>
    %218 = arith.addf %213, %217 : vector<8x32xf32>
    %219 = arith.addf %218, %27 : vector<8x32xf32>
    %cst_131 = arith.constant dense<0.000000e+00> : vector<8x32xf32>
    %220 = tpu.matmul %212, %3, %cst_131 {dimension_numbers = #tpu.dot_dimension_numbers<[1], [0], [0], [1], [0, 0, 1, 1], [], []>} : vector<8x32xf32>, vector<32x32xf32>, vector<8x32xf32> -> vector<8x32xf32>
    %221 = arith.addf %214, %220 : vector<8x32xf32>
    %222 = arith.addf %221, %31 : vector<8x32xf32>
    %cst_132 = arith.constant dense<0.000000e+00> : vector<8x32xf32>
    %223 = tpu.matmul %212, %5, %cst_132 {dimension_numbers = #tpu.dot_dimension_numbers<[1], [0], [0], [1], [0, 0, 1, 1], [], []>} : vector<8x32xf32>, vector<32x32xf32>, vector<8x32xf32> -> vector<8x32xf32>
    %224 = arith.addf %215, %223 : vector<8x32xf32>
    %225 = arith.addf %224, %35 : vector<8x32xf32>
    %cst_133 = arith.constant dense<0.000000e+00> : vector<8x32xf32>
    %226 = tpu.matmul %212, %7, %cst_133 {dimension_numbers = #tpu.dot_dimension_numbers<[1], [0], [0], [1], [0, 0, 1, 1], [], []>} : vector<8x32xf32>, vector<32x32xf32>, vector<8x32xf32> -> vector<8x32xf32>
    %227 = arith.addf %216, %226 : vector<8x32xf32>
    %228 = arith.addf %227, %39 : vector<8x32xf32>
    %229 = arith.negf %219 : vector<8x32xf32>
    %230 = math.exp %229 : vector<8x32xf32>
    %cst_134 = arith.constant 1.000000e+00 : f32
    %231 = vector.broadcast %cst_134 : f32 to vector<8x32xf32>
    %232 = arith.addf %231, %230 : vector<8x32xf32>
    %233 = arith.divf %231, %232 : vector<8x32xf32>
    %234 = arith.negf %222 : vector<8x32xf32>
    %235 = math.exp %234 : vector<8x32xf32>
    %cst_135 = arith.constant 1.000000e+00 : f32
    %236 = vector.broadcast %cst_135 : f32 to vector<8x32xf32>
    %237 = arith.addf %236, %235 : vector<8x32xf32>
    %238 = arith.divf %236, %237 : vector<8x32xf32>
    %239 = math.tanh %225 : vector<8x32xf32>
    %240 = arith.negf %228 : vector<8x32xf32>
    %241 = math.exp %240 : vector<8x32xf32>
    %cst_136 = arith.constant 1.000000e+00 : f32
    %242 = vector.broadcast %cst_136 : f32 to vector<8x32xf32>
    %243 = arith.addf %242, %241 : vector<8x32xf32>
    %244 = arith.divf %242, %243 : vector<8x32xf32>
    %245 = arith.mulf %238, %210 : vector<8x32xf32>
    %246 = arith.mulf %233, %239 : vector<8x32xf32>
    %247 = arith.addf %245, %246 : vector<8x32xf32>
    %248 = math.tanh %247 : vector<8x32xf32>
    %249 = arith.mulf %244, %248 : vector<8x32xf32>
    %250 = vector.extract_strided_slice %78 {offsets = [32, 0], sizes = [8, 32], strides = [1, 1]} : vector<64x32xf32> to vector<8x32xf32>
    %251 = vector.extract_strided_slice %81 {offsets = [32, 0], sizes = [8, 32], strides = [1, 1]} : vector<64x32xf32> to vector<8x32xf32>
    %252 = vector.extract_strided_slice %84 {offsets = [32, 0], sizes = [8, 32], strides = [1, 1]} : vector<64x32xf32> to vector<8x32xf32>
    %253 = vector.extract_strided_slice %87 {offsets = [32, 0], sizes = [8, 32], strides = [1, 1]} : vector<64x32xf32> to vector<8x32xf32>
    %cst_137 = arith.constant dense<0.000000e+00> : vector<8x32xf32>
    %254 = tpu.matmul %249, %1, %cst_137 {dimension_numbers = #tpu.dot_dimension_numbers<[1], [0], [0], [1], [0, 0, 1, 1], [], []>} : vector<8x32xf32>, vector<32x32xf32>, vector<8x32xf32> -> vector<8x32xf32>
    %255 = arith.addf %250, %254 : vector<8x32xf32>
    %256 = arith.addf %255, %27 : vector<8x32xf32>
    %cst_138 = arith.constant dense<0.000000e+00> : vector<8x32xf32>
    %257 = tpu.matmul %249, %3, %cst_138 {dimension_numbers = #tpu.dot_dimension_numbers<[1], [0], [0], [1], [0, 0, 1, 1], [], []>} : vector<8x32xf32>, vector<32x32xf32>, vector<8x32xf32> -> vector<8x32xf32>
    %258 = arith.addf %251, %257 : vector<8x32xf32>
    %259 = arith.addf %258, %31 : vector<8x32xf32>
    %cst_139 = arith.constant dense<0.000000e+00> : vector<8x32xf32>
    %260 = tpu.matmul %249, %5, %cst_139 {dimension_numbers = #tpu.dot_dimension_numbers<[1], [0], [0], [1], [0, 0, 1, 1], [], []>} : vector<8x32xf32>, vector<32x32xf32>, vector<8x32xf32> -> vector<8x32xf32>
    %261 = arith.addf %252, %260 : vector<8x32xf32>
    %262 = arith.addf %261, %35 : vector<8x32xf32>
    %cst_140 = arith.constant dense<0.000000e+00> : vector<8x32xf32>
    %263 = tpu.matmul %249, %7, %cst_140 {dimension_numbers = #tpu.dot_dimension_numbers<[1], [0], [0], [1], [0, 0, 1, 1], [], []>} : vector<8x32xf32>, vector<32x32xf32>, vector<8x32xf32> -> vector<8x32xf32>
    %264 = arith.addf %253, %263 : vector<8x32xf32>
    %265 = arith.addf %264, %39 : vector<8x32xf32>
    %266 = arith.negf %256 : vector<8x32xf32>
    %267 = math.exp %266 : vector<8x32xf32>
    %cst_141 = arith.constant 1.000000e+00 : f32
    %268 = vector.broadcast %cst_141 : f32 to vector<8x32xf32>
    %269 = arith.addf %268, %267 : vector<8x32xf32>
    %270 = arith.divf %268, %269 : vector<8x32xf32>
    %271 = arith.negf %259 : vector<8x32xf32>
    %272 = math.exp %271 : vector<8x32xf32>
    %cst_142 = arith.constant 1.000000e+00 : f32
    %273 = vector.broadcast %cst_142 : f32 to vector<8x32xf32>
    %274 = arith.addf %273, %272 : vector<8x32xf32>
    %275 = arith.divf %273, %274 : vector<8x32xf32>
    %276 = math.tanh %262 : vector<8x32xf32>
    %277 = arith.negf %265 : vector<8x32xf32>
    %278 = math.exp %277 : vector<8x32xf32>
    %cst_143 = arith.constant 1.000000e+00 : f32
    %279 = vector.broadcast %cst_143 : f32 to vector<8x32xf32>
    %280 = arith.addf %279, %278 : vector<8x32xf32>
    %281 = arith.divf %279, %280 : vector<8x32xf32>
    %282 = arith.mulf %275, %247 : vector<8x32xf32>
    %283 = arith.mulf %270, %276 : vector<8x32xf32>
    %284 = arith.addf %282, %283 : vector<8x32xf32>
    %285 = math.tanh %284 : vector<8x32xf32>
    %286 = arith.mulf %281, %285 : vector<8x32xf32>
    %287 = vector.extract_strided_slice %78 {offsets = [40, 0], sizes = [8, 32], strides = [1, 1]} : vector<64x32xf32> to vector<8x32xf32>
    %288 = vector.extract_strided_slice %81 {offsets = [40, 0], sizes = [8, 32], strides = [1, 1]} : vector<64x32xf32> to vector<8x32xf32>
    %289 = vector.extract_strided_slice %84 {offsets = [40, 0], sizes = [8, 32], strides = [1, 1]} : vector<64x32xf32> to vector<8x32xf32>
    %290 = vector.extract_strided_slice %87 {offsets = [40, 0], sizes = [8, 32], strides = [1, 1]} : vector<64x32xf32> to vector<8x32xf32>
    %cst_144 = arith.constant dense<0.000000e+00> : vector<8x32xf32>
    %291 = tpu.matmul %286, %1, %cst_144 {dimension_numbers = #tpu.dot_dimension_numbers<[1], [0], [0], [1], [0, 0, 1, 1], [], []>} : vector<8x32xf32>, vector<32x32xf32>, vector<8x32xf32> -> vector<8x32xf32>
    %292 = arith.addf %287, %291 : vector<8x32xf32>
    %293 = arith.addf %292, %27 : vector<8x32xf32>
    %cst_145 = arith.constant dense<0.000000e+00> : vector<8x32xf32>
    %294 = tpu.matmul %286, %3, %cst_145 {dimension_numbers = #tpu.dot_dimension_numbers<[1], [0], [0], [1], [0, 0, 1, 1], [], []>} : vector<8x32xf32>, vector<32x32xf32>, vector<8x32xf32> -> vector<8x32xf32>
    %295 = arith.addf %288, %294 : vector<8x32xf32>
    %296 = arith.addf %295, %31 : vector<8x32xf32>
    %cst_146 = arith.constant dense<0.000000e+00> : vector<8x32xf32>
    %297 = tpu.matmul %286, %5, %cst_146 {dimension_numbers = #tpu.dot_dimension_numbers<[1], [0], [0], [1], [0, 0, 1, 1], [], []>} : vector<8x32xf32>, vector<32x32xf32>, vector<8x32xf32> -> vector<8x32xf32>
    %298 = arith.addf %289, %297 : vector<8x32xf32>
    %299 = arith.addf %298, %35 : vector<8x32xf32>
    %cst_147 = arith.constant dense<0.000000e+00> : vector<8x32xf32>
    %300 = tpu.matmul %286, %7, %cst_147 {dimension_numbers = #tpu.dot_dimension_numbers<[1], [0], [0], [1], [0, 0, 1, 1], [], []>} : vector<8x32xf32>, vector<32x32xf32>, vector<8x32xf32> -> vector<8x32xf32>
    %301 = arith.addf %290, %300 : vector<8x32xf32>
    %302 = arith.addf %301, %39 : vector<8x32xf32>
    %303 = arith.negf %293 : vector<8x32xf32>
    %304 = math.exp %303 : vector<8x32xf32>
    %cst_148 = arith.constant 1.000000e+00 : f32
    %305 = vector.broadcast %cst_148 : f32 to vector<8x32xf32>
    %306 = arith.addf %305, %304 : vector<8x32xf32>
    %307 = arith.divf %305, %306 : vector<8x32xf32>
    %308 = arith.negf %296 : vector<8x32xf32>
    %309 = math.exp %308 : vector<8x32xf32>
    %cst_149 = arith.constant 1.000000e+00 : f32
    %310 = vector.broadcast %cst_149 : f32 to vector<8x32xf32>
    %311 = arith.addf %310, %309 : vector<8x32xf32>
    %312 = arith.divf %310, %311 : vector<8x32xf32>
    %313 = math.tanh %299 : vector<8x32xf32>
    %314 = arith.negf %302 : vector<8x32xf32>
    %315 = math.exp %314 : vector<8x32xf32>
    %cst_150 = arith.constant 1.000000e+00 : f32
    %316 = vector.broadcast %cst_150 : f32 to vector<8x32xf32>
    %317 = arith.addf %316, %315 : vector<8x32xf32>
    %318 = arith.divf %316, %317 : vector<8x32xf32>
    %319 = arith.mulf %312, %284 : vector<8x32xf32>
    %320 = arith.mulf %307, %313 : vector<8x32xf32>
    %321 = arith.addf %319, %320 : vector<8x32xf32>
    %322 = math.tanh %321 : vector<8x32xf32>
    %323 = arith.mulf %318, %322 : vector<8x32xf32>
    %324 = vector.extract_strided_slice %78 {offsets = [48, 0], sizes = [8, 32], strides = [1, 1]} : vector<64x32xf32> to vector<8x32xf32>
    %325 = vector.extract_strided_slice %81 {offsets = [48, 0], sizes = [8, 32], strides = [1, 1]} : vector<64x32xf32> to vector<8x32xf32>
    %326 = vector.extract_strided_slice %84 {offsets = [48, 0], sizes = [8, 32], strides = [1, 1]} : vector<64x32xf32> to vector<8x32xf32>
    %327 = vector.extract_strided_slice %87 {offsets = [48, 0], sizes = [8, 32], strides = [1, 1]} : vector<64x32xf32> to vector<8x32xf32>
    %cst_151 = arith.constant dense<0.000000e+00> : vector<8x32xf32>
    %328 = tpu.matmul %323, %1, %cst_151 {dimension_numbers = #tpu.dot_dimension_numbers<[1], [0], [0], [1], [0, 0, 1, 1], [], []>} : vector<8x32xf32>, vector<32x32xf32>, vector<8x32xf32> -> vector<8x32xf32>
    %329 = arith.addf %324, %328 : vector<8x32xf32>
    %330 = arith.addf %329, %27 : vector<8x32xf32>
    %cst_152 = arith.constant dense<0.000000e+00> : vector<8x32xf32>
    %331 = tpu.matmul %323, %3, %cst_152 {dimension_numbers = #tpu.dot_dimension_numbers<[1], [0], [0], [1], [0, 0, 1, 1], [], []>} : vector<8x32xf32>, vector<32x32xf32>, vector<8x32xf32> -> vector<8x32xf32>
    %332 = arith.addf %325, %331 : vector<8x32xf32>
    %333 = arith.addf %332, %31 : vector<8x32xf32>
    %cst_153 = arith.constant dense<0.000000e+00> : vector<8x32xf32>
    %334 = tpu.matmul %323, %5, %cst_153 {dimension_numbers = #tpu.dot_dimension_numbers<[1], [0], [0], [1], [0, 0, 1, 1], [], []>} : vector<8x32xf32>, vector<32x32xf32>, vector<8x32xf32> -> vector<8x32xf32>
    %335 = arith.addf %326, %334 : vector<8x32xf32>
    %336 = arith.addf %335, %35 : vector<8x32xf32>
    %cst_154 = arith.constant dense<0.000000e+00> : vector<8x32xf32>
    %337 = tpu.matmul %323, %7, %cst_154 {dimension_numbers = #tpu.dot_dimension_numbers<[1], [0], [0], [1], [0, 0, 1, 1], [], []>} : vector<8x32xf32>, vector<32x32xf32>, vector<8x32xf32> -> vector<8x32xf32>
    %338 = arith.addf %327, %337 : vector<8x32xf32>
    %339 = arith.addf %338, %39 : vector<8x32xf32>
    %340 = arith.negf %330 : vector<8x32xf32>
    %341 = math.exp %340 : vector<8x32xf32>
    %cst_155 = arith.constant 1.000000e+00 : f32
    %342 = vector.broadcast %cst_155 : f32 to vector<8x32xf32>
    %343 = arith.addf %342, %341 : vector<8x32xf32>
    %344 = arith.divf %342, %343 : vector<8x32xf32>
    %345 = arith.negf %333 : vector<8x32xf32>
    %346 = math.exp %345 : vector<8x32xf32>
    %cst_156 = arith.constant 1.000000e+00 : f32
    %347 = vector.broadcast %cst_156 : f32 to vector<8x32xf32>
    %348 = arith.addf %347, %346 : vector<8x32xf32>
    %349 = arith.divf %347, %348 : vector<8x32xf32>
    %350 = math.tanh %336 : vector<8x32xf32>
    %351 = arith.negf %339 : vector<8x32xf32>
    %352 = math.exp %351 : vector<8x32xf32>
    %cst_157 = arith.constant 1.000000e+00 : f32
    %353 = vector.broadcast %cst_157 : f32 to vector<8x32xf32>
    %354 = arith.addf %353, %352 : vector<8x32xf32>
    %355 = arith.divf %353, %354 : vector<8x32xf32>
    %356 = arith.mulf %349, %321 : vector<8x32xf32>
    %357 = arith.mulf %344, %350 : vector<8x32xf32>
    %358 = arith.addf %356, %357 : vector<8x32xf32>
    %359 = math.tanh %358 : vector<8x32xf32>
    %360 = arith.mulf %355, %359 : vector<8x32xf32>
    %361 = vector.extract_strided_slice %78 {offsets = [56, 0], sizes = [8, 32], strides = [1, 1]} : vector<64x32xf32> to vector<8x32xf32>
    %362 = vector.extract_strided_slice %81 {offsets = [56, 0], sizes = [8, 32], strides = [1, 1]} : vector<64x32xf32> to vector<8x32xf32>
    %363 = vector.extract_strided_slice %84 {offsets = [56, 0], sizes = [8, 32], strides = [1, 1]} : vector<64x32xf32> to vector<8x32xf32>
    %364 = vector.extract_strided_slice %87 {offsets = [56, 0], sizes = [8, 32], strides = [1, 1]} : vector<64x32xf32> to vector<8x32xf32>
    %cst_158 = arith.constant dense<0.000000e+00> : vector<8x32xf32>
    %365 = tpu.matmul %360, %1, %cst_158 {dimension_numbers = #tpu.dot_dimension_numbers<[1], [0], [0], [1], [0, 0, 1, 1], [], []>} : vector<8x32xf32>, vector<32x32xf32>, vector<8x32xf32> -> vector<8x32xf32>
    %366 = arith.addf %361, %365 : vector<8x32xf32>
    %367 = arith.addf %366, %27 : vector<8x32xf32>
    %cst_159 = arith.constant dense<0.000000e+00> : vector<8x32xf32>
    %368 = tpu.matmul %360, %3, %cst_159 {dimension_numbers = #tpu.dot_dimension_numbers<[1], [0], [0], [1], [0, 0, 1, 1], [], []>} : vector<8x32xf32>, vector<32x32xf32>, vector<8x32xf32> -> vector<8x32xf32>
    %369 = arith.addf %362, %368 : vector<8x32xf32>
    %370 = arith.addf %369, %31 : vector<8x32xf32>
    %cst_160 = arith.constant dense<0.000000e+00> : vector<8x32xf32>
    %371 = tpu.matmul %360, %5, %cst_160 {dimension_numbers = #tpu.dot_dimension_numbers<[1], [0], [0], [1], [0, 0, 1, 1], [], []>} : vector<8x32xf32>, vector<32x32xf32>, vector<8x32xf32> -> vector<8x32xf32>
    %372 = arith.addf %363, %371 : vector<8x32xf32>
    %373 = arith.addf %372, %35 : vector<8x32xf32>
    %cst_161 = arith.constant dense<0.000000e+00> : vector<8x32xf32>
    %374 = tpu.matmul %360, %7, %cst_161 {dimension_numbers = #tpu.dot_dimension_numbers<[1], [0], [0], [1], [0, 0, 1, 1], [], []>} : vector<8x32xf32>, vector<32x32xf32>, vector<8x32xf32> -> vector<8x32xf32>
    %375 = arith.addf %364, %374 : vector<8x32xf32>
    %376 = arith.addf %375, %39 : vector<8x32xf32>
    %377 = arith.negf %367 : vector<8x32xf32>
    %378 = math.exp %377 : vector<8x32xf32>
    %cst_162 = arith.constant 1.000000e+00 : f32
    %379 = vector.broadcast %cst_162 : f32 to vector<8x32xf32>
    %380 = arith.addf %379, %378 : vector<8x32xf32>
    %381 = arith.divf %379, %380 : vector<8x32xf32>
    %382 = arith.negf %370 : vector<8x32xf32>
    %383 = math.exp %382 : vector<8x32xf32>
    %cst_163 = arith.constant 1.000000e+00 : f32
    %384 = vector.broadcast %cst_163 : f32 to vector<8x32xf32>
    %385 = arith.addf %384, %383 : vector<8x32xf32>
    %386 = arith.divf %384, %385 : vector<8x32xf32>
    %387 = math.tanh %373 : vector<8x32xf32>
    %388 = arith.negf %376 : vector<8x32xf32>
    %389 = math.exp %388 : vector<8x32xf32>
    %cst_164 = arith.constant 1.000000e+00 : f32
    %390 = vector.broadcast %cst_164 : f32 to vector<8x32xf32>
    %391 = arith.addf %390, %389 : vector<8x32xf32>
    %392 = arith.divf %390, %391 : vector<8x32xf32>
    %393 = arith.mulf %386, %358 : vector<8x32xf32>
    %394 = arith.mulf %381, %387 : vector<8x32xf32>
    %395 = arith.addf %393, %394 : vector<8x32xf32>
    %396 = math.tanh %395 : vector<8x32xf32>
    %397 = arith.mulf %392, %396 : vector<8x32xf32>
    %cst_165 = arith.constant 0.000000e+00 : f32
    %398 = vector.broadcast %cst_165 : f32 to vector<8x32xf32>
    %cst_166 = arith.constant dense<0.000000e+00> : vector<8x32xf32>
    %399 = tpu.matmul %397, %9, %cst_166 {dimension_numbers = #tpu.dot_dimension_numbers<[1], [0], [0], [1], [0, 0, 1, 1], [], []>} : vector<8x32xf32>, vector<32x32xf32>, vector<8x32xf32> -> vector<8x32xf32>
    %400 = arith.addf %398, %399 : vector<8x32xf32>
    %401 = arith.addf %400, %43 : vector<8x32xf32>
    %cst_167 = arith.constant dense<0.000000e+00> : vector<8x32xf32>
    %402 = tpu.matmul %397, %11, %cst_167 {dimension_numbers = #tpu.dot_dimension_numbers<[1], [0], [0], [1], [0, 0, 1, 1], [], []>} : vector<8x32xf32>, vector<32x32xf32>, vector<8x32xf32> -> vector<8x32xf32>
    %403 = arith.addf %398, %402 : vector<8x32xf32>
    %404 = arith.addf %403, %47 : vector<8x32xf32>
    %cst_168 = arith.constant dense<0.000000e+00> : vector<8x32xf32>
    %405 = tpu.matmul %397, %13, %cst_168 {dimension_numbers = #tpu.dot_dimension_numbers<[1], [0], [0], [1], [0, 0, 1, 1], [], []>} : vector<8x32xf32>, vector<32x32xf32>, vector<8x32xf32> -> vector<8x32xf32>
    %406 = arith.addf %398, %405 : vector<8x32xf32>
    %407 = arith.addf %406, %51 : vector<8x32xf32>
    %cst_169 = arith.constant dense<0.000000e+00> : vector<8x32xf32>
    %408 = tpu.matmul %397, %15, %cst_169 {dimension_numbers = #tpu.dot_dimension_numbers<[1], [0], [0], [1], [0, 0, 1, 1], [], []>} : vector<8x32xf32>, vector<32x32xf32>, vector<8x32xf32> -> vector<8x32xf32>
    %409 = arith.addf %398, %408 : vector<8x32xf32>
    %410 = arith.addf %409, %55 : vector<8x32xf32>
    %411 = arith.negf %401 : vector<8x32xf32>
    %412 = math.exp %411 : vector<8x32xf32>
    %cst_170 = arith.constant 1.000000e+00 : f32
    %413 = vector.broadcast %cst_170 : f32 to vector<8x32xf32>
    %414 = arith.addf %413, %412 : vector<8x32xf32>
    %415 = arith.divf %413, %414 : vector<8x32xf32>
    %416 = arith.negf %404 : vector<8x32xf32>
    %417 = math.exp %416 : vector<8x32xf32>
    %cst_171 = arith.constant 1.000000e+00 : f32
    %418 = vector.broadcast %cst_171 : f32 to vector<8x32xf32>
    %419 = arith.addf %418, %417 : vector<8x32xf32>
    %420 = arith.divf %418, %419 : vector<8x32xf32>
    %421 = math.tanh %407 : vector<8x32xf32>
    %422 = arith.negf %410 : vector<8x32xf32>
    %423 = math.exp %422 : vector<8x32xf32>
    %cst_172 = arith.constant 1.000000e+00 : f32
    %424 = vector.broadcast %cst_172 : f32 to vector<8x32xf32>
    %425 = arith.addf %424, %423 : vector<8x32xf32>
    %426 = arith.divf %424, %425 : vector<8x32xf32>
    %427 = arith.mulf %420, %395 : vector<8x32xf32>
    %428 = arith.mulf %415, %421 : vector<8x32xf32>
    %429 = arith.addf %427, %428 : vector<8x32xf32>
    %430 = math.tanh %429 : vector<8x32xf32>
    %431 = arith.mulf %426, %430 : vector<8x32xf32>
    %c1_173 = arith.constant 1 : index
    %432 = memref.load %arg1[%c1_173] : memref<8xi32, #tpu.memory_space<smem>>
    %c0_i32 = arith.constant 0 : i32
    %433 = arith.cmpi ne, %432, %c0_i32 : i32
    %434 = vector.extract_strided_slice %90 {offsets = [8, 0], sizes = [8, 32], strides = [1, 1]} : vector<64x32xf32> to vector<8x32xf32>
    %cst_174 = arith.constant dense<0.000000e+00> : vector<8x32xf32>
    %435 = tpu.matmul %431, %17, %cst_174 {dimension_numbers = #tpu.dot_dimension_numbers<[1], [0], [0], [1], [0, 0, 1, 1], [], []>} : vector<8x32xf32>, vector<32x32xf32>, vector<8x32xf32> -> vector<8x32xf32>
    %436 = arith.addf %435, %59 : vector<8x32xf32>
    %437 = arith.select %433, %434, %436 : vector<8x32xf32>
    %438 = vector.extract_strided_slice %93 {offsets = [8, 0], sizes = [8, 32], strides = [1, 1]} : vector<64x32xf32> to vector<8x32xf32>
    %cst_175 = arith.constant dense<0.000000e+00> : vector<8x32xf32>
    %439 = tpu.matmul %431, %19, %cst_175 {dimension_numbers = #tpu.dot_dimension_numbers<[1], [0], [0], [1], [0, 0, 1, 1], [], []>} : vector<8x32xf32>, vector<32x32xf32>, vector<8x32xf32> -> vector<8x32xf32>
    %440 = arith.addf %439, %63 : vector<8x32xf32>
    %441 = arith.select %433, %438, %440 : vector<8x32xf32>
    %442 = vector.extract_strided_slice %96 {offsets = [8, 0], sizes = [8, 32], strides = [1, 1]} : vector<64x32xf32> to vector<8x32xf32>
    %cst_176 = arith.constant dense<0.000000e+00> : vector<8x32xf32>
    %443 = tpu.matmul %431, %21, %cst_176 {dimension_numbers = #tpu.dot_dimension_numbers<[1], [0], [0], [1], [0, 0, 1, 1], [], []>} : vector<8x32xf32>, vector<32x32xf32>, vector<8x32xf32> -> vector<8x32xf32>
    %444 = arith.addf %443, %67 : vector<8x32xf32>
    %445 = arith.select %433, %442, %444 : vector<8x32xf32>
    %446 = vector.extract_strided_slice %99 {offsets = [8, 0], sizes = [8, 32], strides = [1, 1]} : vector<64x32xf32> to vector<8x32xf32>
    %cst_177 = arith.constant dense<0.000000e+00> : vector<8x32xf32>
    %447 = tpu.matmul %431, %23, %cst_177 {dimension_numbers = #tpu.dot_dimension_numbers<[1], [0], [0], [1], [0, 0, 1, 1], [], []>} : vector<8x32xf32>, vector<32x32xf32>, vector<8x32xf32> -> vector<8x32xf32>
    %448 = arith.addf %447, %71 : vector<8x32xf32>
    %449 = arith.select %433, %446, %448 : vector<8x32xf32>
    %cst_178 = arith.constant dense<0.000000e+00> : vector<8x32xf32>
    %450 = tpu.matmul %431, %9, %cst_178 {dimension_numbers = #tpu.dot_dimension_numbers<[1], [0], [0], [1], [0, 0, 1, 1], [], []>} : vector<8x32xf32>, vector<32x32xf32>, vector<8x32xf32> -> vector<8x32xf32>
    %451 = arith.addf %437, %450 : vector<8x32xf32>
    %452 = arith.addf %451, %43 : vector<8x32xf32>
    %cst_179 = arith.constant dense<0.000000e+00> : vector<8x32xf32>
    %453 = tpu.matmul %431, %11, %cst_179 {dimension_numbers = #tpu.dot_dimension_numbers<[1], [0], [0], [1], [0, 0, 1, 1], [], []>} : vector<8x32xf32>, vector<32x32xf32>, vector<8x32xf32> -> vector<8x32xf32>
    %454 = arith.addf %441, %453 : vector<8x32xf32>
    %455 = arith.addf %454, %47 : vector<8x32xf32>
    %cst_180 = arith.constant dense<0.000000e+00> : vector<8x32xf32>
    %456 = tpu.matmul %431, %13, %cst_180 {dimension_numbers = #tpu.dot_dimension_numbers<[1], [0], [0], [1], [0, 0, 1, 1], [], []>} : vector<8x32xf32>, vector<32x32xf32>, vector<8x32xf32> -> vector<8x32xf32>
    %457 = arith.addf %445, %456 : vector<8x32xf32>
    %458 = arith.addf %457, %51 : vector<8x32xf32>
    %cst_181 = arith.constant dense<0.000000e+00> : vector<8x32xf32>
    %459 = tpu.matmul %431, %15, %cst_181 {dimension_numbers = #tpu.dot_dimension_numbers<[1], [0], [0], [1], [0, 0, 1, 1], [], []>} : vector<8x32xf32>, vector<32x32xf32>, vector<8x32xf32> -> vector<8x32xf32>
    %460 = arith.addf %449, %459 : vector<8x32xf32>
    %461 = arith.addf %460, %55 : vector<8x32xf32>
    %462 = arith.negf %452 : vector<8x32xf32>
    %463 = math.exp %462 : vector<8x32xf32>
    %cst_182 = arith.constant 1.000000e+00 : f32
    %464 = vector.broadcast %cst_182 : f32 to vector<8x32xf32>
    %465 = arith.addf %464, %463 : vector<8x32xf32>
    %466 = arith.divf %464, %465 : vector<8x32xf32>
    %467 = arith.negf %455 : vector<8x32xf32>
    %468 = math.exp %467 : vector<8x32xf32>
    %cst_183 = arith.constant 1.000000e+00 : f32
    %469 = vector.broadcast %cst_183 : f32 to vector<8x32xf32>
    %470 = arith.addf %469, %468 : vector<8x32xf32>
    %471 = arith.divf %469, %470 : vector<8x32xf32>
    %472 = math.tanh %458 : vector<8x32xf32>
    %473 = arith.negf %461 : vector<8x32xf32>
    %474 = math.exp %473 : vector<8x32xf32>
    %cst_184 = arith.constant 1.000000e+00 : f32
    %475 = vector.broadcast %cst_184 : f32 to vector<8x32xf32>
    %476 = arith.addf %475, %474 : vector<8x32xf32>
    %477 = arith.divf %475, %476 : vector<8x32xf32>
    %478 = arith.mulf %471, %429 : vector<8x32xf32>
    %479 = arith.mulf %466, %472 : vector<8x32xf32>
    %480 = arith.addf %478, %479 : vector<8x32xf32>
    %481 = math.tanh %480 : vector<8x32xf32>
    %482 = arith.mulf %477, %481 : vector<8x32xf32>
    %c2_185 = arith.constant 2 : index
    %483 = memref.load %arg1[%c2_185] : memref<8xi32, #tpu.memory_space<smem>>
    %c0_i32_186 = arith.constant 0 : i32
    %484 = arith.cmpi ne, %483, %c0_i32_186 : i32
    %485 = vector.extract_strided_slice %90 {offsets = [16, 0], sizes = [8, 32], strides = [1, 1]} : vector<64x32xf32> to vector<8x32xf32>
    %cst_187 = arith.constant dense<0.000000e+00> : vector<8x32xf32>
    %486 = tpu.matmul %482, %17, %cst_187 {dimension_numbers = #tpu.dot_dimension_numbers<[1], [0], [0], [1], [0, 0, 1, 1], [], []>} : vector<8x32xf32>, vector<32x32xf32>, vector<8x32xf32> -> vector<8x32xf32>
    %487 = arith.addf %486, %59 : vector<8x32xf32>
    %488 = arith.select %484, %485, %487 : vector<8x32xf32>
    %489 = vector.extract_strided_slice %93 {offsets = [16, 0], sizes = [8, 32], strides = [1, 1]} : vector<64x32xf32> to vector<8x32xf32>
    %cst_188 = arith.constant dense<0.000000e+00> : vector<8x32xf32>
    %490 = tpu.matmul %482, %19, %cst_188 {dimension_numbers = #tpu.dot_dimension_numbers<[1], [0], [0], [1], [0, 0, 1, 1], [], []>} : vector<8x32xf32>, vector<32x32xf32>, vector<8x32xf32> -> vector<8x32xf32>
    %491 = arith.addf %490, %63 : vector<8x32xf32>
    %492 = arith.select %484, %489, %491 : vector<8x32xf32>
    %493 = vector.extract_strided_slice %96 {offsets = [16, 0], sizes = [8, 32], strides = [1, 1]} : vector<64x32xf32> to vector<8x32xf32>
    %cst_189 = arith.constant dense<0.000000e+00> : vector<8x32xf32>
    %494 = tpu.matmul %482, %21, %cst_189 {dimension_numbers = #tpu.dot_dimension_numbers<[1], [0], [0], [1], [0, 0, 1, 1], [], []>} : vector<8x32xf32>, vector<32x32xf32>, vector<8x32xf32> -> vector<8x32xf32>
    %495 = arith.addf %494, %67 : vector<8x32xf32>
    %496 = arith.select %484, %493, %495 : vector<8x32xf32>
    %497 = vector.extract_strided_slice %99 {offsets = [16, 0], sizes = [8, 32], strides = [1, 1]} : vector<64x32xf32> to vector<8x32xf32>
    %cst_190 = arith.constant dense<0.000000e+00> : vector<8x32xf32>
    %498 = tpu.matmul %482, %23, %cst_190 {dimension_numbers = #tpu.dot_dimension_numbers<[1], [0], [0], [1], [0, 0, 1, 1], [], []>} : vector<8x32xf32>, vector<32x32xf32>, vector<8x32xf32> -> vector<8x32xf32>
    %499 = arith.addf %498, %71 : vector<8x32xf32>
    %500 = arith.select %484, %497, %499 : vector<8x32xf32>
    %cst_191 = arith.constant dense<0.000000e+00> : vector<8x32xf32>
    %501 = tpu.matmul %482, %9, %cst_191 {dimension_numbers = #tpu.dot_dimension_numbers<[1], [0], [0], [1], [0, 0, 1, 1], [], []>} : vector<8x32xf32>, vector<32x32xf32>, vector<8x32xf32> -> vector<8x32xf32>
    %502 = arith.addf %488, %501 : vector<8x32xf32>
    %503 = arith.addf %502, %43 : vector<8x32xf32>
    %cst_192 = arith.constant dense<0.000000e+00> : vector<8x32xf32>
    %504 = tpu.matmul %482, %11, %cst_192 {dimension_numbers = #tpu.dot_dimension_numbers<[1], [0], [0], [1], [0, 0, 1, 1], [], []>} : vector<8x32xf32>, vector<32x32xf32>, vector<8x32xf32> -> vector<8x32xf32>
    %505 = arith.addf %492, %504 : vector<8x32xf32>
    %506 = arith.addf %505, %47 : vector<8x32xf32>
    %cst_193 = arith.constant dense<0.000000e+00> : vector<8x32xf32>
    %507 = tpu.matmul %482, %13, %cst_193 {dimension_numbers = #tpu.dot_dimension_numbers<[1], [0], [0], [1], [0, 0, 1, 1], [], []>} : vector<8x32xf32>, vector<32x32xf32>, vector<8x32xf32> -> vector<8x32xf32>
    %508 = arith.addf %496, %507 : vector<8x32xf32>
    %509 = arith.addf %508, %51 : vector<8x32xf32>
    %cst_194 = arith.constant dense<0.000000e+00> : vector<8x32xf32>
    %510 = tpu.matmul %482, %15, %cst_194 {dimension_numbers = #tpu.dot_dimension_numbers<[1], [0], [0], [1], [0, 0, 1, 1], [], []>} : vector<8x32xf32>, vector<32x32xf32>, vector<8x32xf32> -> vector<8x32xf32>
    %511 = arith.addf %500, %510 : vector<8x32xf32>
    %512 = arith.addf %511, %55 : vector<8x32xf32>
    %513 = arith.negf %503 : vector<8x32xf32>
    %514 = math.exp %513 : vector<8x32xf32>
    %cst_195 = arith.constant 1.000000e+00 : f32
    %515 = vector.broadcast %cst_195 : f32 to vector<8x32xf32>
    %516 = arith.addf %515, %514 : vector<8x32xf32>
    %517 = arith.divf %515, %516 : vector<8x32xf32>
    %518 = arith.negf %506 : vector<8x32xf32>
    %519 = math.exp %518 : vector<8x32xf32>
    %cst_196 = arith.constant 1.000000e+00 : f32
    %520 = vector.broadcast %cst_196 : f32 to vector<8x32xf32>
    %521 = arith.addf %520, %519 : vector<8x32xf32>
    %522 = arith.divf %520, %521 : vector<8x32xf32>
    %523 = math.tanh %509 : vector<8x32xf32>
    %524 = arith.negf %512 : vector<8x32xf32>
    %525 = math.exp %524 : vector<8x32xf32>
    %cst_197 = arith.constant 1.000000e+00 : f32
    %526 = vector.broadcast %cst_197 : f32 to vector<8x32xf32>
    %527 = arith.addf %526, %525 : vector<8x32xf32>
    %528 = arith.divf %526, %527 : vector<8x32xf32>
    %529 = arith.mulf %522, %480 : vector<8x32xf32>
    %530 = arith.mulf %517, %523 : vector<8x32xf32>
    %531 = arith.addf %529, %530 : vector<8x32xf32>
    %532 = math.tanh %531 : vector<8x32xf32>
    %533 = arith.mulf %528, %532 : vector<8x32xf32>
    %c3_198 = arith.constant 3 : index
    %534 = memref.load %arg1[%c3_198] : memref<8xi32, #tpu.memory_space<smem>>
    %c0_i32_199 = arith.constant 0 : i32
    %535 = arith.cmpi ne, %534, %c0_i32_199 : i32
    %536 = vector.extract_strided_slice %90 {offsets = [24, 0], sizes = [8, 32], strides = [1, 1]} : vector<64x32xf32> to vector<8x32xf32>
    %cst_200 = arith.constant dense<0.000000e+00> : vector<8x32xf32>
    %537 = tpu.matmul %533, %17, %cst_200 {dimension_numbers = #tpu.dot_dimension_numbers<[1], [0], [0], [1], [0, 0, 1, 1], [], []>} : vector<8x32xf32>, vector<32x32xf32>, vector<8x32xf32> -> vector<8x32xf32>
    %538 = arith.addf %537, %59 : vector<8x32xf32>
    %539 = arith.select %535, %536, %538 : vector<8x32xf32>
    %540 = vector.extract_strided_slice %93 {offsets = [24, 0], sizes = [8, 32], strides = [1, 1]} : vector<64x32xf32> to vector<8x32xf32>
    %cst_201 = arith.constant dense<0.000000e+00> : vector<8x32xf32>
    %541 = tpu.matmul %533, %19, %cst_201 {dimension_numbers = #tpu.dot_dimension_numbers<[1], [0], [0], [1], [0, 0, 1, 1], [], []>} : vector<8x32xf32>, vector<32x32xf32>, vector<8x32xf32> -> vector<8x32xf32>
    %542 = arith.addf %541, %63 : vector<8x32xf32>
    %543 = arith.select %535, %540, %542 : vector<8x32xf32>
    %544 = vector.extract_strided_slice %96 {offsets = [24, 0], sizes = [8, 32], strides = [1, 1]} : vector<64x32xf32> to vector<8x32xf32>
    %cst_202 = arith.constant dense<0.000000e+00> : vector<8x32xf32>
    %545 = tpu.matmul %533, %21, %cst_202 {dimension_numbers = #tpu.dot_dimension_numbers<[1], [0], [0], [1], [0, 0, 1, 1], [], []>} : vector<8x32xf32>, vector<32x32xf32>, vector<8x32xf32> -> vector<8x32xf32>
    %546 = arith.addf %545, %67 : vector<8x32xf32>
    %547 = arith.select %535, %544, %546 : vector<8x32xf32>
    %548 = vector.extract_strided_slice %99 {offsets = [24, 0], sizes = [8, 32], strides = [1, 1]} : vector<64x32xf32> to vector<8x32xf32>
    %cst_203 = arith.constant dense<0.000000e+00> : vector<8x32xf32>
    %549 = tpu.matmul %533, %23, %cst_203 {dimension_numbers = #tpu.dot_dimension_numbers<[1], [0], [0], [1], [0, 0, 1, 1], [], []>} : vector<8x32xf32>, vector<32x32xf32>, vector<8x32xf32> -> vector<8x32xf32>
    %550 = arith.addf %549, %71 : vector<8x32xf32>
    %551 = arith.select %535, %548, %550 : vector<8x32xf32>
    %cst_204 = arith.constant dense<0.000000e+00> : vector<8x32xf32>
    %552 = tpu.matmul %533, %9, %cst_204 {dimension_numbers = #tpu.dot_dimension_numbers<[1], [0], [0], [1], [0, 0, 1, 1], [], []>} : vector<8x32xf32>, vector<32x32xf32>, vector<8x32xf32> -> vector<8x32xf32>
    %553 = arith.addf %539, %552 : vector<8x32xf32>
    %554 = arith.addf %553, %43 : vector<8x32xf32>
    %cst_205 = arith.constant dense<0.000000e+00> : vector<8x32xf32>
    %555 = tpu.matmul %533, %11, %cst_205 {dimension_numbers = #tpu.dot_dimension_numbers<[1], [0], [0], [1], [0, 0, 1, 1], [], []>} : vector<8x32xf32>, vector<32x32xf32>, vector<8x32xf32> -> vector<8x32xf32>
    %556 = arith.addf %543, %555 : vector<8x32xf32>
    %557 = arith.addf %556, %47 : vector<8x32xf32>
    %cst_206 = arith.constant dense<0.000000e+00> : vector<8x32xf32>
    %558 = tpu.matmul %533, %13, %cst_206 {dimension_numbers = #tpu.dot_dimension_numbers<[1], [0], [0], [1], [0, 0, 1, 1], [], []>} : vector<8x32xf32>, vector<32x32xf32>, vector<8x32xf32> -> vector<8x32xf32>
    %559 = arith.addf %547, %558 : vector<8x32xf32>
    %560 = arith.addf %559, %51 : vector<8x32xf32>
    %cst_207 = arith.constant dense<0.000000e+00> : vector<8x32xf32>
    %561 = tpu.matmul %533, %15, %cst_207 {dimension_numbers = #tpu.dot_dimension_numbers<[1], [0], [0], [1], [0, 0, 1, 1], [], []>} : vector<8x32xf32>, vector<32x32xf32>, vector<8x32xf32> -> vector<8x32xf32>
    %562 = arith.addf %551, %561 : vector<8x32xf32>
    %563 = arith.addf %562, %55 : vector<8x32xf32>
    %564 = arith.negf %554 : vector<8x32xf32>
    %565 = math.exp %564 : vector<8x32xf32>
    %cst_208 = arith.constant 1.000000e+00 : f32
    %566 = vector.broadcast %cst_208 : f32 to vector<8x32xf32>
    %567 = arith.addf %566, %565 : vector<8x32xf32>
    %568 = arith.divf %566, %567 : vector<8x32xf32>
    %569 = arith.negf %557 : vector<8x32xf32>
    %570 = math.exp %569 : vector<8x32xf32>
    %cst_209 = arith.constant 1.000000e+00 : f32
    %571 = vector.broadcast %cst_209 : f32 to vector<8x32xf32>
    %572 = arith.addf %571, %570 : vector<8x32xf32>
    %573 = arith.divf %571, %572 : vector<8x32xf32>
    %574 = math.tanh %560 : vector<8x32xf32>
    %575 = arith.negf %563 : vector<8x32xf32>
    %576 = math.exp %575 : vector<8x32xf32>
    %cst_210 = arith.constant 1.000000e+00 : f32
    %577 = vector.broadcast %cst_210 : f32 to vector<8x32xf32>
    %578 = arith.addf %577, %576 : vector<8x32xf32>
    %579 = arith.divf %577, %578 : vector<8x32xf32>
    %580 = arith.mulf %573, %531 : vector<8x32xf32>
    %581 = arith.mulf %568, %574 : vector<8x32xf32>
    %582 = arith.addf %580, %581 : vector<8x32xf32>
    %583 = math.tanh %582 : vector<8x32xf32>
    %584 = arith.mulf %579, %583 : vector<8x32xf32>
    %c4 = arith.constant 4 : index
    %585 = memref.load %arg1[%c4] : memref<8xi32, #tpu.memory_space<smem>>
    %c0_i32_211 = arith.constant 0 : i32
    %586 = arith.cmpi ne, %585, %c0_i32_211 : i32
    %587 = vector.extract_strided_slice %90 {offsets = [32, 0], sizes = [8, 32], strides = [1, 1]} : vector<64x32xf32> to vector<8x32xf32>
    %cst_212 = arith.constant dense<0.000000e+00> : vector<8x32xf32>
    %588 = tpu.matmul %584, %17, %cst_212 {dimension_numbers = #tpu.dot_dimension_numbers<[1], [0], [0], [1], [0, 0, 1, 1], [], []>} : vector<8x32xf32>, vector<32x32xf32>, vector<8x32xf32> -> vector<8x32xf32>
    %589 = arith.addf %588, %59 : vector<8x32xf32>
    %590 = arith.select %586, %587, %589 : vector<8x32xf32>
    %591 = vector.extract_strided_slice %93 {offsets = [32, 0], sizes = [8, 32], strides = [1, 1]} : vector<64x32xf32> to vector<8x32xf32>
    %cst_213 = arith.constant dense<0.000000e+00> : vector<8x32xf32>
    %592 = tpu.matmul %584, %19, %cst_213 {dimension_numbers = #tpu.dot_dimension_numbers<[1], [0], [0], [1], [0, 0, 1, 1], [], []>} : vector<8x32xf32>, vector<32x32xf32>, vector<8x32xf32> -> vector<8x32xf32>
    %593 = arith.addf %592, %63 : vector<8x32xf32>
    %594 = arith.select %586, %591, %593 : vector<8x32xf32>
    %595 = vector.extract_strided_slice %96 {offsets = [32, 0], sizes = [8, 32], strides = [1, 1]} : vector<64x32xf32> to vector<8x32xf32>
    %cst_214 = arith.constant dense<0.000000e+00> : vector<8x32xf32>
    %596 = tpu.matmul %584, %21, %cst_214 {dimension_numbers = #tpu.dot_dimension_numbers<[1], [0], [0], [1], [0, 0, 1, 1], [], []>} : vector<8x32xf32>, vector<32x32xf32>, vector<8x32xf32> -> vector<8x32xf32>
    %597 = arith.addf %596, %67 : vector<8x32xf32>
    %598 = arith.select %586, %595, %597 : vector<8x32xf32>
    %599 = vector.extract_strided_slice %99 {offsets = [32, 0], sizes = [8, 32], strides = [1, 1]} : vector<64x32xf32> to vector<8x32xf32>
    %cst_215 = arith.constant dense<0.000000e+00> : vector<8x32xf32>
    %600 = tpu.matmul %584, %23, %cst_215 {dimension_numbers = #tpu.dot_dimension_numbers<[1], [0], [0], [1], [0, 0, 1, 1], [], []>} : vector<8x32xf32>, vector<32x32xf32>, vector<8x32xf32> -> vector<8x32xf32>
    %601 = arith.addf %600, %71 : vector<8x32xf32>
    %602 = arith.select %586, %599, %601 : vector<8x32xf32>
    %cst_216 = arith.constant dense<0.000000e+00> : vector<8x32xf32>
    %603 = tpu.matmul %584, %9, %cst_216 {dimension_numbers = #tpu.dot_dimension_numbers<[1], [0], [0], [1], [0, 0, 1, 1], [], []>} : vector<8x32xf32>, vector<32x32xf32>, vector<8x32xf32> -> vector<8x32xf32>
    %604 = arith.addf %590, %603 : vector<8x32xf32>
    %605 = arith.addf %604, %43 : vector<8x32xf32>
    %cst_217 = arith.constant dense<0.000000e+00> : vector<8x32xf32>
    %606 = tpu.matmul %584, %11, %cst_217 {dimension_numbers = #tpu.dot_dimension_numbers<[1], [0], [0], [1], [0, 0, 1, 1], [], []>} : vector<8x32xf32>, vector<32x32xf32>, vector<8x32xf32> -> vector<8x32xf32>
    %607 = arith.addf %594, %606 : vector<8x32xf32>
    %608 = arith.addf %607, %47 : vector<8x32xf32>
    %cst_218 = arith.constant dense<0.000000e+00> : vector<8x32xf32>
    %609 = tpu.matmul %584, %13, %cst_218 {dimension_numbers = #tpu.dot_dimension_numbers<[1], [0], [0], [1], [0, 0, 1, 1], [], []>} : vector<8x32xf32>, vector<32x32xf32>, vector<8x32xf32> -> vector<8x32xf32>
    %610 = arith.addf %598, %609 : vector<8x32xf32>
    %611 = arith.addf %610, %51 : vector<8x32xf32>
    %cst_219 = arith.constant dense<0.000000e+00> : vector<8x32xf32>
    %612 = tpu.matmul %584, %15, %cst_219 {dimension_numbers = #tpu.dot_dimension_numbers<[1], [0], [0], [1], [0, 0, 1, 1], [], []>} : vector<8x32xf32>, vector<32x32xf32>, vector<8x32xf32> -> vector<8x32xf32>
    %613 = arith.addf %602, %612 : vector<8x32xf32>
    %614 = arith.addf %613, %55 : vector<8x32xf32>
    %615 = arith.negf %605 : vector<8x32xf32>
    %616 = math.exp %615 : vector<8x32xf32>
    %cst_220 = arith.constant 1.000000e+00 : f32
    %617 = vector.broadcast %cst_220 : f32 to vector<8x32xf32>
    %618 = arith.addf %617, %616 : vector<8x32xf32>
    %619 = arith.divf %617, %618 : vector<8x32xf32>
    %620 = arith.negf %608 : vector<8x32xf32>
    %621 = math.exp %620 : vector<8x32xf32>
    %cst_221 = arith.constant 1.000000e+00 : f32
    %622 = vector.broadcast %cst_221 : f32 to vector<8x32xf32>
    %623 = arith.addf %622, %621 : vector<8x32xf32>
    %624 = arith.divf %622, %623 : vector<8x32xf32>
    %625 = math.tanh %611 : vector<8x32xf32>
    %626 = arith.negf %614 : vector<8x32xf32>
    %627 = math.exp %626 : vector<8x32xf32>
    %cst_222 = arith.constant 1.000000e+00 : f32
    %628 = vector.broadcast %cst_222 : f32 to vector<8x32xf32>
    %629 = arith.addf %628, %627 : vector<8x32xf32>
    %630 = arith.divf %628, %629 : vector<8x32xf32>
    %631 = arith.mulf %624, %582 : vector<8x32xf32>
    %632 = arith.mulf %619, %625 : vector<8x32xf32>
    %633 = arith.addf %631, %632 : vector<8x32xf32>
    %634 = math.tanh %633 : vector<8x32xf32>
    %635 = arith.mulf %630, %634 : vector<8x32xf32>
    %c5 = arith.constant 5 : index
    %636 = memref.load %arg1[%c5] : memref<8xi32, #tpu.memory_space<smem>>
    %c0_i32_223 = arith.constant 0 : i32
    %637 = arith.cmpi ne, %636, %c0_i32_223 : i32
    %638 = vector.extract_strided_slice %90 {offsets = [40, 0], sizes = [8, 32], strides = [1, 1]} : vector<64x32xf32> to vector<8x32xf32>
    %cst_224 = arith.constant dense<0.000000e+00> : vector<8x32xf32>
    %639 = tpu.matmul %635, %17, %cst_224 {dimension_numbers = #tpu.dot_dimension_numbers<[1], [0], [0], [1], [0, 0, 1, 1], [], []>} : vector<8x32xf32>, vector<32x32xf32>, vector<8x32xf32> -> vector<8x32xf32>
    %640 = arith.addf %639, %59 : vector<8x32xf32>
    %641 = arith.select %637, %638, %640 : vector<8x32xf32>
    %642 = vector.extract_strided_slice %93 {offsets = [40, 0], sizes = [8, 32], strides = [1, 1]} : vector<64x32xf32> to vector<8x32xf32>
    %cst_225 = arith.constant dense<0.000000e+00> : vector<8x32xf32>
    %643 = tpu.matmul %635, %19, %cst_225 {dimension_numbers = #tpu.dot_dimension_numbers<[1], [0], [0], [1], [0, 0, 1, 1], [], []>} : vector<8x32xf32>, vector<32x32xf32>, vector<8x32xf32> -> vector<8x32xf32>
    %644 = arith.addf %643, %63 : vector<8x32xf32>
    %645 = arith.select %637, %642, %644 : vector<8x32xf32>
    %646 = vector.extract_strided_slice %96 {offsets = [40, 0], sizes = [8, 32], strides = [1, 1]} : vector<64x32xf32> to vector<8x32xf32>
    %cst_226 = arith.constant dense<0.000000e+00> : vector<8x32xf32>
    %647 = tpu.matmul %635, %21, %cst_226 {dimension_numbers = #tpu.dot_dimension_numbers<[1], [0], [0], [1], [0, 0, 1, 1], [], []>} : vector<8x32xf32>, vector<32x32xf32>, vector<8x32xf32> -> vector<8x32xf32>
    %648 = arith.addf %647, %67 : vector<8x32xf32>
    %649 = arith.select %637, %646, %648 : vector<8x32xf32>
    %650 = vector.extract_strided_slice %99 {offsets = [40, 0], sizes = [8, 32], strides = [1, 1]} : vector<64x32xf32> to vector<8x32xf32>
    %cst_227 = arith.constant dense<0.000000e+00> : vector<8x32xf32>
    %651 = tpu.matmul %635, %23, %cst_227 {dimension_numbers = #tpu.dot_dimension_numbers<[1], [0], [0], [1], [0, 0, 1, 1], [], []>} : vector<8x32xf32>, vector<32x32xf32>, vector<8x32xf32> -> vector<8x32xf32>
    %652 = arith.addf %651, %71 : vector<8x32xf32>
    %653 = arith.select %637, %650, %652 : vector<8x32xf32>
    %cst_228 = arith.constant dense<0.000000e+00> : vector<8x32xf32>
    %654 = tpu.matmul %635, %9, %cst_228 {dimension_numbers = #tpu.dot_dimension_numbers<[1], [0], [0], [1], [0, 0, 1, 1], [], []>} : vector<8x32xf32>, vector<32x32xf32>, vector<8x32xf32> -> vector<8x32xf32>
    %655 = arith.addf %641, %654 : vector<8x32xf32>
    %656 = arith.addf %655, %43 : vector<8x32xf32>
    %cst_229 = arith.constant dense<0.000000e+00> : vector<8x32xf32>
    %657 = tpu.matmul %635, %11, %cst_229 {dimension_numbers = #tpu.dot_dimension_numbers<[1], [0], [0], [1], [0, 0, 1, 1], [], []>} : vector<8x32xf32>, vector<32x32xf32>, vector<8x32xf32> -> vector<8x32xf32>
    %658 = arith.addf %645, %657 : vector<8x32xf32>
    %659 = arith.addf %658, %47 : vector<8x32xf32>
    %cst_230 = arith.constant dense<0.000000e+00> : vector<8x32xf32>
    %660 = tpu.matmul %635, %13, %cst_230 {dimension_numbers = #tpu.dot_dimension_numbers<[1], [0], [0], [1], [0, 0, 1, 1], [], []>} : vector<8x32xf32>, vector<32x32xf32>, vector<8x32xf32> -> vector<8x32xf32>
    %661 = arith.addf %649, %660 : vector<8x32xf32>
    %662 = arith.addf %661, %51 : vector<8x32xf32>
    %cst_231 = arith.constant dense<0.000000e+00> : vector<8x32xf32>
    %663 = tpu.matmul %635, %15, %cst_231 {dimension_numbers = #tpu.dot_dimension_numbers<[1], [0], [0], [1], [0, 0, 1, 1], [], []>} : vector<8x32xf32>, vector<32x32xf32>, vector<8x32xf32> -> vector<8x32xf32>
    %664 = arith.addf %653, %663 : vector<8x32xf32>
    %665 = arith.addf %664, %55 : vector<8x32xf32>
    %666 = arith.negf %656 : vector<8x32xf32>
    %667 = math.exp %666 : vector<8x32xf32>
    %cst_232 = arith.constant 1.000000e+00 : f32
    %668 = vector.broadcast %cst_232 : f32 to vector<8x32xf32>
    %669 = arith.addf %668, %667 : vector<8x32xf32>
    %670 = arith.divf %668, %669 : vector<8x32xf32>
    %671 = arith.negf %659 : vector<8x32xf32>
    %672 = math.exp %671 : vector<8x32xf32>
    %cst_233 = arith.constant 1.000000e+00 : f32
    %673 = vector.broadcast %cst_233 : f32 to vector<8x32xf32>
    %674 = arith.addf %673, %672 : vector<8x32xf32>
    %675 = arith.divf %673, %674 : vector<8x32xf32>
    %676 = math.tanh %662 : vector<8x32xf32>
    %677 = arith.negf %665 : vector<8x32xf32>
    %678 = math.exp %677 : vector<8x32xf32>
    %cst_234 = arith.constant 1.000000e+00 : f32
    %679 = vector.broadcast %cst_234 : f32 to vector<8x32xf32>
    %680 = arith.addf %679, %678 : vector<8x32xf32>
    %681 = arith.divf %679, %680 : vector<8x32xf32>
    %682 = arith.mulf %675, %633 : vector<8x32xf32>
    %683 = arith.mulf %670, %676 : vector<8x32xf32>
    %684 = arith.addf %682, %683 : vector<8x32xf32>
    %685 = math.tanh %684 : vector<8x32xf32>
    %686 = arith.mulf %681, %685 : vector<8x32xf32>
    %c6 = arith.constant 6 : index
    %687 = memref.load %arg1[%c6] : memref<8xi32, #tpu.memory_space<smem>>
    %c0_i32_235 = arith.constant 0 : i32
    %688 = arith.cmpi ne, %687, %c0_i32_235 : i32
    %689 = vector.extract_strided_slice %90 {offsets = [48, 0], sizes = [8, 32], strides = [1, 1]} : vector<64x32xf32> to vector<8x32xf32>
    %cst_236 = arith.constant dense<0.000000e+00> : vector<8x32xf32>
    %690 = tpu.matmul %686, %17, %cst_236 {dimension_numbers = #tpu.dot_dimension_numbers<[1], [0], [0], [1], [0, 0, 1, 1], [], []>} : vector<8x32xf32>, vector<32x32xf32>, vector<8x32xf32> -> vector<8x32xf32>
    %691 = arith.addf %690, %59 : vector<8x32xf32>
    %692 = arith.select %688, %689, %691 : vector<8x32xf32>
    %693 = vector.extract_strided_slice %93 {offsets = [48, 0], sizes = [8, 32], strides = [1, 1]} : vector<64x32xf32> to vector<8x32xf32>
    %cst_237 = arith.constant dense<0.000000e+00> : vector<8x32xf32>
    %694 = tpu.matmul %686, %19, %cst_237 {dimension_numbers = #tpu.dot_dimension_numbers<[1], [0], [0], [1], [0, 0, 1, 1], [], []>} : vector<8x32xf32>, vector<32x32xf32>, vector<8x32xf32> -> vector<8x32xf32>
    %695 = arith.addf %694, %63 : vector<8x32xf32>
    %696 = arith.select %688, %693, %695 : vector<8x32xf32>
    %697 = vector.extract_strided_slice %96 {offsets = [48, 0], sizes = [8, 32], strides = [1, 1]} : vector<64x32xf32> to vector<8x32xf32>
    %cst_238 = arith.constant dense<0.000000e+00> : vector<8x32xf32>
    %698 = tpu.matmul %686, %21, %cst_238 {dimension_numbers = #tpu.dot_dimension_numbers<[1], [0], [0], [1], [0, 0, 1, 1], [], []>} : vector<8x32xf32>, vector<32x32xf32>, vector<8x32xf32> -> vector<8x32xf32>
    %699 = arith.addf %698, %67 : vector<8x32xf32>
    %700 = arith.select %688, %697, %699 : vector<8x32xf32>
    %701 = vector.extract_strided_slice %99 {offsets = [48, 0], sizes = [8, 32], strides = [1, 1]} : vector<64x32xf32> to vector<8x32xf32>
    %cst_239 = arith.constant dense<0.000000e+00> : vector<8x32xf32>
    %702 = tpu.matmul %686, %23, %cst_239 {dimension_numbers = #tpu.dot_dimension_numbers<[1], [0], [0], [1], [0, 0, 1, 1], [], []>} : vector<8x32xf32>, vector<32x32xf32>, vector<8x32xf32> -> vector<8x32xf32>
    %703 = arith.addf %702, %71 : vector<8x32xf32>
    %704 = arith.select %688, %701, %703 : vector<8x32xf32>
    %cst_240 = arith.constant dense<0.000000e+00> : vector<8x32xf32>
    %705 = tpu.matmul %686, %9, %cst_240 {dimension_numbers = #tpu.dot_dimension_numbers<[1], [0], [0], [1], [0, 0, 1, 1], [], []>} : vector<8x32xf32>, vector<32x32xf32>, vector<8x32xf32> -> vector<8x32xf32>
    %706 = arith.addf %692, %705 : vector<8x32xf32>
    %707 = arith.addf %706, %43 : vector<8x32xf32>
    %cst_241 = arith.constant dense<0.000000e+00> : vector<8x32xf32>
    %708 = tpu.matmul %686, %11, %cst_241 {dimension_numbers = #tpu.dot_dimension_numbers<[1], [0], [0], [1], [0, 0, 1, 1], [], []>} : vector<8x32xf32>, vector<32x32xf32>, vector<8x32xf32> -> vector<8x32xf32>
    %709 = arith.addf %696, %708 : vector<8x32xf32>
    %710 = arith.addf %709, %47 : vector<8x32xf32>
    %cst_242 = arith.constant dense<0.000000e+00> : vector<8x32xf32>
    %711 = tpu.matmul %686, %13, %cst_242 {dimension_numbers = #tpu.dot_dimension_numbers<[1], [0], [0], [1], [0, 0, 1, 1], [], []>} : vector<8x32xf32>, vector<32x32xf32>, vector<8x32xf32> -> vector<8x32xf32>
    %712 = arith.addf %700, %711 : vector<8x32xf32>
    %713 = arith.addf %712, %51 : vector<8x32xf32>
    %cst_243 = arith.constant dense<0.000000e+00> : vector<8x32xf32>
    %714 = tpu.matmul %686, %15, %cst_243 {dimension_numbers = #tpu.dot_dimension_numbers<[1], [0], [0], [1], [0, 0, 1, 1], [], []>} : vector<8x32xf32>, vector<32x32xf32>, vector<8x32xf32> -> vector<8x32xf32>
    %715 = arith.addf %704, %714 : vector<8x32xf32>
    %716 = arith.addf %715, %55 : vector<8x32xf32>
    %717 = arith.negf %707 : vector<8x32xf32>
    %718 = math.exp %717 : vector<8x32xf32>
    %cst_244 = arith.constant 1.000000e+00 : f32
    %719 = vector.broadcast %cst_244 : f32 to vector<8x32xf32>
    %720 = arith.addf %719, %718 : vector<8x32xf32>
    %721 = arith.divf %719, %720 : vector<8x32xf32>
    %722 = arith.negf %710 : vector<8x32xf32>
    %723 = math.exp %722 : vector<8x32xf32>
    %cst_245 = arith.constant 1.000000e+00 : f32
    %724 = vector.broadcast %cst_245 : f32 to vector<8x32xf32>
    %725 = arith.addf %724, %723 : vector<8x32xf32>
    %726 = arith.divf %724, %725 : vector<8x32xf32>
    %727 = math.tanh %713 : vector<8x32xf32>
    %728 = arith.negf %716 : vector<8x32xf32>
    %729 = math.exp %728 : vector<8x32xf32>
    %cst_246 = arith.constant 1.000000e+00 : f32
    %730 = vector.broadcast %cst_246 : f32 to vector<8x32xf32>
    %731 = arith.addf %730, %729 : vector<8x32xf32>
    %732 = arith.divf %730, %731 : vector<8x32xf32>
    %733 = arith.mulf %726, %684 : vector<8x32xf32>
    %734 = arith.mulf %721, %727 : vector<8x32xf32>
    %735 = arith.addf %733, %734 : vector<8x32xf32>
    %736 = math.tanh %735 : vector<8x32xf32>
    %737 = arith.mulf %732, %736 : vector<8x32xf32>
    %738 = tpu.concatenate %431, %482, %533, %584, %635, %686, %737 in 0 : vector<8x32xf32>, vector<8x32xf32>, vector<8x32xf32>, vector<8x32xf32>, vector<8x32xf32>, vector<8x32xf32>, vector<8x32xf32> -> vector<56x32xf32>
    %cst_247 = arith.constant dense<0.000000e+00> : vector<56x4xf32>
    %739 = tpu.matmul %738, %72, %cst_247 {dimension_numbers = #tpu.dot_dimension_numbers<[1], [0], [0], [1], [0, 0, 1, 1], [], []>} : vector<56x32xf32>, vector<32x4xf32>, vector<56x4xf32> -> vector<56x4xf32>
    %740 = vector.broadcast %73 : vector<1x4xf32> to vector<56x4xf32>
    %741 = arith.addf %739, %740 : vector<56x4xf32>
    %cst_248 = arith.constant 0.000000e+00 : f32
    %742 = vector.broadcast %cst_248 : f32 to vector<8x4xf32>
    %743 = tpu.concatenate %742, %741 in 0 : vector<8x4xf32>, vector<56x4xf32> -> vector<64x4xf32>
    %c0_249 = arith.constant 0 : index
    %c0_250 = arith.constant 0 : index
    %744 = vector.load %arg14[%c0_249, %c0_250] : memref<64x4xf32, #tpu.memory_space<vmem>>, vector<64x4xf32>
    tpu.vector_store %arg14[%c0_249, %c0_250], %743 {strides = array<i32>} : memref<64x4xf32, #tpu.memory_space<vmem>>, vector<64x4xf32>,
    return
  }
  func.func @transform_0(%arg0: i32, %arg1: memref<8xi32, #tpu.memory_space<smem>>) -> (i32, i32) {
    %c0_i32 = arith.constant 0 : i32
    %c0_i32_0 = arith.constant 0 : i32
    %c0_i32_1 = arith.constant 0 : i32
    return %c0_i32, %c0_i32_0 : i32, i32
  }
  func.func @transform_1(%arg0: i32, %arg1: memref<8xi32, #tpu.memory_space<smem>>) -> (i32, i32) {
    %c0_i32 = arith.constant 0 : i32
    %c0_i32_0 = arith.constant 0 : i32
    %c0_i32_1 = arith.constant 0 : i32
    return %c0_i32, %c0_i32_0 : i32, i32
  }
  func.func @transform_2(%arg0: i32, %arg1: memref<8xi32, #tpu.memory_space<smem>>) -> (i32, i32, i32) {
    %c0_i32 = arith.constant 0 : i32
    %c0_i32_0 = arith.constant 0 : i32
    %c0_i32_1 = arith.constant 0 : i32
    %c0_i32_2 = arith.constant 0 : i32
    return %c0_i32, %c0_i32_0, %c0_i32_1 : i32, i32, i32
  }
  func.func @transform_3(%arg0: i32, %arg1: memref<8xi32, #tpu.memory_space<smem>>) -> (i32, i32, i32) {
    %c0_i32 = arith.constant 0 : i32
    %c0_i32_0 = arith.constant 0 : i32
    %c0_i32_1 = arith.constant 0 : i32
    %c0_i32_2 = arith.constant 0 : i32
    return %c0_i32, %c0_i32_0, %c0_i32_1 : i32, i32, i32
  }
  func.func @transform_4(%arg0: i32, %arg1: memref<8xi32, #tpu.memory_space<smem>>) -> (i32, i32, i32) {
    %c0_i32 = arith.constant 0 : i32
    %c0_i32_0 = arith.constant 0 : i32
    %c0_i32_1 = arith.constant 0 : i32
    %c0_i32_2 = arith.constant 0 : i32
    return %c0_i32, %c0_i32_0, %c0_i32_1 : i32, i32, i32
  }
  func.func @transform_5(%arg0: i32, %arg1: memref<8xi32, #tpu.memory_space<smem>>) -> (i32, i32, i32) {
    %c0_i32 = arith.constant 0 : i32
    %c0_i32_0 = arith.constant 0 : i32
    %c0_i32_1 = arith.constant 0 : i32
    %c0_i32_2 = arith.constant 0 : i32
    return %c0_i32, %c0_i32_0, %c0_i32_1 : i32, i32, i32
  }
  func.func @transform_6(%arg0: i32, %arg1: memref<8xi32, #tpu.memory_space<smem>>) -> (i32, i32, i32) {
    %c0_i32 = arith.constant 0 : i32
    %c0_i32_0 = arith.constant 0 : i32
    %c0_i32_1 = arith.constant 0 : i32
    %c0_i32_2 = arith.constant 0 : i32
    return %c0_i32, %c0_i32_0, %c0_i32_1 : i32, i32, i32
  }
  func.func @transform_7(%arg0: i32, %arg1: memref<8xi32, #tpu.memory_space<smem>>) -> (i32, i32, i32) {
    %c0_i32 = arith.constant 0 : i32
    %c0_i32_0 = arith.constant 0 : i32
    %c0_i32_1 = arith.constant 0 : i32
    %c0_i32_2 = arith.constant 0 : i32
    return %c0_i32, %c0_i32_0, %c0_i32_1 : i32, i32, i32
  }
  func.func @transform_8(%arg0: i32, %arg1: memref<8xi32, #tpu.memory_space<smem>>) -> (i32, i32, i32) {
    %c0_i32 = arith.constant 0 : i32
    %c0_i32_0 = arith.constant 0 : i32
    %c0_i32_1 = arith.constant 0 : i32
    %c0_i32_2 = arith.constant 0 : i32
    return %c0_i32, %c0_i32_0, %c0_i32_1 : i32, i32, i32
  }
  func.func @transform_9(%arg0: i32, %arg1: memref<8xi32, #tpu.memory_space<smem>>) -> (i32, i32, i32) {
    %c0_i32 = arith.constant 0 : i32
    %c0_i32_0 = arith.constant 0 : i32
    %c0_i32_1 = arith.constant 0 : i32
    %c0_i32_2 = arith.constant 0 : i32
    return %c0_i32, %c0_i32_0, %c0_i32_1 : i32, i32, i32
  }
  func.func @transform_10(%arg0: i32, %arg1: memref<8xi32, #tpu.memory_space<smem>>) -> (i32, i32) {
    %c0_i32 = arith.constant 0 : i32
    %c0_i32_0 = arith.constant 0 : i32
    %c0_i32_1 = arith.constant 0 : i32
    return %c0_i32, %c0_i32_0 : i32, i32
  }
  func.func @transform_11(%arg0: i32, %arg1: memref<8xi32, #tpu.memory_space<smem>>) -> (i32, i32) {
    %c0_i32 = arith.constant 0 : i32
    %c0_i32_0 = arith.constant 0 : i32
    %c0_i32_1 = arith.constant 0 : i32
    return %c0_i32, %c0_i32_0 : i32, i32
  }
  func.func @transform_12(%arg0: i32, %arg1: memref<8xi32, #tpu.memory_space<smem>>) -> (i32, i32) {
    %c0_i32 = arith.constant 0 : i32
    %c0_i32_0 = arith.constant 0 : i32
    %c0_i32_1 = arith.constant 0 : i32
    return %c0_i32, %c0_i32_0 : i32, i32
  }
}

</mosaic_0001>

<llo_original>
// kernel: tpu_custom_call.1
$region0: #{tpu_custom_call.1}
  #allocation0 [shape = 'u32[]', space=smem, size = 0x4, offset = 0x4, fixed_abs, tag = 'smem constant byte address 0x4 - core index']
  #allocation1 [shape = 'u32[144,128]{1,0:T(1,128)}', space=vmem, size = 0x12000, scoped, tag = 'internal scratch']
  #allocation2 [shape = 's32[1]{0}', space=sflag, size = 0x4, scoped, tag = 'scoped memory for tpu_custom_call.1']
  #allocation3 [shape = 'u8[512]{0}', space=smem, size = 0x200, scoped, tag = 'prefetched SMEM operand 0']
  %s0 = inlined_call_operand.vmem [shape: s32[8], index: 0, kind: input, shape index: {}]
  %s1 = inlined_call_operand.vmem [shape: f32[64,4], index: 1, kind: input, shape index: {}]
  %s2 = inlined_call_operand.vmem [shape: f32[64,4], index: 2, kind: input, shape index: {}]
  %s3 = inlined_call_operand.vmem [shape: f32[4,4,32], index: 3, kind: input, shape index: {}]
  %s4 = inlined_call_operand.vmem [shape: f32[4,32,32], index: 4, kind: input, shape index: {}]
  %s5 = inlined_call_operand.vmem [shape: f32[4,1,32], index: 5, kind: input, shape index: {}]
  %s6 = inlined_call_operand.vmem [shape: f32[4,4,32], index: 6, kind: input, shape index: {}]
  %s7 = inlined_call_operand.hbm [shape: f32[4,32,32], index: 7, kind: input, shape index: {}]
  %s8 = inlined_call_operand.vmem [shape: f32[4,1,32], index: 8, kind: input, shape index: {}]
  %s9 = inlined_call_operand.hbm [shape: f32[4,32,32], index: 9, kind: input, shape index: {}]
  %s10 = inlined_call_operand.vmem [shape: f32[4,1,32], index: 10, kind: input, shape index: {}]
  %s11 = inlined_call_operand.vmem [shape: f32[32,4], index: 11, kind: input, shape index: {}]
  %s12 = inlined_call_operand.vmem [shape: f32[1,4], index: 12, kind: input, shape index: {}]
  %s13 = inlined_call_operand.vmem [shape: f32[64,4], index: 13, kind: output, shape index: {}]
  %s14 = sld [smem:[#allocation0]]
  $region66: #{tpu_custom_call.1} parent=0
    _
  %s16 = ssub.s32 1, %s14
  %s17 = scalar_select 0, %s16, %s14
  %s18 = sshll.u32 %s0, 4
  %s19 = int_to_ptr.vmem [resolvable:$true] %s18
  %21 = dma.vmem_to_smem %s19, 16, [#allocation3], [#allocation2]
  %22 = dma.done [#allocation2], 16
  %23 = sfence
  $region1: #{tpu_custom_call.1} parent=0
    #allocation4 [shape = 'u8[65536]{0}', space=vmem, size = 0x10000, scoped, tag = 'input window, operand 7, single buffered']
    #allocation5 [shape = 's32[1]{0}', space=sflag, size = 0x4, scoped, tag = 'scoped memory for tpu_custom_call.1']
    #allocation6 [shape = 'u8[65536]{0}', space=vmem, size = 0x10000, scoped, tag = 'input window, operand 9, single buffered']
    #allocation7 [shape = 's32[1]{0}', space=sflag, size = 0x4, scoped, tag = 'scoped memory for tpu_custom_call.1']
    %24 = vsyncpa [#allocation5], 0
    %25 = vsyncpa [#allocation7], 0
    // Predicated region
    $region2: #{tpu_custom_call.1} parent=1 // pred_check
      _
    $region3: #{tpu_custom_call.1} parent=1 // pred_check_branch
      %27 = sbr.rel (0) target = $region5
    $region4: #{tpu_custom_call.1} parent=1 // pred_region
      _
    $region5: #{tpu_custom_call.1} parent=1 // pred_fallthru
      _
    // Predicated region
    $region6: #{tpu_custom_call.1} parent=1 // pred_check
      _
    $region7: #{tpu_custom_call.1} parent=1 // pred_check_branch
      %29 = sbr.rel (0) target = $region9
    $region8: #{tpu_custom_call.1} parent=1 // pred_region
      _
    $region9: #{tpu_custom_call.1} parent=1 // pred_fallthru
      _
    // Predicated region
    $region10: #{tpu_custom_call.1} parent=1 // pred_check
      _
    $region11: #{tpu_custom_call.1} parent=1 // pred_check_branch
      %31 = sbr.rel (0) target = $region13
    $region12: #{tpu_custom_call.1} parent=1 // pred_region
      _
    $region13: #{tpu_custom_call.1} parent=1 // pred_fallthru
      _
    // Predicated region
    $region14: #{tpu_custom_call.1} parent=1 // pred_check
      _
    $region15: #{tpu_custom_call.1} parent=1 // pred_check_branch
      %33 = sbr.rel (0) target = $region17
    $region16: #{tpu_custom_call.1} parent=1 // pred_region
      _
    $region17: #{tpu_custom_call.1} parent=1 // pred_fallthru
      _
    // Predicated region
    $region18: #{tpu_custom_call.1} parent=1 // pred_check
      _
    $region19: #{tpu_custom_call.1} parent=1 // pred_check_branch
      %35 = sbr.rel (0) target = $region21
    $region20: #{tpu_custom_call.1} parent=1 // pred_region
      _
    $region21: #{tpu_custom_call.1} parent=1 // pred_fallthru
      _
    // Predicated region
    $region22: #{tpu_custom_call.1} parent=1 // pred_check
      _
    $region23: #{tpu_custom_call.1} parent=1 // pred_check_branch
      %37 = sbr.rel (0) target = $region25
    $region24: #{tpu_custom_call.1} parent=1 // pred_region
      _
    $region25: #{tpu_custom_call.1} parent=1 // pred_fallthru
      _
    // Predicated region
    $region26: #{tpu_custom_call.1} parent=1 // pred_check
      _
    $region27: #{tpu_custom_call.1} parent=1 // pred_check_branch
      %39 = sbr.rel (0) target = $region29
    $region28: #{tpu_custom_call.1} parent=1 // pred_region
      %s41 = ssub.s32 2048, 2048
      %42 = vsyncadd [#allocation5], %s41
      %s43 = sshll.u32 [#allocation4], 4
      %s44 = int_to_ptr.vmem [resolvable:$true] %s43
      %49 = dma.hbm_to_vmem [thread:$0]  %s7, 2048, %s44, [#allocation5], 128, 128, 8
    $region29: #{tpu_custom_call.1} parent=1 // pred_fallthru
      _
    // Predicated region
    $region30: #{tpu_custom_call.1} parent=1 // pred_check
      _
    $region31: #{tpu_custom_call.1} parent=1 // pred_check_branch
      %51 = sbr.rel (0) target = $region33
    $region32: #{tpu_custom_call.1} parent=1 // pred_region
      _
    $region33: #{tpu_custom_call.1} parent=1 // pred_fallthru
      _
    // Predicated region
    $region34: #{tpu_custom_call.1} parent=1 // pred_check
      _
    $region35: #{tpu_custom_call.1} parent=1 // pred_check_branch
      %53 = sbr.rel (0) target = $region37
    $region36: #{tpu_custom_call.1} parent=1 // pred_region
      %s55 = ssub.s32 2048, 2048
      %56 = vsyncadd [#allocation7], %s55
      %s57 = sshll.u32 [#allocation6], 4
      %s58 = int_to_ptr.vmem [resolvable:$true] %s57
      %63 = dma.hbm_to_vmem [thread:$0]  %s9, 2048, %s58, [#allocation7], 128, 128, 8
    $region37: #{tpu_custom_call.1} parent=1 // pred_fallthru
      _
    // Predicated region
    $region38: #{tpu_custom_call.1} parent=1 // pred_check
      _
    $region39: #{tpu_custom_call.1} parent=1 // pred_check_branch
      %65 = sbr.rel (0) target = $region41
    $region40: #{tpu_custom_call.1} parent=1 // pred_region
      _
    $region41: #{tpu_custom_call.1} parent=1 // pred_fallthru
      _
    // Predicated region
    $region42: #{tpu_custom_call.1} parent=1 // pred_check
      _
    $region43: #{tpu_custom_call.1} parent=1 // pred_check_branch
      %67 = sbr.rel (0) target = $region45
    $region44: #{tpu_custom_call.1} parent=1 // pred_region
      _
    $region45: #{tpu_custom_call.1} parent=1 // pred_fallthru
      _
    // Predicated region
    $region46: #{tpu_custom_call.1} parent=1 // pred_check
      _
    $region47: #{tpu_custom_call.1} parent=1 // pred_check_branch
      %69 = sbr.rel (0) target = $region49
    $region48: #{tpu_custom_call.1} parent=1 // pred_region
      _
    $region49: #{tpu_custom_call.1} parent=1 // pred_fallthru
      _
    // Predicated region
    $region50: #{tpu_custom_call.1} parent=1 // pred_check
      _
    $region51: #{tpu_custom_call.1} parent=1 // pred_check_branch
      %71 = sbr.rel (0) target = $region53
    $region52: #{tpu_custom_call.1} parent=1 // pred_region
      %72 = dma.done [#allocation5], 2048
    $region53: #{tpu_custom_call.1} parent=1 // pred_fallthru
      _
    // Predicated region
    $region54: #{tpu_custom_call.1} parent=1 // pred_check
      _
    $region55: #{tpu_custom_call.1} parent=1 // pred_check_branch
      %74 = sbr.rel (0) target = $region57
    $region56: #{tpu_custom_call.1} parent=1 // pred_region
      %75 = dma.done [#allocation7], 2048
    $region57: #{tpu_custom_call.1} parent=1 // pred_fallthru
      _
    %v76 = vld [vmem:[%s4] sm:$0xff]
    %v77 = vld [vmem:[%s4 + $0x8] sm:$0xff]
    %v78 = vld [vmem:[%s4 + $0x10] sm:$0xff]
    %v79 = vld [vmem:[%s4 + $0x18] sm:$0xff]
    %s80 = scalar_lea.vmem %s4, 32
    %v81 = vld [vmem:[%s80] sm:$0xff]
    %v82 = vld [vmem:[%s80 + $0x8] sm:$0xff]
    %v83 = vld [vmem:[%s80 + $0x10] sm:$0xff]
    %v84 = vld [vmem:[%s80 + $0x18] sm:$0xff]
    %s85 = scalar_lea.vmem %s4, 64
    %v86 = vld [vmem:[%s85] sm:$0xff]
    %v87 = vld [vmem:[%s85 + $0x8] sm:$0xff]
    %v88 = vld [vmem:[%s85 + $0x10] sm:$0xff]
    %v89 = vld [vmem:[%s85 + $0x18] sm:$0xff]
    %s90 = scalar_lea.vmem %s4, 96
    %v91 = vld [vmem:[%s90] sm:$0xff]
    %v92 = vld [vmem:[%s90 + $0x8] sm:$0xff]
    %v93 = vld [vmem:[%s90 + $0x10] sm:$0xff]
    %v94 = vld [vmem:[%s90 + $0x18] sm:$0xff]
    %v95 = vld [vmem:[#allocation4] sm:$0xff]
    %v96 = vld [vmem:[#allocation4 + $0x8] sm:$0xff]
    %v97 = vld [vmem:[#allocation4 + $0x10] sm:$0xff]
    %v98 = vld [vmem:[#allocation4 + $0x18] sm:$0xff]
    %s99 = scalar_lea.vmem [#allocation4], 32
    %v100 = vld [vmem:[%s99] sm:$0xff]
    %v101 = vld [vmem:[%s99 + $0x8] sm:$0xff]
    %v102 = vld [vmem:[%s99 + $0x10] sm:$0xff]
    %v103 = vld [vmem:[%s99 + $0x18] sm:$0xff]
    %s104 = scalar_lea.vmem [#allocation4], 64
    %v105 = vld [vmem:[%s104] sm:$0xff]
    %v106 = vld [vmem:[%s104 + $0x8] sm:$0xff]
    %v107 = vld [vmem:[%s104 + $0x10] sm:$0xff]
    %v108 = vld [vmem:[%s104 + $0x18] sm:$0xff]
    %s109 = scalar_lea.vmem [#allocation4], 96
    %v110 = vld [vmem:[%s109] sm:$0xff]
    %v111 = vld [vmem:[%s109 + $0x8] sm:$0xff]
    %v112 = vld [vmem:[%s109 + $0x10] sm:$0xff]
    %v113 = vld [vmem:[%s109 + $0x18] sm:$0xff]
    %v114 = vld [vmem:[#allocation6] sm:$0xff]
    %v115 = vld [vmem:[#allocation6 + $0x8] sm:$0xff]
    %v116 = vld [vmem:[#allocation6 + $0x10] sm:$0xff]
    %v117 = vld [vmem:[#allocation6 + $0x18] sm:$0xff]
    %s118 = scalar_lea.vmem [#allocation6], 32
    %v119 = vld [vmem:[%s118] sm:$0xff]
    %v120 = vld [vmem:[%s118 + $0x8] sm:$0xff]
    %v121 = vld [vmem:[%s118 + $0x10] sm:$0xff]
    %v122 = vld [vmem:[%s118 + $0x18] sm:$0xff]
    %s123 = scalar_lea.vmem [#allocation6], 64
    %v124 = vld [vmem:[%s123] sm:$0xff]
    %v125 = vld [vmem:[%s123 + $0x8] sm:$0xff]
    %v126 = vld [vmem:[%s123 + $0x10] sm:$0xff]
    %v127 = vld [vmem:[%s123 + $0x18] sm:$0xff]
    %s128 = scalar_lea.vmem [#allocation6], 96
    %v129 = vld [vmem:[%s128] sm:$0xff]
    %v130 = vld [vmem:[%s128 + $0x8] sm:$0xff]
    %v131 = vld [vmem:[%s128 + $0x10] sm:$0xff]
    %v132 = vld [vmem:[%s128 + $0x18] sm:$0xff]
    %v133 = vld [vmem:[%s5] sm:$0x1]
    %v135 = vlaneseq
    %v136 = vshrl.u32 %v135, 7
    %v137 = vsub.s32 0, %v136
    %v138 = vrot.slane %v133, %v137
    %s140 = scalar_lea.vmem %s5, 1
    %v141 = vld [vmem:[%s140] sm:$0x1]
    %v143 = vlaneseq
    %v144 = vshrl.u32 %v143, 7
    %v145 = vsub.s32 0, %v144
    %v146 = vrot.slane %v141, %v145
    %s148 = scalar_lea.vmem %s5, 2
    %v149 = vld [vmem:[%s148] sm:$0x1]
    %v151 = vlaneseq
    %v152 = vshrl.u32 %v151, 7
    %v153 = vsub.s32 0, %v152
    %v154 = vrot.slane %v149, %v153
    %s156 = scalar_lea.vmem %s5, 3
    %v157 = vld [vmem:[%s156] sm:$0x1]
    %v159 = vlaneseq
    %v160 = vshrl.u32 %v159, 7
    %v161 = vsub.s32 0, %v160
    %v162 = vrot.slane %v157, %v161
    %v164 = vld [vmem:[%s8] sm:$0x1]
    %v166 = vlaneseq
    %v167 = vshrl.u32 %v166, 7
    %v168 = vsub.s32 0, %v167
    %v169 = vrot.slane %v164, %v168
    %s171 = scalar_lea.vmem %s8, 1
    %v172 = vld [vmem:[%s171] sm:$0x1]
    %v174 = vlaneseq
    %v175 = vshrl.u32 %v174, 7
    %v176 = vsub.s32 0, %v175
    %v177 = vrot.slane %v172, %v176
    %s179 = scalar_lea.vmem %s8, 2
    %v180 = vld [vmem:[%s179] sm:$0x1]
    %v182 = vlaneseq
    %v183 = vshrl.u32 %v182, 7
    %v184 = vsub.s32 0, %v183
    %v185 = vrot.slane %v180, %v184
    %s187 = scalar_lea.vmem %s8, 3
    %v188 = vld [vmem:[%s187] sm:$0x1]
    %v190 = vlaneseq
    %v191 = vshrl.u32 %v190, 7
    %v192 = vsub.s32 0, %v191
    %v193 = vrot.slane %v188, %v192
    %v195 = vld [vmem:[%s10] sm:$0x1]
    %v197 = vlaneseq
    %v198 = vshrl.u32 %v197, 7
    %v199 = vsub.s32 0, %v198
    %v200 = vrot.slane %v195, %v199
    %s202 = scalar_lea.vmem %s10, 1
    %v203 = vld [vmem:[%s202] sm:$0x1]
    %v205 = vlaneseq
    %v206 = vshrl.u32 %v205, 7
    %v207 = vsub.s32 0, %v206
    %v208 = vrot.slane %v203, %v207
    %s210 = scalar_lea.vmem %s10, 2
    %v211 = vld [vmem:[%s210] sm:$0x1]
    %v213 = vlaneseq
    %v214 = vshrl.u32 %v213, 7
    %v215 = vsub.s32 0, %v214
    %v216 = vrot.slane %v211, %v215
    %s218 = scalar_lea.vmem %s10, 3
    %v219 = vld [vmem:[%s218] sm:$0x1]
    %v221 = vlaneseq
    %v222 = vshrl.u32 %v221, 7
    %v223 = vsub.s32 0, %v222
    %v224 = vrot.slane %v219, %v223
    %v226 = vld [vmem:[%s11] sm:$0xff]
    %v227 = vld [vmem:[%s11 + $0x8] sm:$0xff]
    %v228 = vld [vmem:[%s11 + $0x10] sm:$0xff]
    %v229 = vld [vmem:[%s11 + $0x18] sm:$0xff]
    %v230 = vld [vmem:[%s12] sm:$0x1]
    %v231 = vld [vmem:[%s1] sm:$0xff]
    %v232 = vld [vmem:[%s1 + $0x8] sm:$0xff]
    %v233 = vld [vmem:[%s1 + $0x10] sm:$0xff]
    %v234 = vld [vmem:[%s1 + $0x18] sm:$0xff]
    %v235 = vld [vmem:[%s1 + $0x20] sm:$0xff]
    %v236 = vld [vmem:[%s1 + $0x28] sm:$0xff]
    %v237 = vld [vmem:[%s1 + $0x30] sm:$0xff]
    %v238 = vld [vmem:[%s1 + $0x38] sm:$0xff]
    %v239 = vld [vmem:[%s2] sm:$0xff]
    %v240 = vld [vmem:[%s2 + $0x8] sm:$0xff]
    %v241 = vld [vmem:[%s2 + $0x10] sm:$0xff]
    %v242 = vld [vmem:[%s2 + $0x18] sm:$0xff]
    %v243 = vld [vmem:[%s2 + $0x20] sm:$0xff]
    %v244 = vld [vmem:[%s2 + $0x28] sm:$0xff]
    %v245 = vld [vmem:[%s2 + $0x30] sm:$0xff]
    %v246 = vld [vmem:[%s2 + $0x38] sm:$0xff]
    %v247 = vld [vmem:[%s3] sm:$0xf]
    %vm248 = vcmask 31744
    %v250 = vsel %vm248, %v231, 0
    %v253 = vsel %vm248, %v232, 0
    %v256 = vsel %vm248, %v233, 0
    %v259 = vsel %vm248, %v234, 0
    %v262 = vsel %vm248, %v235, 0
    %v265 = vsel %vm248, %v236, 0
    %v268 = vsel %vm248, %v237, 0
    %v271 = vsel %vm248, %v238, 0
    %vm273 = vcmask 1043456
    %v275 = vsel %vm273, %v247, 0
    %277 = vmatprep.subr.mxu0 0.0
    %278 = vmatpush1.msra.mxu0 %v275
    %279 = vmatprep.subr.mxu0 0.0
    %280 = vmatpush1.msra.mxu0 0.0
    %281 = vmatprep.subr.mxu0 0.0
    %282 = vmatpush1.msra.mxu0 0.0
    %283 = vmatprep.subr.mxu0 0.0
    %284 = vmatpush1.msra.mxu0 0.0
    %285 = vmatprep.subr.mxu0 0.0
    %286 = vmatpush1.msra.mxu0 0.0
    %287 = vmatprep.subr.mxu0 0.0
    %288 = vmatpush1.msra.mxu0 0.0
    %289 = vmatprep.subr.mxu0 0.0
    %290 = vmatpush1.msra.mxu0 0.0
    %291 = vmatprep.subr.mxu0 0.0
    %292 = vmatpush1.msra.mxu0 0.0
    %293 = vmatprep.subr.mxu0 0.0
    %294 = vmatpush1.msra.mxu0 0.0
    %295 = vmatprep.subr.mxu0 0.0
    %296 = vmatpush1.msra.mxu0 0.0
    %297 = vmatprep.subr.mxu0 0.0
    %298 = vmatpush1.msra.mxu0 0.0
    %299 = vmatprep.subr.mxu0 0.0
    %300 = vmatpush1.msra.mxu0 0.0
    %301 = vmatprep.subr.mxu0 0.0
    %302 = vmatpush1.msra.mxu0 0.0
    %303 = vmatprep.subr.mxu0 0.0
    %304 = vmatpush1.msra.mxu0 0.0
    %305 = vmatprep.subr.mxu0 0.0
    %306 = vmatpush1.msra.mxu0 0.0
    %307 = vmatprep.subr.mxu0 0.0
    %308 = vmatpush1.msra.mxu0 0.0
    %309 = vmatprep.subr.mxu0 0.0
    %310 = vmatpush1.msra.mxu0 0.0
    %311 = vmatprep.subr.mxu0 0.0
    %312 = vmatpush1.msra.mxu0 0.0
    %313 = vmatprep.subr.mxu0 0.0
    %314 = vmatpush1.msra.mxu0 0.0
    %315 = vmatprep.subr.mxu0 0.0
    %316 = vmatpush1.msra.mxu0 0.0
    %317 = vmatprep.subr.mxu0 0.0
    %318 = vmatpush1.msra.mxu0 0.0
    %319 = vmatprep.subr.mxu0 0.0
    %320 = vmatpush1.msra.mxu0 0.0
    %321 = vmatprep.subr.mxu0 0.0
    %322 = vmatpush1.msra.mxu0 0.0
    %323 = vmatprep.subr.mxu0 0.0
    %324 = vmatpush1.msra.mxu0 0.0
    %325 = vmatprep.subr.mxu0 0.0
    %326 = vmatpush1.msra.mxu0 0.0
    %327 = vmatprep.subr.mxu0 0.0
    %328 = vmatpush1.msra.mxu0 0.0
    %329 = vmatprep.subr.mxu0 0.0
    %330 = vmatpush1.msra.mxu0 0.0
    %331 = vmatprep.subr.mxu0 0.0
    %332 = vmatpush1.msra.mxu0 0.0
    %333 = vmatprep.subr.mxu0 0.0
    %334 = vmatpush1.msra.mxu0 0.0
    %335 = vmatprep.subr.mxu0 0.0
    %336 = vmatpush1.msra.mxu0 0.0
    %337 = vmatprep.subr.mxu0 0.0
    %338 = vmatpush1.msra.mxu0 0.0
    %339 = vmatprep.subr.mxu0 0.0
    %340 = vmatpush1.msra.mxu0 0.0
    %341 = vmatprep.mubr.f32.mxu0 0.0
    %342 = vmatmul.mubr.f32.gmra.mrb[0].mxu0 %v250
    %v343 = vpop.f32.mrb[0].mxu0
    %v344 = vadd.f32 0.0, %v343
    %v345 = vpop.f32.mrb[0].mxu0
    %346 = vmatprep.mubr.f32.mxu0 0.0
    %347 = vmatmul.mubr.f32.gmra.mrb[0].mxu0 %v253
    %v348 = vpop.f32.mrb[0].mxu0
    %v349 = vadd.f32 0.0, %v348
    %v350 = vpop.f32.mrb[0].mxu0
    %351 = vmatprep.mubr.f32.mxu0 0.0
    %352 = vmatmul.mubr.f32.gmra.mrb[0].mxu0 %v256
    %v353 = vpop.f32.mrb[0].mxu0
    %v354 = vadd.f32 0.0, %v353
    %v355 = vpop.f32.mrb[0].mxu0
    %356 = vmatprep.mubr.f32.mxu0 0.0
    %357 = vmatmul.mubr.f32.gmra.mrb[0].mxu0 %v259
    %v358 = vpop.f32.mrb[0].mxu0
    %v359 = vadd.f32 0.0, %v358
    %v360 = vpop.f32.mrb[0].mxu0
    %361 = vmatprep.mubr.f32.mxu0 0.0
    %362 = vmatmul.mubr.f32.gmra.mrb[0].mxu0 %v262
    %v363 = vpop.f32.mrb[0].mxu0
    %v364 = vadd.f32 0.0, %v363
    %v365 = vpop.f32.mrb[0].mxu0
    %366 = vmatprep.mubr.f32.mxu0 0.0
    %367 = vmatmul.mubr.f32.gmra.mrb[0].mxu0 %v265
    %v368 = vpop.f32.mrb[0].mxu0
    %v369 = vadd.f32 0.0, %v368
    %v370 = vpop.f32.mrb[0].mxu0
    %371 = vmatprep.mubr.f32.mxu0 0.0
    %372 = vmatmul.mubr.f32.gmra.mrb[0].mxu0 %v268
    %v373 = vpop.f32.mrb[0].mxu0
    %v374 = vadd.f32 0.0, %v373
    %v375 = vpop.f32.mrb[0].mxu0
    %376 = vmatprep.mubr.f32.mxu0 0.0
    %377 = vmatmul.mubr.f32.gmra.mrb[0].mxu0 %v271
    %v378 = vpop.f32.mrb[0].mxu0
    %v379 = vadd.f32 0.0, %v378
    %v380 = vpop.f32.mrb[0].mxu0
    %381 = vdwg.mxu0
    %s382 = scalar_lea.vmem %s3, 4
    %v383 = vld [vmem:[%s382] sm:$0xf]
    %v385 = vsel %vm273, %v383, 0
    %387 = vmatprep.subr.mxu0 0.0
    %388 = vmatpush1.msra.mxu0 %v385
    %389 = vmatprep.subr.mxu0 0.0
    %390 = vmatpush1.msra.mxu0 0.0
    %391 = vmatprep.subr.mxu0 0.0
    %392 = vmatpush1.msra.mxu0 0.0
    %393 = vmatprep.subr.mxu0 0.0
    %394 = vmatpush1.msra.mxu0 0.0
    %395 = vmatprep.subr.mxu0 0.0
    %396 = vmatpush1.msra.mxu0 0.0
    %397 = vmatprep.subr.mxu0 0.0
    %398 = vmatpush1.msra.mxu0 0.0
    %399 = vmatprep.subr.mxu0 0.0
    %400 = vmatpush1.msra.mxu0 0.0
    %401 = vmatprep.subr.mxu0 0.0
    %402 = vmatpush1.msra.mxu0 0.0
    %403 = vmatprep.subr.mxu0 0.0
    %404 = vmatpush1.msra.mxu0 0.0
    %405 = vmatprep.subr.mxu0 0.0
    %406 = vmatpush1.msra.mxu0 0.0
    %407 = vmatprep.subr.mxu0 0.0
    %408 = vmatpush1.msra.mxu0 0.0
    %409 = vmatprep.subr.mxu0 0.0
    %410 = vmatpush1.msra.mxu0 0.0
    %411 = vmatprep.subr.mxu0 0.0
    %412 = vmatpush1.msra.mxu0 0.0
    %413 = vmatprep.subr.mxu0 0.0
    %414 = vmatpush1.msra.mxu0 0.0
    %415 = vmatprep.subr.mxu0 0.0
    %416 = vmatpush1.msra.mxu0 0.0
    %417 = vmatprep.subr.mxu0 0.0
    %418 = vmatpush1.msra.mxu0 0.0
    %419 = vmatprep.subr.mxu0 0.0
    %420 = vmatpush1.msra.mxu0 0.0
    %421 = vmatprep.subr.mxu0 0.0
    %422 = vmatpush1.msra.mxu0 0.0
    %423 = vmatprep.subr.mxu0 0.0
    %424 = vmatpush1.msra.mxu0 0.0
    %425 = vmatprep.subr.mxu0 0.0
    %426 = vmatpush1.msra.mxu0 0.0
    %427 = vmatprep.subr.mxu0 0.0
    %428 = vmatpush1.msra.mxu0 0.0
    %429 = vmatprep.subr.mxu0 0.0
    %430 = vmatpush1.msra.mxu0 0.0
    %431 = vmatprep.subr.mxu0 0.0
    %432 = vmatpush1.msra.mxu0 0.0
    %433 = vmatprep.subr.mxu0 0.0
    %434 = vmatpush1.msra.mxu0 0.0
    %435 = vmatprep.subr.mxu0 0.0
    %436 = vmatpush1.msra.mxu0 0.0
    %437 = vmatprep.subr.mxu0 0.0
    %438 = vmatpush1.msra.mxu0 0.0
    %439 = vmatprep.subr.mxu0 0.0
    %440 = vmatpush1.msra.mxu0 0.0
    %441 = vmatprep.subr.mxu0 0.0
    %442 = vmatpush1.msra.mxu0 0.0
    %443 = vmatprep.subr.mxu0 0.0
    %444 = vmatpush1.msra.mxu0 0.0
    %445 = vmatprep.subr.mxu0 0.0
    %446 = vmatpush1.msra.mxu0 0.0
    %447 = vmatprep.subr.mxu0 0.0
    %448 = vmatpush1.msra.mxu0 0.0
    %449 = vmatprep.subr.mxu0 0.0
    %450 = vmatpush1.msra.mxu0 0.0
    %451 = vmatprep.mubr.f32.mxu0 0.0
    %452 = vmatmul.mubr.f32.gmra.mrb[0].mxu0 %v250
    %v453 = vpop.f32.mrb[0].mxu0
    %v454 = vadd.f32 0.0, %v453
    %v455 = vpop.f32.mrb[0].mxu0
    %456 = vmatprep.mubr.f32.mxu0 0.0
    %457 = vmatmul.mubr.f32.gmra.mrb[0].mxu0 %v253
    %v458 = vpop.f32.mrb[0].mxu0
    %v459 = vadd.f32 0.0, %v458
    %v460 = vpop.f32.mrb[0].mxu0
    %461 = vmatprep.mubr.f32.mxu0 0.0
    %462 = vmatmul.mubr.f32.gmra.mrb[0].mxu0 %v256
    %v463 = vpop.f32.mrb[0].mxu0
    %v464 = vadd.f32 0.0, %v463
    %v465 = vpop.f32.mrb[0].mxu0
    %466 = vmatprep.mubr.f32.mxu0 0.0
    %467 = vmatmul.mubr.f32.gmra.mrb[0].mxu0 %v259
    %v468 = vpop.f32.mrb[0].mxu0
    %v469 = vadd.f32 0.0, %v468
    %v470 = vpop.f32.mrb[0].mxu0
    %471 = vmatprep.mubr.f32.mxu0 0.0
    %472 = vmatmul.mubr.f32.gmra.mrb[0].mxu0 %v262
    %v473 = vpop.f32.mrb[0].mxu0
    %v474 = vadd.f32 0.0, %v473
    %v475 = vpop.f32.mrb[0].mxu0
    %476 = vmatprep.mubr.f32.mxu0 0.0
    %477 = vmatmul.mubr.f32.gmra.mrb[0].mxu0 %v265
    %v478 = vpop.f32.mrb[0].mxu0
    %v479 = vadd.f32 0.0, %v478
    %v480 = vpop.f32.mrb[0].mxu0
    %481 = vmatprep.mubr.f32.mxu0 0.0
    %482 = vmatmul.mubr.f32.gmra.mrb[0].mxu0 %v268
    %v483 = vpop.f32.mrb[0].mxu0
    %v484 = vadd.f32 0.0, %v483
    %v485 = vpop.f32.mrb[0].mxu0
    %486 = vmatprep.mubr.f32.mxu0 0.0
    %487 = vmatmul.mubr.f32.gmra.mrb[0].mxu0 %v271
    %v488 = vpop.f32.mrb[0].mxu0
    %v489 = vadd.f32 0.0, %v488
    %v490 = vpop.f32.mrb[0].mxu0
    %491 = vdwg.mxu0
    %s492 = scalar_lea.vmem %s3, 8
    %v493 = vld [vmem:[%s492] sm:$0xf]
    %v495 = vsel %vm273, %v493, 0
    %497 = vmatprep.subr.mxu0 0.0
    %498 = vmatpush1.msra.mxu0 %v495
    %499 = vmatprep.subr.mxu0 0.0
    %500 = vmatpush1.msra.mxu0 0.0
    %501 = vmatprep.subr.mxu0 0.0
    %502 = vmatpush1.msra.mxu0 0.0
    %503 = vmatprep.subr.mxu0 0.0
    %504 = vmatpush1.msra.mxu0 0.0
    %505 = vmatprep.subr.mxu0 0.0
    %506 = vmatpush1.msra.mxu0 0.0
    %507 = vmatprep.subr.mxu0 0.0
    %508 = vmatpush1.msra.mxu0 0.0
    %509 = vmatprep.subr.mxu0 0.0
    %510 = vmatpush1.msra.mxu0 0.0
    %511 = vmatprep.subr.mxu0 0.0
    %512 = vmatpush1.msra.mxu0 0.0
    %513 = vmatprep.subr.mxu0 0.0
    %514 = vmatpush1.msra.mxu0 0.0
    %515 = vmatprep.subr.mxu0 0.0
    %516 = vmatpush1.msra.mxu0 0.0
    %517 = vmatprep.subr.mxu0 0.0
    %518 = vmatpush1.msra.mxu0 0.0
    %519 = vmatprep.subr.mxu0 0.0
    %520 = vmatpush1.msra.mxu0 0.0
    %521 = vmatprep.subr.mxu0 0.0
    %522 = vmatpush1.msra.mxu0 0.0
    %523 = vmatprep.subr.mxu0 0.0
    %524 = vmatpush1.msra.mxu0 0.0
    %525 = vmatprep.subr.mxu0 0.0
    %526 = vmatpush1.msra.mxu0 0.0
    %527 = vmatprep.subr.mxu0 0.0
    %528 = vmatpush1.msra.mxu0 0.0
    %529 = vmatprep.subr.mxu0 0.0
    %530 = vmatpush1.msra.mxu0 0.0
    %531 = vmatprep.subr.mxu0 0.0
    %532 = vmatpush1.msra.mxu0 0.0
    %533 = vmatprep.subr.mxu0 0.0
    %534 = vmatpush1.msra.mxu0 0.0
    %535 = vmatprep.subr.mxu0 0.0
    %536 = vmatpush1.msra.mxu0 0.0
    %537 = vmatprep.subr.mxu0 0.0
    %538 = vmatpush1.msra.mxu0 0.0
    %539 = vmatprep.subr.mxu0 0.0
    %540 = vmatpush1.msra.mxu0 0.0
    %541 = vmatprep.subr.mxu0 0.0
    %542 = vmatpush1.msra.mxu0 0.0
    %543 = vmatprep.subr.mxu0 0.0
    %544 = vmatpush1.msra.mxu0 0.0
    %545 = vmatprep.subr.mxu0 0.0
    %546 = vmatpush1.msra.mxu0 0.0
    %547 = vmatprep.subr.mxu0 0.0
    %548 = vmatpush1.msra.mxu0 0.0
    %549 = vmatprep.subr.mxu0 0.0
    %550 = vmatpush1.msra.mxu0 0.0
    %551 = vmatprep.subr.mxu0 0.0
    %552 = vmatpush1.msra.mxu0 0.0
    %553 = vmatprep.subr.mxu0 0.0
    %554 = vmatpush1.msra.mxu0 0.0
    %555 = vmatprep.subr.mxu0 0.0
    %556 = vmatpush1.msra.mxu0 0.0
    %557 = vmatprep.subr.mxu0 0.0
    %558 = vmatpush1.msra.mxu0 0.0
    %559 = vmatprep.subr.mxu0 0.0
    %560 = vmatpush1.msra.mxu0 0.0
    %561 = vmatprep.mubr.f32.mxu0 0.0
    %562 = vmatmul.mubr.f32.gmra.mrb[0].mxu0 %v250
    %v563 = vpop.f32.mrb[0].mxu0
    %v564 = vadd.f32 0.0, %v563
    %v565 = vpop.f32.mrb[0].mxu0
    %566 = vmatprep.mubr.f32.mxu0 0.0
    %567 = vmatmul.mubr.f32.gmra.mrb[0].mxu0 %v253
    %v568 = vpop.f32.mrb[0].mxu0
    %v569 = vadd.f32 0.0, %v568
    %v570 = vpop.f32.mrb[0].mxu0
    %571 = vmatprep.mubr.f32.mxu0 0.0
    %572 = vmatmul.mubr.f32.gmra.mrb[0].mxu0 %v256
    %v573 = vpop.f32.mrb[0].mxu0
    %v574 = vadd.f32 0.0, %v573
    %v575 = vpop.f32.mrb[0].mxu0
    %576 = vmatprep.mubr.f32.mxu0 0.0
    %577 = vmatmul.mubr.f32.gmra.mrb[0].mxu0 %v259
    %v578 = vpop.f32.mrb[0].mxu0
    %v579 = vadd.f32 0.0, %v578
    %v580 = vpop.f32.mrb[0].mxu0
    %581 = vmatprep.mubr.f32.mxu0 0.0
    %582 = vmatmul.mubr.f32.gmra.mrb[0].mxu0 %v262
    %v583 = vpop.f32.mrb[0].mxu0
    %v584 = vadd.f32 0.0, %v583
    %v585 = vpop.f32.mrb[0].mxu0
    %586 = vmatprep.mubr.f32.mxu0 0.0
    %587 = vmatmul.mubr.f32.gmra.mrb[0].mxu0 %v265
    %v588 = vpop.f32.mrb[0].mxu0
    %v589 = vadd.f32 0.0, %v588
    %v590 = vpop.f32.mrb[0].mxu0
    %591 = vmatprep.mubr.f32.mxu0 0.0
    %592 = vmatmul.mubr.f32.gmra.mrb[0].mxu0 %v268
    %v593 = vpop.f32.mrb[0].mxu0
    %v594 = vadd.f32 0.0, %v593
    %v595 = vpop.f32.mrb[0].mxu0
    %596 = vmatprep.mubr.f32.mxu0 0.0
    %597 = vmatmul.mubr.f32.gmra.mrb[0].mxu0 %v271
    %v598 = vpop.f32.mrb[0].mxu0
    %v599 = vadd.f32 0.0, %v598
    %v600 = vpop.f32.mrb[0].mxu0
    %601 = vdwg.mxu0
    %s602 = scalar_lea.vmem %s3, 12
    %v603 = vld [vmem:[%s602] sm:$0xf]
    %v605 = vsel %vm273, %v603, 0
    %607 = vmatprep.subr.mxu0 0.0
    %608 = vmatpush1.msra.mxu0 %v605
    %609 = vmatprep.subr.mxu0 0.0
    %610 = vmatpush1.msra.mxu0 0.0
    %611 = vmatprep.subr.mxu0 0.0
    %612 = vmatpush1.msra.mxu0 0.0
    %613 = vmatprep.subr.mxu0 0.0
    %614 = vmatpush1.msra.mxu0 0.0
    %615 = vmatprep.subr.mxu0 0.0
    %616 = vmatpush1.msra.mxu0 0.0
    %617 = vmatprep.subr.mxu0 0.0
    %618 = vmatpush1.msra.mxu0 0.0
    %619 = vmatprep.subr.mxu0 0.0
    %620 = vmatpush1.msra.mxu0 0.0
    %621 = vmatprep.subr.mxu0 0.0
    %622 = vmatpush1.msra.mxu0 0.0
    %623 = vmatprep.subr.mxu0 0.0
    %624 = vmatpush1.msra.mxu0 0.0
    %625 = vmatprep.subr.mxu0 0.0
    %626 = vmatpush1.msra.mxu0 0.0
    %627 = vmatprep.subr.mxu0 0.0
    %628 = vmatpush1.msra.mxu0 0.0
    %629 = vmatprep.subr.mxu0 0.0
    %630 = vmatpush1.msra.mxu0 0.0
    %631 = vmatprep.subr.mxu0 0.0
    %632 = vmatpush1.msra.mxu0 0.0
    %633 = vmatprep.subr.mxu0 0.0
    %634 = vmatpush1.msra.mxu0 0.0
    %635 = vmatprep.subr.mxu0 0.0
    %636 = vmatpush1.msra.mxu0 0.0
    %637 = vmatprep.subr.mxu0 0.0
    %638 = vmatpush1.msra.mxu0 0.0
    %639 = vmatprep.subr.mxu0 0.0
    %640 = vmatpush1.msra.mxu0 0.0
    %641 = vmatprep.subr.mxu0 0.0
    %642 = vmatpush1.msra.mxu0 0.0
    %643 = vmatprep.subr.mxu0 0.0
    %644 = vmatpush1.msra.mxu0 0.0
    %645 = vmatprep.subr.mxu0 0.0
    %646 = vmatpush1.msra.mxu0 0.0
    %647 = vmatprep.subr.mxu0 0.0
    %648 = vmatpush1.msra.mxu0 0.0
    %649 = vmatprep.subr.mxu0 0.0
    %650 = vmatpush1.msra.mxu0 0.0
    %651 = vmatprep.subr.mxu0 0.0
    %652 = vmatpush1.msra.mxu0 0.0
    %653 = vmatprep.subr.mxu0 0.0
    %654 = vmatpush1.msra.mxu0 0.0
    %655 = vmatprep.subr.mxu0 0.0
    %656 = vmatpush1.msra.mxu0 0.0
    %657 = vmatprep.subr.mxu0 0.0
    %658 = vmatpush1.msra.mxu0 0.0
    %659 = vmatprep.subr.mxu0 0.0
    %660 = vmatpush1.msra.mxu0 0.0
    %661 = vmatprep.subr.mxu0 0.0
    %662 = vmatpush1.msra.mxu0 0.0
    %663 = vmatprep.subr.mxu0 0.0
    %664 = vmatpush1.msra.mxu0 0.0
    %665 = vmatprep.subr.mxu0 0.0
    %666 = vmatpush1.msra.mxu0 0.0
    %667 = vmatprep.subr.mxu0 0.0
    %668 = vmatpush1.msra.mxu0 0.0
    %669 = vmatprep.subr.mxu0 0.0
    %670 = vmatpush1.msra.mxu0 0.0
    %671 = vmatprep.mubr.f32.mxu0 0.0
    %672 = vmatmul.mubr.f32.gmra.mrb[0].mxu0 %v250
    %v673 = vpop.f32.mrb[0].mxu0
    %v674 = vadd.f32 0.0, %v673
    %v675 = vpop.f32.mrb[0].mxu0
    %676 = vmatprep.mubr.f32.mxu0 0.0
    %677 = vmatmul.mubr.f32.gmra.mrb[0].mxu0 %v253
    %v678 = vpop.f32.mrb[0].mxu0
    %v679 = vadd.f32 0.0, %v678
    %v680 = vpop.f32.mrb[0].mxu0
    %681 = vmatprep.mubr.f32.mxu0 0.0
    %682 = vmatmul.mubr.f32.gmra.mrb[0].mxu0 %v256
    %v683 = vpop.f32.mrb[0].mxu0
    %v684 = vadd.f32 0.0, %v683
    %v685 = vpop.f32.mrb[0].mxu0
    %686 = vmatprep.mubr.f32.mxu0 0.0
    %687 = vmatmul.mubr.f32.gmra.mrb[0].mxu0 %v259
    %v688 = vpop.f32.mrb[0].mxu0
    %v689 = vadd.f32 0.0, %v688
    %v690 = vpop.f32.mrb[0].mxu0
    %691 = vmatprep.mubr.f32.mxu0 0.0
    %692 = vmatmul.mubr.f32.gmra.mrb[0].mxu0 %v262
    %v693 = vpop.f32.mrb[0].mxu0
    %v694 = vadd.f32 0.0, %v693
    %v695 = vpop.f32.mrb[0].mxu0
    %696 = vmatprep.mubr.f32.mxu0 0.0
    %697 = vmatmul.mubr.f32.gmra.mrb[0].mxu0 %v265
    %v698 = vpop.f32.mrb[0].mxu0
    %v699 = vadd.f32 0.0, %v698
    %v700 = vpop.f32.mrb[0].mxu0
    %701 = vmatprep.mubr.f32.mxu0 0.0
    %702 = vmatmul.mubr.f32.gmra.mrb[0].mxu0 %v268
    %v703 = vpop.f32.mrb[0].mxu0
    %v704 = vadd.f32 0.0, %v703
    %v705 = vpop.f32.mrb[0].mxu0
    %706 = vmatprep.mubr.f32.mxu0 0.0
    %707 = vmatmul.mubr.f32.gmra.mrb[0].mxu0 %v271
    %v708 = vpop.f32.mrb[0].mxu0
    %v709 = vadd.f32 0.0, %v708
    %v710 = vpop.f32.mrb[0].mxu0
    %711 = vdwg.mxu0
    %v712 = vld [vmem:[%s6] sm:$0xf]
    %v714 = vsel %vm248, %v239, 0
    %v717 = vsel %vm248, %v240, 0
    %v720 = vsel %vm248, %v241, 0
    %v723 = vsel %vm248, %v242, 0
    %v726 = vsel %vm248, %v243, 0
    %v729 = vsel %vm248, %v244, 0
    %v732 = vsel %vm248, %v245, 0
    %v735 = vsel %vm248, %v246, 0
    %v738 = vsel %vm273, %v712, 0
    %740 = vmatprep.subr.mxu0 0.0
    %741 = vmatpush1.msra.mxu0 %v738
    %742 = vmatprep.subr.mxu0 0.0
    %743 = vmatpush1.msra.mxu0 0.0
    %744 = vmatprep.subr.mxu0 0.0
    %745 = vmatpush1.msra.mxu0 0.0
    %746 = vmatprep.subr.mxu0 0.0
    %747 = vmatpush1.msra.mxu0 0.0
    %748 = vmatprep.subr.mxu0 0.0
    %749 = vmatpush1.msra.mxu0 0.0
    %750 = vmatprep.subr.mxu0 0.0
    %751 = vmatpush1.msra.mxu0 0.0
    %752 = vmatprep.subr.mxu0 0.0
    %753 = vmatpush1.msra.mxu0 0.0
    %754 = vmatprep.subr.mxu0 0.0
    %755 = vmatpush1.msra.mxu0 0.0
    %756 = vmatprep.subr.mxu0 0.0
    %757 = vmatpush1.msra.mxu0 0.0
    %758 = vmatprep.subr.mxu0 0.0
    %759 = vmatpush1.msra.mxu0 0.0
    %760 = vmatprep.subr.mxu0 0.0
    %761 = vmatpush1.msra.mxu0 0.0
    %762 = vmatprep.subr.mxu0 0.0
    %763 = vmatpush1.msra.mxu0 0.0
    %764 = vmatprep.subr.mxu0 0.0
    %765 = vmatpush1.msra.mxu0 0.0
    %766 = vmatprep.subr.mxu0 0.0
    %767 = vmatpush1.msra.mxu0 0.0
    %768 = vmatprep.subr.mxu0 0.0
    %769 = vmatpush1.msra.mxu0 0.0
    %770 = vmatprep.subr.mxu0 0.0
    %771 = vmatpush1.msra.mxu0 0.0
    %772 = vmatprep.subr.mxu0 0.0
    %773 = vmatpush1.msra.mxu0 0.0
    %774 = vmatprep.subr.mxu0 0.0
    %775 = vmatpush1.msra.mxu0 0.0
    %776 = vmatprep.subr.mxu0 0.0
    %777 = vmatpush1.msra.mxu0 0.0
    %778 = vmatprep.subr.mxu0 0.0
    %779 = vmatpush1.msra.mxu0 0.0
    %780 = vmatprep.subr.mxu0 0.0
    %781 = vmatpush1.msra.mxu0 0.0
    %782 = vmatprep.subr.mxu0 0.0
    %783 = vmatpush1.msra.mxu0 0.0
    %784 = vmatprep.subr.mxu0 0.0
    %785 = vmatpush1.msra.mxu0 0.0
    %786 = vmatprep.subr.mxu0 0.0
    %787 = vmatpush1.msra.mxu0 0.0
    %788 = vmatprep.subr.mxu0 0.0
    %789 = vmatpush1.msra.mxu0 0.0
    %790 = vmatprep.subr.mxu0 0.0
    %791 = vmatpush1.msra.mxu0 0.0
    %792 = vmatprep.subr.mxu0 0.0
    %793 = vmatpush1.msra.mxu0 0.0
    %794 = vmatprep.subr.mxu0 0.0
    %795 = vmatpush1.msra.mxu0 0.0
    %796 = vmatprep.subr.mxu0 0.0
    %797 = vmatpush1.msra.mxu0 0.0
    %798 = vmatprep.subr.mxu0 0.0
    %799 = vmatpush1.msra.mxu0 0.0
    %800 = vmatprep.subr.mxu0 0.0
    %801 = vmatpush1.msra.mxu0 0.0
    %802 = vmatprep.subr.mxu0 0.0
    %803 = vmatpush1.msra.mxu0 0.0
    %804 = vmatprep.mubr.f32.mxu0 0.0
    %805 = vmatmul.mubr.f32.gmra.mrb[0].mxu0 %v714
    %v806 = vpop.f32.mrb[0].mxu0
    %v807 = vpop.f32.mrb[0].mxu0
    %808 = vmatprep.mubr.f32.mxu0 0.0
    %809 = vmatmul.mubr.f32.gmra.mrb[0].mxu0 %v717
    %v810 = vpop.f32.mrb[0].mxu0
    %v811 = vadd.f32 0.0, %v810
    %v812 = vpop.f32.mrb[0].mxu0
    %813 = vmatprep.mubr.f32.mxu0 0.0
    %814 = vmatmul.mubr.f32.gmra.mrb[0].mxu0 %v720
    %v815 = vpop.f32.mrb[0].mxu0
    %v816 = vadd.f32 0.0, %v815
    %v817 = vpop.f32.mrb[0].mxu0
    %818 = vmatprep.mubr.f32.mxu0 0.0
    %819 = vmatmul.mubr.f32.gmra.mrb[0].mxu0 %v723
    %v820 = vpop.f32.mrb[0].mxu0
    %v821 = vadd.f32 0.0, %v820
    %v822 = vpop.f32.mrb[0].mxu0
    %823 = vmatprep.mubr.f32.mxu0 0.0
    %824 = vmatmul.mubr.f32.gmra.mrb[0].mxu0 %v726
    %v825 = vpop.f32.mrb[0].mxu0
    %v826 = vadd.f32 0.0, %v825
    %v827 = vpop.f32.mrb[0].mxu0
    %828 = vmatprep.mubr.f32.mxu0 0.0
    %829 = vmatmul.mubr.f32.gmra.mrb[0].mxu0 %v729
    %v830 = vpop.f32.mrb[0].mxu0
    %v831 = vadd.f32 0.0, %v830
    %v832 = vpop.f32.mrb[0].mxu0
    %833 = vmatprep.mubr.f32.mxu0 0.0
    %834 = vmatmul.mubr.f32.gmra.mrb[0].mxu0 %v732
    %v835 = vpop.f32.mrb[0].mxu0
    %v836 = vadd.f32 0.0, %v835
    %v837 = vpop.f32.mrb[0].mxu0
    %838 = vmatprep.mubr.f32.mxu0 0.0
    %839 = vmatmul.mubr.f32.gmra.mrb[0].mxu0 %v735
    %v840 = vpop.f32.mrb[0].mxu0
    %v841 = vpop.f32.mrb[0].mxu0
    %842 = vdwg.mxu0
    %s843 = scalar_lea.vmem %s6, 4
    %v844 = vld [vmem:[%s843] sm:$0xf]
    %v846 = vsel %vm273, %v844, 0
    %848 = vmatprep.subr.mxu0 0.0
    %849 = vmatpush1.msra.mxu0 %v846
    %850 = vmatprep.subr.mxu0 0.0
    %851 = vmatpush1.msra.mxu0 0.0
    %852 = vmatprep.subr.mxu0 0.0
    %853 = vmatpush1.msra.mxu0 0.0
    %854 = vmatprep.subr.mxu0 0.0
    %855 = vmatpush1.msra.mxu0 0.0
    %856 = vmatprep.subr.mxu0 0.0
    %857 = vmatpush1.msra.mxu0 0.0
    %858 = vmatprep.subr.mxu0 0.0
    %859 = vmatpush1.msra.mxu0 0.0
    %860 = vmatprep.subr.mxu0 0.0
    %861 = vmatpush1.msra.mxu0 0.0
    %862 = vmatprep.subr.mxu0 0.0
    %863 = vmatpush1.msra.mxu0 0.0
    %864 = vmatprep.subr.mxu0 0.0
    %865 = vmatpush1.msra.mxu0 0.0
    %866 = vmatprep.subr.mxu0 0.0
    %867 = vmatpush1.msra.mxu0 0.0
    %868 = vmatprep.subr.mxu0 0.0
    %869 = vmatpush1.msra.mxu0 0.0
    %870 = vmatprep.subr.mxu0 0.0
    %871 = vmatpush1.msra.mxu0 0.0
    %872 = vmatprep.subr.mxu0 0.0
    %873 = vmatpush1.msra.mxu0 0.0
    %874 = vmatprep.subr.mxu0 0.0
    %875 = vmatpush1.msra.mxu0 0.0
    %876 = vmatprep.subr.mxu0 0.0
    %877 = vmatpush1.msra.mxu0 0.0
    %878 = vmatprep.subr.mxu0 0.0
    %879 = vmatpush1.msra.mxu0 0.0
    %880 = vmatprep.subr.mxu0 0.0
    %881 = vmatpush1.msra.mxu0 0.0
    %882 = vmatprep.subr.mxu0 0.0
    %883 = vmatpush1.msra.mxu0 0.0
    %884 = vmatprep.subr.mxu0 0.0
    %885 = vmatpush1.msra.mxu0 0.0
    %886 = vmatprep.subr.mxu0 0.0
    %887 = vmatpush1.msra.mxu0 0.0
    %888 = vmatprep.subr.mxu0 0.0
    %889 = vmatpush1.msra.mxu0 0.0
    %890 = vmatprep.subr.mxu0 0.0
    %891 = vmatpush1.msra.mxu0 0.0
    %892 = vmatprep.subr.mxu0 0.0
    %893 = vmatpush1.msra.mxu0 0.0
    %894 = vmatprep.subr.mxu0 0.0
    %895 = vmatpush1.msra.mxu0 0.0
    %896 = vmatprep.subr.mxu0 0.0
    %897 = vmatpush1.msra.mxu0 0.0
    %898 = vmatprep.subr.mxu0 0.0
    %899 = vmatpush1.msra.mxu0 0.0
    %900 = vmatprep.subr.mxu0 0.0
    %901 = vmatpush1.msra.mxu0 0.0
    %902 = vmatprep.subr.mxu0 0.0
    %903 = vmatpush1.msra.mxu0 0.0
    %904 = vmatprep.subr.mxu0 0.0
    %905 = vmatpush1.msra.mxu0 0.0
    %906 = vmatprep.subr.mxu0 0.0
    %907 = vmatpush1.msra.mxu0 0.0
    %908 = vmatprep.subr.mxu0 0.0
    %909 = vmatpush1.msra.mxu0 0.0
    %910 = vmatprep.subr.mxu0 0.0
    %911 = vmatpush1.msra.mxu0 0.0
    %912 = vmatprep.mubr.f32.mxu0 0.0
    %913 = vmatmul.mubr.f32.gmra.mrb[0].mxu0 %v714
    %v914 = vpop.f32.mrb[0].mxu0
    %v915 = vpop.f32.mrb[0].mxu0
    %916 = vmatprep.mubr.f32.mxu0 0.0
    %917 = vmatmul.mubr.f32.gmra.mrb[0].mxu0 %v717
    %v918 = vpop.f32.mrb[0].mxu0
    %v919 = vadd.f32 0.0, %v918
    %v920 = vpop.f32.mrb[0].mxu0
    %921 = vmatprep.mubr.f32.mxu0 0.0
    %922 = vmatmul.mubr.f32.gmra.mrb[0].mxu0 %v720
    %v923 = vpop.f32.mrb[0].mxu0
    %v924 = vadd.f32 0.0, %v923
    %v925 = vpop.f32.mrb[0].mxu0
    %926 = vmatprep.mubr.f32.mxu0 0.0
    %927 = vmatmul.mubr.f32.gmra.mrb[0].mxu0 %v723
    %v928 = vpop.f32.mrb[0].mxu0
    %v929 = vadd.f32 0.0, %v928
    %v930 = vpop.f32.mrb[0].mxu0
    %931 = vmatprep.mubr.f32.mxu0 0.0
    %932 = vmatmul.mubr.f32.gmra.mrb[0].mxu0 %v726
    %v933 = vpop.f32.mrb[0].mxu0
    %v934 = vadd.f32 0.0, %v933
    %v935 = vpop.f32.mrb[0].mxu0
    %936 = vmatprep.mubr.f32.mxu0 0.0
    %937 = vmatmul.mubr.f32.gmra.mrb[0].mxu0 %v729
    %v938 = vpop.f32.mrb[0].mxu0
    %v939 = vadd.f32 0.0, %v938
    %v940 = vpop.f32.mrb[0].mxu0
    %941 = vmatprep.mubr.f32.mxu0 0.0
    %942 = vmatmul.mubr.f32.gmra.mrb[0].mxu0 %v732
    %v943 = vpop.f32.mrb[0].mxu0
    %v944 = vadd.f32 0.0, %v943
    %v945 = vpop.f32.mrb[0].mxu0
    %946 = vmatprep.mubr.f32.mxu0 0.0
    %947 = vmatmul.mubr.f32.gmra.mrb[0].mxu0 %v735
    %v948 = vpop.f32.mrb[0].mxu0
    %v949 = vpop.f32.mrb[0].mxu0
    %950 = vdwg.mxu0
    %s951 = scalar_lea.vmem %s6, 8
    %v952 = vld [vmem:[%s951] sm:$0xf]
    %v954 = vsel %vm273, %v952, 0
    %956 = vmatprep.subr.mxu0 0.0
    %957 = vmatpush1.msra.mxu0 %v954
    %958 = vmatprep.subr.mxu0 0.0
    %959 = vmatpush1.msra.mxu0 0.0
    %960 = vmatprep.subr.mxu0 0.0
    %961 = vmatpush1.msra.mxu0 0.0
    %962 = vmatprep.subr.mxu0 0.0
    %963 = vmatpush1.msra.mxu0 0.0
    %964 = vmatprep.subr.mxu0 0.0
    %965 = vmatpush1.msra.mxu0 0.0
    %966 = vmatprep.subr.mxu0 0.0
    %967 = vmatpush1.msra.mxu0 0.0
    %968 = vmatprep.subr.mxu0 0.0
    %969 = vmatpush1.msra.mxu0 0.0
    %970 = vmatprep.subr.mxu0 0.0
    %971 = vmatpush1.msra.mxu0 0.0
    %972 = vmatprep.subr.mxu0 0.0
    %973 = vmatpush1.msra.mxu0 0.0
    %974 = vmatprep.subr.mxu0 0.0
    %975 = vmatpush1.msra.mxu0 0.0
    %976 = vmatprep.subr.mxu0 0.0
    %977 = vmatpush1.msra.mxu0 0.0
    %978 = vmatprep.subr.mxu0 0.0
    %979 = vmatpush1.msra.mxu0 0.0
    %980 = vmatprep.subr.mxu0 0.0
    %981 = vmatpush1.msra.mxu0 0.0
    %982 = vmatprep.subr.mxu0 0.0
    %983 = vmatpush1.msra.mxu0 0.0
    %984 = vmatprep.subr.mxu0 0.0
    %985 = vmatpush1.msra.mxu0 0.0
    %986 = vmatprep.subr.mxu0 0.0
    %987 = vmatpush1.msra.mxu0 0.0
    %988 = vmatprep.subr.mxu0 0.0
    %989 = vmatpush1.msra.mxu0 0.0
    %990 = vmatprep.subr.mxu0 0.0
    %991 = vmatpush1.msra.mxu0 0.0
    %992 = vmatprep.subr.mxu0 0.0
    %993 = vmatpush1.msra.mxu0 0.0
    %994 = vmatprep.subr.mxu0 0.0
    %995 = vmatpush1.msra.mxu0 0.0
    %996 = vmatprep.subr.mxu0 0.0
    %997 = vmatpush1.msra.mxu0 0.0
    %998 = vmatprep.subr.mxu0 0.0
    %999 = vmatpush1.msra.mxu0 0.0
    %1000 = vmatprep.subr.mxu0 0.0
    %1001 = vmatpush1.msra.mxu0 0.0
    %1002 = vmatprep.subr.mxu0 0.0
    %1003 = vmatpush1.msra.mxu0 0.0
    %1004 = vmatprep.subr.mxu0 0.0
    %1005 = vmatpush1.msra.mxu0 0.0
    %1006 = vmatprep.subr.mxu0 0.0
    %1007 = vmatpush1.msra.mxu0 0.0
    %1008 = vmatprep.subr.mxu0 0.0
    %1009 = vmatpush1.msra.mxu0 0.0
    %1010 = vmatprep.subr.mxu0 0.0
    %1011 = vmatpush1.msra.mxu0 0.0
    %1012 = vmatprep.subr.mxu0 0.0
    %1013 = vmatpush1.msra.mxu0 0.0
    %1014 = vmatprep.subr.mxu0 0.0
    %1015 = vmatpush1.msra.mxu0 0.0
    %1016 = vmatprep.subr.mxu0 0.0
    %1017 = vmatpush1.msra.mxu0 0.0
    %1018 = vmatprep.subr.mxu0 0.0
    %1019 = vmatpush1.msra.mxu0 0.0
    %1020 = vmatprep.mubr.f32.mxu0 0.0
    %1021 = vmatmul.mubr.f32.gmra.mrb[0].mxu0 %v714
    %v1022 = vpop.f32.mrb[0].mxu0
    %v1023 = vpop.f32.mrb[0].mxu0
    %1024 = vmatprep.mubr.f32.mxu0 0.0
    %1025 = vmatmul.mubr.f32.gmra.mrb[0].mxu0 %v717
    %v1026 = vpop.f32.mrb[0].mxu0
    %v1027 = vadd.f32 0.0, %v1026
    %v1028 = vpop.f32.mrb[0].mxu0
    %1029 = vmatprep.mubr.f32.mxu0 0.0
    %1030 = vmatmul.mubr.f32.gmra.mrb[0].mxu0 %v720
    %v1031 = vpop.f32.mrb[0].mxu0
    %v1032 = vadd.f32 0.0, %v1031
    %v1033 = vpop.f32.mrb[0].mxu0
    %1034 = vmatprep.mubr.f32.mxu0 0.0
    %1035 = vmatmul.mubr.f32.gmra.mrb[0].mxu0 %v723
    %v1036 = vpop.f32.mrb[0].mxu0
    %v1037 = vadd.f32 0.0, %v1036
    %v1038 = vpop.f32.mrb[0].mxu0
    %1039 = vmatprep.mubr.f32.mxu0 0.0
    %1040 = vmatmul.mubr.f32.gmra.mrb[0].mxu0 %v726
    %v1041 = vpop.f32.mrb[0].mxu0
    %v1042 = vadd.f32 0.0, %v1041
    %v1043 = vpop.f32.mrb[0].mxu0
    %1044 = vmatprep.mubr.f32.mxu0 0.0
    %1045 = vmatmul.mubr.f32.gmra.mrb[0].mxu0 %v729
    %v1046 = vpop.f32.mrb[0].mxu0
    %v1047 = vadd.f32 0.0, %v1046
    %v1048 = vpop.f32.mrb[0].mxu0
    %1049 = vmatprep.mubr.f32.mxu0 0.0
    %1050 = vmatmul.mubr.f32.gmra.mrb[0].mxu0 %v732
    %v1051 = vpop.f32.mrb[0].mxu0
    %v1052 = vadd.f32 0.0, %v1051
    %v1053 = vpop.f32.mrb[0].mxu0
    %1054 = vmatprep.mubr.f32.mxu0 0.0
    %1055 = vmatmul.mubr.f32.gmra.mrb[0].mxu0 %v735
    %v1056 = vpop.f32.mrb[0].mxu0
    %v1057 = vpop.f32.mrb[0].mxu0
    %1058 = vdwg.mxu0
    %s1059 = scalar_lea.vmem %s6, 12
    %v1060 = vld [vmem:[%s1059] sm:$0xf]
    %v1062 = vsel %vm273, %v1060, 0
    %1064 = vmatprep.subr.mxu0 0.0
    %1065 = vmatpush1.msra.mxu0 %v1062
    %1066 = vmatprep.subr.mxu0 0.0
    %1067 = vmatpush1.msra.mxu0 0.0
    %1068 = vmatprep.subr.mxu0 0.0
    %1069 = vmatpush1.msra.mxu0 0.0
    %1070 = vmatprep.subr.mxu0 0.0
    %1071 = vmatpush1.msra.mxu0 0.0
    %1072 = vmatprep.subr.mxu0 0.0
    %1073 = vmatpush1.msra.mxu0 0.0
    %1074 = vmatprep.subr.mxu0 0.0
    %1075 = vmatpush1.msra.mxu0 0.0
    %1076 = vmatprep.subr.mxu0 0.0
    %1077 = vmatpush1.msra.mxu0 0.0
    %1078 = vmatprep.subr.mxu0 0.0
    %1079 = vmatpush1.msra.mxu0 0.0
    %1080 = vmatprep.subr.mxu0 0.0
    %1081 = vmatpush1.msra.mxu0 0.0
    %1082 = vmatprep.subr.mxu0 0.0
    %1083 = vmatpush1.msra.mxu0 0.0
    %1084 = vmatprep.subr.mxu0 0.0
    %1085 = vmatpush1.msra.mxu0 0.0
    %1086 = vmatprep.subr.mxu0 0.0
    %1087 = vmatpush1.msra.mxu0 0.0
    %1088 = vmatprep.subr.mxu0 0.0
    %1089 = vmatpush1.msra.mxu0 0.0
    %1090 = vmatprep.subr.mxu0 0.0
    %1091 = vmatpush1.msra.mxu0 0.0
    %1092 = vmatprep.subr.mxu0 0.0
    %1093 = vmatpush1.msra.mxu0 0.0
    %1094 = vmatprep.subr.mxu0 0.0
    %1095 = vmatpush1.msra.mxu0 0.0
    %1096 = vmatprep.subr.mxu0 0.0
    %1097 = vmatpush1.msra.mxu0 0.0
    %1098 = vmatprep.subr.mxu0 0.0
    %1099 = vmatpush1.msra.mxu0 0.0
    %1100 = vmatprep.subr.mxu0 0.0
    %1101 = vmatpush1.msra.mxu0 0.0
    %1102 = vmatprep.subr.mxu0 0.0
    %1103 = vmatpush1.msra.mxu0 0.0
    %1104 = vmatprep.subr.mxu0 0.0
    %1105 = vmatpush1.msra.mxu0 0.0
    %1106 = vmatprep.subr.mxu0 0.0
    %1107 = vmatpush1.msra.mxu0 0.0
    %1108 = vmatprep.subr.mxu0 0.0
    %1109 = vmatpush1.msra.mxu0 0.0
    %1110 = vmatprep.subr.mxu0 0.0
    %1111 = vmatpush1.msra.mxu0 0.0
    %1112 = vmatprep.subr.mxu0 0.0
    %1113 = vmatpush1.msra.mxu0 0.0
    %1114 = vmatprep.subr.mxu0 0.0
    %1115 = vmatpush1.msra.mxu0 0.0
    %1116 = vmatprep.subr.mxu0 0.0
    %1117 = vmatpush1.msra.mxu0 0.0
    %1118 = vmatprep.subr.mxu0 0.0
    %1119 = vmatpush1.msra.mxu0 0.0
    %1120 = vmatprep.subr.mxu0 0.0
    %1121 = vmatpush1.msra.mxu0 0.0
    %1122 = vmatprep.subr.mxu0 0.0
    %1123 = vmatpush1.msra.mxu0 0.0
    %1124 = vmatprep.subr.mxu0 0.0
    %1125 = vmatpush1.msra.mxu0 0.0
    %1126 = vmatprep.subr.mxu0 0.0
    %1127 = vmatpush1.msra.mxu0 0.0
    %1128 = vmatprep.mubr.f32.mxu0 0.0
    %1129 = vmatmul.mubr.f32.gmra.mrb[0].mxu0 %v714
    %v1130 = vpop.f32.mrb[0].mxu0
    %v1131 = vpop.f32.mrb[0].mxu0
    %1132 = vmatprep.mubr.f32.mxu0 0.0
    %1133 = vmatmul.mubr.f32.gmra.mrb[0].mxu0 %v717
    %v1134 = vpop.f32.mrb[0].mxu0
    %v1135 = vadd.f32 0.0, %v1134
    %v1136 = vpop.f32.mrb[0].mxu0
    %1137 = vmatprep.mubr.f32.mxu0 0.0
    %1138 = vmatmul.mubr.f32.gmra.mrb[0].mxu0 %v720
    %v1139 = vpop.f32.mrb[0].mxu0
    %v1140 = vadd.f32 0.0, %v1139
    %v1141 = vpop.f32.mrb[0].mxu0
    %1142 = vmatprep.mubr.f32.mxu0 0.0
    %1143 = vmatmul.mubr.f32.gmra.mrb[0].mxu0 %v723
    %v1144 = vpop.f32.mrb[0].mxu0
    %v1145 = vadd.f32 0.0, %v1144
    %v1146 = vpop.f32.mrb[0].mxu0
    %1147 = vmatprep.mubr.f32.mxu0 0.0
    %1148 = vmatmul.mubr.f32.gmra.mrb[0].mxu0 %v726
    %v1149 = vpop.f32.mrb[0].mxu0
    %v1150 = vadd.f32 0.0, %v1149
    %v1151 = vpop.f32.mrb[0].mxu0
    %1152 = vmatprep.mubr.f32.mxu0 0.0
    %1153 = vmatmul.mubr.f32.gmra.mrb[0].mxu0 %v729
    %v1154 = vpop.f32.mrb[0].mxu0
    %v1155 = vadd.f32 0.0, %v1154
    %v1156 = vpop.f32.mrb[0].mxu0
    %1157 = vmatprep.mubr.f32.mxu0 0.0
    %1158 = vmatmul.mubr.f32.gmra.mrb[0].mxu0 %v732
    %v1159 = vpop.f32.mrb[0].mxu0
    %v1160 = vadd.f32 0.0, %v1159
    %v1161 = vpop.f32.mrb[0].mxu0
    %1162 = vmatprep.mubr.f32.mxu0 0.0
    %1163 = vmatmul.mubr.f32.gmra.mrb[0].mxu0 %v735
    %v1164 = vpop.f32.mrb[0].mxu0
    %v1165 = vpop.f32.mrb[0].mxu0
    %1166 = vdwg.mxu0
    %vm1167 = vcmask 261120
    %v1169 = vsel %vm1167, 0.0, 0
    %1171 = vmatprep.subr.mxu0 0.0
    %1172 = vmatpush1.msra.mxu0 %v76
    %1173 = vmatprep.subr.mxu0 0.0
    %1174 = vmatpush1.msra.mxu0 %v77
    %1175 = vmatprep.subr.mxu0 0.0
    %1176 = vmatpush1.msra.mxu0 %v78
    %1177 = vmatprep.subr.mxu0 0.0
    %1178 = vmatpush1.msra.mxu0 %v79
    %1179 = vmatprep.subr.mxu0 0.0
    %1180 = vmatpush1.msra.mxu0 0.0
    %1181 = vmatprep.subr.mxu0 0.0
    %1182 = vmatpush1.msra.mxu0 0.0
    %1183 = vmatprep.subr.mxu0 0.0
    %1184 = vmatpush1.msra.mxu0 0.0
    %1185 = vmatprep.subr.mxu0 0.0
    %1186 = vmatpush1.msra.mxu0 0.0
    %1187 = vmatprep.subr.mxu0 0.0
    %1188 = vmatpush1.msra.mxu0 0.0
    %1189 = vmatprep.subr.mxu0 0.0
    %1190 = vmatpush1.msra.mxu0 0.0
    %1191 = vmatprep.subr.mxu0 0.0
    %1192 = vmatpush1.msra.mxu0 0.0
    %1193 = vmatprep.subr.mxu0 0.0
    %1194 = vmatpush1.msra.mxu0 0.0
    %1195 = vmatprep.subr.mxu0 0.0
    %1196 = vmatpush1.msra.mxu0 0.0
    %1197 = vmatprep.subr.mxu0 0.0
    %1198 = vmatpush1.msra.mxu0 0.0
    %1199 = vmatprep.subr.mxu0 0.0
    %1200 = vmatpush1.msra.mxu0 0.0
    %1201 = vmatprep.subr.mxu0 0.0
    %1202 = vmatpush1.msra.mxu0 0.0
    %1203 = vmatprep.subr.mxu0 0.0
    %1204 = vmatpush1.msra.mxu0 0.0
    %1205 = vmatprep.subr.mxu0 0.0
    %1206 = vmatpush1.msra.mxu0 0.0
    %1207 = vmatprep.subr.mxu0 0.0
    %1208 = vmatpush1.msra.mxu0 0.0
    %1209 = vmatprep.subr.mxu0 0.0
    %1210 = vmatpush1.msra.mxu0 0.0
    %1211 = vmatprep.subr.mxu0 0.0
    %1212 = vmatpush1.msra.mxu0 0.0
    %1213 = vmatprep.subr.mxu0 0.0
    %1214 = vmatpush1.msra.mxu0 0.0
    %1215 = vmatprep.subr.mxu0 0.0
    %1216 = vmatpush1.msra.mxu0 0.0
    %1217 = vmatprep.subr.mxu0 0.0
    %1218 = vmatpush1.msra.mxu0 0.0
    %1219 = vmatprep.subr.mxu0 0.0
    %1220 = vmatpush1.msra.mxu0 0.0
    %1221 = vmatprep.subr.mxu0 0.0
    %1222 = vmatpush1.msra.mxu0 0.0
    %1223 = vmatprep.subr.mxu0 0.0
    %1224 = vmatpush1.msra.mxu0 0.0
    %1225 = vmatprep.subr.mxu0 0.0
    %1226 = vmatpush1.msra.mxu0 0.0
    %1227 = vmatprep.subr.mxu0 0.0
    %1228 = vmatpush1.msra.mxu0 0.0
    %1229 = vmatprep.subr.mxu0 0.0
    %1230 = vmatpush1.msra.mxu0 0.0
    %1231 = vmatprep.subr.mxu0 0.0
    %1232 = vmatpush1.msra.mxu0 0.0
    %1233 = vmatprep.subr.mxu0 0.0
    %1234 = vmatpush1.msra.mxu0 0.0
    %1235 = vmatprep.mubr.f32.mxu0 0.0
    %1236 = vmatmul.mubr.f32.gmra.mrb[0].mxu0 %v1169
    %v1237 = vpop.f32.mrb[0].mxu0
    %v1238 = vadd.f32 0.0, %v1237
    %v1239 = vpop.f32.mrb[0].mxu0
    %1240 = vdwg.mxu0
    %v1241 = vadd.f32 %v344, %v1238
    %v1242 = vadd.f32 %v1241, %v138
    %1243 = vmatprep.subr.mxu0 0.0
    %1244 = vmatpush1.msra.mxu0 %v81
    %1245 = vmatprep.subr.mxu0 0.0
    %1246 = vmatpush1.msra.mxu0 %v82
    %1247 = vmatprep.subr.mxu0 0.0
    %1248 = vmatpush1.msra.mxu0 %v83
    %1249 = vmatprep.subr.mxu0 0.0
    %1250 = vmatpush1.msra.mxu0 %v84
    %1251 = vmatprep.subr.mxu0 0.0
    %1252 = vmatpush1.msra.mxu0 0.0
    %1253 = vmatprep.subr.mxu0 0.0
    %1254 = vmatpush1.msra.mxu0 0.0
    %1255 = vmatprep.subr.mxu0 0.0
    %1256 = vmatpush1.msra.mxu0 0.0
    %1257 = vmatprep.subr.mxu0 0.0
    %1258 = vmatpush1.msra.mxu0 0.0
    %1259 = vmatprep.subr.mxu0 0.0
    %1260 = vmatpush1.msra.mxu0 0.0
    %1261 = vmatprep.subr.mxu0 0.0
    %1262 = vmatpush1.msra.mxu0 0.0
    %1263 = vmatprep.subr.mxu0 0.0
    %1264 = vmatpush1.msra.mxu0 0.0
    %1265 = vmatprep.subr.mxu0 0.0
    %1266 = vmatpush1.msra.mxu0 0.0
    %1267 = vmatprep.subr.mxu0 0.0
    %1268 = vmatpush1.msra.mxu0 0.0
    %1269 = vmatprep.subr.mxu0 0.0
    %1270 = vmatpush1.msra.mxu0 0.0
    %1271 = vmatprep.subr.mxu0 0.0
    %1272 = vmatpush1.msra.mxu0 0.0
    %1273 = vmatprep.subr.mxu0 0.0
    %1274 = vmatpush1.msra.mxu0 0.0
    %1275 = vmatprep.subr.mxu0 0.0
    %1276 = vmatpush1.msra.mxu0 0.0
    %1277 = vmatprep.subr.mxu0 0.0
    %1278 = vmatpush1.msra.mxu0 0.0
    %1279 = vmatprep.subr.mxu0 0.0
    %1280 = vmatpush1.msra.mxu0 0.0
    %1281 = vmatprep.subr.mxu0 0.0
    %1282 = vmatpush1.msra.mxu0 0.0
    %1283 = vmatprep.subr.mxu0 0.0
    %1284 = vmatpush1.msra.mxu0 0.0
    %1285 = vmatprep.subr.mxu0 0.0
    %1286 = vmatpush1.msra.mxu0 0.0
    %1287 = vmatprep.subr.mxu0 0.0
    %1288 = vmatpush1.msra.mxu0 0.0
    %1289 = vmatprep.subr.mxu0 0.0
    %1290 = vmatpush1.msra.mxu0 0.0
    %1291 = vmatprep.subr.mxu0 0.0
    %1292 = vmatpush1.msra.mxu0 0.0
    %1293 = vmatprep.subr.mxu0 0.0
    %1294 = vmatpush1.msra.mxu0 0.0
    %1295 = vmatprep.subr.mxu0 0.0
    %1296 = vmatpush1.msra.mxu0 0.0
    %1297 = vmatprep.subr.mxu0 0.0
    %1298 = vmatpush1.msra.mxu0 0.0
    %1299 = vmatprep.subr.mxu0 0.0
    %1300 = vmatpush1.msra.mxu0 0.0
    %1301 = vmatprep.subr.mxu0 0.0
    %1302 = vmatpush1.msra.mxu0 0.0
    %1303 = vmatprep.subr.mxu0 0.0
    %1304 = vmatpush1.msra.mxu0 0.0
    %1305 = vmatprep.subr.mxu0 0.0
    %1306 = vmatpush1.msra.mxu0 0.0
    %1307 = vmatprep.mubr.f32.mxu0 0.0
    %1308 = vmatmul.mubr.f32.gmra.mrb[0].mxu0 %v1169
    %v1309 = vpop.f32.mrb[0].mxu0
    %v1310 = vadd.f32 0.0, %v1309
    %v1311 = vpop.f32.mrb[0].mxu0
    %1312 = vdwg.mxu0
    %v1313 = vadd.f32 %v454, %v1310
    %v1314 = vadd.f32 %v1313, %v146
    %1315 = vmatprep.subr.mxu0 0.0
    %1316 = vmatpush1.msra.mxu0 %v86
    %1317 = vmatprep.subr.mxu0 0.0
    %1318 = vmatpush1.msra.mxu0 %v87
    %1319 = vmatprep.subr.mxu0 0.0
    %1320 = vmatpush1.msra.mxu0 %v88
    %1321 = vmatprep.subr.mxu0 0.0
    %1322 = vmatpush1.msra.mxu0 %v89
    %1323 = vmatprep.subr.mxu0 0.0
    %1324 = vmatpush1.msra.mxu0 0.0
    %1325 = vmatprep.subr.mxu0 0.0
    %1326 = vmatpush1.msra.mxu0 0.0
    %1327 = vmatprep.subr.mxu0 0.0
    %1328 = vmatpush1.msra.mxu0 0.0
    %1329 = vmatprep.subr.mxu0 0.0
    %1330 = vmatpush1.msra.mxu0 0.0
    %1331 = vmatprep.subr.mxu0 0.0
    %1332 = vmatpush1.msra.mxu0 0.0
    %1333 = vmatprep.subr.mxu0 0.0
    %1334 = vmatpush1.msra.mxu0 0.0
    %1335 = vmatprep.subr.mxu0 0.0
    %1336 = vmatpush1.msra.mxu0 0.0
    %1337 = vmatprep.subr.mxu0 0.0
    %1338 = vmatpush1.msra.mxu0 0.0
    %1339 = vmatprep.subr.mxu0 0.0
    %1340 = vmatpush1.msra.mxu0 0.0
    %1341 = vmatprep.subr.mxu0 0.0
    %1342 = vmatpush1.msra.mxu0 0.0
    %1343 = vmatprep.subr.mxu0 0.0
    %1344 = vmatpush1.msra.mxu0 0.0
    %1345 = vmatprep.subr.mxu0 0.0
    %1346 = vmatpush1.msra.mxu0 0.0
    %1347 = vmatprep.subr.mxu0 0.0
    %1348 = vmatpush1.msra.mxu0 0.0
    %1349 = vmatprep.subr.mxu0 0.0
    %1350 = vmatpush1.msra.mxu0 0.0
    %1351 = vmatprep.subr.mxu0 0.0
    %1352 = vmatpush1.msra.mxu0 0.0
    %1353 = vmatprep.subr.mxu0 0.0
    %1354 = vmatpush1.msra.mxu0 0.0
    %1355 = vmatprep.subr.mxu0 0.0
    %1356 = vmatpush1.msra.mxu0 0.0
    %1357 = vmatprep.subr.mxu0 0.0
    %1358 = vmatpush1.msra.mxu0 0.0
    %1359 = vmatprep.subr.mxu0 0.0
    %1360 = vmatpush1.msra.mxu0 0.0
    %1361 = vmatprep.subr.mxu0 0.0
    %1362 = vmatpush1.msra.mxu0 0.0
    %1363 = vmatprep.subr.mxu0 0.0
    %1364 = vmatpush1.msra.mxu0 0.0
    %1365 = vmatprep.subr.mxu0 0.0
    %1366 = vmatpush1.msra.mxu0 0.0
    %1367 = vmatprep.subr.mxu0 0.0
    %1368 = vmatpush1.msra.mxu0 0.0
    %1369 = vmatprep.subr.mxu0 0.0
    %1370 = vmatpush1.msra.mxu0 0.0
    %1371 = vmatprep.subr.mxu0 0.0
    %1372 = vmatpush1.msra.mxu0 0.0
    %1373 = vmatprep.subr.mxu0 0.0
    %1374 = vmatpush1.msra.mxu0 0.0
    %1375 = vmatprep.subr.mxu0 0.0
    %1376 = vmatpush1.msra.mxu0 0.0
    %1377 = vmatprep.subr.mxu0 0.0
    %1378 = vmatpush1.msra.mxu0 0.0
    %1379 = vmatprep.mubr.f32.mxu0 0.0
    %1380 = vmatmul.mubr.f32.gmra.mrb[0].mxu0 %v1169
    %v1381 = vpop.f32.mrb[0].mxu0
    %v1382 = vadd.f32 0.0, %v1381
    %v1383 = vpop.f32.mrb[0].mxu0
    %1384 = vdwg.mxu0
    %v1385 = vadd.f32 %v564, %v1382
    %v1386 = vadd.f32 %v1385, %v154
    %1387 = vmatprep.subr.mxu0 0.0
    %1388 = vmatpush1.msra.mxu0 %v91
    %1389 = vmatprep.subr.mxu0 0.0
    %1390 = vmatpush1.msra.mxu0 %v92
    %1391 = vmatprep.subr.mxu0 0.0
    %1392 = vmatpush1.msra.mxu0 %v93
    %1393 = vmatprep.subr.mxu0 0.0
    %1394 = vmatpush1.msra.mxu0 %v94
    %1395 = vmatprep.subr.mxu0 0.0
    %1396 = vmatpush1.msra.mxu0 0.0
    %1397 = vmatprep.subr.mxu0 0.0
    %1398 = vmatpush1.msra.mxu0 0.0
    %1399 = vmatprep.subr.mxu0 0.0
    %1400 = vmatpush1.msra.mxu0 0.0
    %1401 = vmatprep.subr.mxu0 0.0
    %1402 = vmatpush1.msra.mxu0 0.0
    %1403 = vmatprep.subr.mxu0 0.0
    %1404 = vmatpush1.msra.mxu0 0.0
    %1405 = vmatprep.subr.mxu0 0.0
    %1406 = vmatpush1.msra.mxu0 0.0
    %1407 = vmatprep.subr.mxu0 0.0
    %1408 = vmatpush1.msra.mxu0 0.0
    %1409 = vmatprep.subr.mxu0 0.0
    %1410 = vmatpush1.msra.mxu0 0.0
    %1411 = vmatprep.subr.mxu0 0.0
    %1412 = vmatpush1.msra.mxu0 0.0
    %1413 = vmatprep.subr.mxu0 0.0
    %1414 = vmatpush1.msra.mxu0 0.0
    %1415 = vmatprep.subr.mxu0 0.0
    %1416 = vmatpush1.msra.mxu0 0.0
    %1417 = vmatprep.subr.mxu0 0.0
    %1418 = vmatpush1.msra.mxu0 0.0
    %1419 = vmatprep.subr.mxu0 0.0
    %1420 = vmatpush1.msra.mxu0 0.0
    %1421 = vmatprep.subr.mxu0 0.0
    %1422 = vmatpush1.msra.mxu0 0.0
    %1423 = vmatprep.subr.mxu0 0.0
    %1424 = vmatpush1.msra.mxu0 0.0
    %1425 = vmatprep.subr.mxu0 0.0
    %1426 = vmatpush1.msra.mxu0 0.0
    %1427 = vmatprep.subr.mxu0 0.0
    %1428 = vmatpush1.msra.mxu0 0.0
    %1429 = vmatprep.subr.mxu0 0.0
    %1430 = vmatpush1.msra.mxu0 0.0
    %1431 = vmatprep.subr.mxu0 0.0
    %1432 = vmatpush1.msra.mxu0 0.0
    %1433 = vmatprep.subr.mxu0 0.0
    %1434 = vmatpush1.msra.mxu0 0.0
    %1435 = vmatprep.subr.mxu0 0.0
    %1436 = vmatpush1.msra.mxu0 0.0
    %1437 = vmatprep.subr.mxu0 0.0
    %1438 = vmatpush1.msra.mxu0 0.0
    %1439 = vmatprep.subr.mxu0 0.0
    %1440 = vmatpush1.msra.mxu0 0.0
    %1441 = vmatprep.subr.mxu0 0.0
    %1442 = vmatpush1.msra.mxu0 0.0
    %1443 = vmatprep.subr.mxu0 0.0
    %1444 = vmatpush1.msra.mxu0 0.0
    %1445 = vmatprep.subr.mxu0 0.0
    %1446 = vmatpush1.msra.mxu0 0.0
    %1447 = vmatprep.subr.mxu0 0.0
    %1448 = vmatpush1.msra.mxu0 0.0
    %1449 = vmatprep.subr.mxu0 0.0
    %1450 = vmatpush1.msra.mxu0 0.0
    %1451 = vmatprep.mubr.f32.mxu0 0.0
    %1452 = vmatmul.mubr.f32.gmra.mrb[0].mxu0 %v1169
    %v1453 = vpop.f32.mrb[0].mxu0
    %v1454 = vadd.f32 0.0, %v1453
    %v1455 = vpop.f32.mrb[0].mxu0
    %1456 = vdwg.mxu0
    %v1457 = vadd.f32 %v674, %v1454
    %v1458 = vadd.f32 %v1457, %v162
    %v1459 = vxor.u32 %v1242, 2147483648
    %v1460 = vmul.f32 %v1459, 1.442695
    %v1461 = vpow.pop %v1460
    %v1462 = vadd.f32 %v1461, 1.0
    %v1463 = vrcp.pop %v1462
    %v1464 = vmul.f32 1.0, %v1463
    %v1465 = vxor.u32 %v1314, 2147483648
    %v1466 = vmul.f32 %v1465, 1.442695
    %v1467 = vpow.pop %v1466
    %v1468 = vadd.f32 %v1467, 1.0
    %v1469 = vrcp.pop %v1468
    %v1470 = vmul.f32 1.0, %v1469
    %v1471 = vtanh.pop %v1386
    %v1472 = vxor.u32 %v1458, 2147483648
    %v1473 = vmul.f32 %v1472, 1.442695
    %v1474 = vpow.pop %v1473
    %v1475 = vadd.f32 %v1474, 1.0
    %v1476 = vrcp.pop %v1475
    %v1477 = vmul.f32 1.0, %v1476
    %v1478 = vmul.f32 %v1470, 0.0
    %v1479 = vmul.f32 %v1464, %v1471
    %v1480 = vadd.f32 %v1478, %v1479
    %v1481 = vtanh.pop %v1480
    %v1482 = vmul.f32 %v1477, %v1481
    %v1484 = vsel %vm1167, %v1482, 0
    %1486 = vmatprep.subr.mxu0 0.0
    %1487 = vmatpush1.msra.mxu0 %v76
    %1488 = vmatprep.subr.mxu0 0.0
    %1489 = vmatpush1.msra.mxu0 %v77
    %1490 = vmatprep.subr.mxu0 0.0
    %1491 = vmatpush1.msra.mxu0 %v78
    %1492 = vmatprep.subr.mxu0 0.0
    %1493 = vmatpush1.msra.mxu0 %v79
    %1494 = vmatprep.subr.mxu0 0.0
    %1495 = vmatpush1.msra.mxu0 0.0
    %1496 = vmatprep.subr.mxu0 0.0
    %1497 = vmatpush1.msra.mxu0 0.0
    %1498 = vmatprep.subr.mxu0 0.0
    %1499 = vmatpush1.msra.mxu0 0.0
    %1500 = vmatprep.subr.mxu0 0.0
    %1501 = vmatpush1.msra.mxu0 0.0
    %1502 = vmatprep.subr.mxu0 0.0
    %1503 = vmatpush1.msra.mxu0 0.0
    %1504 = vmatprep.subr.mxu0 0.0
    %1505 = vmatpush1.msra.mxu0 0.0
    %1506 = vmatprep.subr.mxu0 0.0
    %1507 = vmatpush1.msra.mxu0 0.0
    %1508 = vmatprep.subr.mxu0 0.0
    %1509 = vmatpush1.msra.mxu0 0.0
    %1510 = vmatprep.subr.mxu0 0.0
    %1511 = vmatpush1.msra.mxu0 0.0
    %1512 = vmatprep.subr.mxu0 0.0
    %1513 = vmatpush1.msra.mxu0 0.0
    %1514 = vmatprep.subr.mxu0 0.0
    %1515 = vmatpush1.msra.mxu0 0.0
    %1516 = vmatprep.subr.mxu0 0.0
    %1517 = vmatpush1.msra.mxu0 0.0
    %1518 = vmatprep.subr.mxu0 0.0
    %1519 = vmatpush1.msra.mxu0 0.0
    %1520 = vmatprep.subr.mxu0 0.0
    %1521 = vmatpush1.msra.mxu0 0.0
    %1522 = vmatprep.subr.mxu0 0.0
    %1523 = vmatpush1.msra.mxu0 0.0
    %1524 = vmatprep.subr.mxu0 0.0
    %1525 = vmatpush1.msra.mxu0 0.0
    %1526 = vmatprep.subr.mxu0 0.0
    %1527 = vmatpush1.msra.mxu0 0.0
    %1528 = vmatprep.subr.mxu0 0.0
    %1529 = vmatpush1.msra.mxu0 0.0
    %1530 = vmatprep.subr.mxu0 0.0
    %1531 = vmatpush1.msra.mxu0 0.0
    %1532 = vmatprep.subr.mxu0 0.0
    %1533 = vmatpush1.msra.mxu0 0.0
    %1534 = vmatprep.subr.mxu0 0.0
    %1535 = vmatpush1.msra.mxu0 0.0
    %1536 = vmatprep.subr.mxu0 0.0
    %1537 = vmatpush1.msra.mxu0 0.0
    %1538 = vmatprep.subr.mxu0 0.0
    %1539 = vmatpush1.msra.mxu0 0.0
    %1540 = vmatprep.subr.mxu0 0.0
    %1541 = vmatpush1.msra.mxu0 0.0
    %1542 = vmatprep.subr.mxu0 0.0
    %1543 = vmatpush1.msra.mxu0 0.0
    %1544 = vmatprep.subr.mxu0 0.0
    %1545 = vmatpush1.msra.mxu0 0.0
    %1546 = vmatprep.subr.mxu0 0.0
    %1547 = vmatpush1.msra.mxu0 0.0
    %1548 = vmatprep.subr.mxu0 0.0
    %1549 = vmatpush1.msra.mxu0 0.0
    %1550 = vmatprep.mubr.f32.mxu0 0.0
    %1551 = vmatmul.mubr.f32.gmra.mrb[0].mxu0 %v1484
    %v1552 = vpop.f32.mrb[0].mxu0
    %v1553 = vadd.f32 0.0, %v1552
    %v1554 = vpop.f32.mrb[0].mxu0
    %1555 = vdwg.mxu0
    %v1556 = vadd.f32 %v349, %v1553
    %v1557 = vadd.f32 %v1556, %v138
    %1558 = vmatprep.subr.mxu0 0.0
    %1559 = vmatpush1.msra.mxu0 %v81
    %1560 = vmatprep.subr.mxu0 0.0
    %1561 = vmatpush1.msra.mxu0 %v82
    %1562 = vmatprep.subr.mxu0 0.0
    %1563 = vmatpush1.msra.mxu0 %v83
    %1564 = vmatprep.subr.mxu0 0.0
    %1565 = vmatpush1.msra.mxu0 %v84
    %1566 = vmatprep.subr.mxu0 0.0
    %1567 = vmatpush1.msra.mxu0 0.0
    %1568 = vmatprep.subr.mxu0 0.0
    %1569 = vmatpush1.msra.mxu0 0.0
    %1570 = vmatprep.subr.mxu0 0.0
    %1571 = vmatpush1.msra.mxu0 0.0
    %1572 = vmatprep.subr.mxu0 0.0
    %1573 = vmatpush1.msra.mxu0 0.0
    %1574 = vmatprep.subr.mxu0 0.0
    %1575 = vmatpush1.msra.mxu0 0.0
    %1576 = vmatprep.subr.mxu0 0.0
    %1577 = vmatpush1.msra.mxu0 0.0
    %1578 = vmatprep.subr.mxu0 0.0
    %1579 = vmatpush1.msra.mxu0 0.0
    %1580 = vmatprep.subr.mxu0 0.0
    %1581 = vmatpush1.msra.mxu0 0.0
    %1582 = vmatprep.subr.mxu0 0.0
    %1583 = vmatpush1.msra.mxu0 0.0
    %1584 = vmatprep.subr.mxu0 0.0
    %1585 = vmatpush1.msra.mxu0 0.0
    %1586 = vmatprep.subr.mxu0 0.0
    %1587 = vmatpush1.msra.mxu0 0.0
    %1588 = vmatprep.subr.mxu0 0.0
    %1589 = vmatpush1.msra.mxu0 0.0
    %1590 = vmatprep.subr.mxu0 0.0
    %1591 = vmatpush1.msra.mxu0 0.0
    %1592 = vmatprep.subr.mxu0 0.0
    %1593 = vmatpush1.msra.mxu0 0.0
    %1594 = vmatprep.subr.mxu0 0.0
    %1595 = vmatpush1.msra.mxu0 0.0
    %1596 = vmatprep.subr.mxu0 0.0
    %1597 = vmatpush1.msra.mxu0 0.0
    %1598 = vmatprep.subr.mxu0 0.0
    %1599 = vmatpush1.msra.mxu0 0.0
    %1600 = vmatprep.subr.mxu0 0.0
    %1601 = vmatpush1.msra.mxu0 0.0
    %1602 = vmatprep.subr.mxu0 0.0
    %1603 = vmatpush1.msra.mxu0 0.0
    %1604 = vmatprep.subr.mxu0 0.0
    %1605 = vmatpush1.msra.mxu0 0.0
    %1606 = vmatprep.subr.mxu0 0.0
    %1607 = vmatpush1.msra.mxu0 0.0
    %1608 = vmatprep.subr.mxu0 0.0
    %1609 = vmatpush1.msra.mxu0 0.0
    %1610 = vmatprep.subr.mxu0 0.0
    %1611 = vmatpush1.msra.mxu0 0.0
    %1612 = vmatprep.subr.mxu0 0.0
    %1613 = vmatpush1.msra.mxu0 0.0
    %1614 = vmatprep.subr.mxu0 0.0
    %1615 = vmatpush1.msra.mxu0 0.0
    %1616 = vmatprep.subr.mxu0 0.0
    %1617 = vmatpush1.msra.mxu0 0.0
    %1618 = vmatprep.subr.mxu0 0.0
    %1619 = vmatpush1.msra.mxu0 0.0
    %1620 = vmatprep.subr.mxu0 0.0
    %1621 = vmatpush1.msra.mxu0 0.0
    %1622 = vmatprep.mubr.f32.mxu0 0.0
    %1623 = vmatmul.mubr.f32.gmra.mrb[0].mxu0 %v1484
    %v1624 = vpop.f32.mrb[0].mxu0
    %v1625 = vadd.f32 0.0, %v1624
    %v1626 = vpop.f32.mrb[0].mxu0
    %1627 = vdwg.mxu0
    %v1628 = vadd.f32 %v459, %v1625
    %v1629 = vadd.f32 %v1628, %v146
    %1630 = vmatprep.subr.mxu0 0.0
    %1631 = vmatpush1.msra.mxu0 %v86
    %1632 = vmatprep.subr.mxu0 0.0
    %1633 = vmatpush1.msra.mxu0 %v87
    %1634 = vmatprep.subr.mxu0 0.0
    %1635 = vmatpush1.msra.mxu0 %v88
    %1636 = vmatprep.subr.mxu0 0.0
    %1637 = vmatpush1.msra.mxu0 %v89
    %1638 = vmatprep.subr.mxu0 0.0
    %1639 = vmatpush1.msra.mxu0 0.0
    %1640 = vmatprep.subr.mxu0 0.0
    %1641 = vmatpush1.msra.mxu0 0.0
    %1642 = vmatprep.subr.mxu0 0.0
    %1643 = vmatpush1.msra.mxu0 0.0
    %1644 = vmatprep.subr.mxu0 0.0
    %1645 = vmatpush1.msra.mxu0 0.0
    %1646 = vmatprep.subr.mxu0 0.0
    %1647 = vmatpush1.msra.mxu0 0.0
    %1648 = vmatprep.subr.mxu0 0.0
    %1649 = vmatpush1.msra.mxu0 0.0
    %1650 = vmatprep.subr.mxu0 0.0
    %1651 = vmatpush1.msra.mxu0 0.0
    %1652 = vmatprep.subr.mxu0 0.0
    %1653 = vmatpush1.msra.mxu0 0.0
    %1654 = vmatprep.subr.mxu0 0.0
    %1655 = vmatpush1.msra.mxu0 0.0
    %1656 = vmatprep.subr.mxu0 0.0
    %1657 = vmatpush1.msra.mxu0 0.0
    %1658 = vmatprep.subr.mxu0 0.0
    %1659 = vmatpush1.msra.mxu0 0.0
    %1660 = vmatprep.subr.mxu0 0.0
    %1661 = vmatpush1.msra.mxu0 0.0
    %1662 = vmatprep.subr.mxu0 0.0
    %1663 = vmatpush1.msra.mxu0 0.0
    %1664 = vmatprep.subr.mxu0 0.0
    %1665 = vmatpush1.msra.mxu0 0.0
    %1666 = vmatprep.subr.mxu0 0.0
    %1667 = vmatpush1.msra.mxu0 0.0
    %1668 = vmatprep.subr.mxu0 0.0
    %1669 = vmatpush1.msra.mxu0 0.0
    %1670 = vmatprep.subr.mxu0 0.0
    %1671 = vmatpush1.msra.mxu0 0.0
    %1672 = vmatprep.subr.mxu0 0.0
    %1673 = vmatpush1.msra.mxu0 0.0
    %1674 = vmatprep.subr.mxu0 0.0
    %1675 = vmatpush1.msra.mxu0 0.0
    %1676 = vmatprep.subr.mxu0 0.0
    %1677 = vmatpush1.msra.mxu0 0.0
    %1678 = vmatprep.subr.mxu0 0.0
    %1679 = vmatpush1.msra.mxu0 0.0
    %1680 = vmatprep.subr.mxu0 0.0
    %1681 = vmatpush1.msra.mxu0 0.0
    %1682 = vmatprep.subr.mxu0 0.0
    %1683 = vmatpush1.msra.mxu0 0.0
    %1684 = vmatprep.subr.mxu0 0.0
    %1685 = vmatpush1.msra.mxu0 0.0
    %1686 = vmatprep.subr.mxu0 0.0
    %1687 = vmatpush1.msra.mxu0 0.0
    %1688 = vmatprep.subr.mxu0 0.0
    %1689 = vmatpush1.msra.mxu0 0.0
    %1690 = vmatprep.subr.mxu0 0.0
    %1691 = vmatpush1.msra.mxu0 0.0
    %1692 = vmatprep.subr.mxu0 0.0
    %1693 = vmatpush1.msra.mxu0 0.0
    %1694 = vmatprep.mubr.f32.mxu0 0.0
    %1695 = vmatmul.mubr.f32.gmra.mrb[0].mxu0 %v1484
    %v1696 = vpop.f32.mrb[0].mxu0
    %v1697 = vadd.f32 0.0, %v1696
    %v1698 = vpop.f32.mrb[0].mxu0
    %1699 = vdwg.mxu0
    %v1700 = vadd.f32 %v569, %v1697
    %v1701 = vadd.f32 %v1700, %v154
    %1702 = vmatprep.subr.mxu0 0.0
    %1703 = vmatpush1.msra.mxu0 %v91
    %1704 = vmatprep.subr.mxu0 0.0
    %1705 = vmatpush1.msra.mxu0 %v92
    %1706 = vmatprep.subr.mxu0 0.0
    %1707 = vmatpush1.msra.mxu0 %v93
    %1708 = vmatprep.subr.mxu0 0.0
    %1709 = vmatpush1.msra.mxu0 %v94
    %1710 = vmatprep.subr.mxu0 0.0
    %1711 = vmatpush1.msra.mxu0 0.0
    %1712 = vmatprep.subr.mxu0 0.0
    %1713 = vmatpush1.msra.mxu0 0.0
    %1714 = vmatprep.subr.mxu0 0.0
    %1715 = vmatpush1.msra.mxu0 0.0
    %1716 = vmatprep.subr.mxu0 0.0
    %1717 = vmatpush1.msra.mxu0 0.0
    %1718 = vmatprep.subr.mxu0 0.0
    %1719 = vmatpush1.msra.mxu0 0.0
    %1720 = vmatprep.subr.mxu0 0.0
    %1721 = vmatpush1.msra.mxu0 0.0
    %1722 = vmatprep.subr.mxu0 0.0
    %1723 = vmatpush1.msra.mxu0 0.0
    %1724 = vmatprep.subr.mxu0 0.0
    %1725 = vmatpush1.msra.mxu0 0.0
    %1726 = vmatprep.subr.mxu0 0.0
    %1727 = vmatpush1.msra.mxu0 0.0
    %1728 = vmatprep.subr.mxu0 0.0
    %1729 = vmatpush1.msra.mxu0 0.0
    %1730 = vmatprep.subr.mxu0 0.0
    %1731 = vmatpush1.msra.mxu0 0.0
    %1732 = vmatprep.subr.mxu0 0.0
    %1733 = vmatpush1.msra.mxu0 0.0
    %1734 = vmatprep.subr.mxu0 0.0
    %1735 = vmatpush1.msra.mxu0 0.0
    %1736 = vmatprep.subr.mxu0 0.0
    %1737 = vmatpush1.msra.mxu0 0.0
    %1738 = vmatprep.subr.mxu0 0.0
    %1739 = vmatpush1.msra.mxu0 0.0
    %1740 = vmatprep.subr.mxu0 0.0
    %1741 = vmatpush1.msra.mxu0 0.0
    %1742 = vmatprep.subr.mxu0 0.0
    %1743 = vmatpush1.msra.mxu0 0.0
    %1744 = vmatprep.subr.mxu0 0.0
    %1745 = vmatpush1.msra.mxu0 0.0
    %1746 = vmatprep.subr.mxu0 0.0
    %1747 = vmatpush1.msra.mxu0 0.0
    %1748 = vmatprep.subr.mxu0 0.0
    %1749 = vmatpush1.msra.mxu0 0.0
    %1750 = vmatprep.subr.mxu0 0.0
    %1751 = vmatpush1.msra.mxu0 0.0
    %1752 = vmatprep.subr.mxu0 0.0
    %1753 = vmatpush1.msra.mxu0 0.0
    %1754 = vmatprep.subr.mxu0 0.0
    %1755 = vmatpush1.msra.mxu0 0.0
    %1756 = vmatprep.subr.mxu0 0.0
    %1757 = vmatpush1.msra.mxu0 0.0
    %1758 = vmatprep.subr.mxu0 0.0
    %1759 = vmatpush1.msra.mxu0 0.0
    %1760 = vmatprep.subr.mxu0 0.0
    %1761 = vmatpush1.msra.mxu0 0.0
    %1762 = vmatprep.subr.mxu0 0.0
    %1763 = vmatpush1.msra.mxu0 0.0
    %1764 = vmatprep.subr.mxu0 0.0
    %1765 = vmatpush1.msra.mxu0 0.0
    %1766 = vmatprep.mubr.f32.mxu0 0.0
    %1767 = vmatmul.mubr.f32.gmra.mrb[0].mxu0 %v1484
    %v1768 = vpop.f32.mrb[0].mxu0
    %v1769 = vadd.f32 0.0, %v1768
    %v1770 = vpop.f32.mrb[0].mxu0
    %1771 = vdwg.mxu0
    %v1772 = vadd.f32 %v679, %v1769
    %v1773 = vadd.f32 %v1772, %v162
    %v1774 = vxor.u32 %v1557, 2147483648
    %v1775 = vmul.f32 %v1774, 1.442695
    %v1776 = vpow.pop %v1775
    %v1777 = vadd.f32 %v1776, 1.0
    %v1778 = vrcp.pop %v1777
    %v1779 = vmul.f32 1.0, %v1778
    %v1780 = vxor.u32 %v1629, 2147483648
    %v1781 = vmul.f32 %v1780, 1.442695
    %v1782 = vpow.pop %v1781
    %v1783 = vadd.f32 %v1782, 1.0
    %v1784 = vrcp.pop %v1783
    %v1785 = vmul.f32 1.0, %v1784
    %v1786 = vtanh.pop %v1701
    %v1787 = vxor.u32 %v1773, 2147483648
    %v1788 = vmul.f32 %v1787, 1.442695
    %v1789 = vpow.pop %v1788
    %v1790 = vadd.f32 %v1789, 1.0
    %v1791 = vrcp.pop %v1790
    %v1792 = vmul.f32 1.0, %v1791
    %v1793 = vmul.f32 %v1785, %v1480
    %v1794 = vmul.f32 %v1779, %v1786
    %v1795 = vadd.f32 %v1793, %v1794
    %v1796 = vtanh.pop %v1795
    %v1797 = vmul.f32 %v1792, %v1796
    %v1799 = vsel %vm1167, %v1797, 0
    %1801 = vmatprep.subr.mxu0 0.0
    %1802 = vmatpush1.msra.mxu0 %v76
    %1803 = vmatprep.subr.mxu0 0.0
    %1804 = vmatpush1.msra.mxu0 %v77
    %1805 = vmatprep.subr.mxu0 0.0
    %1806 = vmatpush1.msra.mxu0 %v78
    %1807 = vmatprep.subr.mxu0 0.0
    %1808 = vmatpush1.msra.mxu0 %v79
    %1809 = vmatprep.subr.mxu0 0.0
    %1810 = vmatpush1.msra.mxu0 0.0
    %1811 = vmatprep.subr.mxu0 0.0
    %1812 = vmatpush1.msra.mxu0 0.0
    %1813 = vmatprep.subr.mxu0 0.0
    %1814 = vmatpush1.msra.mxu0 0.0
    %1815 = vmatprep.subr.mxu0 0.0
    %1816 = vmatpush1.msra.mxu0 0.0
    %1817 = vmatprep.subr.mxu0 0.0
    %1818 = vmatpush1.msra.mxu0 0.0
    %1819 = vmatprep.subr.mxu0 0.0
    %1820 = vmatpush1.msra.mxu0 0.0
    %1821 = vmatprep.subr.mxu0 0.0
    %1822 = vmatpush1.msra.mxu0 0.0
    %1823 = vmatprep.subr.mxu0 0.0
    %1824 = vmatpush1.msra.mxu0 0.0
    %1825 = vmatprep.subr.mxu0 0.0
    %1826 = vmatpush1.msra.mxu0 0.0
    %1827 = vmatprep.subr.mxu0 0.0
    %1828 = vmatpush1.msra.mxu0 0.0
    %1829 = vmatprep.subr.mxu0 0.0
    %1830 = vmatpush1.msra.mxu0 0.0
    %1831 = vmatprep.subr.mxu0 0.0
    %1832 = vmatpush1.msra.mxu0 0.0
    %1833 = vmatprep.subr.mxu0 0.0
    %1834 = vmatpush1.msra.mxu0 0.0
    %1835 = vmatprep.subr.mxu0 0.0
    %1836 = vmatpush1.msra.mxu0 0.0
    %1837 = vmatprep.subr.mxu0 0.0
    %1838 = vmatpush1.msra.mxu0 0.0
    %1839 = vmatprep.subr.mxu0 0.0
    %1840 = vmatpush1.msra.mxu0 0.0
    %1841 = vmatprep.subr.mxu0 0.0
    %1842 = vmatpush1.msra.mxu0 0.0
    %1843 = vmatprep.subr.mxu0 0.0
    %1844 = vmatpush1.msra.mxu0 0.0
    %1845 = vmatprep.subr.mxu0 0.0
    %1846 = vmatpush1.msra.mxu0 0.0
    %1847 = vmatprep.subr.mxu0 0.0
    %1848 = vmatpush1.msra.mxu0 0.0
    %1849 = vmatprep.subr.mxu0 0.0
    %1850 = vmatpush1.msra.mxu0 0.0
    %1851 = vmatprep.subr.mxu0 0.0
    %1852 = vmatpush1.msra.mxu0 0.0
    %1853 = vmatprep.subr.mxu0 0.0
    %1854 = vmatpush1.msra.mxu0 0.0
    %1855 = vmatprep.subr.mxu0 0.0
    %1856 = vmatpush1.msra.mxu0 0.0
    %1857 = vmatprep.subr.mxu0 0.0
    %1858 = vmatpush1.msra.mxu0 0.0
    %1859 = vmatprep.subr.mxu0 0.0
    %1860 = vmatpush1.msra.mxu0 0.0
    %1861 = vmatprep.subr.mxu0 0.0
    %1862 = vmatpush1.msra.mxu0 0.0
    %1863 = vmatprep.subr.mxu0 0.0
    %1864 = vmatpush1.msra.mxu0 0.0
    %1865 = vmatprep.mubr.f32.mxu0 0.0
    %1866 = vmatmul.mubr.f32.gmra.mrb[0].mxu0 %v1799
    %v1867 = vpop.f32.mrb[0].mxu0
    %v1868 = vadd.f32 0.0, %v1867
    %v1869 = vpop.f32.mrb[0].mxu0
    %1870 = vdwg.mxu0
    %v1871 = vadd.f32 %v354, %v1868
    %v1872 = vadd.f32 %v1871, %v138
    %1873 = vmatprep.subr.mxu0 0.0
    %1874 = vmatpush1.msra.mxu0 %v81
    %1875 = vmatprep.subr.mxu0 0.0
    %1876 = vmatpush1.msra.mxu0 %v82
    %1877 = vmatprep.subr.mxu0 0.0
    %1878 = vmatpush1.msra.mxu0 %v83
    %1879 = vmatprep.subr.mxu0 0.0
    %1880 = vmatpush1.msra.mxu0 %v84
    %1881 = vmatprep.subr.mxu0 0.0
    %1882 = vmatpush1.msra.mxu0 0.0
    %1883 = vmatprep.subr.mxu0 0.0
    %1884 = vmatpush1.msra.mxu0 0.0
    %1885 = vmatprep.subr.mxu0 0.0
    %1886 = vmatpush1.msra.mxu0 0.0
    %1887 = vmatprep.subr.mxu0 0.0
    %1888 = vmatpush1.msra.mxu0 0.0
    %1889 = vmatprep.subr.mxu0 0.0
    %1890 = vmatpush1.msra.mxu0 0.0
    %1891 = vmatprep.subr.mxu0 0.0
    %1892 = vmatpush1.msra.mxu0 0.0
    %1893 = vmatprep.subr.mxu0 0.0
    %1894 = vmatpush1.msra.mxu0 0.0
    %1895 = vmatprep.subr.mxu0 0.0
    %1896 = vmatpush1.msra.mxu0 0.0
    %1897 = vmatprep.subr.mxu0 0.0
    %1898 = vmatpush1.msra.mxu0 0.0
    %1899 = vmatprep.subr.mxu0 0.0
    %1900 = vmatpush1.msra.mxu0 0.0
    %1901 = vmatprep.subr.mxu0 0.0
    %1902 = vmatpush1.msra.mxu0 0.0
    %1903 = vmatprep.subr.mxu0 0.0
    %1904 = vmatpush1.msra.mxu0 0.0
    %1905 = vmatprep.subr.mxu0 0.0
    %1906 = vmatpush1.msra.mxu0 0.0
    %1907 = vmatprep.subr.mxu0 0.0
    %1908 = vmatpush1.msra.mxu0 0.0
    %1909 = vmatprep.subr.mxu0 0.0
    %1910 = vmatpush1.msra.mxu0 0.0
    %1911 = vmatprep.subr.mxu0 0.0
    %1912 = vmatpush1.msra.mxu0 0.0
    %1913 = vmatprep.subr.mxu0 0.0
    %1914 = vmatpush1.msra.mxu0 0.0
    %1915 = vmatprep.subr.mxu0 0.0
    %1916 = vmatpush1.msra.mxu0 0.0
    %1917 = vmatprep.subr.mxu0 0.0
    %1918 = vmatpush1.msra.mxu0 0.0
    %1919 = vmatprep.subr.mxu0 0.0
    %1920 = vmatpush1.msra.mxu0 0.0
    %1921 = vmatprep.subr.mxu0 0.0
    %1922 = vmatpush1.msra.mxu0 0.0
    %1923 = vmatprep.subr.mxu0 0.0
    %1924 = vmatpush1.msra.mxu0 0.0
    %1925 = vmatprep.subr.mxu0 0.0
    %1926 = vmatpush1.msra.mxu0 0.0
    %1927 = vmatprep.subr.mxu0 0.0
    %1928 = vmatpush1.msra.mxu0 0.0
    %1929 = vmatprep.subr.mxu0 0.0
    %1930 = vmatpush1.msra.mxu0 0.0
    %1931 = vmatprep.subr.mxu0 0.0
    %1932 = vmatpush1.msra.mxu0 0.0
    %1933 = vmatprep.subr.mxu0 0.0
    %1934 = vmatpush1.msra.mxu0 0.0
    %1935 = vmatprep.subr.mxu0 0.0
    %1936 = vmatpush1.msra.mxu0 0.0
    %1937 = vmatprep.mubr.f32.mxu0 0.0
    %1938 = vmatmul.mubr.f32.gmra.mrb[0].mxu0 %v1799
    %v1939 = vpop.f32.mrb[0].mxu0
    %v1940 = vadd.f32 0.0, %v1939
    %v1941 = vpop.f32.mrb[0].mxu0
    %1942 = vdwg.mxu0
    %v1943 = vadd.f32 %v464, %v1940
    %v1944 = vadd.f32 %v1943, %v146
    %1945 = vmatprep.subr.mxu0 0.0
    %1946 = vmatpush1.msra.mxu0 %v86
    %1947 = vmatprep.subr.mxu0 0.0
    %1948 = vmatpush1.msra.mxu0 %v87
    %1949 = vmatprep.subr.mxu0 0.0
    %1950 = vmatpush1.msra.mxu0 %v88
    %1951 = vmatprep.subr.mxu0 0.0
    %1952 = vmatpush1.msra.mxu0 %v89
    %1953 = vmatprep.subr.mxu0 0.0
    %1954 = vmatpush1.msra.mxu0 0.0
    %1955 = vmatprep.subr.mxu0 0.0
    %1956 = vmatpush1.msra.mxu0 0.0
    %1957 = vmatprep.subr.mxu0 0.0
    %1958 = vmatpush1.msra.mxu0 0.0
    %1959 = vmatprep.subr.mxu0 0.0
    %1960 = vmatpush1.msra.mxu0 0.0
    %1961 = vmatprep.subr.mxu0 0.0
    %1962 = vmatpush1.msra.mxu0 0.0
    %1963 = vmatprep.subr.mxu0 0.0
    %1964 = vmatpush1.msra.mxu0 0.0
    %1965 = vmatprep.subr.mxu0 0.0
    %1966 = vmatpush1.msra.mxu0 0.0
    %1967 = vmatprep.subr.mxu0 0.0
    %1968 = vmatpush1.msra.mxu0 0.0
    %1969 = vmatprep.subr.mxu0 0.0
    %1970 = vmatpush1.msra.mxu0 0.0
    %1971 = vmatprep.subr.mxu0 0.0
    %1972 = vmatpush1.msra.mxu0 0.0
    %1973 = vmatprep.subr.mxu0 0.0
    %1974 = vmatpush1.msra.mxu0 0.0
    %1975 = vmatprep.subr.mxu0 0.0
    %1976 = vmatpush1.msra.mxu0 0.0
    %1977 = vmatprep.subr.mxu0 0.0
    %1978 = vmatpush1.msra.mxu0 0.0
    %1979 = vmatprep.subr.mxu0 0.0
    %1980 = vmatpush1.msra.mxu0 0.0
    %1981 = vmatprep.subr.mxu0 0.0
    %1982 = vmatpush1.msra.mxu0 0.0
    %1983 = vmatprep.subr.mxu0 0.0
    %1984 = vmatpush1.msra.mxu0 0.0
    %1985 = vmatprep.subr.mxu0 0.0
    %1986 = vmatpush1.msra.mxu0 0.0
    %1987 = vmatprep.subr.mxu0 0.0
    %1988 = vmatpush1.msra.mxu0 0.0
    %1989 = vmatprep.subr.mxu0 0.0
    %1990 = vmatpush1.msra.mxu0 0.0
    %1991 = vmatprep.subr.mxu0 0.0
    %1992 = vmatpush1.msra.mxu0 0.0
    %1993 = vmatprep.subr.mxu0 0.0
    %1994 = vmatpush1.msra.mxu0 0.0
    %1995 = vmatprep.subr.mxu0 0.0
    %1996 = vmatpush1.msra.mxu0 0.0
    %1997 = vmatprep.subr.mxu0 0.0
    %1998 = vmatpush1.msra.mxu0 0.0
    %1999 = vmatprep.subr.mxu0 0.0
    %2000 = vmatpush1.msra.mxu0 0.0
    %2001 = vmatprep.subr.mxu0 0.0
    %2002 = vmatpush1.msra.mxu0 0.0
    %2003 = vmatprep.subr.mxu0 0.0
    %2004 = vmatpush1.msra.mxu0 0.0
    %2005 = vmatprep.subr.mxu0 0.0
    %2006 = vmatpush1.msra.mxu0 0.0
    %2007 = vmatprep.subr.mxu0 0.0
    %2008 = vmatpush1.msra.mxu0 0.0
    %2009 = vmatprep.mubr.f32.mxu0 0.0
    %2010 = vmatmul.mubr.f32.gmra.mrb[0].mxu0 %v1799
    %v2011 = vpop.f32.mrb[0].mxu0
    %v2012 = vadd.f32 0.0, %v2011
    %v2013 = vpop.f32.mrb[0].mxu0
    %2014 = vdwg.mxu0
    %v2015 = vadd.f32 %v574, %v2012
    %v2016 = vadd.f32 %v2015, %v154
    %2017 = vmatprep.subr.mxu0 0.0
    %2018 = vmatpush1.msra.mxu0 %v91
    %2019 = vmatprep.subr.mxu0 0.0
    %2020 = vmatpush1.msra.mxu0 %v92
    %2021 = vmatprep.subr.mxu0 0.0
    %2022 = vmatpush1.msra.mxu0 %v93
    %2023 = vmatprep.subr.mxu0 0.0
    %2024 = vmatpush1.msra.mxu0 %v94
    %2025 = vmatprep.subr.mxu0 0.0
    %2026 = vmatpush1.msra.mxu0 0.0
    %2027 = vmatprep.subr.mxu0 0.0
    %2028 = vmatpush1.msra.mxu0 0.0
    %2029 = vmatprep.subr.mxu0 0.0
    %2030 = vmatpush1.msra.mxu0 0.0
    %2031 = vmatprep.subr.mxu0 0.0
    %2032 = vmatpush1.msra.mxu0 0.0
    %2033 = vmatprep.subr.mxu0 0.0
    %2034 = vmatpush1.msra.mxu0 0.0
    %2035 = vmatprep.subr.mxu0 0.0
    %2036 = vmatpush1.msra.mxu0 0.0
    %2037 = vmatprep.subr.mxu0 0.0
    %2038 = vmatpush1.msra.mxu0 0.0
    %2039 = vmatprep.subr.mxu0 0.0
    %2040 = vmatpush1.msra.mxu0 0.0
    %2041 = vmatprep.subr.mxu0 0.0
    %2042 = vmatpush1.msra.mxu0 0.0
    %2043 = vmatprep.subr.mxu0 0.0
    %2044 = vmatpush1.msra.mxu0 0.0
    %2045 = vmatprep.subr.mxu0 0.0
    %2046 = vmatpush1.msra.mxu0 0.0
    %2047 = vmatprep.subr.mxu0 0.0
    %2048 = vmatpush1.msra.mxu0 0.0
    %2049 = vmatprep.subr.mxu0 0.0
    %2050 = vmatpush1.msra.mxu0 0.0
    %2051 = vmatprep.subr.mxu0 0.0
    %2052 = vmatpush1.msra.mxu0 0.0
    %2053 = vmatprep.subr.mxu0 0.0
    %2054 = vmatpush1.msra.mxu0 0.0
    %2055 = vmatprep.subr.mxu0 0.0
    %2056 = vmatpush1.msra.mxu0 0.0
    %2057 = vmatprep.subr.mxu0 0.0
    %2058 = vmatpush1.msra.mxu0 0.0
    %2059 = vmatprep.subr.mxu0 0.0
    %2060 = vmatpush1.msra.mxu0 0.0
    %2061 = vmatprep.subr.mxu0 0.0
    %2062 = vmatpush1.msra.mxu0 0.0
    %2063 = vmatprep.subr.mxu0 0.0
    %2064 = vmatpush1.msra.mxu0 0.0
    %2065 = vmatprep.subr.mxu0 0.0
    %2066 = vmatpush1.msra.mxu0 0.0
    %2067 = vmatprep.subr.mxu0 0.0
    %2068 = vmatpush1.msra.mxu0 0.0
    %2069 = vmatprep.subr.mxu0 0.0
    %2070 = vmatpush1.msra.mxu0 0.0
    %2071 = vmatprep.subr.mxu0 0.0
    %2072 = vmatpush1.msra.mxu0 0.0
    %2073 = vmatprep.subr.mxu0 0.0
    %2074 = vmatpush1.msra.mxu0 0.0
    %2075 = vmatprep.subr.mxu0 0.0
    %2076 = vmatpush1.msra.mxu0 0.0
    %2077 = vmatprep.subr.mxu0 0.0
    %2078 = vmatpush1.msra.mxu0 0.0
    %2079 = vmatprep.subr.mxu0 0.0
    %2080 = vmatpush1.msra.mxu0 0.0
    %2081 = vmatprep.mubr.f32.mxu0 0.0
    %2082 = vmatmul.mubr.f32.gmra.mrb[0].mxu0 %v1799
    %v2083 = vpop.f32.mrb[0].mxu0
    %v2084 = vadd.f32 0.0, %v2083
    %v2085 = vpop.f32.mrb[0].mxu0
    %2086 = vdwg.mxu0
    %v2087 = vadd.f32 %v684, %v2084
    %v2088 = vadd.f32 %v2087, %v162
    %v2089 = vxor.u32 %v1872, 2147483648
    %v2090 = vmul.f32 %v2089, 1.442695
    %v2091 = vpow.pop %v2090
    %v2092 = vadd.f32 %v2091, 1.0
    %v2093 = vrcp.pop %v2092
    %v2094 = vmul.f32 1.0, %v2093
    %v2095 = vxor.u32 %v1944, 2147483648
    %v2096 = vmul.f32 %v2095, 1.442695
    %v2097 = vpow.pop %v2096
    %v2098 = vadd.f32 %v2097, 1.0
    %v2099 = vrcp.pop %v2098
    %v2100 = vmul.f32 1.0, %v2099
    %v2101 = vtanh.pop %v2016
    %v2102 = vxor.u32 %v2088, 2147483648
    %v2103 = vmul.f32 %v2102, 1.442695
    %v2104 = vpow.pop %v2103
    %v2105 = vadd.f32 %v2104, 1.0
    %v2106 = vrcp.pop %v2105
    %v2107 = vmul.f32 1.0, %v2106
    %v2108 = vmul.f32 %v2100, %v1795
    %v2109 = vmul.f32 %v2094, %v2101
    %v2110 = vadd.f32 %v2108, %v2109
    %v2111 = vtanh.pop %v2110
    %v2112 = vmul.f32 %v2107, %v2111
    %v2114 = vsel %vm1167, %v2112, 0
    %2116 = vmatprep.subr.mxu0 0.0
    %2117 = vmatpush1.msra.mxu0 %v76
    %2118 = vmatprep.subr.mxu0 0.0
    %2119 = vmatpush1.msra.mxu0 %v77
    %2120 = vmatprep.subr.mxu0 0.0
    %2121 = vmatpush1.msra.mxu0 %v78
    %2122 = vmatprep.subr.mxu0 0.0
    %2123 = vmatpush1.msra.mxu0 %v79
    %2124 = vmatprep.subr.mxu0 0.0
    %2125 = vmatpush1.msra.mxu0 0.0
    %2126 = vmatprep.subr.mxu0 0.0
    %2127 = vmatpush1.msra.mxu0 0.0
    %2128 = vmatprep.subr.mxu0 0.0
    %2129 = vmatpush1.msra.mxu0 0.0
    %2130 = vmatprep.subr.mxu0 0.0
    %2131 = vmatpush1.msra.mxu0 0.0
    %2132 = vmatprep.subr.mxu0 0.0
    %2133 = vmatpush1.msra.mxu0 0.0
    %2134 = vmatprep.subr.mxu0 0.0
    %2135 = vmatpush1.msra.mxu0 0.0
    %2136 = vmatprep.subr.mxu0 0.0
    %2137 = vmatpush1.msra.mxu0 0.0
    %2138 = vmatprep.subr.mxu0 0.0
    %2139 = vmatpush1.msra.mxu0 0.0
    %2140 = vmatprep.subr.mxu0 0.0
    %2141 = vmatpush1.msra.mxu0 0.0
    %2142 = vmatprep.subr.mxu0 0.0
    %2143 = vmatpush1.msra.mxu0 0.0
    %2144 = vmatprep.subr.mxu0 0.0
    %2145 = vmatpush1.msra.mxu0 0.0
    %2146 = vmatprep.subr.mxu0 0.0
    %2147 = vmatpush1.msra.mxu0 0.0
    %2148 = vmatprep.subr.mxu0 0.0
    %2149 = vmatpush1.msra.mxu0 0.0
    %2150 = vmatprep.subr.mxu0 0.0
    %2151 = vmatpush1.msra.mxu0 0.0
    %2152 = vmatprep.subr.mxu0 0.0
    %2153 = vmatpush1.msra.mxu0 0.0
    %2154 = vmatprep.subr.mxu0 0.0
    %2155 = vmatpush1.msra.mxu0 0.0
    %2156 = vmatprep.subr.mxu0 0.0
    %2157 = vmatpush1.msra.mxu0 0.0
    %2158 = vmatprep.subr.mxu0 0.0
    %2159 = vmatpush1.msra.mxu0 0.0
    %2160 = vmatprep.subr.mxu0 0.0
    %2161 = vmatpush1.msra.mxu0 0.0
    %2162 = vmatprep.subr.mxu0 0.0
    %2163 = vmatpush1.msra.mxu0 0.0
    %2164 = vmatprep.subr.mxu0 0.0
    %2165 = vmatpush1.msra.mxu0 0.0
    %2166 = vmatprep.subr.mxu0 0.0
    %2167 = vmatpush1.msra.mxu0 0.0
    %2168 = vmatprep.subr.mxu0 0.0
    %2169 = vmatpush1.msra.mxu0 0.0
    %2170 = vmatprep.subr.mxu0 0.0
    %2171 = vmatpush1.msra.mxu0 0.0
    %2172 = vmatprep.subr.mxu0 0.0
    %2173 = vmatpush1.msra.mxu0 0.0
    %2174 = vmatprep.subr.mxu0 0.0
    %2175 = vmatpush1.msra.mxu0 0.0
    %2176 = vmatprep.subr.mxu0 0.0
    %2177 = vmatpush1.msra.mxu0 0.0
    %2178 = vmatprep.subr.mxu0 0.0
    %2179 = vmatpush1.msra.mxu0 0.0
    %2180 = vmatprep.mubr.f32.mxu0 0.0
    %2181 = vmatmul.mubr.f32.gmra.mrb[0].mxu0 %v2114
    %v2182 = vpop.f32.mrb[0].mxu0
    %v2183 = vadd.f32 0.0, %v2182
    %v2184 = vpop.f32.mrb[0].mxu0
    %2185 = vdwg.mxu0
    %v2186 = vadd.f32 %v359, %v2183
    %v2187 = vadd.f32 %v2186, %v138
    %2188 = vmatprep.subr.mxu0 0.0
    %2189 = vmatpush1.msra.mxu0 %v81
    %2190 = vmatprep.subr.mxu0 0.0
    %2191 = vmatpush1.msra.mxu0 %v82
    %2192 = vmatprep.subr.mxu0 0.0
    %2193 = vmatpush1.msra.mxu0 %v83
    %2194 = vmatprep.subr.mxu0 0.0
    %2195 = vmatpush1.msra.mxu0 %v84
    %2196 = vmatprep.subr.mxu0 0.0
    %2197 = vmatpush1.msra.mxu0 0.0
    %2198 = vmatprep.subr.mxu0 0.0
    %2199 = vmatpush1.msra.mxu0 0.0
    %2200 = vmatprep.subr.mxu0 0.0
    %2201 = vmatpush1.msra.mxu0 0.0
    %2202 = vmatprep.subr.mxu0 0.0
    %2203 = vmatpush1.msra.mxu0 0.0
    %2204 = vmatprep.subr.mxu0 0.0
    %2205 = vmatpush1.msra.mxu0 0.0
    %2206 = vmatprep.subr.mxu0 0.0
    %2207 = vmatpush1.msra.mxu0 0.0
    %2208 = vmatprep.subr.mxu0 0.0
    %2209 = vmatpush1.msra.mxu0 0.0
    %2210 = vmatprep.subr.mxu0 0.0
    %2211 = vmatpush1.msra.mxu0 0.0
    %2212 = vmatprep.subr.mxu0 0.0
    %2213 = vmatpush1.msra.mxu0 0.0
    %2214 = vmatprep.subr.mxu0 0.0
    %2215 = vmatpush1.msra.mxu0 0.0
    %2216 = vmatprep.subr.mxu0 0.0
    %2217 = vmatpush1.msra.mxu0 0.0
    %2218 = vmatprep.subr.mxu0 0.0
    %2219 = vmatpush1.msra.mxu0 0.0
    %2220 = vmatprep.subr.mxu0 0.0
    %2221 = vmatpush1.msra.mxu0 0.0
    %2222 = vmatprep.subr.mxu0 0.0
    %2223 = vmatpush1.msra.mxu0 0.0
    %2224 = vmatprep.subr.mxu0 0.0
    %2225 = vmatpush1.msra.mxu0 0.0
    %2226 = vmatprep.subr.mxu0 0.0
    %2227 = vmatpush1.msra.mxu0 0.0
    %2228 = vmatprep.subr.mxu0 0.0
    %2229 = vmatpush1.msra.mxu0 0.0
    %2230 = vmatprep.subr.mxu0 0.0
    %2231 = vmatpush1.msra.mxu0 0.0
    %2232 = vmatprep.subr.mxu0 0.0
    %2233 = vmatpush1.msra.mxu0 0.0
    %2234 = vmatprep.subr.mxu0 0.0
    %2235 = vmatpush1.msra.mxu0 0.0
    %2236 = vmatprep.subr.mxu0 0.0
    %2237 = vmatpush1.msra.mxu0 0.0
    %2238 = vmatprep.subr.mxu0 0.0
    %2239 = vmatpush1.msra.mxu0 0.0
    %2240 = vmatprep.subr.mxu0 0.0
    %2241 = vmatpush1.msra.mxu0 0.0
    %2242 = vmatprep.subr.mxu0 0.0
    %2243 = vmatpush1.msra.mxu0 0.0
    %2244 = vmatprep.subr.mxu0 0.0
    %2245 = vmatpush1.msra.mxu0 0.0
    %2246 = vmatprep.subr.mxu0 0.0
    %2247 = vmatpush1.msra.mxu0 0.0
    %2248 = vmatprep.subr.mxu0 0.0
    %2249 = vmatpush1.msra.mxu0 0.0
    %2250 = vmatprep.subr.mxu0 0.0
    %2251 = vmatpush1.msra.mxu0 0.0
    %2252 = vmatprep.mubr.f32.mxu0 0.0
    %2253 = vmatmul.mubr.f32.gmra.mrb[0].mxu0 %v2114
    %v2254 = vpop.f32.mrb[0].mxu0
    %v2255 = vadd.f32 0.0, %v2254
    %v2256 = vpop.f32.mrb[0].mxu0
    %2257 = vdwg.mxu0
    %v2258 = vadd.f32 %v469, %v2255
    %v2259 = vadd.f32 %v2258, %v146
    %2260 = vmatprep.subr.mxu0 0.0
    %2261 = vmatpush1.msra.mxu0 %v86
    %2262 = vmatprep.subr.mxu0 0.0
    %2263 = vmatpush1.msra.mxu0 %v87
    %2264 = vmatprep.subr.mxu0 0.0
    %2265 = vmatpush1.msra.mxu0 %v88
    %2266 = vmatprep.subr.mxu0 0.0
    %2267 = vmatpush1.msra.mxu0 %v89
    %2268 = vmatprep.subr.mxu0 0.0
    %2269 = vmatpush1.msra.mxu0 0.0
    %2270 = vmatprep.subr.mxu0 0.0
    %2271 = vmatpush1.msra.mxu0 0.0
    %2272 = vmatprep.subr.mxu0 0.0
    %2273 = vmatpush1.msra.mxu0 0.0
    %2274 = vmatprep.subr.mxu0 0.0
    %2275 = vmatpush1.msra.mxu0 0.0
    %2276 = vmatprep.subr.mxu0 0.0
    %2277 = vmatpush1.msra.mxu0 0.0
    %2278 = vmatprep.subr.mxu0 0.0
    %2279 = vmatpush1.msra.mxu0 0.0
    %2280 = vmatprep.subr.mxu0 0.0
    %2281 = vmatpush1.msra.mxu0 0.0
    %2282 = vmatprep.subr.mxu0 0.0
    %2283 = vmatpush1.msra.mxu0 0.0
    %2284 = vmatprep.subr.mxu0 0.0
    %2285 = vmatpush1.msra.mxu0 0.0
    %2286 = vmatprep.subr.mxu0 0.0
    %2287 = vmatpush1.msra.mxu0 0.0
    %2288 = vmatprep.subr.mxu0 0.0
    %2289 = vmatpush1.msra.mxu0 0.0
    %2290 = vmatprep.subr.mxu0 0.0
    %2291 = vmatpush1.msra.mxu0 0.0
    %2292 = vmatprep.subr.mxu0 0.0
    %2293 = vmatpush1.msra.mxu0 0.0
    %2294 = vmatprep.subr.mxu0 0.0
    %2295 = vmatpush1.msra.mxu0 0.0
    %2296 = vmatprep.subr.mxu0 0.0
    %2297 = vmatpush1.msra.mxu0 0.0
    %2298 = vmatprep.subr.mxu0 0.0
    %2299 = vmatpush1.msra.mxu0 0.0
    %2300 = vmatprep.subr.mxu0 0.0
    %2301 = vmatpush1.msra.mxu0 0.0
    %2302 = vmatprep.subr.mxu0 0.0
    %2303 = vmatpush1.msra.mxu0 0.0
    %2304 = vmatprep.subr.mxu0 0.0
    %2305 = vmatpush1.msra.mxu0 0.0
    %2306 = vmatprep.subr.mxu0 0.0
    %2307 = vmatpush1.msra.mxu0 0.0
    %2308 = vmatprep.subr.mxu0 0.0
    %2309 = vmatpush1.msra.mxu0 0.0
    %2310 = vmatprep.subr.mxu0 0.0
    %2311 = vmatpush1.msra.mxu0 0.0
    %2312 = vmatprep.subr.mxu0 0.0
    %2313 = vmatpush1.msra.mxu0 0.0
    %2314 = vmatprep.subr.mxu0 0.0
    %2315 = vmatpush1.msra.mxu0 0.0
    %2316 = vmatprep.subr.mxu0 0.0
    %2317 = vmatpush1.msra.mxu0 0.0
    %2318 = vmatprep.subr.mxu0 0.0
    %2319 = vmatpush1.msra.mxu0 0.0
    %2320 = vmatprep.subr.mxu0 0.0
    %2321 = vmatpush1.msra.mxu0 0.0
    %2322 = vmatprep.subr.mxu0 0.0
    %2323 = vmatpush1.msra.mxu0 0.0
    %2324 = vmatprep.mubr.f32.mxu0 0.0
    %2325 = vmatmul.mubr.f32.gmra.mrb[0].mxu0 %v2114
    %v2326 = vpop.f32.mrb[0].mxu0
    %v2327 = vadd.f32 0.0, %v2326
    %v2328 = vpop.f32.mrb[0].mxu0
    %2329 = vdwg.mxu0
    %v2330 = vadd.f32 %v579, %v2327
    %v2331 = vadd.f32 %v2330, %v154
    %2332 = vmatprep.subr.mxu0 0.0
    %2333 = vmatpush1.msra.mxu0 %v91
    %2334 = vmatprep.subr.mxu0 0.0
    %2335 = vmatpush1.msra.mxu0 %v92
    %2336 = vmatprep.subr.mxu0 0.0
    %2337 = vmatpush1.msra.mxu0 %v93
    %2338 = vmatprep.subr.mxu0 0.0
    %2339 = vmatpush1.msra.mxu0 %v94
    %2340 = vmatprep.subr.mxu0 0.0
    %2341 = vmatpush1.msra.mxu0 0.0
    %2342 = vmatprep.subr.mxu0 0.0
    %2343 = vmatpush1.msra.mxu0 0.0
    %2344 = vmatprep.subr.mxu0 0.0
    %2345 = vmatpush1.msra.mxu0 0.0
    %2346 = vmatprep.subr.mxu0 0.0
    %2347 = vmatpush1.msra.mxu0 0.0
    %2348 = vmatprep.subr.mxu0 0.0
    %2349 = vmatpush1.msra.mxu0 0.0
    %2350 = vmatprep.subr.mxu0 0.0
    %2351 = vmatpush1.msra.mxu0 0.0
    %2352 = vmatprep.subr.mxu0 0.0
    %2353 = vmatpush1.msra.mxu0 0.0
    %2354 = vmatprep.subr.mxu0 0.0
    %2355 = vmatpush1.msra.mxu0 0.0
    %2356 = vmatprep.subr.mxu0 0.0
    %2357 = vmatpush1.msra.mxu0 0.0
    %2358 = vmatprep.subr.mxu0 0.0
    %2359 = vmatpush1.msra.mxu0 0.0
    %2360 = vmatprep.subr.mxu0 0.0
    %2361 = vmatpush1.msra.mxu0 0.0
    %2362 = vmatprep.subr.mxu0 0.0
    %2363 = vmatpush1.msra.mxu0 0.0
    %2364 = vmatprep.subr.mxu0 0.0
    %2365 = vmatpush1.msra.mxu0 0.0
    %2366 = vmatprep.subr.mxu0 0.0
    %2367 = vmatpush1.msra.mxu0 0.0
    %2368 = vmatprep.subr.mxu0 0.0
    %2369 = vmatpush1.msra.mxu0 0.0
    %2370 = vmatprep.subr.mxu0 0.0
    %2371 = vmatpush1.msra.mxu0 0.0
    %2372 = vmatprep.subr.mxu0 0.0
    %2373 = vmatpush1.msra.mxu0 0.0
    %2374 = vmatprep.subr.mxu0 0.0
    %2375 = vmatpush1.msra.mxu0 0.0
    %2376 = vmatprep.subr.mxu0 0.0
    %2377 = vmatpush1.msra.mxu0 0.0
    %2378 = vmatprep.subr.mxu0 0.0
    %2379 = vmatpush1.msra.mxu0 0.0
    %2380 = vmatprep.subr.mxu0 0.0
    %2381 = vmatpush1.msra.mxu0 0.0
    %2382 = vmatprep.subr.mxu0 0.0
    %2383 = vmatpush1.msra.mxu0 0.0
    %2384 = vmatprep.subr.mxu0 0.0
    %2385 = vmatpush1.msra.mxu0 0.0
    %2386 = vmatprep.subr.mxu0 0.0
    %2387 = vmatpush1.msra.mxu0 0.0
    %2388 = vmatprep.subr.mxu0 0.0
    %2389 = vmatpush1.msra.mxu0 0.0
    %2390 = vmatprep.subr.mxu0 0.0
    %2391 = vmatpush1.msra.mxu0 0.0
    %2392 = vmatprep.subr.mxu0 0.0
    %2393 = vmatpush1.msra.mxu0 0.0
    %2394 = vmatprep.subr.mxu0 0.0
    %2395 = vmatpush1.msra.mxu0 0.0
    %2396 = vmatprep.mubr.f32.mxu0 0.0
    %2397 = vmatmul.mubr.f32.gmra.mrb[0].mxu0 %v2114
    %v2398 = vpop.f32.mrb[0].mxu0
    %v2399 = vadd.f32 0.0, %v2398
    %v2400 = vpop.f32.mrb[0].mxu0
    %2401 = vdwg.mxu0
    %v2402 = vadd.f32 %v689, %v2399
    %v2403 = vadd.f32 %v2402, %v162
    %v2404 = vxor.u32 %v2187, 2147483648
    %v2405 = vmul.f32 %v2404, 1.442695
    %v2406 = vpow.pop %v2405
    %v2407 = vadd.f32 %v2406, 1.0
    %v2408 = vrcp.pop %v2407
    %v2409 = vmul.f32 1.0, %v2408
    %v2410 = vxor.u32 %v2259, 2147483648
    %v2411 = vmul.f32 %v2410, 1.442695
    %v2412 = vpow.pop %v2411
    %v2413 = vadd.f32 %v2412, 1.0
    %v2414 = vrcp.pop %v2413
    %v2415 = vmul.f32 1.0, %v2414
    %v2416 = vtanh.pop %v2331
    %v2417 = vxor.u32 %v2403, 2147483648
    %v2418 = vmul.f32 %v2417, 1.442695
    %v2419 = vpow.pop %v2418
    %v2420 = vadd.f32 %v2419, 1.0
    %v2421 = vrcp.pop %v2420
    %v2422 = vmul.f32 1.0, %v2421
    %v2423 = vmul.f32 %v2415, %v2110
    %v2424 = vmul.f32 %v2409, %v2416
    %v2425 = vadd.f32 %v2423, %v2424
    %v2426 = vtanh.pop %v2425
    %v2427 = vmul.f32 %v2422, %v2426
    %v2429 = vsel %vm1167, %v2427, 0
    %2431 = vmatprep.subr.mxu0 0.0
    %2432 = vmatpush1.msra.mxu0 %v76
    %2433 = vmatprep.subr.mxu0 0.0
    %2434 = vmatpush1.msra.mxu0 %v77
    %2435 = vmatprep.subr.mxu0 0.0
    %2436 = vmatpush1.msra.mxu0 %v78
    %2437 = vmatprep.subr.mxu0 0.0
    %2438 = vmatpush1.msra.mxu0 %v79
    %2439 = vmatprep.subr.mxu0 0.0
    %2440 = vmatpush1.msra.mxu0 0.0
    %2441 = vmatprep.subr.mxu0 0.0
    %2442 = vmatpush1.msra.mxu0 0.0
    %2443 = vmatprep.subr.mxu0 0.0
    %2444 = vmatpush1.msra.mxu0 0.0
    %2445 = vmatprep.subr.mxu0 0.0
    %2446 = vmatpush1.msra.mxu0 0.0
    %2447 = vmatprep.subr.mxu0 0.0
    %2448 = vmatpush1.msra.mxu0 0.0
    %2449 = vmatprep.subr.mxu0 0.0
    %2450 = vmatpush1.msra.mxu0 0.0
    %2451 = vmatprep.subr.mxu0 0.0
    %2452 = vmatpush1.msra.mxu0 0.0
    %2453 = vmatprep.subr.mxu0 0.0
    %2454 = vmatpush1.msra.mxu0 0.0
    %2455 = vmatprep.subr.mxu0 0.0
    %2456 = vmatpush1.msra.mxu0 0.0
    %2457 = vmatprep.subr.mxu0 0.0
    %2458 = vmatpush1.msra.mxu0 0.0
    %2459 = vmatprep.subr.mxu0 0.0
    %2460 = vmatpush1.msra.mxu0 0.0
    %2461 = vmatprep.subr.mxu0 0.0
    %2462 = vmatpush1.msra.mxu0 0.0
    %2463 = vmatprep.subr.mxu0 0.0
    %2464 = vmatpush1.msra.mxu0 0.0
    %2465 = vmatprep.subr.mxu0 0.0
    %2466 = vmatpush1.msra.mxu0 0.0
    %2467 = vmatprep.subr.mxu0 0.0
    %2468 = vmatpush1.msra.mxu0 0.0
    %2469 = vmatprep.subr.mxu0 0.0
    %2470 = vmatpush1.msra.mxu0 0.0
    %2471 = vmatprep.subr.mxu0 0.0
    %2472 = vmatpush1.msra.mxu0 0.0
    %2473 = vmatprep.subr.mxu0 0.0
    %2474 = vmatpush1.msra.mxu0 0.0
    %2475 = vmatprep.subr.mxu0 0.0
    %2476 = vmatpush1.msra.mxu0 0.0
    %2477 = vmatprep.subr.mxu0 0.0
    %2478 = vmatpush1.msra.mxu0 0.0
    %2479 = vmatprep.subr.mxu0 0.0
    %2480 = vmatpush1.msra.mxu0 0.0
    %2481 = vmatprep.subr.mxu0 0.0
    %2482 = vmatpush1.msra.mxu0 0.0
    %2483 = vmatprep.subr.mxu0 0.0
    %2484 = vmatpush1.msra.mxu0 0.0
    %2485 = vmatprep.subr.mxu0 0.0
    %2486 = vmatpush1.msra.mxu0 0.0
    %2487 = vmatprep.subr.mxu0 0.0
    %2488 = vmatpush1.msra.mxu0 0.0
    %2489 = vmatprep.subr.mxu0 0.0
    %2490 = vmatpush1.msra.mxu0 0.0
    %2491 = vmatprep.subr.mxu0 0.0
    %2492 = vmatpush1.msra.mxu0 0.0
    %2493 = vmatprep.subr.mxu0 0.0
    %2494 = vmatpush1.msra.mxu0 0.0
    %2495 = vmatprep.mubr.f32.mxu0 0.0
    %2496 = vmatmul.mubr.f32.gmra.mrb[0].mxu0 %v2429
    %v2497 = vpop.f32.mrb[0].mxu0
    %v2498 = vadd.f32 0.0, %v2497
    %v2499 = vpop.f32.mrb[0].mxu0
    %2500 = vdwg.mxu0
    %v2501 = vadd.f32 %v364, %v2498
    %v2502 = vadd.f32 %v2501, %v138
    %2503 = vmatprep.subr.mxu0 0.0
    %2504 = vmatpush1.msra.mxu0 %v81
    %2505 = vmatprep.subr.mxu0 0.0
    %2506 = vmatpush1.msra.mxu0 %v82
    %2507 = vmatprep.subr.mxu0 0.0
    %2508 = vmatpush1.msra.mxu0 %v83
    %2509 = vmatprep.subr.mxu0 0.0
    %2510 = vmatpush1.msra.mxu0 %v84
    %2511 = vmatprep.subr.mxu0 0.0
    %2512 = vmatpush1.msra.mxu0 0.0
    %2513 = vmatprep.subr.mxu0 0.0
    %2514 = vmatpush1.msra.mxu0 0.0
    %2515 = vmatprep.subr.mxu0 0.0
    %2516 = vmatpush1.msra.mxu0 0.0
    %2517 = vmatprep.subr.mxu0 0.0
    %2518 = vmatpush1.msra.mxu0 0.0
    %2519 = vmatprep.subr.mxu0 0.0
    %2520 = vmatpush1.msra.mxu0 0.0
    %2521 = vmatprep.subr.mxu0 0.0
    %2522 = vmatpush1.msra.mxu0 0.0
    %2523 = vmatprep.subr.mxu0 0.0
    %2524 = vmatpush1.msra.mxu0 0.0
    %2525 = vmatprep.subr.mxu0 0.0
    %2526 = vmatpush1.msra.mxu0 0.0
    %2527 = vmatprep.subr.mxu0 0.0
    %2528 = vmatpush1.msra.mxu0 0.0
    %2529 = vmatprep.subr.mxu0 0.0
    %2530 = vmatpush1.msra.mxu0 0.0
    %2531 = vmatprep.subr.mxu0 0.0
    %2532 = vmatpush1.msra.mxu0 0.0
    %2533 = vmatprep.subr.mxu0 0.0
    %2534 = vmatpush1.msra.mxu0 0.0
    %2535 = vmatprep.subr.mxu0 0.0
    %2536 = vmatpush1.msra.mxu0 0.0
    %2537 = vmatprep.subr.mxu0 0.0
    %2538 = vmatpush1.msra.mxu0 0.0
    %2539 = vmatprep.subr.mxu0 0.0
    %2540 = vmatpush1.msra.mxu0 0.0
    %2541 = vmatprep.subr.mxu0 0.0
    %2542 = vmatpush1.msra.mxu0 0.0
    %2543 = vmatprep.subr.mxu0 0.0
    %2544 = vmatpush1.msra.mxu0 0.0
    %2545 = vmatprep.subr.mxu0 0.0
    %2546 = vmatpush1.msra.mxu0 0.0
    %2547 = vmatprep.subr.mxu0 0.0
    %2548 = vmatpush1.msra.mxu0 0.0
    %2549 = vmatprep.subr.mxu0 0.0
    %2550 = vmatpush1.msra.mxu0 0.0
    %2551 = vmatprep.subr.mxu0 0.0
    %2552 = vmatpush1.msra.mxu0 0.0
    %2553 = vmatprep.subr.mxu0 0.0
    %2554 = vmatpush1.msra.mxu0 0.0
    %2555 = vmatprep.subr.mxu0 0.0
    %2556 = vmatpush1.msra.mxu0 0.0
    %2557 = vmatprep.subr.mxu0 0.0
    %2558 = vmatpush1.msra.mxu0 0.0
    %2559 = vmatprep.subr.mxu0 0.0
    %2560 = vmatpush1.msra.mxu0 0.0
    %2561 = vmatprep.subr.mxu0 0.0
    %2562 = vmatpush1.msra.mxu0 0.0
    %2563 = vmatprep.subr.mxu0 0.0
    %2564 = vmatpush1.msra.mxu0 0.0
    %2565 = vmatprep.subr.mxu0 0.0
    %2566 = vmatpush1.msra.mxu0 0.0
    %2567 = vmatprep.mubr.f32.mxu0 0.0
    %2568 = vmatmul.mubr.f32.gmra.mrb[0].mxu0 %v2429
    %v2569 = vpop.f32.mrb[0].mxu0
    %v2570 = vadd.f32 0.0, %v2569
    %v2571 = vpop.f32.mrb[0].mxu0
    %2572 = vdwg.mxu0
    %v2573 = vadd.f32 %v474, %v2570
    %v2574 = vadd.f32 %v2573, %v146
    %2575 = vmatprep.subr.mxu0 0.0
    %2576 = vmatpush1.msra.mxu0 %v86
    %2577 = vmatprep.subr.mxu0 0.0
    %2578 = vmatpush1.msra.mxu0 %v87
    %2579 = vmatprep.subr.mxu0 0.0
    %2580 = vmatpush1.msra.mxu0 %v88
    %2581 = vmatprep.subr.mxu0 0.0
    %2582 = vmatpush1.msra.mxu0 %v89
    %2583 = vmatprep.subr.mxu0 0.0
    %2584 = vmatpush1.msra.mxu0 0.0
    %2585 = vmatprep.subr.mxu0 0.0
    %2586 = vmatpush1.msra.mxu0 0.0
    %2587 = vmatprep.subr.mxu0 0.0
    %2588 = vmatpush1.msra.mxu0 0.0
    %2589 = vmatprep.subr.mxu0 0.0
    %2590 = vmatpush1.msra.mxu0 0.0
    %2591 = vmatprep.subr.mxu0 0.0
    %2592 = vmatpush1.msra.mxu0 0.0
    %2593 = vmatprep.subr.mxu0 0.0
    %2594 = vmatpush1.msra.mxu0 0.0
    %2595 = vmatprep.subr.mxu0 0.0
    %2596 = vmatpush1.msra.mxu0 0.0
    %2597 = vmatprep.subr.mxu0 0.0
    %2598 = vmatpush1.msra.mxu0 0.0
    %2599 = vmatprep.subr.mxu0 0.0
    %2600 = vmatpush1.msra.mxu0 0.0
    %2601 = vmatprep.subr.mxu0 0.0
    %2602 = vmatpush1.msra.mxu0 0.0
    %2603 = vmatprep.subr.mxu0 0.0
    %2604 = vmatpush1.msra.mxu0 0.0
    %2605 = vmatprep.subr.mxu0 0.0
    %2606 = vmatpush1.msra.mxu0 0.0
    %2607 = vmatprep.subr.mxu0 0.0
    %2608 = vmatpush1.msra.mxu0 0.0
    %2609 = vmatprep.subr.mxu0 0.0
    %2610 = vmatpush1.msra.mxu0 0.0
    %2611 = vmatprep.subr.mxu0 0.0
    %2612 = vmatpush1.msra.mxu0 0.0
    %2613 = vmatprep.subr.mxu0 0.0
    %2614 = vmatpush1.msra.mxu0 0.0
    %2615 = vmatprep.subr.mxu0 0.0
    %2616 = vmatpush1.msra.mxu0 0.0
    %2617 = vmatprep.subr.mxu0 0.0
    %2618 = vmatpush1.msra.mxu0 0.0
    %2619 = vmatprep.subr.mxu0 0.0
    %2620 = vmatpush1.msra.mxu0 0.0
    %2621 = vmatprep.subr.mxu0 0.0
    %2622 = vmatpush1.msra.mxu0 0.0
    %2623 = vmatprep.subr.mxu0 0.0
    %2624 = vmatpush1.msra.mxu0 0.0
    %2625 = vmatprep.subr.mxu0 0.0
    %2626 = vmatpush1.msra.mxu0 0.0
    %2627 = vmatprep.subr.mxu0 0.0
    %2628 = vmatpush1.msra.mxu0 0.0
    %2629 = vmatprep.subr.mxu0 0.0
    %2630 = vmatpush1.msra.mxu0 0.0
    %2631 = vmatprep.subr.mxu0 0.0
    %2632 = vmatpush1.msra.mxu0 0.0
    %2633 = vmatprep.subr.mxu0 0.0
    %2634 = vmatpush1.msra.mxu0 0.0
    %2635 = vmatprep.subr.mxu0 0.0
    %2636 = vmatpush1.msra.mxu0 0.0
    %2637 = vmatprep.subr.mxu0 0.0
    %2638 = vmatpush1.msra.mxu0 0.0
    %2639 = vmatprep.mubr.f32.mxu0 0.0
    %2640 = vmatmul.mubr.f32.gmra.mrb[0].mxu0 %v2429
    %v2641 = vpop.f32.mrb[0].mxu0
    %v2642 = vadd.f32 0.0, %v2641
    %v2643 = vpop.f32.mrb[0].mxu0
    %2644 = vdwg.mxu0
    %v2645 = vadd.f32 %v584, %v2642
    %v2646 = vadd.f32 %v2645, %v154
    %2647 = vmatprep.subr.mxu0 0.0
    %2648 = vmatpush1.msra.mxu0 %v91
    %2649 = vmatprep.subr.mxu0 0.0
    %2650 = vmatpush1.msra.mxu0 %v92
    %2651 = vmatprep.subr.mxu0 0.0
    %2652 = vmatpush1.msra.mxu0 %v93
    %2653 = vmatprep.subr.mxu0 0.0
    %2654 = vmatpush1.msra.mxu0 %v94
    %2655 = vmatprep.subr.mxu0 0.0
    %2656 = vmatpush1.msra.mxu0 0.0
    %2657 = vmatprep.subr.mxu0 0.0
    %2658 = vmatpush1.msra.mxu0 0.0
    %2659 = vmatprep.subr.mxu0 0.0
    %2660 = vmatpush1.msra.mxu0 0.0
    %2661 = vmatprep.subr.mxu0 0.0
    %2662 = vmatpush1.msra.mxu0 0.0
    %2663 = vmatprep.subr.mxu0 0.0
    %2664 = vmatpush1.msra.mxu0 0.0
    %2665 = vmatprep.subr.mxu0 0.0
    %2666 = vmatpush1.msra.mxu0 0.0
    %2667 = vmatprep.subr.mxu0 0.0
    %2668 = vmatpush1.msra.mxu0 0.0
    %2669 = vmatprep.subr.mxu0 0.0
    %2670 = vmatpush1.msra.mxu0 0.0
    %2671 = vmatprep.subr.mxu0 0.0
    %2672 = vmatpush1.msra.mxu0 0.0
    %2673 = vmatprep.subr.mxu0 0.0
    %2674 = vmatpush1.msra.mxu0 0.0
    %2675 = vmatprep.subr.mxu0 0.0
    %2676 = vmatpush1.msra.mxu0 0.0
    %2677 = vmatprep.subr.mxu0 0.0
    %2678 = vmatpush1.msra.mxu0 0.0
    %2679 = vmatprep.subr.mxu0 0.0
    %2680 = vmatpush1.msra.mxu0 0.0
    %2681 = vmatprep.subr.mxu0 0.0
    %2682 = vmatpush1.msra.mxu0 0.0
    %2683 = vmatprep.subr.mxu0 0.0
    %2684 = vmatpush1.msra.mxu0 0.0
    %2685 = vmatprep.subr.mxu0 0.0
    %2686 = vmatpush1.msra.mxu0 0.0
    %2687 = vmatprep.subr.mxu0 0.0
    %2688 = vmatpush1.msra.mxu0 0.0
    %2689 = vmatprep.subr.mxu0 0.0
    %2690 = vmatpush1.msra.mxu0 0.0
    %2691 = vmatprep.subr.mxu0 0.0
    %2692 = vmatpush1.msra.mxu0 0.0
    %2693 = vmatprep.subr.mxu0 0.0
    %2694 = vmatpush1.msra.mxu0 0.0
    %2695 = vmatprep.subr.mxu0 0.0
    %2696 = vmatpush1.msra.mxu0 0.0
    %2697 = vmatprep.subr.mxu0 0.0
    %2698 = vmatpush1.msra.mxu0 0.0
    %2699 = vmatprep.subr.mxu0 0.0
    %2700 = vmatpush1.msra.mxu0 0.0
    %2701 = vmatprep.subr.mxu0 0.0
    %2702 = vmatpush1.msra.mxu0 0.0
    %2703 = vmatprep.subr.mxu0 0.0
    %2704 = vmatpush1.msra.mxu0 0.0
    %2705 = vmatprep.subr.mxu0 0.0
    %2706 = vmatpush1.msra.mxu0 0.0
    %2707 = vmatprep.subr.mxu0 0.0
    %2708 = vmatpush1.msra.mxu0 0.0
    %2709 = vmatprep.subr.mxu0 0.0
    %2710 = vmatpush1.msra.mxu0 0.0
    %2711 = vmatprep.mubr.f32.mxu0 0.0
    %2712 = vmatmul.mubr.f32.gmra.mrb[0].mxu0 %v2429
    %v2713 = vpop.f32.mrb[0].mxu0
    %v2714 = vadd.f32 0.0, %v2713
    %v2715 = vpop.f32.mrb[0].mxu0
    %2716 = vdwg.mxu0
    %v2717 = vadd.f32 %v694, %v2714
    %v2718 = vadd.f32 %v2717, %v162
    %v2719 = vxor.u32 %v2502, 2147483648
    %v2720 = vmul.f32 %v2719, 1.442695
    %v2721 = vpow.pop %v2720
    %v2722 = vadd.f32 %v2721, 1.0
    %v2723 = vrcp.pop %v2722
    %v2724 = vmul.f32 1.0, %v2723
    %v2725 = vxor.u32 %v2574, 2147483648
    %v2726 = vmul.f32 %v2725, 1.442695
    %v2727 = vpow.pop %v2726
    %v2728 = vadd.f32 %v2727, 1.0
    %v2729 = vrcp.pop %v2728
    %v2730 = vmul.f32 1.0, %v2729
    %v2731 = vtanh.pop %v2646
    %v2732 = vxor.u32 %v2718, 2147483648
    %v2733 = vmul.f32 %v2732, 1.442695
    %v2734 = vpow.pop %v2733
    %v2735 = vadd.f32 %v2734, 1.0
    %v2736 = vrcp.pop %v2735
    %v2737 = vmul.f32 1.0, %v2736
    %v2738 = vmul.f32 %v2730, %v2425
    %v2739 = vmul.f32 %v2724, %v2731
    %v2740 = vadd.f32 %v2738, %v2739
    %v2741 = vtanh.pop %v2740
    %v2742 = vmul.f32 %v2737, %v2741
    %v2744 = vsel %vm1167, %v2742, 0
    %2746 = vmatprep.subr.mxu0 0.0
    %2747 = vmatpush1.msra.mxu0 %v76
    %2748 = vmatprep.subr.mxu0 0.0
    %2749 = vmatpush1.msra.mxu0 %v77
    %2750 = vmatprep.subr.mxu0 0.0
    %2751 = vmatpush1.msra.mxu0 %v78
    %2752 = vmatprep.subr.mxu0 0.0
    %2753 = vmatpush1.msra.mxu0 %v79
    %2754 = vmatprep.subr.mxu0 0.0
    %2755 = vmatpush1.msra.mxu0 0.0
    %2756 = vmatprep.subr.mxu0 0.0
    %2757 = vmatpush1.msra.mxu0 0.0
    %2758 = vmatprep.subr.mxu0 0.0
    %2759 = vmatpush1.msra.mxu0 0.0
    %2760 = vmatprep.subr.mxu0 0.0
    %2761 = vmatpush1.msra.mxu0 0.0
    %2762 = vmatprep.subr.mxu0 0.0
    %2763 = vmatpush1.msra.mxu0 0.0
    %2764 = vmatprep.subr.mxu0 0.0
    %2765 = vmatpush1.msra.mxu0 0.0
    %2766 = vmatprep.subr.mxu0 0.0
    %2767 = vmatpush1.msra.mxu0 0.0
    %2768 = vmatprep.subr.mxu0 0.0
    %2769 = vmatpush1.msra.mxu0 0.0
    %2770 = vmatprep.subr.mxu0 0.0
    %2771 = vmatpush1.msra.mxu0 0.0
    %2772 = vmatprep.subr.mxu0 0.0
    %2773 = vmatpush1.msra.mxu0 0.0
    %2774 = vmatprep.subr.mxu0 0.0
    %2775 = vmatpush1.msra.mxu0 0.0
    %2776 = vmatprep.subr.mxu0 0.0
    %2777 = vmatpush1.msra.mxu0 0.0
    %2778 = vmatprep.subr.mxu0 0.0
    %2779 = vmatpush1.msra.mxu0 0.0
    %2780 = vmatprep.subr.mxu0 0.0
    %2781 = vmatpush1.msra.mxu0 0.0
    %2782 = vmatprep.subr.mxu0 0.0
    %2783 = vmatpush1.msra.mxu0 0.0
    %2784 = vmatprep.subr.mxu0 0.0
    %2785 = vmatpush1.msra.mxu0 0.0
    %2786 = vmatprep.subr.mxu0 0.0
    %2787 = vmatpush1.msra.mxu0 0.0
    %2788 = vmatprep.subr.mxu0 0.0
    %2789 = vmatpush1.msra.mxu0 0.0
    %2790 = vmatprep.subr.mxu0 0.0
    %2791 = vmatpush1.msra.mxu0 0.0
    %2792 = vmatprep.subr.mxu0 0.0
    %2793 = vmatpush1.msra.mxu0 0.0
    %2794 = vmatprep.subr.mxu0 0.0
    %2795 = vmatpush1.msra.mxu0 0.0
    %2796 = vmatprep.subr.mxu0 0.0
    %2797 = vmatpush1.msra.mxu0 0.0
    %2798 = vmatprep.subr.mxu0 0.0
    %2799 = vmatpush1.msra.mxu0 0.0
    %2800 = vmatprep.subr.mxu0 0.0
    %2801 = vmatpush1.msra.mxu0 0.0
    %2802 = vmatprep.subr.mxu0 0.0
    %2803 = vmatpush1.msra.mxu0 0.0
    %2804 = vmatprep.subr.mxu0 0.0
    %2805 = vmatpush1.msra.mxu0 0.0
    %2806 = vmatprep.subr.mxu0 0.0
    %2807 = vmatpush1.msra.mxu0 0.0
    %2808 = vmatprep.subr.mxu0 0.0
    %2809 = vmatpush1.msra.mxu0 0.0
    %2810 = vmatprep.mubr.f32.mxu0 0.0
    %2811 = vmatmul.mubr.f32.gmra.mrb[0].mxu0 %v2744
    %v2812 = vpop.f32.mrb[0].mxu0
    %v2813 = vadd.f32 0.0, %v2812
    %v2814 = vpop.f32.mrb[0].mxu0
    %2815 = vdwg.mxu0
    %v2816 = vadd.f32 %v369, %v2813
    %v2817 = vadd.f32 %v2816, %v138
    %2818 = vmatprep.subr.mxu0 0.0
    %2819 = vmatpush1.msra.mxu0 %v81
    %2820 = vmatprep.subr.mxu0 0.0
    %2821 = vmatpush1.msra.mxu0 %v82
    %2822 = vmatprep.subr.mxu0 0.0
    %2823 = vmatpush1.msra.mxu0 %v83
    %2824 = vmatprep.subr.mxu0 0.0
    %2825 = vmatpush1.msra.mxu0 %v84
    %2826 = vmatprep.subr.mxu0 0.0
    %2827 = vmatpush1.msra.mxu0 0.0
    %2828 = vmatprep.subr.mxu0 0.0
    %2829 = vmatpush1.msra.mxu0 0.0
    %2830 = vmatprep.subr.mxu0 0.0
    %2831 = vmatpush1.msra.mxu0 0.0
    %2832 = vmatprep.subr.mxu0 0.0
    %2833 = vmatpush1.msra.mxu0 0.0
    %2834 = vmatprep.subr.mxu0 0.0
    %2835 = vmatpush1.msra.mxu0 0.0
    %2836 = vmatprep.subr.mxu0 0.0
    %2837 = vmatpush1.msra.mxu0 0.0
    %2838 = vmatprep.subr.mxu0 0.0
    %2839 = vmatpush1.msra.mxu0 0.0
    %2840 = vmatprep.subr.mxu0 0.0
    %2841 = vmatpush1.msra.mxu0 0.0
    %2842 = vmatprep.subr.mxu0 0.0
    %2843 = vmatpush1.msra.mxu0 0.0
    %2844 = vmatprep.subr.mxu0 0.0
    %2845 = vmatpush1.msra.mxu0 0.0
    %2846 = vmatprep.subr.mxu0 0.0
    %2847 = vmatpush1.msra.mxu0 0.0
    %2848 = vmatprep.subr.mxu0 0.0
    %2849 = vmatpush1.msra.mxu0 0.0
    %2850 = vmatprep.subr.mxu0 0.0
    %2851 = vmatpush1.msra.mxu0 0.0
    %2852 = vmatprep.subr.mxu0 0.0
    %2853 = vmatpush1.msra.mxu0 0.0
    %2854 = vmatprep.subr.mxu0 0.0
    %2855 = vmatpush1.msra.mxu0 0.0
    %2856 = vmatprep.subr.mxu0 0.0
    %2857 = vmatpush1.msra.mxu0 0.0
    %2858 = vmatprep.subr.mxu0 0.0
    %2859 = vmatpush1.msra.mxu0 0.0
    %2860 = vmatprep.subr.mxu0 0.0
    %2861 = vmatpush1.msra.mxu0 0.0
    %2862 = vmatprep.subr.mxu0 0.0
    %2863 = vmatpush1.msra.mxu0 0.0
    %2864 = vmatprep.subr.mxu0 0.0
    %2865 = vmatpush1.msra.mxu0 0.0
    %2866 = vmatprep.subr.mxu0 0.0
    %2867 = vmatpush1.msra.mxu0 0.0
    %2868 = vmatprep.subr.mxu0 0.0
    %2869 = vmatpush1.msra.mxu0 0.0
    %2870 = vmatprep.subr.mxu0 0.0
    %2871 = vmatpush1.msra.mxu0 0.0
    %2872 = vmatprep.subr.mxu0 0.0
    %2873 = vmatpush1.msra.mxu0 0.0
    %2874 = vmatprep.subr.mxu0 0.0
    %2875 = vmatpush1.msra.mxu0 0.0
    %2876 = vmatprep.subr.mxu0 0.0
    %2877 = vmatpush1.msra.mxu0 0.0
    %2878 = vmatprep.subr.mxu0 0.0
    %2879 = vmatpush1.msra.mxu0 0.0
    %2880 = vmatprep.subr.mxu0 0.0
    %2881 = vmatpush1.msra.mxu0 0.0
    %2882 = vmatprep.mubr.f32.mxu0 0.0
    %2883 = vmatmul.mubr.f32.gmra.mrb[0].mxu0 %v2744
    %v2884 = vpop.f32.mrb[0].mxu0
    %v2885 = vadd.f32 0.0, %v2884
    %v2886 = vpop.f32.mrb[0].mxu0
    %2887 = vdwg.mxu0
    %v2888 = vadd.f32 %v479, %v2885
    %v2889 = vadd.f32 %v2888, %v146
    %2890 = vmatprep.subr.mxu0 0.0
    %2891 = vmatpush1.msra.mxu0 %v86
    %2892 = vmatprep.subr.mxu0 0.0
    %2893 = vmatpush1.msra.mxu0 %v87
    %2894 = vmatprep.subr.mxu0 0.0
    %2895 = vmatpush1.msra.mxu0 %v88
    %2896 = vmatprep.subr.mxu0 0.0
    %2897 = vmatpush1.msra.mxu0 %v89
    %2898 = vmatprep.subr.mxu0 0.0
    %2899 = vmatpush1.msra.mxu0 0.0
    %2900 = vmatprep.subr.mxu0 0.0
    %2901 = vmatpush1.msra.mxu0 0.0
    %2902 = vmatprep.subr.mxu0 0.0
    %2903 = vmatpush1.msra.mxu0 0.0
    %2904 = vmatprep.subr.mxu0 0.0
    %2905 = vmatpush1.msra.mxu0 0.0
    %2906 = vmatprep.subr.mxu0 0.0
    %2907 = vmatpush1.msra.mxu0 0.0
    %2908 = vmatprep.subr.mxu0 0.0
    %2909 = vmatpush1.msra.mxu0 0.0
    %2910 = vmatprep.subr.mxu0 0.0
    %2911 = vmatpush1.msra.mxu0 0.0
    %2912 = vmatprep.subr.mxu0 0.0
    %2913 = vmatpush1.msra.mxu0 0.0
    %2914 = vmatprep.subr.mxu0 0.0
    %2915 = vmatpush1.msra.mxu0 0.0
    %2916 = vmatprep.subr.mxu0 0.0
    %2917 = vmatpush1.msra.mxu0 0.0
    %2918 = vmatprep.subr.mxu0 0.0
    %2919 = vmatpush1.msra.mxu0 0.0
    %2920 = vmatprep.subr.mxu0 0.0
    %2921 = vmatpush1.msra.mxu0 0.0
    %2922 = vmatprep.subr.mxu0 0.0
    %2923 = vmatpush1.msra.mxu0 0.0
    %2924 = vmatprep.subr.mxu0 0.0
    %2925 = vmatpush1.msra.mxu0 0.0
    %2926 = vmatprep.subr.mxu0 0.0
    %2927 = vmatpush1.msra.mxu0 0.0
    %2928 = vmatprep.subr.mxu0 0.0
    %2929 = vmatpush1.msra.mxu0 0.0
    %2930 = vmatprep.subr.mxu0 0.0
    %2931 = vmatpush1.msra.mxu0 0.0
    %2932 = vmatprep.subr.mxu0 0.0
    %2933 = vmatpush1.msra.mxu0 0.0
    %2934 = vmatprep.subr.mxu0 0.0
    %2935 = vmatpush1.msra.mxu0 0.0
    %2936 = vmatprep.subr.mxu0 0.0
    %2937 = vmatpush1.msra.mxu0 0.0
    %2938 = vmatprep.subr.mxu0 0.0
    %2939 = vmatpush1.msra.mxu0 0.0
    %2940 = vmatprep.subr.mxu0 0.0
    %2941 = vmatpush1.msra.mxu0 0.0
    %2942 = vmatprep.subr.mxu0 0.0
    %2943 = vmatpush1.msra.mxu0 0.0
    %2944 = vmatprep.subr.mxu0 0.0
    %2945 = vmatpush1.msra.mxu0 0.0
    %2946 = vmatprep.subr.mxu0 0.0
    %2947 = vmatpush1.msra.mxu0 0.0
    %2948 = vmatprep.subr.mxu0 0.0
    %2949 = vmatpush1.msra.mxu0 0.0
    %2950 = vmatprep.subr.mxu0 0.0
    %2951 = vmatpush1.msra.mxu0 0.0
    %2952 = vmatprep.subr.mxu0 0.0
    %2953 = vmatpush1.msra.mxu0 0.0
    %2954 = vmatprep.mubr.f32.mxu0 0.0
    %2955 = vmatmul.mubr.f32.gmra.mrb[0].mxu0 %v2744
    %v2956 = vpop.f32.mrb[0].mxu0
    %v2957 = vadd.f32 0.0, %v2956
    %v2958 = vpop.f32.mrb[0].mxu0
    %2959 = vdwg.mxu0
    %v2960 = vadd.f32 %v589, %v2957
    %v2961 = vadd.f32 %v2960, %v154
    %2962 = vmatprep.subr.mxu0 0.0
    %2963 = vmatpush1.msra.mxu0 %v91
    %2964 = vmatprep.subr.mxu0 0.0
    %2965 = vmatpush1.msra.mxu0 %v92
    %2966 = vmatprep.subr.mxu0 0.0
    %2967 = vmatpush1.msra.mxu0 %v93
    %2968 = vmatprep.subr.mxu0 0.0
    %2969 = vmatpush1.msra.mxu0 %v94
    %2970 = vmatprep.subr.mxu0 0.0
    %2971 = vmatpush1.msra.mxu0 0.0
    %2972 = vmatprep.subr.mxu0 0.0
    %2973 = vmatpush1.msra.mxu0 0.0
    %2974 = vmatprep.subr.mxu0 0.0
    %2975 = vmatpush1.msra.mxu0 0.0
    %2976 = vmatprep.subr.mxu0 0.0
    %2977 = vmatpush1.msra.mxu0 0.0
    %2978 = vmatprep.subr.mxu0 0.0
    %2979 = vmatpush1.msra.mxu0 0.0
    %2980 = vmatprep.subr.mxu0 0.0
    %2981 = vmatpush1.msra.mxu0 0.0
    %2982 = vmatprep.subr.mxu0 0.0
    %2983 = vmatpush1.msra.mxu0 0.0
    %2984 = vmatprep.subr.mxu0 0.0
    %2985 = vmatpush1.msra.mxu0 0.0
    %2986 = vmatprep.subr.mxu0 0.0
    %2987 = vmatpush1.msra.mxu0 0.0
    %2988 = vmatprep.subr.mxu0 0.0
    %2989 = vmatpush1.msra.mxu0 0.0
    %2990 = vmatprep.subr.mxu0 0.0
    %2991 = vmatpush1.msra.mxu0 0.0
    %2992 = vmatprep.subr.mxu0 0.0
    %2993 = vmatpush1.msra.mxu0 0.0
    %2994 = vmatprep.subr.mxu0 0.0
    %2995 = vmatpush1.msra.mxu0 0.0
    %2996 = vmatprep.subr.mxu0 0.0
    %2997 = vmatpush1.msra.mxu0 0.0
    %2998 = vmatprep.subr.mxu0 0.0
    %2999 = vmatpush1.msra.mxu0 0.0
    %3000 = vmatprep.subr.mxu0 0.0
    %3001 = vmatpush1.msra.mxu0 0.0
    %3002 = vmatprep.subr.mxu0 0.0
    %3003 = vmatpush1.msra.mxu0 0.0
    %3004 = vmatprep.subr.mxu0 0.0
    %3005 = vmatpush1.msra.mxu0 0.0
    %3006 = vmatprep.subr.mxu0 0.0
    %3007 = vmatpush1.msra.mxu0 0.0
    %3008 = vmatprep.subr.mxu0 0.0
    %3009 = vmatpush1.msra.mxu0 0.0
    %3010 = vmatprep.subr.mxu0 0.0
    %3011 = vmatpush1.msra.mxu0 0.0
    %3012 = vmatprep.subr.mxu0 0.0
    %3013 = vmatpush1.msra.mxu0 0.0
    %3014 = vmatprep.subr.mxu0 0.0
    %3015 = vmatpush1.msra.mxu0 0.0
    %3016 = vmatprep.subr.mxu0 0.0
    %3017 = vmatpush1.msra.mxu0 0.0
    %3018 = vmatprep.subr.mxu0 0.0
    %3019 = vmatpush1.msra.mxu0 0.0
    %3020 = vmatprep.subr.mxu0 0.0
    %3021 = vmatpush1.msra.mxu0 0.0
    %3022 = vmatprep.subr.mxu0 0.0
    %3023 = vmatpush1.msra.mxu0 0.0
    %3024 = vmatprep.subr.mxu0 0.0
    %3025 = vmatpush1.msra.mxu0 0.0
    %3026 = vmatprep.mubr.f32.mxu0 0.0
    %3027 = vmatmul.mubr.f32.gmra.mrb[0].mxu0 %v2744
    %v3028 = vpop.f32.mrb[0].mxu0
    %v3029 = vadd.f32 0.0, %v3028
    %v3030 = vpop.f32.mrb[0].mxu0
    %3031 = vdwg.mxu0
    %v3032 = vadd.f32 %v699, %v3029
    %v3033 = vadd.f32 %v3032, %v162
    %v3034 = vxor.u32 %v2817, 2147483648
    %v3035 = vmul.f32 %v3034, 1.442695
    %v3036 = vpow.pop %v3035
    %v3037 = vadd.f32 %v3036, 1.0
    %v3038 = vrcp.pop %v3037
    %v3039 = vmul.f32 1.0, %v3038
    %v3040 = vxor.u32 %v2889, 2147483648
    %v3041 = vmul.f32 %v3040, 1.442695
    %v3042 = vpow.pop %v3041
    %v3043 = vadd.f32 %v3042, 1.0
    %v3044 = vrcp.pop %v3043
    %v3045 = vmul.f32 1.0, %v3044
    %v3046 = vtanh.pop %v2961
    %v3047 = vxor.u32 %v3033, 2147483648
    %v3048 = vmul.f32 %v3047, 1.442695
    %v3049 = vpow.pop %v3048
    %v3050 = vadd.f32 %v3049, 1.0
    %v3051 = vrcp.pop %v3050
    %v3052 = vmul.f32 1.0, %v3051
    %v3053 = vmul.f32 %v3045, %v2740
    %v3054 = vmul.f32 %v3039, %v3046
    %v3055 = vadd.f32 %v3053, %v3054
    %v3056 = vtanh.pop %v3055
    %v3057 = vmul.f32 %v3052, %v3056
    %v3059 = vsel %vm1167, %v3057, 0
    %3061 = vmatprep.subr.mxu0 0.0
    %3062 = vmatpush1.msra.mxu0 %v76
    %3063 = vmatprep.subr.mxu0 0.0
    %3064 = vmatpush1.msra.mxu0 %v77
    %3065 = vmatprep.subr.mxu0 0.0
    %3066 = vmatpush1.msra.mxu0 %v78
    %3067 = vmatprep.subr.mxu0 0.0
    %3068 = vmatpush1.msra.mxu0 %v79
    %3069 = vmatprep.subr.mxu0 0.0
    %3070 = vmatpush1.msra.mxu0 0.0
    %3071 = vmatprep.subr.mxu0 0.0
    %3072 = vmatpush1.msra.mxu0 0.0
    %3073 = vmatprep.subr.mxu0 0.0
    %3074 = vmatpush1.msra.mxu0 0.0
    %3075 = vmatprep.subr.mxu0 0.0
    %3076 = vmatpush1.msra.mxu0 0.0
    %3077 = vmatprep.subr.mxu0 0.0
    %3078 = vmatpush1.msra.mxu0 0.0
    %3079 = vmatprep.subr.mxu0 0.0
    %3080 = vmatpush1.msra.mxu0 0.0
    %3081 = vmatprep.subr.mxu0 0.0
    %3082 = vmatpush1.msra.mxu0 0.0
    %3083 = vmatprep.subr.mxu0 0.0
    %3084 = vmatpush1.msra.mxu0 0.0
    %3085 = vmatprep.subr.mxu0 0.0
    %3086 = vmatpush1.msra.mxu0 0.0
    %3087 = vmatprep.subr.mxu0 0.0
    %3088 = vmatpush1.msra.mxu0 0.0
    %3089 = vmatprep.subr.mxu0 0.0
    %3090 = vmatpush1.msra.mxu0 0.0
    %3091 = vmatprep.subr.mxu0 0.0
    %3092 = vmatpush1.msra.mxu0 0.0
    %3093 = vmatprep.subr.mxu0 0.0
    %3094 = vmatpush1.msra.mxu0 0.0
    %3095 = vmatprep.subr.mxu0 0.0
    %3096 = vmatpush1.msra.mxu0 0.0
    %3097 = vmatprep.subr.mxu0 0.0
    %3098 = vmatpush1.msra.mxu0 0.0
    %3099 = vmatprep.subr.mxu0 0.0
    %3100 = vmatpush1.msra.mxu0 0.0
    %3101 = vmatprep.subr.mxu0 0.0
    %3102 = vmatpush1.msra.mxu0 0.0
    %3103 = vmatprep.subr.mxu0 0.0
    %3104 = vmatpush1.msra.mxu0 0.0
    %3105 = vmatprep.subr.mxu0 0.0
    %3106 = vmatpush1.msra.mxu0 0.0
    %3107 = vmatprep.subr.mxu0 0.0
    %3108 = vmatpush1.msra.mxu0 0.0
    %3109 = vmatprep.subr.mxu0 0.0
    %3110 = vmatpush1.msra.mxu0 0.0
    %3111 = vmatprep.subr.mxu0 0.0
    %3112 = vmatpush1.msra.mxu0 0.0
    %3113 = vmatprep.subr.mxu0 0.0
    %3114 = vmatpush1.msra.mxu0 0.0
    %3115 = vmatprep.subr.mxu0 0.0
    %3116 = vmatpush1.msra.mxu0 0.0
    %3117 = vmatprep.subr.mxu0 0.0
    %3118 = vmatpush1.msra.mxu0 0.0
    %3119 = vmatprep.subr.mxu0 0.0
    %3120 = vmatpush1.msra.mxu0 0.0
    %3121 = vmatprep.subr.mxu0 0.0
    %3122 = vmatpush1.msra.mxu0 0.0
    %3123 = vmatprep.subr.mxu0 0.0
    %3124 = vmatpush1.msra.mxu0 0.0
    %3125 = vmatprep.mubr.f32.mxu0 0.0
    %3126 = vmatmul.mubr.f32.gmra.mrb[0].mxu0 %v3059
    %v3127 = vpop.f32.mrb[0].mxu0
    %v3128 = vadd.f32 0.0, %v3127
    %v3129 = vpop.f32.mrb[0].mxu0
    %3130 = vdwg.mxu0
    %v3131 = vadd.f32 %v374, %v3128
    %v3132 = vadd.f32 %v3131, %v138
    %3133 = vmatprep.subr.mxu0 0.0
    %3134 = vmatpush1.msra.mxu0 %v81
    %3135 = vmatprep.subr.mxu0 0.0
    %3136 = vmatpush1.msra.mxu0 %v82
    %3137 = vmatprep.subr.mxu0 0.0
    %3138 = vmatpush1.msra.mxu0 %v83
    %3139 = vmatprep.subr.mxu0 0.0
    %3140 = vmatpush1.msra.mxu0 %v84
    %3141 = vmatprep.subr.mxu0 0.0
    %3142 = vmatpush1.msra.mxu0 0.0
    %3143 = vmatprep.subr.mxu0 0.0
    %3144 = vmatpush1.msra.mxu0 0.0
    %3145 = vmatprep.subr.mxu0 0.0
    %3146 = vmatpush1.msra.mxu0 0.0
    %3147 = vmatprep.subr.mxu0 0.0
    %3148 = vmatpush1.msra.mxu0 0.0
    %3149 = vmatprep.subr.mxu0 0.0
    %3150 = vmatpush1.msra.mxu0 0.0
    %3151 = vmatprep.subr.mxu0 0.0
    %3152 = vmatpush1.msra.mxu0 0.0
    %3153 = vmatprep.subr.mxu0 0.0
    %3154 = vmatpush1.msra.mxu0 0.0
    %3155 = vmatprep.subr.mxu0 0.0
    %3156 = vmatpush1.msra.mxu0 0.0
    %3157 = vmatprep.subr.mxu0 0.0
    %3158 = vmatpush1.msra.mxu0 0.0
    %3159 = vmatprep.subr.mxu0 0.0
    %3160 = vmatpush1.msra.mxu0 0.0
    %3161 = vmatprep.subr.mxu0 0.0
    %3162 = vmatpush1.msra.mxu0 0.0
    %3163 = vmatprep.subr.mxu0 0.0
    %3164 = vmatpush1.msra.mxu0 0.0
    %3165 = vmatprep.subr.mxu0 0.0
    %3166 = vmatpush1.msra.mxu0 0.0
    %3167 = vmatprep.subr.mxu0 0.0
    %3168 = vmatpush1.msra.mxu0 0.0
    %3169 = vmatprep.subr.mxu0 0.0
    %3170 = vmatpush1.msra.mxu0 0.0
    %3171 = vmatprep.subr.mxu0 0.0
    %3172 = vmatpush1.msra.mxu0 0.0
    %3173 = vmatprep.subr.mxu0 0.0
    %3174 = vmatpush1.msra.mxu0 0.0
    %3175 = vmatprep.subr.mxu0 0.0
    %3176 = vmatpush1.msra.mxu0 0.0
    %3177 = vmatprep.subr.mxu0 0.0
    %3178 = vmatpush1.msra.mxu0 0.0
    %3179 = vmatprep.subr.mxu0 0.0
    %3180 = vmatpush1.msra.mxu0 0.0
    %3181 = vmatprep.subr.mxu0 0.0
    %3182 = vmatpush1.msra.mxu0 0.0
    %3183 = vmatprep.subr.mxu0 0.0
    %3184 = vmatpush1.msra.mxu0 0.0
    %3185 = vmatprep.subr.mxu0 0.0
    %3186 = vmatpush1.msra.mxu0 0.0
    %3187 = vmatprep.subr.mxu0 0.0
    %3188 = vmatpush1.msra.mxu0 0.0
    %3189 = vmatprep.subr.mxu0 0.0
    %3190 = vmatpush1.msra.mxu0 0.0
    %3191 = vmatprep.subr.mxu0 0.0
    %3192 = vmatpush1.msra.mxu0 0.0
    %3193 = vmatprep.subr.mxu0 0.0
    %3194 = vmatpush1.msra.mxu0 0.0
    %3195 = vmatprep.subr.mxu0 0.0
    %3196 = vmatpush1.msra.mxu0 0.0
    %3197 = vmatprep.mubr.f32.mxu0 0.0
    %3198 = vmatmul.mubr.f32.gmra.mrb[0].mxu0 %v3059
    %v3199 = vpop.f32.mrb[0].mxu0
    %v3200 = vadd.f32 0.0, %v3199
    %v3201 = vpop.f32.mrb[0].mxu0
    %3202 = vdwg.mxu0
    %v3203 = vadd.f32 %v484, %v3200
    %v3204 = vadd.f32 %v3203, %v146
    %3205 = vmatprep.subr.mxu0 0.0
    %3206 = vmatpush1.msra.mxu0 %v86
    %3207 = vmatprep.subr.mxu0 0.0
    %3208 = vmatpush1.msra.mxu0 %v87
    %3209 = vmatprep.subr.mxu0 0.0
    %3210 = vmatpush1.msra.mxu0 %v88
    %3211 = vmatprep.subr.mxu0 0.0
    %3212 = vmatpush1.msra.mxu0 %v89
    %3213 = vmatprep.subr.mxu0 0.0
    %3214 = vmatpush1.msra.mxu0 0.0
    %3215 = vmatprep.subr.mxu0 0.0
    %3216 = vmatpush1.msra.mxu0 0.0
    %3217 = vmatprep.subr.mxu0 0.0
    %3218 = vmatpush1.msra.mxu0 0.0
    %3219 = vmatprep.subr.mxu0 0.0
    %3220 = vmatpush1.msra.mxu0 0.0
    %3221 = vmatprep.subr.mxu0 0.0
    %3222 = vmatpush1.msra.mxu0 0.0
    %3223 = vmatprep.subr.mxu0 0.0
    %3224 = vmatpush1.msra.mxu0 0.0
    %3225 = vmatprep.subr.mxu0 0.0
    %3226 = vmatpush1.msra.mxu0 0.0
    %3227 = vmatprep.subr.mxu0 0.0
    %3228 = vmatpush1.msra.mxu0 0.0
    %3229 = vmatprep.subr.mxu0 0.0
    %3230 = vmatpush1.msra.mxu0 0.0
    %3231 = vmatprep.subr.mxu0 0.0
    %3232 = vmatpush1.msra.mxu0 0.0
    %3233 = vmatprep.subr.mxu0 0.0
    %3234 = vmatpush1.msra.mxu0 0.0
    %3235 = vmatprep.subr.mxu0 0.0
    %3236 = vmatpush1.msra.mxu0 0.0
    %3237 = vmatprep.subr.mxu0 0.0
    %3238 = vmatpush1.msra.mxu0 0.0
    %3239 = vmatprep.subr.mxu0 0.0
    %3240 = vmatpush1.msra.mxu0 0.0
    %3241 = vmatprep.subr.mxu0 0.0
    %3242 = vmatpush1.msra.mxu0 0.0
    %3243 = vmatprep.subr.mxu0 0.0
    %3244 = vmatpush1.msra.mxu0 0.0
    %3245 = vmatprep.subr.mxu0 0.0
    %3246 = vmatpush1.msra.mxu0 0.0
    %3247 = vmatprep.subr.mxu0 0.0
    %3248 = vmatpush1.msra.mxu0 0.0
    %3249 = vmatprep.subr.mxu0 0.0
    %3250 = vmatpush1.msra.mxu0 0.0
    %3251 = vmatprep.subr.mxu0 0.0
    %3252 = vmatpush1.msra.mxu0 0.0
    %3253 = vmatprep.subr.mxu0 0.0
    %3254 = vmatpush1.msra.mxu0 0.0
    %3255 = vmatprep.subr.mxu0 0.0
    %3256 = vmatpush1.msra.mxu0 0.0
    %3257 = vmatprep.subr.mxu0 0.0
    %3258 = vmatpush1.msra.mxu0 0.0
    %3259 = vmatprep.subr.mxu0 0.0
    %3260 = vmatpush1.msra.mxu0 0.0
    %3261 = vmatprep.subr.mxu0 0.0
    %3262 = vmatpush1.msra.mxu0 0.0
    %3263 = vmatprep.subr.mxu0 0.0
    %3264 = vmatpush1.msra.mxu0 0.0
    %3265 = vmatprep.subr.mxu0 0.0
    %3266 = vmatpush1.msra.mxu0 0.0
    %3267 = vmatprep.subr.mxu0 0.0
    %3268 = vmatpush1.msra.mxu0 0.0
    %3269 = vmatprep.mubr.f32.mxu0 0.0
    %3270 = vmatmul.mubr.f32.gmra.mrb[0].mxu0 %v3059
    %v3271 = vpop.f32.mrb[0].mxu0
    %v3272 = vadd.f32 0.0, %v3271
    %v3273 = vpop.f32.mrb[0].mxu0
    %3274 = vdwg.mxu0
    %v3275 = vadd.f32 %v594, %v3272
    %v3276 = vadd.f32 %v3275, %v154
    %3277 = vmatprep.subr.mxu0 0.0
    %3278 = vmatpush1.msra.mxu0 %v91
    %3279 = vmatprep.subr.mxu0 0.0
    %3280 = vmatpush1.msra.mxu0 %v92
    %3281 = vmatprep.subr.mxu0 0.0
    %3282 = vmatpush1.msra.mxu0 %v93
    %3283 = vmatprep.subr.mxu0 0.0
    %3284 = vmatpush1.msra.mxu0 %v94
    %3285 = vmatprep.subr.mxu0 0.0
    %3286 = vmatpush1.msra.mxu0 0.0
    %3287 = vmatprep.subr.mxu0 0.0
    %3288 = vmatpush1.msra.mxu0 0.0
    %3289 = vmatprep.subr.mxu0 0.0
    %3290 = vmatpush1.msra.mxu0 0.0
    %3291 = vmatprep.subr.mxu0 0.0
    %3292 = vmatpush1.msra.mxu0 0.0
    %3293 = vmatprep.subr.mxu0 0.0
    %3294 = vmatpush1.msra.mxu0 0.0
    %3295 = vmatprep.subr.mxu0 0.0
    %3296 = vmatpush1.msra.mxu0 0.0
    %3297 = vmatprep.subr.mxu0 0.0
    %3298 = vmatpush1.msra.mxu0 0.0
    %3299 = vmatprep.subr.mxu0 0.0
    %3300 = vmatpush1.msra.mxu0 0.0
    %3301 = vmatprep.subr.mxu0 0.0
    %3302 = vmatpush1.msra.mxu0 0.0
    %3303 = vmatprep.subr.mxu0 0.0
    %3304 = vmatpush1.msra.mxu0 0.0
    %3305 = vmatprep.subr.mxu0 0.0
    %3306 = vmatpush1.msra.mxu0 0.0
    %3307 = vmatprep.subr.mxu0 0.0
    %3308 = vmatpush1.msra.mxu0 0.0
    %3309 = vmatprep.subr.mxu0 0.0
    %3310 = vmatpush1.msra.mxu0 0.0
    %3311 = vmatprep.subr.mxu0 0.0
    %3312 = vmatpush1.msra.mxu0 0.0
    %3313 = vmatprep.subr.mxu0 0.0
    %3314 = vmatpush1.msra.mxu0 0.0
    %3315 = vmatprep.subr.mxu0 0.0
    %3316 = vmatpush1.msra.mxu0 0.0
    %3317 = vmatprep.subr.mxu0 0.0
    %3318 = vmatpush1.msra.mxu0 0.0
    %3319 = vmatprep.subr.mxu0 0.0
    %3320 = vmatpush1.msra.mxu0 0.0
    %3321 = vmatprep.subr.mxu0 0.0
    %3322 = vmatpush1.msra.mxu0 0.0
    %3323 = vmatprep.subr.mxu0 0.0
    %3324 = vmatpush1.msra.mxu0 0.0
    %3325 = vmatprep.subr.mxu0 0.0
    %3326 = vmatpush1.msra.mxu0 0.0
    %3327 = vmatprep.subr.mxu0 0.0
    %3328 = vmatpush1.msra.mxu0 0.0
    %3329 = vmatprep.subr.mxu0 0.0
    %3330 = vmatpush1.msra.mxu0 0.0
    %3331 = vmatprep.subr.mxu0 0.0
    %3332 = vmatpush1.msra.mxu0 0.0
    %3333 = vmatprep.subr.mxu0 0.0
    %3334 = vmatpush1.msra.mxu0 0.0
    %3335 = vmatprep.subr.mxu0 0.0
    %3336 = vmatpush1.msra.mxu0 0.0
    %3337 = vmatprep.subr.mxu0 0.0
    %3338 = vmatpush1.msra.mxu0 0.0
    %3339 = vmatprep.subr.mxu0 0.0
    %3340 = vmatpush1.msra.mxu0 0.0
    %3341 = vmatprep.mubr.f32.mxu0 0.0
    %3342 = vmatmul.mubr.f32.gmra.mrb[0].mxu0 %v3059
    %v3343 = vpop.f32.mrb[0].mxu0
    %v3344 = vadd.f32 0.0, %v3343
    %v3345 = vpop.f32.mrb[0].mxu0
    %3346 = vdwg.mxu0
    %v3347 = vadd.f32 %v704, %v3344
    %v3348 = vadd.f32 %v3347, %v162
    %v3349 = vxor.u32 %v3132, 2147483648
    %v3350 = vmul.f32 %v3349, 1.442695
    %v3351 = vpow.pop %v3350
    %v3352 = vadd.f32 %v3351, 1.0
    %v3353 = vrcp.pop %v3352
    %v3354 = vmul.f32 1.0, %v3353
    %v3355 = vxor.u32 %v3204, 2147483648
    %v3356 = vmul.f32 %v3355, 1.442695
    %v3357 = vpow.pop %v3356
    %v3358 = vadd.f32 %v3357, 1.0
    %v3359 = vrcp.pop %v3358
    %v3360 = vmul.f32 1.0, %v3359
    %v3361 = vtanh.pop %v3276
    %v3362 = vxor.u32 %v3348, 2147483648
    %v3363 = vmul.f32 %v3362, 1.442695
    %v3364 = vpow.pop %v3363
    %v3365 = vadd.f32 %v3364, 1.0
    %v3366 = vrcp.pop %v3365
    %v3367 = vmul.f32 1.0, %v3366
    %v3368 = vmul.f32 %v3360, %v3055
    %v3369 = vmul.f32 %v3354, %v3361
    %v3370 = vadd.f32 %v3368, %v3369
    %v3371 = vtanh.pop %v3370
    %v3372 = vmul.f32 %v3367, %v3371
    %v3374 = vsel %vm1167, %v3372, 0
    %3376 = vmatprep.subr.mxu0 0.0
    %3377 = vmatpush1.msra.mxu0 %v76
    %3378 = vmatprep.subr.mxu0 0.0
    %3379 = vmatpush1.msra.mxu0 %v77
    %3380 = vmatprep.subr.mxu0 0.0
    %3381 = vmatpush1.msra.mxu0 %v78
    %3382 = vmatprep.subr.mxu0 0.0
    %3383 = vmatpush1.msra.mxu0 %v79
    %3384 = vmatprep.subr.mxu0 0.0
    %3385 = vmatpush1.msra.mxu0 0.0
    %3386 = vmatprep.subr.mxu0 0.0
    %3387 = vmatpush1.msra.mxu0 0.0
    %3388 = vmatprep.subr.mxu0 0.0
    %3389 = vmatpush1.msra.mxu0 0.0
    %3390 = vmatprep.subr.mxu0 0.0
    %3391 = vmatpush1.msra.mxu0 0.0
    %3392 = vmatprep.subr.mxu0 0.0
    %3393 = vmatpush1.msra.mxu0 0.0
    %3394 = vmatprep.subr.mxu0 0.0
    %3395 = vmatpush1.msra.mxu0 0.0
    %3396 = vmatprep.subr.mxu0 0.0
    %3397 = vmatpush1.msra.mxu0 0.0
    %3398 = vmatprep.subr.mxu0 0.0
    %3399 = vmatpush1.msra.mxu0 0.0
    %3400 = vmatprep.subr.mxu0 0.0
    %3401 = vmatpush1.msra.mxu0 0.0
    %3402 = vmatprep.subr.mxu0 0.0
    %3403 = vmatpush1.msra.mxu0 0.0
    %3404 = vmatprep.subr.mxu0 0.0
    %3405 = vmatpush1.msra.mxu0 0.0
    %3406 = vmatprep.subr.mxu0 0.0
    %3407 = vmatpush1.msra.mxu0 0.0
    %3408 = vmatprep.subr.mxu0 0.0
    %3409 = vmatpush1.msra.mxu0 0.0
    %3410 = vmatprep.subr.mxu0 0.0
    %3411 = vmatpush1.msra.mxu0 0.0
    %3412 = vmatprep.subr.mxu0 0.0
    %3413 = vmatpush1.msra.mxu0 0.0
    %3414 = vmatprep.subr.mxu0 0.0
    %3415 = vmatpush1.msra.mxu0 0.0
    %3416 = vmatprep.subr.mxu0 0.0
    %3417 = vmatpush1.msra.mxu0 0.0
    %3418 = vmatprep.subr.mxu0 0.0
    %3419 = vmatpush1.msra.mxu0 0.0
    %3420 = vmatprep.subr.mxu0 0.0
    %3421 = vmatpush1.msra.mxu0 0.0
    %3422 = vmatprep.subr.mxu0 0.0
    %3423 = vmatpush1.msra.mxu0 0.0
    %3424 = vmatprep.subr.mxu0 0.0
    %3425 = vmatpush1.msra.mxu0 0.0
    %3426 = vmatprep.subr.mxu0 0.0
    %3427 = vmatpush1.msra.mxu0 0.0
    %3428 = vmatprep.subr.mxu0 0.0
    %3429 = vmatpush1.msra.mxu0 0.0
    %3430 = vmatprep.subr.mxu0 0.0
    %3431 = vmatpush1.msra.mxu0 0.0
    %3432 = vmatprep.subr.mxu0 0.0
    %3433 = vmatpush1.msra.mxu0 0.0
    %3434 = vmatprep.subr.mxu0 0.0
    %3435 = vmatpush1.msra.mxu0 0.0
    %3436 = vmatprep.subr.mxu0 0.0
    %3437 = vmatpush1.msra.mxu0 0.0
    %3438 = vmatprep.subr.mxu0 0.0
    %3439 = vmatpush1.msra.mxu0 0.0
    %3440 = vmatprep.mubr.f32.mxu0 0.0
    %3441 = vmatmul.mubr.f32.gmra.mrb[0].mxu0 %v3374
    %v3442 = vpop.f32.mrb[0].mxu0
    %v3443 = vadd.f32 0.0, %v3442
    %v3444 = vpop.f32.mrb[0].mxu0
    %3445 = vdwg.mxu0
    %v3446 = vadd.f32 %v379, %v3443
    %v3447 = vadd.f32 %v3446, %v138
    %3448 = vmatprep.subr.mxu0 0.0
    %3449 = vmatpush1.msra.mxu0 %v81
    %3450 = vmatprep.subr.mxu0 0.0
    %3451 = vmatpush1.msra.mxu0 %v82
    %3452 = vmatprep.subr.mxu0 0.0
    %3453 = vmatpush1.msra.mxu0 %v83
    %3454 = vmatprep.subr.mxu0 0.0
    %3455 = vmatpush1.msra.mxu0 %v84
    %3456 = vmatprep.subr.mxu0 0.0
    %3457 = vmatpush1.msra.mxu0 0.0
    %3458 = vmatprep.subr.mxu0 0.0
    %3459 = vmatpush1.msra.mxu0 0.0
    %3460 = vmatprep.subr.mxu0 0.0
    %3461 = vmatpush1.msra.mxu0 0.0
    %3462 = vmatprep.subr.mxu0 0.0
    %3463 = vmatpush1.msra.mxu0 0.0
    %3464 = vmatprep.subr.mxu0 0.0
    %3465 = vmatpush1.msra.mxu0 0.0
    %3466 = vmatprep.subr.mxu0 0.0
    %3467 = vmatpush1.msra.mxu0 0.0
    %3468 = vmatprep.subr.mxu0 0.0
    %3469 = vmatpush1.msra.mxu0 0.0
    %3470 = vmatprep.subr.mxu0 0.0
    %3471 = vmatpush1.msra.mxu0 0.0
    %3472 = vmatprep.subr.mxu0 0.0
    %3473 = vmatpush1.msra.mxu0 0.0
    %3474 = vmatprep.subr.mxu0 0.0
    %3475 = vmatpush1.msra.mxu0 0.0
    %3476 = vmatprep.subr.mxu0 0.0
    %3477 = vmatpush1.msra.mxu0 0.0
    %3478 = vmatprep.subr.mxu0 0.0
    %3479 = vmatpush1.msra.mxu0 0.0
    %3480 = vmatprep.subr.mxu0 0.0
    %3481 = vmatpush1.msra.mxu0 0.0
    %3482 = vmatprep.subr.mxu0 0.0
    %3483 = vmatpush1.msra.mxu0 0.0
    %3484 = vmatprep.subr.mxu0 0.0
    %3485 = vmatpush1.msra.mxu0 0.0
    %3486 = vmatprep.subr.mxu0 0.0
    %3487 = vmatpush1.msra.mxu0 0.0
    %3488 = vmatprep.subr.mxu0 0.0
    %3489 = vmatpush1.msra.mxu0 0.0
    %3490 = vmatprep.subr.mxu0 0.0
    %3491 = vmatpush1.msra.mxu0 0.0
    %3492 = vmatprep.subr.mxu0 0.0
    %3493 = vmatpush1.msra.mxu0 0.0
    %3494 = vmatprep.subr.mxu0 0.0
    %3495 = vmatpush1.msra.mxu0 0.0
    %3496 = vmatprep.subr.mxu0 0.0
    %3497 = vmatpush1.msra.mxu0 0.0
    %3498 = vmatprep.subr.mxu0 0.0
    %3499 = vmatpush1.msra.mxu0 0.0
    %3500 = vmatprep.subr.mxu0 0.0
    %3501 = vmatpush1.msra.mxu0 0.0
    %3502 = vmatprep.subr.mxu0 0.0
    %3503 = vmatpush1.msra.mxu0 0.0
    %3504 = vmatprep.subr.mxu0 0.0
    %3505 = vmatpush1.msra.mxu0 0.0
    %3506 = vmatprep.subr.mxu0 0.0
    %3507 = vmatpush1.msra.mxu0 0.0
    %3508 = vmatprep.subr.mxu0 0.0
    %3509 = vmatpush1.msra.mxu0 0.0
    %3510 = vmatprep.subr.mxu0 0.0
    %3511 = vmatpush1.msra.mxu0 0.0
    %3512 = vmatprep.mubr.f32.mxu0 0.0
    %3513 = vmatmul.mubr.f32.gmra.mrb[0].mxu0 %v3374
    %v3514 = vpop.f32.mrb[0].mxu0
    %v3515 = vadd.f32 0.0, %v3514
    %v3516 = vpop.f32.mrb[0].mxu0
    %3517 = vdwg.mxu0
    %v3518 = vadd.f32 %v489, %v3515
    %v3519 = vadd.f32 %v3518, %v146
    %3520 = vmatprep.subr.mxu0 0.0
    %3521 = vmatpush1.msra.mxu0 %v86
    %3522 = vmatprep.subr.mxu0 0.0
    %3523 = vmatpush1.msra.mxu0 %v87
    %3524 = vmatprep.subr.mxu0 0.0
    %3525 = vmatpush1.msra.mxu0 %v88
    %3526 = vmatprep.subr.mxu0 0.0
    %3527 = vmatpush1.msra.mxu0 %v89
    %3528 = vmatprep.subr.mxu0 0.0
    %3529 = vmatpush1.msra.mxu0 0.0
    %3530 = vmatprep.subr.mxu0 0.0
    %3531 = vmatpush1.msra.mxu0 0.0
    %3532 = vmatprep.subr.mxu0 0.0
    %3533 = vmatpush1.msra.mxu0 0.0
    %3534 = vmatprep.subr.mxu0 0.0
    %3535 = vmatpush1.msra.mxu0 0.0
    %3536 = vmatprep.subr.mxu0 0.0
    %3537 = vmatpush1.msra.mxu0 0.0
    %3538 = vmatprep.subr.mxu0 0.0
    %3539 = vmatpush1.msra.mxu0 0.0
    %3540 = vmatprep.subr.mxu0 0.0
    %3541 = vmatpush1.msra.mxu0 0.0
    %3542 = vmatprep.subr.mxu0 0.0
    %3543 = vmatpush1.msra.mxu0 0.0
    %3544 = vmatprep.subr.mxu0 0.0
    %3545 = vmatpush1.msra.mxu0 0.0
    %3546 = vmatprep.subr.mxu0 0.0
    %3547 = vmatpush1.msra.mxu0 0.0
    %3548 = vmatprep.subr.mxu0 0.0
    %3549 = vmatpush1.msra.mxu0 0.0
    %3550 = vmatprep.subr.mxu0 0.0
    %3551 = vmatpush1.msra.mxu0 0.0
    %3552 = vmatprep.subr.mxu0 0.0
    %3553 = vmatpush1.msra.mxu0 0.0
    %3554 = vmatprep.subr.mxu0 0.0
    %3555 = vmatpush1.msra.mxu0 0.0
    %3556 = vmatprep.subr.mxu0 0.0
    %3557 = vmatpush1.msra.mxu0 0.0
    %3558 = vmatprep.subr.mxu0 0.0
    %3559 = vmatpush1.msra.mxu0 0.0
    %3560 = vmatprep.subr.mxu0 0.0
    %3561 = vmatpush1.msra.mxu0 0.0
    %3562 = vmatprep.subr.mxu0 0.0
    %3563 = vmatpush1.msra.mxu0 0.0
    %3564 = vmatprep.subr.mxu0 0.0
    %3565 = vmatpush1.msra.mxu0 0.0
    %3566 = vmatprep.subr.mxu0 0.0
    %3567 = vmatpush1.msra.mxu0 0.0
    %3568 = vmatprep.subr.mxu0 0.0
    %3569 = vmatpush1.msra.mxu0 0.0
    %3570 = vmatprep.subr.mxu0 0.0
    %3571 = vmatpush1.msra.mxu0 0.0
    %3572 = vmatprep.subr.mxu0 0.0
    %3573 = vmatpush1.msra.mxu0 0.0
    %3574 = vmatprep.subr.mxu0 0.0
    %3575 = vmatpush1.msra.mxu0 0.0
    %3576 = vmatprep.subr.mxu0 0.0
    %3577 = vmatpush1.msra.mxu0 0.0
    %3578 = vmatprep.subr.mxu0 0.0
    %3579 = vmatpush1.msra.mxu0 0.0
    %3580 = vmatprep.subr.mxu0 0.0
    %3581 = vmatpush1.msra.mxu0 0.0
    %3582 = vmatprep.subr.mxu0 0.0
    %3583 = vmatpush1.msra.mxu0 0.0
    %3584 = vmatprep.mubr.f32.mxu0 0.0
    %3585 = vmatmul.mubr.f32.gmra.mrb[0].mxu0 %v3374
    %v3586 = vpop.f32.mrb[0].mxu0
    %v3587 = vadd.f32 0.0, %v3586
    %v3588 = vpop.f32.mrb[0].mxu0
    %3589 = vdwg.mxu0
    %v3590 = vadd.f32 %v599, %v3587
    %v3591 = vadd.f32 %v3590, %v154
    %3592 = vmatprep.subr.mxu0 0.0
    %3593 = vmatpush1.msra.mxu0 %v91
    %3594 = vmatprep.subr.mxu0 0.0
    %3595 = vmatpush1.msra.mxu0 %v92
    %3596 = vmatprep.subr.mxu0 0.0
    %3597 = vmatpush1.msra.mxu0 %v93
    %3598 = vmatprep.subr.mxu0 0.0
    %3599 = vmatpush1.msra.mxu0 %v94
    %3600 = vmatprep.subr.mxu0 0.0
    %3601 = vmatpush1.msra.mxu0 0.0
    %3602 = vmatprep.subr.mxu0 0.0
    %3603 = vmatpush1.msra.mxu0 0.0
    %3604 = vmatprep.subr.mxu0 0.0
    %3605 = vmatpush1.msra.mxu0 0.0
    %3606 = vmatprep.subr.mxu0 0.0
    %3607 = vmatpush1.msra.mxu0 0.0
    %3608 = vmatprep.subr.mxu0 0.0
    %3609 = vmatpush1.msra.mxu0 0.0
    %3610 = vmatprep.subr.mxu0 0.0
    %3611 = vmatpush1.msra.mxu0 0.0
    %3612 = vmatprep.subr.mxu0 0.0
    %3613 = vmatpush1.msra.mxu0 0.0
    %3614 = vmatprep.subr.mxu0 0.0
    %3615 = vmatpush1.msra.mxu0 0.0
    %3616 = vmatprep.subr.mxu0 0.0
    %3617 = vmatpush1.msra.mxu0 0.0
    %3618 = vmatprep.subr.mxu0 0.0
    %3619 = vmatpush1.msra.mxu0 0.0
    %3620 = vmatprep.subr.mxu0 0.0
    %3621 = vmatpush1.msra.mxu0 0.0
    %3622 = vmatprep.subr.mxu0 0.0
    %3623 = vmatpush1.msra.mxu0 0.0
    %3624 = vmatprep.subr.mxu0 0.0
    %3625 = vmatpush1.msra.mxu0 0.0
    %3626 = vmatprep.subr.mxu0 0.0
    %3627 = vmatpush1.msra.mxu0 0.0
    %3628 = vmatprep.subr.mxu0 0.0
    %3629 = vmatpush1.msra.mxu0 0.0
    %3630 = vmatprep.subr.mxu0 0.0
    %3631 = vmatpush1.msra.mxu0 0.0
    %3632 = vmatprep.subr.mxu0 0.0
    %3633 = vmatpush1.msra.mxu0 0.0
    %3634 = vmatprep.subr.mxu0 0.0
    %3635 = vmatpush1.msra.mxu0 0.0
    %3636 = vmatprep.subr.mxu0 0.0
    %3637 = vmatpush1.msra.mxu0 0.0
    %3638 = vmatprep.subr.mxu0 0.0
    %3639 = vmatpush1.msra.mxu0 0.0
    %3640 = vmatprep.subr.mxu0 0.0
    %3641 = vmatpush1.msra.mxu0 0.0
    %3642 = vmatprep.subr.mxu0 0.0
    %3643 = vmatpush1.msra.mxu0 0.0
    %3644 = vmatprep.subr.mxu0 0.0
    %3645 = vmatpush1.msra.mxu0 0.0
    %3646 = vmatprep.subr.mxu0 0.0
    %3647 = vmatpush1.msra.mxu0 0.0
    %3648 = vmatprep.subr.mxu0 0.0
    %3649 = vmatpush1.msra.mxu0 0.0
    %3650 = vmatprep.subr.mxu0 0.0
    %3651 = vmatpush1.msra.mxu0 0.0
    %3652 = vmatprep.subr.mxu0 0.0
    %3653 = vmatpush1.msra.mxu0 0.0
    %3654 = vmatprep.subr.mxu0 0.0
    %3655 = vmatpush1.msra.mxu0 0.0
    %3656 = vmatprep.mubr.f32.mxu0 0.0
    %3657 = vmatmul.mubr.f32.gmra.mrb[0].mxu0 %v3374
    %v3658 = vpop.f32.mrb[0].mxu0
    %v3659 = vadd.f32 0.0, %v3658
    %v3660 = vpop.f32.mrb[0].mxu0
    %3661 = vdwg.mxu0
    %v3662 = vadd.f32 %v709, %v3659
    %v3663 = vadd.f32 %v3662, %v162
    %v3664 = vxor.u32 %v3447, 2147483648
    %v3665 = vmul.f32 %v3664, 1.442695
    %v3666 = vpow.pop %v3665
    %v3667 = vadd.f32 %v3666, 1.0
    %v3668 = vrcp.pop %v3667
    %v3669 = vmul.f32 1.0, %v3668
    %v3670 = vxor.u32 %v3519, 2147483648
    %v3671 = vmul.f32 %v3670, 1.442695
    %v3672 = vpow.pop %v3671
    %v3673 = vadd.f32 %v3672, 1.0
    %v3674 = vrcp.pop %v3673
    %v3675 = vmul.f32 1.0, %v3674
    %v3676 = vtanh.pop %v3591
    %v3677 = vxor.u32 %v3663, 2147483648
    %v3678 = vmul.f32 %v3677, 1.442695
    %v3679 = vpow.pop %v3678
    %v3680 = vadd.f32 %v3679, 1.0
    %v3681 = vrcp.pop %v3680
    %v3682 = vmul.f32 1.0, %v3681
    %v3683 = vmul.f32 %v3675, %v3370
    %v3684 = vmul.f32 %v3669, %v3676
    %v3685 = vadd.f32 %v3683, %v3684
    %v3686 = vtanh.pop %v3685
    %v3687 = vmul.f32 %v3682, %v3686
    %v3689 = vsel %vm1167, %v3687, 0
    %3691 = vmatprep.subr.mxu0 0.0
    %3692 = vmatpush1.msra.mxu0 %v95
    %3693 = vmatprep.subr.mxu0 0.0
    %3694 = vmatpush1.msra.mxu0 %v96
    %3695 = vmatprep.subr.mxu0 0.0
    %3696 = vmatpush1.msra.mxu0 %v97
    %3697 = vmatprep.subr.mxu0 0.0
    %3698 = vmatpush1.msra.mxu0 %v98
    %3699 = vmatprep.subr.mxu0 0.0
    %3700 = vmatpush1.msra.mxu0 0.0
    %3701 = vmatprep.subr.mxu0 0.0
    %3702 = vmatpush1.msra.mxu0 0.0
    %3703 = vmatprep.subr.mxu0 0.0
    %3704 = vmatpush1.msra.mxu0 0.0
    %3705 = vmatprep.subr.mxu0 0.0
    %3706 = vmatpush1.msra.mxu0 0.0
    %3707 = vmatprep.subr.mxu0 0.0
    %3708 = vmatpush1.msra.mxu0 0.0
    %3709 = vmatprep.subr.mxu0 0.0
    %3710 = vmatpush1.msra.mxu0 0.0
    %3711 = vmatprep.subr.mxu0 0.0
    %3712 = vmatpush1.msra.mxu0 0.0
    %3713 = vmatprep.subr.mxu0 0.0
    %3714 = vmatpush1.msra.mxu0 0.0
    %3715 = vmatprep.subr.mxu0 0.0
    %3716 = vmatpush1.msra.mxu0 0.0
    %3717 = vmatprep.subr.mxu0 0.0
    %3718 = vmatpush1.msra.mxu0 0.0
    %3719 = vmatprep.subr.mxu0 0.0
    %3720 = vmatpush1.msra.mxu0 0.0
    %3721 = vmatprep.subr.mxu0 0.0
    %3722 = vmatpush1.msra.mxu0 0.0
    %3723 = vmatprep.subr.mxu0 0.0
    %3724 = vmatpush1.msra.mxu0 0.0
    %3725 = vmatprep.subr.mxu0 0.0
    %3726 = vmatpush1.msra.mxu0 0.0
    %3727 = vmatprep.subr.mxu0 0.0
    %3728 = vmatpush1.msra.mxu0 0.0
    %3729 = vmatprep.subr.mxu0 0.0
    %3730 = vmatpush1.msra.mxu0 0.0
    %3731 = vmatprep.subr.mxu0 0.0
    %3732 = vmatpush1.msra.mxu0 0.0
    %3733 = vmatprep.subr.mxu0 0.0
    %3734 = vmatpush1.msra.mxu0 0.0
    %3735 = vmatprep.subr.mxu0 0.0
    %3736 = vmatpush1.msra.mxu0 0.0
    %3737 = vmatprep.subr.mxu0 0.0
    %3738 = vmatpush1.msra.mxu0 0.0
    %3739 = vmatprep.subr.mxu0 0.0
    %3740 = vmatpush1.msra.mxu0 0.0
    %3741 = vmatprep.subr.mxu0 0.0
    %3742 = vmatpush1.msra.mxu0 0.0
    %3743 = vmatprep.subr.mxu0 0.0
    %3744 = vmatpush1.msra.mxu0 0.0
    %3745 = vmatprep.subr.mxu0 0.0
    %3746 = vmatpush1.msra.mxu0 0.0
    %3747 = vmatprep.subr.mxu0 0.0
    %3748 = vmatpush1.msra.mxu0 0.0
    %3749 = vmatprep.subr.mxu0 0.0
    %3750 = vmatpush1.msra.mxu0 0.0
    %3751 = vmatprep.subr.mxu0 0.0
    %3752 = vmatpush1.msra.mxu0 0.0
    %3753 = vmatprep.subr.mxu0 0.0
    %3754 = vmatpush1.msra.mxu0 0.0
    %3755 = vmatprep.mubr.f32.mxu0 0.0
    %3756 = vmatmul.mubr.f32.gmra.mrb[0].mxu0 %v3689
    %v3757 = vpop.f32.mrb[0].mxu0
    %v3758 = vadd.f32 %v169, %v3757
    %v3759 = vpop.f32.mrb[0].mxu0
    %3760 = vdwg.mxu0
    %3761 = vmatprep.subr.mxu0 0.0
    %3762 = vmatpush1.msra.mxu0 %v100
    %3763 = vmatprep.subr.mxu0 0.0
    %3764 = vmatpush1.msra.mxu0 %v101
    %3765 = vmatprep.subr.mxu0 0.0
    %3766 = vmatpush1.msra.mxu0 %v102
    %3767 = vmatprep.subr.mxu0 0.0
    %3768 = vmatpush1.msra.mxu0 %v103
    %3769 = vmatprep.subr.mxu0 0.0
    %3770 = vmatpush1.msra.mxu0 0.0
    %3771 = vmatprep.subr.mxu0 0.0
    %3772 = vmatpush1.msra.mxu0 0.0
    %3773 = vmatprep.subr.mxu0 0.0
    %3774 = vmatpush1.msra.mxu0 0.0
    %3775 = vmatprep.subr.mxu0 0.0
    %3776 = vmatpush1.msra.mxu0 0.0
    %3777 = vmatprep.subr.mxu0 0.0
    %3778 = vmatpush1.msra.mxu0 0.0
    %3779 = vmatprep.subr.mxu0 0.0
    %3780 = vmatpush1.msra.mxu0 0.0
    %3781 = vmatprep.subr.mxu0 0.0
    %3782 = vmatpush1.msra.mxu0 0.0
    %3783 = vmatprep.subr.mxu0 0.0
    %3784 = vmatpush1.msra.mxu0 0.0
    %3785 = vmatprep.subr.mxu0 0.0
    %3786 = vmatpush1.msra.mxu0 0.0
    %3787 = vmatprep.subr.mxu0 0.0
    %3788 = vmatpush1.msra.mxu0 0.0
    %3789 = vmatprep.subr.mxu0 0.0
    %3790 = vmatpush1.msra.mxu0 0.0
    %3791 = vmatprep.subr.mxu0 0.0
    %3792 = vmatpush1.msra.mxu0 0.0
    %3793 = vmatprep.subr.mxu0 0.0
    %3794 = vmatpush1.msra.mxu0 0.0
    %3795 = vmatprep.subr.mxu0 0.0
    %3796 = vmatpush1.msra.mxu0 0.0
    %3797 = vmatprep.subr.mxu0 0.0
    %3798 = vmatpush1.msra.mxu0 0.0
    %3799 = vmatprep.subr.mxu0 0.0
    %3800 = vmatpush1.msra.mxu0 0.0
    %3801 = vmatprep.subr.mxu0 0.0
    %3802 = vmatpush1.msra.mxu0 0.0
    %3803 = vmatprep.subr.mxu0 0.0
    %3804 = vmatpush1.msra.mxu0 0.0
    %3805 = vmatprep.subr.mxu0 0.0
    %3806 = vmatpush1.msra.mxu0 0.0
    %3807 = vmatprep.subr.mxu0 0.0
    %3808 = vmatpush1.msra.mxu0 0.0
    %3809 = vmatprep.subr.mxu0 0.0
    %3810 = vmatpush1.msra.mxu0 0.0
    %3811 = vmatprep.subr.mxu0 0.0
    %3812 = vmatpush1.msra.mxu0 0.0
    %3813 = vmatprep.subr.mxu0 0.0
    %3814 = vmatpush1.msra.mxu0 0.0
    %3815 = vmatprep.subr.mxu0 0.0
    %3816 = vmatpush1.msra.mxu0 0.0
    %3817 = vmatprep.subr.mxu0 0.0
    %3818 = vmatpush1.msra.mxu0 0.0
    %3819 = vmatprep.subr.mxu0 0.0
    %3820 = vmatpush1.msra.mxu0 0.0
    %3821 = vmatprep.subr.mxu0 0.0
    %3822 = vmatpush1.msra.mxu0 0.0
    %3823 = vmatprep.subr.mxu0 0.0
    %3824 = vmatpush1.msra.mxu0 0.0
    %3825 = vmatprep.mubr.f32.mxu0 0.0
    %3826 = vmatmul.mubr.f32.gmra.mrb[0].mxu0 %v3689
    %v3827 = vpop.f32.mrb[0].mxu0
    %v3828 = vadd.f32 %v177, %v3827
    %v3829 = vpop.f32.mrb[0].mxu0
    %3830 = vdwg.mxu0
    %3831 = vmatprep.subr.mxu0 0.0
    %3832 = vmatpush1.msra.mxu0 %v105
    %3833 = vmatprep.subr.mxu0 0.0
    %3834 = vmatpush1.msra.mxu0 %v106
    %3835 = vmatprep.subr.mxu0 0.0
    %3836 = vmatpush1.msra.mxu0 %v107
    %3837 = vmatprep.subr.mxu0 0.0
    %3838 = vmatpush1.msra.mxu0 %v108
    %3839 = vmatprep.subr.mxu0 0.0
    %3840 = vmatpush1.msra.mxu0 0.0
    %3841 = vmatprep.subr.mxu0 0.0
    %3842 = vmatpush1.msra.mxu0 0.0
    %3843 = vmatprep.subr.mxu0 0.0
    %3844 = vmatpush1.msra.mxu0 0.0
    %3845 = vmatprep.subr.mxu0 0.0
    %3846 = vmatpush1.msra.mxu0 0.0
    %3847 = vmatprep.subr.mxu0 0.0
    %3848 = vmatpush1.msra.mxu0 0.0
    %3849 = vmatprep.subr.mxu0 0.0
    %3850 = vmatpush1.msra.mxu0 0.0
    %3851 = vmatprep.subr.mxu0 0.0
    %3852 = vmatpush1.msra.mxu0 0.0
    %3853 = vmatprep.subr.mxu0 0.0
    %3854 = vmatpush1.msra.mxu0 0.0
    %3855 = vmatprep.subr.mxu0 0.0
    %3856 = vmatpush1.msra.mxu0 0.0
    %3857 = vmatprep.subr.mxu0 0.0
    %3858 = vmatpush1.msra.mxu0 0.0
    %3859 = vmatprep.subr.mxu0 0.0
    %3860 = vmatpush1.msra.mxu0 0.0
    %3861 = vmatprep.subr.mxu0 0.0
    %3862 = vmatpush1.msra.mxu0 0.0
    %3863 = vmatprep.subr.mxu0 0.0
    %3864 = vmatpush1.msra.mxu0 0.0
    %3865 = vmatprep.subr.mxu0 0.0
    %3866 = vmatpush1.msra.mxu0 0.0
    %3867 = vmatprep.subr.mxu0 0.0
    %3868 = vmatpush1.msra.mxu0 0.0
    %3869 = vmatprep.subr.mxu0 0.0
    %3870 = vmatpush1.msra.mxu0 0.0
    %3871 = vmatprep.subr.mxu0 0.0
    %3872 = vmatpush1.msra.mxu0 0.0
    %3873 = vmatprep.subr.mxu0 0.0
    %3874 = vmatpush1.msra.mxu0 0.0
    %3875 = vmatprep.subr.mxu0 0.0
    %3876 = vmatpush1.msra.mxu0 0.0
    %3877 = vmatprep.subr.mxu0 0.0
    %3878 = vmatpush1.msra.mxu0 0.0
    %3879 = vmatprep.subr.mxu0 0.0
    %3880 = vmatpush1.msra.mxu0 0.0
    %3881 = vmatprep.subr.mxu0 0.0
    %3882 = vmatpush1.msra.mxu0 0.0
    %3883 = vmatprep.subr.mxu0 0.0
    %3884 = vmatpush1.msra.mxu0 0.0
    %3885 = vmatprep.subr.mxu0 0.0
    %3886 = vmatpush1.msra.mxu0 0.0
    %3887 = vmatprep.subr.mxu0 0.0
    %3888 = vmatpush1.msra.mxu0 0.0
    %3889 = vmatprep.subr.mxu0 0.0
    %3890 = vmatpush1.msra.mxu0 0.0
    %3891 = vmatprep.subr.mxu0 0.0
    %3892 = vmatpush1.msra.mxu0 0.0
    %3893 = vmatprep.subr.mxu0 0.0
    %3894 = vmatpush1.msra.mxu0 0.0
    %3895 = vmatprep.mubr.f32.mxu0 0.0
    %3896 = vmatmul.mubr.f32.gmra.mrb[0].mxu0 %v3689
    %v3897 = vpop.f32.mrb[0].mxu0
    %v3898 = vadd.f32 %v185, %v3897
    %v3899 = vpop.f32.mrb[0].mxu0
    %3900 = vdwg.mxu0
    %3901 = vmatprep.subr.mxu0 0.0
    %3902 = vmatpush1.msra.mxu0 %v110
    %3903 = vmatprep.subr.mxu0 0.0
    %3904 = vmatpush1.msra.mxu0 %v111
    %3905 = vmatprep.subr.mxu0 0.0
    %3906 = vmatpush1.msra.mxu0 %v112
    %3907 = vmatprep.subr.mxu0 0.0
    %3908 = vmatpush1.msra.mxu0 %v113
    %3909 = vmatprep.subr.mxu0 0.0
    %3910 = vmatpush1.msra.mxu0 0.0
    %3911 = vmatprep.subr.mxu0 0.0
    %3912 = vmatpush1.msra.mxu0 0.0
    %3913 = vmatprep.subr.mxu0 0.0
    %3914 = vmatpush1.msra.mxu0 0.0
    %3915 = vmatprep.subr.mxu0 0.0
    %3916 = vmatpush1.msra.mxu0 0.0
    %3917 = vmatprep.subr.mxu0 0.0
    %3918 = vmatpush1.msra.mxu0 0.0
    %3919 = vmatprep.subr.mxu0 0.0
    %3920 = vmatpush1.msra.mxu0 0.0
    %3921 = vmatprep.subr.mxu0 0.0
    %3922 = vmatpush1.msra.mxu0 0.0
    %3923 = vmatprep.subr.mxu0 0.0
    %3924 = vmatpush1.msra.mxu0 0.0
    %3925 = vmatprep.subr.mxu0 0.0
    %3926 = vmatpush1.msra.mxu0 0.0
    %3927 = vmatprep.subr.mxu0 0.0
    %3928 = vmatpush1.msra.mxu0 0.0
    %3929 = vmatprep.subr.mxu0 0.0
    %3930 = vmatpush1.msra.mxu0 0.0
    %3931 = vmatprep.subr.mxu0 0.0
    %3932 = vmatpush1.msra.mxu0 0.0
    %3933 = vmatprep.subr.mxu0 0.0
    %3934 = vmatpush1.msra.mxu0 0.0
    %3935 = vmatprep.subr.mxu0 0.0
    %3936 = vmatpush1.msra.mxu0 0.0
    %3937 = vmatprep.subr.mxu0 0.0
    %3938 = vmatpush1.msra.mxu0 0.0
    %3939 = vmatprep.subr.mxu0 0.0
    %3940 = vmatpush1.msra.mxu0 0.0
    %3941 = vmatprep.subr.mxu0 0.0
    %3942 = vmatpush1.msra.mxu0 0.0
    %3943 = vmatprep.subr.mxu0 0.0
    %3944 = vmatpush1.msra.mxu0 0.0
    %3945 = vmatprep.subr.mxu0 0.0
    %3946 = vmatpush1.msra.mxu0 0.0
    %3947 = vmatprep.subr.mxu0 0.0
    %3948 = vmatpush1.msra.mxu0 0.0
    %3949 = vmatprep.subr.mxu0 0.0
    %3950 = vmatpush1.msra.mxu0 0.0
    %3951 = vmatprep.subr.mxu0 0.0
    %3952 = vmatpush1.msra.mxu0 0.0
    %3953 = vmatprep.subr.mxu0 0.0
    %3954 = vmatpush1.msra.mxu0 0.0
    %3955 = vmatprep.subr.mxu0 0.0
    %3956 = vmatpush1.msra.mxu0 0.0
    %3957 = vmatprep.subr.mxu0 0.0
    %3958 = vmatpush1.msra.mxu0 0.0
    %3959 = vmatprep.subr.mxu0 0.0
    %3960 = vmatpush1.msra.mxu0 0.0
    %3961 = vmatprep.subr.mxu0 0.0
    %3962 = vmatpush1.msra.mxu0 0.0
    %3963 = vmatprep.subr.mxu0 0.0
    %3964 = vmatpush1.msra.mxu0 0.0
    %3965 = vmatprep.mubr.f32.mxu0 0.0
    %3966 = vmatmul.mubr.f32.gmra.mrb[0].mxu0 %v3689
    %v3967 = vpop.f32.mrb[0].mxu0
    %v3968 = vadd.f32 %v193, %v3967
    %v3969 = vpop.f32.mrb[0].mxu0
    %3970 = vdwg.mxu0
    %v3971 = vxor.u32 %v3758, 2147483648
    %v3972 = vmul.f32 %v3971, 1.442695
    %v3973 = vpow.pop %v3972
    %v3974 = vadd.f32 %v3973, 1.0
    %v3975 = vrcp.pop %v3974
    %v3976 = vmul.f32 1.0, %v3975
    %v3977 = vxor.u32 %v3828, 2147483648
    %v3978 = vmul.f32 %v3977, 1.442695
    %v3979 = vpow.pop %v3978
    %v3980 = vadd.f32 %v3979, 1.0
    %v3981 = vrcp.pop %v3980
    %v3982 = vmul.f32 1.0, %v3981
    %v3983 = vtanh.pop %v3898
    %v3984 = vxor.u32 %v3968, 2147483648
    %v3985 = vmul.f32 %v3984, 1.442695
    %v3986 = vpow.pop %v3985
    %v3987 = vadd.f32 %v3986, 1.0
    %v3988 = vrcp.pop %v3987
    %v3989 = vmul.f32 1.0, %v3988
    %v3990 = vmul.f32 %v3982, %v3685
    %v3991 = vmul.f32 %v3976, %v3983
    %v3992 = vadd.f32 %v3990, %v3991
    %v3993 = vtanh.pop %v3992
    %v3994 = vmul.f32 %v3989, %v3993
    %s3995 = sld [smem:[#allocation3 + $0x1]]
    %p3996 = scmp.ne.s32.totalorder %s3995, 0
    %v3998 = vsel %vm1167, %v3994, 0
    %4000 = vmatprep.subr.mxu0 0.0
    %4001 = vmatpush1.msra.mxu0 %v114
    %4002 = vmatprep.subr.mxu0 0.0
    %4003 = vmatpush1.msra.mxu0 %v115
    %4004 = vmatprep.subr.mxu0 0.0
    %4005 = vmatpush1.msra.mxu0 %v116
    %4006 = vmatprep.subr.mxu0 0.0
    %4007 = vmatpush1.msra.mxu0 %v117
    %4008 = vmatprep.subr.mxu0 0.0
    %4009 = vmatpush1.msra.mxu0 0.0
    %4010 = vmatprep.subr.mxu0 0.0
    %4011 = vmatpush1.msra.mxu0 0.0
    %4012 = vmatprep.subr.mxu0 0.0
    %4013 = vmatpush1.msra.mxu0 0.0
    %4014 = vmatprep.subr.mxu0 0.0
    %4015 = vmatpush1.msra.mxu0 0.0
    %4016 = vmatprep.subr.mxu0 0.0
    %4017 = vmatpush1.msra.mxu0 0.0
    %4018 = vmatprep.subr.mxu0 0.0
    %4019 = vmatpush1.msra.mxu0 0.0
    %4020 = vmatprep.subr.mxu0 0.0
    %4021 = vmatpush1.msra.mxu0 0.0
    %4022 = vmatprep.subr.mxu0 0.0
    %4023 = vmatpush1.msra.mxu0 0.0
    %4024 = vmatprep.subr.mxu0 0.0
    %4025 = vmatpush1.msra.mxu0 0.0
    %4026 = vmatprep.subr.mxu0 0.0
    %4027 = vmatpush1.msra.mxu0 0.0
    %4028 = vmatprep.subr.mxu0 0.0
    %4029 = vmatpush1.msra.mxu0 0.0
    %4030 = vmatprep.subr.mxu0 0.0
    %4031 = vmatpush1.msra.mxu0 0.0
    %4032 = vmatprep.subr.mxu0 0.0
    %4033 = vmatpush1.msra.mxu0 0.0
    %4034 = vmatprep.subr.mxu0 0.0
    %4035 = vmatpush1.msra.mxu0 0.0
    %4036 = vmatprep.subr.mxu0 0.0
    %4037 = vmatpush1.msra.mxu0 0.0
    %4038 = vmatprep.subr.mxu0 0.0
    %4039 = vmatpush1.msra.mxu0 0.0
    %4040 = vmatprep.subr.mxu0 0.0
    %4041 = vmatpush1.msra.mxu0 0.0
    %4042 = vmatprep.subr.mxu0 0.0
    %4043 = vmatpush1.msra.mxu0 0.0
    %4044 = vmatprep.subr.mxu0 0.0
    %4045 = vmatpush1.msra.mxu0 0.0
    %4046 = vmatprep.subr.mxu0 0.0
    %4047 = vmatpush1.msra.mxu0 0.0
    %4048 = vmatprep.subr.mxu0 0.0
    %4049 = vmatpush1.msra.mxu0 0.0
    %4050 = vmatprep.subr.mxu0 0.0
    %4051 = vmatpush1.msra.mxu0 0.0
    %4052 = vmatprep.subr.mxu0 0.0
    %4053 = vmatpush1.msra.mxu0 0.0
    %4054 = vmatprep.subr.mxu0 0.0
    %4055 = vmatpush1.msra.mxu0 0.0
    %4056 = vmatprep.subr.mxu0 0.0
    %4057 = vmatpush1.msra.mxu0 0.0
    %4058 = vmatprep.subr.mxu0 0.0
    %4059 = vmatpush1.msra.mxu0 0.0
    %4060 = vmatprep.subr.mxu0 0.0
    %4061 = vmatpush1.msra.mxu0 0.0
    %4062 = vmatprep.subr.mxu0 0.0
    %4063 = vmatpush1.msra.mxu0 0.0
    %4064 = vmatprep.mubr.f32.mxu0 0.0
    %4065 = vmatmul.mubr.f32.gmra.mrb[0].mxu0 %v3998
    %v4066 = vpop.f32.mrb[0].mxu0
    %v4067 = vadd.f32 %v200, %v4066
    %v4068 = vpop.f32.mrb[0].mxu0
    %4069 = vdwg.mxu0
    %s4070 = scalar_select %p3996, 1, 0
    %v4071 = vstv %s4070
    %vm4072 = vcmp.eq.s32.totalorder %v4071, 1
    %v4073 = vsel %vm4072, %v811, %v4067
    %4074 = vmatprep.subr.mxu0 0.0
    %4075 = vmatpush1.msra.mxu0 %v119
    %4076 = vmatprep.subr.mxu0 0.0
    %4077 = vmatpush1.msra.mxu0 %v120
    %4078 = vmatprep.subr.mxu0 0.0
    %4079 = vmatpush1.msra.mxu0 %v121
    %4080 = vmatprep.subr.mxu0 0.0
    %4081 = vmatpush1.msra.mxu0 %v122
    %4082 = vmatprep.subr.mxu0 0.0
    %4083 = vmatpush1.msra.mxu0 0.0
    %4084 = vmatprep.subr.mxu0 0.0
    %4085 = vmatpush1.msra.mxu0 0.0
    %4086 = vmatprep.subr.mxu0 0.0
    %4087 = vmatpush1.msra.mxu0 0.0
    %4088 = vmatprep.subr.mxu0 0.0
    %4089 = vmatpush1.msra.mxu0 0.0
    %4090 = vmatprep.subr.mxu0 0.0
    %4091 = vmatpush1.msra.mxu0 0.0
    %4092 = vmatprep.subr.mxu0 0.0
    %4093 = vmatpush1.msra.mxu0 0.0
    %4094 = vmatprep.subr.mxu0 0.0
    %4095 = vmatpush1.msra.mxu0 0.0
    %4096 = vmatprep.subr.mxu0 0.0
    %4097 = vmatpush1.msra.mxu0 0.0
    %4098 = vmatprep.subr.mxu0 0.0
    %4099 = vmatpush1.msra.mxu0 0.0
    %4100 = vmatprep.subr.mxu0 0.0
    %4101 = vmatpush1.msra.mxu0 0.0
    %4102 = vmatprep.subr.mxu0 0.0
    %4103 = vmatpush1.msra.mxu0 0.0
    %4104 = vmatprep.subr.mxu0 0.0
    %4105 = vmatpush1.msra.mxu0 0.0
    %4106 = vmatprep.subr.mxu0 0.0
    %4107 = vmatpush1.msra.mxu0 0.0
    %4108 = vmatprep.subr.mxu0 0.0
    %4109 = vmatpush1.msra.mxu0 0.0
    %4110 = vmatprep.subr.mxu0 0.0
    %4111 = vmatpush1.msra.mxu0 0.0
    %4112 = vmatprep.subr.mxu0 0.0
    %4113 = vmatpush1.msra.mxu0 0.0
    %4114 = vmatprep.subr.mxu0 0.0
    %4115 = vmatpush1.msra.mxu0 0.0
    %4116 = vmatprep.subr.mxu0 0.0
    %4117 = vmatpush1.msra.mxu0 0.0
    %4118 = vmatprep.subr.mxu0 0.0
    %4119 = vmatpush1.msra.mxu0 0.0
    %4120 = vmatprep.subr.mxu0 0.0
    %4121 = vmatpush1.msra.mxu0 0.0
    %4122 = vmatprep.subr.mxu0 0.0
    %4123 = vmatpush1.msra.mxu0 0.0
    %4124 = vmatprep.subr.mxu0 0.0
    %4125 = vmatpush1.msra.mxu0 0.0
    %4126 = vmatprep.subr.mxu0 0.0
    %4127 = vmatpush1.msra.mxu0 0.0
    %4128 = vmatprep.subr.mxu0 0.0
    %4129 = vmatpush1.msra.mxu0 0.0
    %4130 = vmatprep.subr.mxu0 0.0
    %4131 = vmatpush1.msra.mxu0 0.0
    %4132 = vmatprep.subr.mxu0 0.0
    %4133 = vmatpush1.msra.mxu0 0.0
    %4134 = vmatprep.subr.mxu0 0.0
    %4135 = vmatpush1.msra.mxu0 0.0
    %4136 = vmatprep.subr.mxu0 0.0
    %4137 = vmatpush1.msra.mxu0 0.0
    %4138 = vmatprep.mubr.f32.mxu0 0.0
    %4139 = vmatmul.mubr.f32.gmra.mrb[0].mxu0 %v3998
    %v4140 = vpop.f32.mrb[0].mxu0
    %v4141 = vadd.f32 %v208, %v4140
    %v4142 = vpop.f32.mrb[0].mxu0
    %4143 = vdwg.mxu0
    %v4144 = vsel %vm4072, %v919, %v4141
    %4145 = vmatprep.subr.mxu0 0.0
    %4146 = vmatpush1.msra.mxu0 %v124
    %4147 = vmatprep.subr.mxu0 0.0
    %4148 = vmatpush1.msra.mxu0 %v125
    %4149 = vmatprep.subr.mxu0 0.0
    %4150 = vmatpush1.msra.mxu0 %v126
    %4151 = vmatprep.subr.mxu0 0.0
    %4152 = vmatpush1.msra.mxu0 %v127
    %4153 = vmatprep.subr.mxu0 0.0
    %4154 = vmatpush1.msra.mxu0 0.0
    %4155 = vmatprep.subr.mxu0 0.0
    %4156 = vmatpush1.msra.mxu0 0.0
    %4157 = vmatprep.subr.mxu0 0.0
    %4158 = vmatpush1.msra.mxu0 0.0
    %4159 = vmatprep.subr.mxu0 0.0
    %4160 = vmatpush1.msra.mxu0 0.0
    %4161 = vmatprep.subr.mxu0 0.0
    %4162 = vmatpush1.msra.mxu0 0.0
    %4163 = vmatprep.subr.mxu0 0.0
    %4164 = vmatpush1.msra.mxu0 0.0
    %4165 = vmatprep.subr.mxu0 0.0
    %4166 = vmatpush1.msra.mxu0 0.0
    %4167 = vmatprep.subr.mxu0 0.0
    %4168 = vmatpush1.msra.mxu0 0.0
    %4169 = vmatprep.subr.mxu0 0.0
    %4170 = vmatpush1.msra.mxu0 0.0
    %4171 = vmatprep.subr.mxu0 0.0
    %4172 = vmatpush1.msra.mxu0 0.0
    %4173 = vmatprep.subr.mxu0 0.0
    %4174 = vmatpush1.msra.mxu0 0.0
    %4175 = vmatprep.subr.mxu0 0.0
    %4176 = vmatpush1.msra.mxu0 0.0
    %4177 = vmatprep.subr.mxu0 0.0
    %4178 = vmatpush1.msra.mxu0 0.0
    %4179 = vmatprep.subr.mxu0 0.0
    %4180 = vmatpush1.msra.mxu0 0.0
    %4181 = vmatprep.subr.mxu0 0.0
    %4182 = vmatpush1.msra.mxu0 0.0
    %4183 = vmatprep.subr.mxu0 0.0
    %4184 = vmatpush1.msra.mxu0 0.0
    %4185 = vmatprep.subr.mxu0 0.0
    %4186 = vmatpush1.msra.mxu0 0.0
    %4187 = vmatprep.subr.mxu0 0.0
    %4188 = vmatpush1.msra.mxu0 0.0
    %4189 = vmatprep.subr.mxu0 0.0
    %4190 = vmatpush1.msra.mxu0 0.0
    %4191 = vmatprep.subr.mxu0 0.0
    %4192 = vmatpush1.msra.mxu0 0.0
    %4193 = vmatprep.subr.mxu0 0.0
    %4194 = vmatpush1.msra.mxu0 0.0
    %4195 = vmatprep.subr.mxu0 0.0
    %4196 = vmatpush1.msra.mxu0 0.0
    %4197 = vmatprep.subr.mxu0 0.0
    %4198 = vmatpush1.msra.mxu0 0.0
    %4199 = vmatprep.subr.mxu0 0.0
    %4200 = vmatpush1.msra.mxu0 0.0
    %4201 = vmatprep.subr.mxu0 0.0
    %4202 = vmatpush1.msra.mxu0 0.0
    %4203 = vmatprep.subr.mxu0 0.0
    %4204 = vmatpush1.msra.mxu0 0.0
    %4205 = vmatprep.subr.mxu0 0.0
    %4206 = vmatpush1.msra.mxu0 0.0
    %4207 = vmatprep.subr.mxu0 0.0
    %4208 = vmatpush1.msra.mxu0 0.0
    %4209 = vmatprep.mubr.f32.mxu0 0.0
    %4210 = vmatmul.mubr.f32.gmra.mrb[0].mxu0 %v3998
    %v4211 = vpop.f32.mrb[0].mxu0
    %v4212 = vadd.f32 %v216, %v4211
    %v4213 = vpop.f32.mrb[0].mxu0
    %4214 = vdwg.mxu0
    %v4215 = vsel %vm4072, %v1027, %v4212
    %4216 = vmatprep.subr.mxu0 0.0
    %4217 = vmatpush1.msra.mxu0 %v129
    %4218 = vmatprep.subr.mxu0 0.0
    %4219 = vmatpush1.msra.mxu0 %v130
    %4220 = vmatprep.subr.mxu0 0.0
    %4221 = vmatpush1.msra.mxu0 %v131
    %4222 = vmatprep.subr.mxu0 0.0
    %4223 = vmatpush1.msra.mxu0 %v132
    %4224 = vmatprep.subr.mxu0 0.0
    %4225 = vmatpush1.msra.mxu0 0.0
    %4226 = vmatprep.subr.mxu0 0.0
    %4227 = vmatpush1.msra.mxu0 0.0
    %4228 = vmatprep.subr.mxu0 0.0
    %4229 = vmatpush1.msra.mxu0 0.0
    %4230 = vmatprep.subr.mxu0 0.0
    %4231 = vmatpush1.msra.mxu0 0.0
    %4232 = vmatprep.subr.mxu0 0.0
    %4233 = vmatpush1.msra.mxu0 0.0
    %4234 = vmatprep.subr.mxu0 0.0
    %4235 = vmatpush1.msra.mxu0 0.0
    %4236 = vmatprep.subr.mxu0 0.0
    %4237 = vmatpush1.msra.mxu0 0.0
    %4238 = vmatprep.subr.mxu0 0.0
    %4239 = vmatpush1.msra.mxu0 0.0
    %4240 = vmatprep.subr.mxu0 0.0
    %4241 = vmatpush1.msra.mxu0 0.0
    %4242 = vmatprep.subr.mxu0 0.0
    %4243 = vmatpush1.msra.mxu0 0.0
    %4244 = vmatprep.subr.mxu0 0.0
    %4245 = vmatpush1.msra.mxu0 0.0
    %4246 = vmatprep.subr.mxu0 0.0
    %4247 = vmatpush1.msra.mxu0 0.0
    %4248 = vmatprep.subr.mxu0 0.0
    %4249 = vmatpush1.msra.mxu0 0.0
    %4250 = vmatprep.subr.mxu0 0.0
    %4251 = vmatpush1.msra.mxu0 0.0
    %4252 = vmatprep.subr.mxu0 0.0
    %4253 = vmatpush1.msra.mxu0 0.0
    %4254 = vmatprep.subr.mxu0 0.0
    %4255 = vmatpush1.msra.mxu0 0.0
    %4256 = vmatprep.subr.mxu0 0.0
    %4257 = vmatpush1.msra.mxu0 0.0
    %4258 = vmatprep.subr.mxu0 0.0
    %4259 = vmatpush1.msra.mxu0 0.0
    %4260 = vmatprep.subr.mxu0 0.0
    %4261 = vmatpush1.msra.mxu0 0.0
    %4262 = vmatprep.subr.mxu0 0.0
    %4263 = vmatpush1.msra.mxu0 0.0
    %4264 = vmatprep.subr.mxu0 0.0
    %4265 = vmatpush1.msra.mxu0 0.0
    %4266 = vmatprep.subr.mxu0 0.0
    %4267 = vmatpush1.msra.mxu0 0.0
    %4268 = vmatprep.subr.mxu0 0.0
    %4269 = vmatpush1.msra.mxu0 0.0
    %4270 = vmatprep.subr.mxu0 0.0
    %4271 = vmatpush1.msra.mxu0 0.0
    %4272 = vmatprep.subr.mxu0 0.0
    %4273 = vmatpush1.msra.mxu0 0.0
    %4274 = vmatprep.subr.mxu0 0.0
    %4275 = vmatpush1.msra.mxu0 0.0
    %4276 = vmatprep.subr.mxu0 0.0
    %4277 = vmatpush1.msra.mxu0 0.0
    %4278 = vmatprep.subr.mxu0 0.0
    %4279 = vmatpush1.msra.mxu0 0.0
    %4280 = vmatprep.mubr.f32.mxu0 0.0
    %4281 = vmatmul.mubr.f32.gmra.mrb[0].mxu0 %v3998
    %v4282 = vpop.f32.mrb[0].mxu0
    %v4283 = vadd.f32 %v224, %v4282
    %v4284 = vpop.f32.mrb[0].mxu0
    %4285 = vdwg.mxu0
    %v4286 = vsel %vm4072, %v1135, %v4283
    %4287 = vmatprep.subr.mxu0 0.0
    %4288 = vmatpush1.msra.mxu0 %v95
    %4289 = vmatprep.subr.mxu0 0.0
    %4290 = vmatpush1.msra.mxu0 %v96
    %4291 = vmatprep.subr.mxu0 0.0
    %4292 = vmatpush1.msra.mxu0 %v97
    %4293 = vmatprep.subr.mxu0 0.0
    %4294 = vmatpush1.msra.mxu0 %v98
    %4295 = vmatprep.subr.mxu0 0.0
    %4296 = vmatpush1.msra.mxu0 0.0
    %4297 = vmatprep.subr.mxu0 0.0
    %4298 = vmatpush1.msra.mxu0 0.0
    %4299 = vmatprep.subr.mxu0 0.0
    %4300 = vmatpush1.msra.mxu0 0.0
    %4301 = vmatprep.subr.mxu0 0.0
    %4302 = vmatpush1.msra.mxu0 0.0
    %4303 = vmatprep.subr.mxu0 0.0
    %4304 = vmatpush1.msra.mxu0 0.0
    %4305 = vmatprep.subr.mxu0 0.0
    %4306 = vmatpush1.msra.mxu0 0.0
    %4307 = vmatprep.subr.mxu0 0.0
    %4308 = vmatpush1.msra.mxu0 0.0
    %4309 = vmatprep.subr.mxu0 0.0
    %4310 = vmatpush1.msra.mxu0 0.0
    %4311 = vmatprep.subr.mxu0 0.0
    %4312 = vmatpush1.msra.mxu0 0.0
    %4313 = vmatprep.subr.mxu0 0.0
    %4314 = vmatpush1.msra.mxu0 0.0
    %4315 = vmatprep.subr.mxu0 0.0
    %4316 = vmatpush1.msra.mxu0 0.0
    %4317 = vmatprep.subr.mxu0 0.0
    %4318 = vmatpush1.msra.mxu0 0.0
    %4319 = vmatprep.subr.mxu0 0.0
    %4320 = vmatpush1.msra.mxu0 0.0
    %4321 = vmatprep.subr.mxu0 0.0
    %4322 = vmatpush1.msra.mxu0 0.0
    %4323 = vmatprep.subr.mxu0 0.0
    %4324 = vmatpush1.msra.mxu0 0.0
    %4325 = vmatprep.subr.mxu0 0.0
    %4326 = vmatpush1.msra.mxu0 0.0
    %4327 = vmatprep.subr.mxu0 0.0
    %4328 = vmatpush1.msra.mxu0 0.0
    %4329 = vmatprep.subr.mxu0 0.0
    %4330 = vmatpush1.msra.mxu0 0.0
    %4331 = vmatprep.subr.mxu0 0.0
    %4332 = vmatpush1.msra.mxu0 0.0
    %4333 = vmatprep.subr.mxu0 0.0
    %4334 = vmatpush1.msra.mxu0 0.0
    %4335 = vmatprep.subr.mxu0 0.0
    %4336 = vmatpush1.msra.mxu0 0.0
    %4337 = vmatprep.subr.mxu0 0.0
    %4338 = vmatpush1.msra.mxu0 0.0
    %4339 = vmatprep.subr.mxu0 0.0
    %4340 = vmatpush1.msra.mxu0 0.0
    %4341 = vmatprep.subr.mxu0 0.0
    %4342 = vmatpush1.msra.mxu0 0.0
    %4343 = vmatprep.subr.mxu0 0.0
    %4344 = vmatpush1.msra.mxu0 0.0
    %4345 = vmatprep.subr.mxu0 0.0
    %4346 = vmatpush1.msra.mxu0 0.0
    %4347 = vmatprep.subr.mxu0 0.0
    %4348 = vmatpush1.msra.mxu0 0.0
    %4349 = vmatprep.subr.mxu0 0.0
    %4350 = vmatpush1.msra.mxu0 0.0
    %4351 = vmatprep.mubr.f32.mxu0 0.0
    %4352 = vmatmul.mubr.f32.gmra.mrb[0].mxu0 %v3998
    %v4353 = vpop.f32.mrb[0].mxu0
    %v4354 = vadd.f32 0.0, %v4353
    %v4355 = vpop.f32.mrb[0].mxu0
    %4356 = vdwg.mxu0
    %v4357 = vadd.f32 %v4073, %v4354
    %v4358 = vadd.f32 %v4357, %v169
    %4359 = vmatprep.subr.mxu0 0.0
    %4360 = vmatpush1.msra.mxu0 %v100
    %4361 = vmatprep.subr.mxu0 0.0
    %4362 = vmatpush1.msra.mxu0 %v101
    %4363 = vmatprep.subr.mxu0 0.0
    %4364 = vmatpush1.msra.mxu0 %v102
    %4365 = vmatprep.subr.mxu0 0.0
    %4366 = vmatpush1.msra.mxu0 %v103
    %4367 = vmatprep.subr.mxu0 0.0
    %4368 = vmatpush1.msra.mxu0 0.0
    %4369 = vmatprep.subr.mxu0 0.0
    %4370 = vmatpush1.msra.mxu0 0.0
    %4371 = vmatprep.subr.mxu0 0.0
    %4372 = vmatpush1.msra.mxu0 0.0
    %4373 = vmatprep.subr.mxu0 0.0
    %4374 = vmatpush1.msra.mxu0 0.0
    %4375 = vmatprep.subr.mxu0 0.0
    %4376 = vmatpush1.msra.mxu0 0.0
    %4377 = vmatprep.subr.mxu0 0.0
    %4378 = vmatpush1.msra.mxu0 0.0
    %4379 = vmatprep.subr.mxu0 0.0
    %4380 = vmatpush1.msra.mxu0 0.0
    %4381 = vmatprep.subr.mxu0 0.0
    %4382 = vmatpush1.msra.mxu0 0.0
    %4383 = vmatprep.subr.mxu0 0.0
    %4384 = vmatpush1.msra.mxu0 0.0
    %4385 = vmatprep.subr.mxu0 0.0
    %4386 = vmatpush1.msra.mxu0 0.0
    %4387 = vmatprep.subr.mxu0 0.0
    %4388 = vmatpush1.msra.mxu0 0.0
    %4389 = vmatprep.subr.mxu0 0.0
    %4390 = vmatpush1.msra.mxu0 0.0
    %4391 = vmatprep.subr.mxu0 0.0
    %4392 = vmatpush1.msra.mxu0 0.0
    %4393 = vmatprep.subr.mxu0 0.0
    %4394 = vmatpush1.msra.mxu0 0.0
    %4395 = vmatprep.subr.mxu0 0.0
    %4396 = vmatpush1.msra.mxu0 0.0
    %4397 = vmatprep.subr.mxu0 0.0
    %4398 = vmatpush1.msra.mxu0 0.0
    %4399 = vmatprep.subr.mxu0 0.0
    %4400 = vmatpush1.msra.mxu0 0.0
    %4401 = vmatprep.subr.mxu0 0.0
    %4402 = vmatpush1.msra.mxu0 0.0
    %4403 = vmatprep.subr.mxu0 0.0
    %4404 = vmatpush1.msra.mxu0 0.0
    %4405 = vmatprep.subr.mxu0 0.0
    %4406 = vmatpush1.msra.mxu0 0.0
    %4407 = vmatprep.subr.mxu0 0.0
    %4408 = vmatpush1.msra.mxu0 0.0
    %4409 = vmatprep.subr.mxu0 0.0
    %4410 = vmatpush1.msra.mxu0 0.0
    %4411 = vmatprep.subr.mxu0 0.0
    %4412 = vmatpush1.msra.mxu0 0.0
    %4413 = vmatprep.subr.mxu0 0.0
    %4414 = vmatpush1.msra.mxu0 0.0
    %4415 = vmatprep.subr.mxu0 0.0
    %4416 = vmatpush1.msra.mxu0 0.0
    %4417 = vmatprep.subr.mxu0 0.0
    %4418 = vmatpush1.msra.mxu0 0.0
    %4419 = vmatprep.subr.mxu0 0.0
    %4420 = vmatpush1.msra.mxu0 0.0
    %4421 = vmatprep.subr.mxu0 0.0
    %4422 = vmatpush1.msra.mxu0 0.0
    %4423 = vmatprep.mubr.f32.mxu0 0.0
    %4424 = vmatmul.mubr.f32.gmra.mrb[0].mxu0 %v3998
    %v4425 = vpop.f32.mrb[0].mxu0
    %v4426 = vadd.f32 0.0, %v4425
    %v4427 = vpop.f32.mrb[0].mxu0
    %4428 = vdwg.mxu0
    %v4429 = vadd.f32 %v4144, %v4426
    %v4430 = vadd.f32 %v4429, %v177
    %4431 = vmatprep.subr.mxu0 0.0
    %4432 = vmatpush1.msra.mxu0 %v105
    %4433 = vmatprep.subr.mxu0 0.0
    %4434 = vmatpush1.msra.mxu0 %v106
    %4435 = vmatprep.subr.mxu0 0.0
    %4436 = vmatpush1.msra.mxu0 %v107
    %4437 = vmatprep.subr.mxu0 0.0
    %4438 = vmatpush1.msra.mxu0 %v108
    %4439 = vmatprep.subr.mxu0 0.0
    %4440 = vmatpush1.msra.mxu0 0.0
    %4441 = vmatprep.subr.mxu0 0.0
    %4442 = vmatpush1.msra.mxu0 0.0
    %4443 = vmatprep.subr.mxu0 0.0
    %4444 = vmatpush1.msra.mxu0 0.0
    %4445 = vmatprep.subr.mxu0 0.0
    %4446 = vmatpush1.msra.mxu0 0.0
    %4447 = vmatprep.subr.mxu0 0.0
    %4448 = vmatpush1.msra.mxu0 0.0
    %4449 = vmatprep.subr.mxu0 0.0
    %4450 = vmatpush1.msra.mxu0 0.0
    %4451 = vmatprep.subr.mxu0 0.0
    %4452 = vmatpush1.msra.mxu0 0.0
    %4453 = vmatprep.subr.mxu0 0.0
    %4454 = vmatpush1.msra.mxu0 0.0
    %4455 = vmatprep.subr.mxu0 0.0
    %4456 = vmatpush1.msra.mxu0 0.0
    %4457 = vmatprep.subr.mxu0 0.0
    %4458 = vmatpush1.msra.mxu0 0.0
    %4459 = vmatprep.subr.mxu0 0.0
    %4460 = vmatpush1.msra.mxu0 0.0
    %4461 = vmatprep.subr.mxu0 0.0
    %4462 = vmatpush1.msra.mxu0 0.0
    %4463 = vmatprep.subr.mxu0 0.0
    %4464 = vmatpush1.msra.mxu0 0.0
    %4465 = vmatprep.subr.mxu0 0.0
    %4466 = vmatpush1.msra.mxu0 0.0
    %4467 = vmatprep.subr.mxu0 0.0
    %4468 = vmatpush1.msra.mxu0 0.0
    %4469 = vmatprep.subr.mxu0 0.0
    %4470 = vmatpush1.msra.mxu0 0.0
    %4471 = vmatprep.subr.mxu0 0.0
    %4472 = vmatpush1.msra.mxu0 0.0
    %4473 = vmatprep.subr.mxu0 0.0
    %4474 = vmatpush1.msra.mxu0 0.0
    %4475 = vmatprep.subr.mxu0 0.0
    %4476 = vmatpush1.msra.mxu0 0.0
    %4477 = vmatprep.subr.mxu0 0.0
    %4478 = vmatpush1.msra.mxu0 0.0
    %4479 = vmatprep.subr.mxu0 0.0
    %4480 = vmatpush1.msra.mxu0 0.0
    %4481 = vmatprep.subr.mxu0 0.0
    %4482 = vmatpush1.msra.mxu0 0.0
    %4483 = vmatprep.subr.mxu0 0.0
    %4484 = vmatpush1.msra.mxu0 0.0
    %4485 = vmatprep.subr.mxu0 0.0
    %4486 = vmatpush1.msra.mxu0 0.0
    %4487 = vmatprep.subr.mxu0 0.0
    %4488 = vmatpush1.msra.mxu0 0.0
    %4489 = vmatprep.subr.mxu0 0.0
    %4490 = vmatpush1.msra.mxu0 0.0
    %4491 = vmatprep.subr.mxu0 0.0
    %4492 = vmatpush1.msra.mxu0 0.0
    %4493 = vmatprep.subr.mxu0 0.0
    %4494 = vmatpush1.msra.mxu0 0.0
    %4495 = vmatprep.mubr.f32.mxu0 0.0
    %4496 = vmatmul.mubr.f32.gmra.mrb[0].mxu0 %v3998
    %v4497 = vpop.f32.mrb[0].mxu0
    %v4498 = vadd.f32 0.0, %v4497
    %v4499 = vpop.f32.mrb[0].mxu0
    %4500 = vdwg.mxu0
    %v4501 = vadd.f32 %v4215, %v4498
    %v4502 = vadd.f32 %v4501, %v185
    %4503 = vmatprep.subr.mxu0 0.0
    %4504 = vmatpush1.msra.mxu0 %v110
    %4505 = vmatprep.subr.mxu0 0.0
    %4506 = vmatpush1.msra.mxu0 %v111
    %4507 = vmatprep.subr.mxu0 0.0
    %4508 = vmatpush1.msra.mxu0 %v112
    %4509 = vmatprep.subr.mxu0 0.0
    %4510 = vmatpush1.msra.mxu0 %v113
    %4511 = vmatprep.subr.mxu0 0.0
    %4512 = vmatpush1.msra.mxu0 0.0
    %4513 = vmatprep.subr.mxu0 0.0
    %4514 = vmatpush1.msra.mxu0 0.0
    %4515 = vmatprep.subr.mxu0 0.0
    %4516 = vmatpush1.msra.mxu0 0.0
    %4517 = vmatprep.subr.mxu0 0.0
    %4518 = vmatpush1.msra.mxu0 0.0
    %4519 = vmatprep.subr.mxu0 0.0
    %4520 = vmatpush1.msra.mxu0 0.0
    %4521 = vmatprep.subr.mxu0 0.0
    %4522 = vmatpush1.msra.mxu0 0.0
    %4523 = vmatprep.subr.mxu0 0.0
    %4524 = vmatpush1.msra.mxu0 0.0
    %4525 = vmatprep.subr.mxu0 0.0
    %4526 = vmatpush1.msra.mxu0 0.0
    %4527 = vmatprep.subr.mxu0 0.0
    %4528 = vmatpush1.msra.mxu0 0.0
    %4529 = vmatprep.subr.mxu0 0.0
    %4530 = vmatpush1.msra.mxu0 0.0
    %4531 = vmatprep.subr.mxu0 0.0
    %4532 = vmatpush1.msra.mxu0 0.0
    %4533 = vmatprep.subr.mxu0 0.0
    %4534 = vmatpush1.msra.mxu0 0.0
    %4535 = vmatprep.subr.mxu0 0.0
    %4536 = vmatpush1.msra.mxu0 0.0
    %4537 = vmatprep.subr.mxu0 0.0
    %4538 = vmatpush1.msra.mxu0 0.0
    %4539 = vmatprep.subr.mxu0 0.0
    %4540 = vmatpush1.msra.mxu0 0.0
    %4541 = vmatprep.subr.mxu0 0.0
    %4542 = vmatpush1.msra.mxu0 0.0
    %4543 = vmatprep.subr.mxu0 0.0
    %4544 = vmatpush1.msra.mxu0 0.0
    %4545 = vmatprep.subr.mxu0 0.0
    %4546 = vmatpush1.msra.mxu0 0.0
    %4547 = vmatprep.subr.mxu0 0.0
    %4548 = vmatpush1.msra.mxu0 0.0
    %4549 = vmatprep.subr.mxu0 0.0
    %4550 = vmatpush1.msra.mxu0 0.0
    %4551 = vmatprep.subr.mxu0 0.0
    %4552 = vmatpush1.msra.mxu0 0.0
    %4553 = vmatprep.subr.mxu0 0.0
    %4554 = vmatpush1.msra.mxu0 0.0
    %4555 = vmatprep.subr.mxu0 0.0
    %4556 = vmatpush1.msra.mxu0 0.0
    %4557 = vmatprep.subr.mxu0 0.0
    %4558 = vmatpush1.msra.mxu0 0.0
    %4559 = vmatprep.subr.mxu0 0.0
    %4560 = vmatpush1.msra.mxu0 0.0
    %4561 = vmatprep.subr.mxu0 0.0
    %4562 = vmatpush1.msra.mxu0 0.0
    %4563 = vmatprep.subr.mxu0 0.0
    %4564 = vmatpush1.msra.mxu0 0.0
    %4565 = vmatprep.subr.mxu0 0.0
    %4566 = vmatpush1.msra.mxu0 0.0
    %4567 = vmatprep.mubr.f32.mxu0 0.0
    %4568 = vmatmul.mubr.f32.gmra.mrb[0].mxu0 %v3998
    %v4569 = vpop.f32.mrb[0].mxu0
    %v4570 = vadd.f32 0.0, %v4569
    %v4571 = vpop.f32.mrb[0].mxu0
    %4572 = vdwg.mxu0
    %v4573 = vadd.f32 %v4286, %v4570
    %v4574 = vadd.f32 %v4573, %v193
    %v4575 = vxor.u32 %v4358, 2147483648
    %v4576 = vmul.f32 %v4575, 1.442695
    %v4577 = vpow.pop %v4576
    %v4578 = vadd.f32 %v4577, 1.0
    %v4579 = vrcp.pop %v4578
    %v4580 = vmul.f32 1.0, %v4579
    %v4581 = vxor.u32 %v4430, 2147483648
    %v4582 = vmul.f32 %v4581, 1.442695
    %v4583 = vpow.pop %v4582
    %v4584 = vadd.f32 %v4583, 1.0
    %v4585 = vrcp.pop %v4584
    %v4586 = vmul.f32 1.0, %v4585
    %v4587 = vtanh.pop %v4502
    %v4588 = vxor.u32 %v4574, 2147483648
    %v4589 = vmul.f32 %v4588, 1.442695
    %v4590 = vpow.pop %v4589
    %v4591 = vadd.f32 %v4590, 1.0
    %v4592 = vrcp.pop %v4591
    %v4593 = vmul.f32 1.0, %v4592
    %v4594 = vmul.f32 %v4586, %v3992
    %v4595 = vmul.f32 %v4580, %v4587
    %v4596 = vadd.f32 %v4594, %v4595
    %v4597 = vtanh.pop %v4596
    %v4598 = vmul.f32 %v4593, %v4597
    %s4599 = sld [smem:[#allocation3 + $0x2]]
    %p4600 = scmp.ne.s32.totalorder %s4599, 0
    %v4602 = vsel %vm1167, %v4598, 0
    %4604 = vmatprep.subr.mxu0 0.0
    %4605 = vmatpush1.msra.mxu0 %v114
    %4606 = vmatprep.subr.mxu0 0.0
    %4607 = vmatpush1.msra.mxu0 %v115
    %4608 = vmatprep.subr.mxu0 0.0
    %4609 = vmatpush1.msra.mxu0 %v116
    %4610 = vmatprep.subr.mxu0 0.0
    %4611 = vmatpush1.msra.mxu0 %v117
    %4612 = vmatprep.subr.mxu0 0.0
    %4613 = vmatpush1.msra.mxu0 0.0
    %4614 = vmatprep.subr.mxu0 0.0
    %4615 = vmatpush1.msra.mxu0 0.0
    %4616 = vmatprep.subr.mxu0 0.0
    %4617 = vmatpush1.msra.mxu0 0.0
    %4618 = vmatprep.subr.mxu0 0.0
    %4619 = vmatpush1.msra.mxu0 0.0
    %4620 = vmatprep.subr.mxu0 0.0
    %4621 = vmatpush1.msra.mxu0 0.0
    %4622 = vmatprep.subr.mxu0 0.0
    %4623 = vmatpush1.msra.mxu0 0.0
    %4624 = vmatprep.subr.mxu0 0.0
    %4625 = vmatpush1.msra.mxu0 0.0
    %4626 = vmatprep.subr.mxu0 0.0
    %4627 = vmatpush1.msra.mxu0 0.0
    %4628 = vmatprep.subr.mxu0 0.0
    %4629 = vmatpush1.msra.mxu0 0.0
    %4630 = vmatprep.subr.mxu0 0.0
    %4631 = vmatpush1.msra.mxu0 0.0
    %4632 = vmatprep.subr.mxu0 0.0
    %4633 = vmatpush1.msra.mxu0 0.0
    %4634 = vmatprep.subr.mxu0 0.0
    %4635 = vmatpush1.msra.mxu0 0.0
    %4636 = vmatprep.subr.mxu0 0.0
    %4637 = vmatpush1.msra.mxu0 0.0
    %4638 = vmatprep.subr.mxu0 0.0
    %4639 = vmatpush1.msra.mxu0 0.0
    %4640 = vmatprep.subr.mxu0 0.0
    %4641 = vmatpush1.msra.mxu0 0.0
    %4642 = vmatprep.subr.mxu0 0.0
    %4643 = vmatpush1.msra.mxu0 0.0
    %4644 = vmatprep.subr.mxu0 0.0
    %4645 = vmatpush1.msra.mxu0 0.0
    %4646 = vmatprep.subr.mxu0 0.0
    %4647 = vmatpush1.msra.mxu0 0.0
    %4648 = vmatprep.subr.mxu0 0.0
    %4649 = vmatpush1.msra.mxu0 0.0
    %4650 = vmatprep.subr.mxu0 0.0
    %4651 = vmatpush1.msra.mxu0 0.0
    %4652 = vmatprep.subr.mxu0 0.0
    %4653 = vmatpush1.msra.mxu0 0.0
    %4654 = vmatprep.subr.mxu0 0.0
    %4655 = vmatpush1.msra.mxu0 0.0
    %4656 = vmatprep.subr.mxu0 0.0
    %4657 = vmatpush1.msra.mxu0 0.0
    %4658 = vmatprep.subr.mxu0 0.0
    %4659 = vmatpush1.msra.mxu0 0.0
    %4660 = vmatprep.subr.mxu0 0.0
    %4661 = vmatpush1.msra.mxu0 0.0
    %4662 = vmatprep.subr.mxu0 0.0
    %4663 = vmatpush1.msra.mxu0 0.0
    %4664 = vmatprep.subr.mxu0 0.0
    %4665 = vmatpush1.msra.mxu0 0.0
    %4666 = vmatprep.subr.mxu0 0.0
    %4667 = vmatpush1.msra.mxu0 0.0
    %4668 = vmatprep.mubr.f32.mxu0 0.0
    %4669 = vmatmul.mubr.f32.gmra.mrb[0].mxu0 %v4602
    %v4670 = vpop.f32.mrb[0].mxu0
    %v4671 = vadd.f32 %v200, %v4670
    %v4672 = vpop.f32.mrb[0].mxu0
    %4673 = vdwg.mxu0
    %s4674 = scalar_select %p4600, 1, 0
    %v4675 = vstv %s4674
    %vm4676 = vcmp.eq.s32.totalorder %v4675, 1
    %v4677 = vsel %vm4676, %v816, %v4671
    %4678 = vmatprep.subr.mxu0 0.0
    %4679 = vmatpush1.msra.mxu0 %v119
    %4680 = vmatprep.subr.mxu0 0.0
    %4681 = vmatpush1.msra.mxu0 %v120
    %4682 = vmatprep.subr.mxu0 0.0
    %4683 = vmatpush1.msra.mxu0 %v121
    %4684 = vmatprep.subr.mxu0 0.0
    %4685 = vmatpush1.msra.mxu0 %v122
    %4686 = vmatprep.subr.mxu0 0.0
    %4687 = vmatpush1.msra.mxu0 0.0
    %4688 = vmatprep.subr.mxu0 0.0
    %4689 = vmatpush1.msra.mxu0 0.0
    %4690 = vmatprep.subr.mxu0 0.0
    %4691 = vmatpush1.msra.mxu0 0.0
    %4692 = vmatprep.subr.mxu0 0.0
    %4693 = vmatpush1.msra.mxu0 0.0
    %4694 = vmatprep.subr.mxu0 0.0
    %4695 = vmatpush1.msra.mxu0 0.0
    %4696 = vmatprep.subr.mxu0 0.0
    %4697 = vmatpush1.msra.mxu0 0.0
    %4698 = vmatprep.subr.mxu0 0.0
    %4699 = vmatpush1.msra.mxu0 0.0
    %4700 = vmatprep.subr.mxu0 0.0
    %4701 = vmatpush1.msra.mxu0 0.0
    %4702 = vmatprep.subr.mxu0 0.0
    %4703 = vmatpush1.msra.mxu0 0.0
    %4704 = vmatprep.subr.mxu0 0.0
    %4705 = vmatpush1.msra.mxu0 0.0
    %4706 = vmatprep.subr.mxu0 0.0
    %4707 = vmatpush1.msra.mxu0 0.0
    %4708 = vmatprep.subr.mxu0 0.0
    %4709 = vmatpush1.msra.mxu0 0.0
    %4710 = vmatprep.subr.mxu0 0.0
    %4711 = vmatpush1.msra.mxu0 0.0
    %4712 = vmatprep.subr.mxu0 0.0
    %4713 = vmatpush1.msra.mxu0 0.0
    %4714 = vmatprep.subr.mxu0 0.0
    %4715 = vmatpush1.msra.mxu0 0.0
    %4716 = vmatprep.subr.mxu0 0.0
    %4717 = vmatpush1.msra.mxu0 0.0
    %4718 = vmatprep.subr.mxu0 0.0
    %4719 = vmatpush1.msra.mxu0 0.0
    %4720 = vmatprep.subr.mxu0 0.0
    %4721 = vmatpush1.msra.mxu0 0.0
    %4722 = vmatprep.subr.mxu0 0.0
    %4723 = vmatpush1.msra.mxu0 0.0
    %4724 = vmatprep.subr.mxu0 0.0
    %4725 = vmatpush1.msra.mxu0 0.0
    %4726 = vmatprep.subr.mxu0 0.0
    %4727 = vmatpush1.msra.mxu0 0.0
    %4728 = vmatprep.subr.mxu0 0.0
    %4729 = vmatpush1.msra.mxu0 0.0
    %4730 = vmatprep.subr.mxu0 0.0
    %4731 = vmatpush1.msra.mxu0 0.0
    %4732 = vmatprep.subr.mxu0 0.0
    %4733 = vmatpush1.msra.mxu0 0.0
    %4734 = vmatprep.subr.mxu0 0.0
    %4735 = vmatpush1.msra.mxu0 0.0
    %4736 = vmatprep.subr.mxu0 0.0
    %4737 = vmatpush1.msra.mxu0 0.0
    %4738 = vmatprep.subr.mxu0 0.0
    %4739 = vmatpush1.msra.mxu0 0.0
    %4740 = vmatprep.subr.mxu0 0.0
    %4741 = vmatpush1.msra.mxu0 0.0
    %4742 = vmatprep.mubr.f32.mxu0 0.0
    %4743 = vmatmul.mubr.f32.gmra.mrb[0].mxu0 %v4602
    %v4744 = vpop.f32.mrb[0].mxu0
    %v4745 = vadd.f32 %v208, %v4744
    %v4746 = vpop.f32.mrb[0].mxu0
    %4747 = vdwg.mxu0
    %v4748 = vsel %vm4676, %v924, %v4745
    %4749 = vmatprep.subr.mxu0 0.0
    %4750 = vmatpush1.msra.mxu0 %v124
    %4751 = vmatprep.subr.mxu0 0.0
    %4752 = vmatpush1.msra.mxu0 %v125
    %4753 = vmatprep.subr.mxu0 0.0
    %4754 = vmatpush1.msra.mxu0 %v126
    %4755 = vmatprep.subr.mxu0 0.0
    %4756 = vmatpush1.msra.mxu0 %v127
    %4757 = vmatprep.subr.mxu0 0.0
    %4758 = vmatpush1.msra.mxu0 0.0
    %4759 = vmatprep.subr.mxu0 0.0
    %4760 = vmatpush1.msra.mxu0 0.0
    %4761 = vmatprep.subr.mxu0 0.0
    %4762 = vmatpush1.msra.mxu0 0.0
    %4763 = vmatprep.subr.mxu0 0.0
    %4764 = vmatpush1.msra.mxu0 0.0
    %4765 = vmatprep.subr.mxu0 0.0
    %4766 = vmatpush1.msra.mxu0 0.0
    %4767 = vmatprep.subr.mxu0 0.0
    %4768 = vmatpush1.msra.mxu0 0.0
    %4769 = vmatprep.subr.mxu0 0.0
    %4770 = vmatpush1.msra.mxu0 0.0
    %4771 = vmatprep.subr.mxu0 0.0
    %4772 = vmatpush1.msra.mxu0 0.0
    %4773 = vmatprep.subr.mxu0 0.0
    %4774 = vmatpush1.msra.mxu0 0.0
    %4775 = vmatprep.subr.mxu0 0.0
    %4776 = vmatpush1.msra.mxu0 0.0
    %4777 = vmatprep.subr.mxu0 0.0
    %4778 = vmatpush1.msra.mxu0 0.0
    %4779 = vmatprep.subr.mxu0 0.0
    %4780 = vmatpush1.msra.mxu0 0.0
    %4781 = vmatprep.subr.mxu0 0.0
    %4782 = vmatpush1.msra.mxu0 0.0
    %4783 = vmatprep.subr.mxu0 0.0
    %4784 = vmatpush1.msra.mxu0 0.0
    %4785 = vmatprep.subr.mxu0 0.0
    %4786 = vmatpush1.msra.mxu0 0.0
    %4787 = vmatprep.subr.mxu0 0.0
    %4788 = vmatpush1.msra.mxu0 0.0
    %4789 = vmatprep.subr.mxu0 0.0
    %4790 = vmatpush1.msra.mxu0 0.0
    %4791 = vmatprep.subr.mxu0 0.0
    %4792 = vmatpush1.msra.mxu0 0.0
    %4793 = vmatprep.subr.mxu0 0.0
    %4794 = vmatpush1.msra.mxu0 0.0
    %4795 = vmatprep.subr.mxu0 0.0
    %4796 = vmatpush1.msra.mxu0 0.0
    %4797 = vmatprep.subr.mxu0 0.0
    %4798 = vmatpush1.msra.mxu0 0.0
    %4799 = vmatprep.subr.mxu0 0.0
    %4800 = vmatpush1.msra.mxu0 0.0
    %4801 = vmatprep.subr.mxu0 0.0
    %4802 = vmatpush1.msra.mxu0 0.0
    %4803 = vmatprep.subr.mxu0 0.0
    %4804 = vmatpush1.msra.mxu0 0.0
    %4805 = vmatprep.subr.mxu0 0.0
    %4806 = vmatpush1.msra.mxu0 0.0
    %4807 = vmatprep.subr.mxu0 0.0
    %4808 = vmatpush1.msra.mxu0 0.0
    %4809 = vmatprep.subr.mxu0 0.0
    %4810 = vmatpush1.msra.mxu0 0.0
    %4811 = vmatprep.subr.mxu0 0.0
    %4812 = vmatpush1.msra.mxu0 0.0
    %4813 = vmatprep.mubr.f32.mxu0 0.0
    %4814 = vmatmul.mubr.f32.gmra.mrb[0].mxu0 %v4602
    %v4815 = vpop.f32.mrb[0].mxu0
    %v4816 = vadd.f32 %v216, %v4815
    %v4817 = vpop.f32.mrb[0].mxu0
    %4818 = vdwg.mxu0
    %v4819 = vsel %vm4676, %v1032, %v4816
    %4820 = vmatprep.subr.mxu0 0.0
    %4821 = vmatpush1.msra.mxu0 %v129
    %4822 = vmatprep.subr.mxu0 0.0
    %4823 = vmatpush1.msra.mxu0 %v130
    %4824 = vmatprep.subr.mxu0 0.0
    %4825 = vmatpush1.msra.mxu0 %v131
    %4826 = vmatprep.subr.mxu0 0.0
    %4827 = vmatpush1.msra.mxu0 %v132
    %4828 = vmatprep.subr.mxu0 0.0
    %4829 = vmatpush1.msra.mxu0 0.0
    %4830 = vmatprep.subr.mxu0 0.0
    %4831 = vmatpush1.msra.mxu0 0.0
    %4832 = vmatprep.subr.mxu0 0.0
    %4833 = vmatpush1.msra.mxu0 0.0
    %4834 = vmatprep.subr.mxu0 0.0
    %4835 = vmatpush1.msra.mxu0 0.0
    %4836 = vmatprep.subr.mxu0 0.0
    %4837 = vmatpush1.msra.mxu0 0.0
    %4838 = vmatprep.subr.mxu0 0.0
    %4839 = vmatpush1.msra.mxu0 0.0
    %4840 = vmatprep.subr.mxu0 0.0
    %4841 = vmatpush1.msra.mxu0 0.0
    %4842 = vmatprep.subr.mxu0 0.0
    %4843 = vmatpush1.msra.mxu0 0.0
    %4844 = vmatprep.subr.mxu0 0.0
    %4845 = vmatpush1.msra.mxu0 0.0
    %4846 = vmatprep.subr.mxu0 0.0
    %4847 = vmatpush1.msra.mxu0 0.0
    %4848 = vmatprep.subr.mxu0 0.0
    %4849 = vmatpush1.msra.mxu0 0.0
    %4850 = vmatprep.subr.mxu0 0.0
    %4851 = vmatpush1.msra.mxu0 0.0
    %4852 = vmatprep.subr.mxu0 0.0
    %4853 = vmatpush1.msra.mxu0 0.0
    %4854 = vmatprep.subr.mxu0 0.0
    %4855 = vmatpush1.msra.mxu0 0.0
    %4856 = vmatprep.subr.mxu0 0.0
    %4857 = vmatpush1.msra.mxu0 0.0
    %4858 = vmatprep.subr.mxu0 0.0
    %4859 = vmatpush1.msra.mxu0 0.0
    %4860 = vmatprep.subr.mxu0 0.0
    %4861 = vmatpush1.msra.mxu0 0.0
    %4862 = vmatprep.subr.mxu0 0.0
    %4863 = vmatpush1.msra.mxu0 0.0
    %4864 = vmatprep.subr.mxu0 0.0
    %4865 = vmatpush1.msra.mxu0 0.0
    %4866 = vmatprep.subr.mxu0 0.0
    %4867 = vmatpush1.msra.mxu0 0.0
    %4868 = vmatprep.subr.mxu0 0.0
    %4869 = vmatpush1.msra.mxu0 0.0
    %4870 = vmatprep.subr.mxu0 0.0
    %4871 = vmatpush1.msra.mxu0 0.0
    %4872 = vmatprep.subr.mxu0 0.0
    %4873 = vmatpush1.msra.mxu0 0.0
    %4874 = vmatprep.subr.mxu0 0.0
    %4875 = vmatpush1.msra.mxu0 0.0
    %4876 = vmatprep.subr.mxu0 0.0
    %4877 = vmatpush1.msra.mxu0 0.0
    %4878 = vmatprep.subr.mxu0 0.0
    %4879 = vmatpush1.msra.mxu0 0.0
    %4880 = vmatprep.subr.mxu0 0.0
    %4881 = vmatpush1.msra.mxu0 0.0
    %4882 = vmatprep.subr.mxu0 0.0
    %4883 = vmatpush1.msra.mxu0 0.0
    %4884 = vmatprep.mubr.f32.mxu0 0.0
    %4885 = vmatmul.mubr.f32.gmra.mrb[0].mxu0 %v4602
    %v4886 = vpop.f32.mrb[0].mxu0
    %v4887 = vadd.f32 %v224, %v4886
    %v4888 = vpop.f32.mrb[0].mxu0
    %4889 = vdwg.mxu0
    %v4890 = vsel %vm4676, %v1140, %v4887
    %4891 = vmatprep.subr.mxu0 0.0
    %4892 = vmatpush1.msra.mxu0 %v95
    %4893 = vmatprep.subr.mxu0 0.0
    %4894 = vmatpush1.msra.mxu0 %v96
    %4895 = vmatprep.subr.mxu0 0.0
    %4896 = vmatpush1.msra.mxu0 %v97
    %4897 = vmatprep.subr.mxu0 0.0
    %4898 = vmatpush1.msra.mxu0 %v98
    %4899 = vmatprep.subr.mxu0 0.0
    %4900 = vmatpush1.msra.mxu0 0.0
    %4901 = vmatprep.subr.mxu0 0.0
    %4902 = vmatpush1.msra.mxu0 0.0
    %4903 = vmatprep.subr.mxu0 0.0
    %4904 = vmatpush1.msra.mxu0 0.0
    %4905 = vmatprep.subr.mxu0 0.0
    %4906 = vmatpush1.msra.mxu0 0.0
    %4907 = vmatprep.subr.mxu0 0.0
    %4908 = vmatpush1.msra.mxu0 0.0
    %4909 = vmatprep.subr.mxu0 0.0
    %4910 = vmatpush1.msra.mxu0 0.0
    %4911 = vmatprep.subr.mxu0 0.0
    %4912 = vmatpush1.msra.mxu0 0.0
    %4913 = vmatprep.subr.mxu0 0.0
    %4914 = vmatpush1.msra.mxu0 0.0
    %4915 = vmatprep.subr.mxu0 0.0
    %4916 = vmatpush1.msra.mxu0 0.0
    %4917 = vmatprep.subr.mxu0 0.0
    %4918 = vmatpush1.msra.mxu0 0.0
    %4919 = vmatprep.subr.mxu0 0.0
    %4920 = vmatpush1.msra.mxu0 0.0
    %4921 = vmatprep.subr.mxu0 0.0
    %4922 = vmatpush1.msra.mxu0 0.0
    %4923 = vmatprep.subr.mxu0 0.0
    %4924 = vmatpush1.msra.mxu0 0.0
    %4925 = vmatprep.subr.mxu0 0.0
    %4926 = vmatpush1.msra.mxu0 0.0
    %4927 = vmatprep.subr.mxu0 0.0
    %4928 = vmatpush1.msra.mxu0 0.0
    %4929 = vmatprep.subr.mxu0 0.0
    %4930 = vmatpush1.msra.mxu0 0.0
    %4931 = vmatprep.subr.mxu0 0.0
    %4932 = vmatpush1.msra.mxu0 0.0
    %4933 = vmatprep.subr.mxu0 0.0
    %4934 = vmatpush1.msra.mxu0 0.0
    %4935 = vmatprep.subr.mxu0 0.0
    %4936 = vmatpush1.msra.mxu0 0.0
    %4937 = vmatprep.subr.mxu0 0.0
    %4938 = vmatpush1.msra.mxu0 0.0
    %4939 = vmatprep.subr.mxu0 0.0
    %4940 = vmatpush1.msra.mxu0 0.0
    %4941 = vmatprep.subr.mxu0 0.0
    %4942 = vmatpush1.msra.mxu0 0.0
    %4943 = vmatprep.subr.mxu0 0.0
    %4944 = vmatpush1.msra.mxu0 0.0
    %4945 = vmatprep.subr.mxu0 0.0
    %4946 = vmatpush1.msra.mxu0 0.0
    %4947 = vmatprep.subr.mxu0 0.0
    %4948 = vmatpush1.msra.mxu0 0.0
    %4949 = vmatprep.subr.mxu0 0.0
    %4950 = vmatpush1.msra.mxu0 0.0
    %4951 = vmatprep.subr.mxu0 0.0
    %4952 = vmatpush1.msra.mxu0 0.0
    %4953 = vmatprep.subr.mxu0 0.0
    %4954 = vmatpush1.msra.mxu0 0.0
    %4955 = vmatprep.mubr.f32.mxu0 0.0
    %4956 = vmatmul.mubr.f32.gmra.mrb[0].mxu0 %v4602
    %v4957 = vpop.f32.mrb[0].mxu0
    %v4958 = vadd.f32 0.0, %v4957
    %v4959 = vpop.f32.mrb[0].mxu0
    %4960 = vdwg.mxu0
    %v4961 = vadd.f32 %v4677, %v4958
    %v4962 = vadd.f32 %v4961, %v169
    %4963 = vmatprep.subr.mxu0 0.0
    %4964 = vmatpush1.msra.mxu0 %v100
    %4965 = vmatprep.subr.mxu0 0.0
    %4966 = vmatpush1.msra.mxu0 %v101
    %4967 = vmatprep.subr.mxu0 0.0
    %4968 = vmatpush1.msra.mxu0 %v102
    %4969 = vmatprep.subr.mxu0 0.0
    %4970 = vmatpush1.msra.mxu0 %v103
    %4971 = vmatprep.subr.mxu0 0.0
    %4972 = vmatpush1.msra.mxu0 0.0
    %4973 = vmatprep.subr.mxu0 0.0
    %4974 = vmatpush1.msra.mxu0 0.0
    %4975 = vmatprep.subr.mxu0 0.0
    %4976 = vmatpush1.msra.mxu0 0.0
    %4977 = vmatprep.subr.mxu0 0.0
    %4978 = vmatpush1.msra.mxu0 0.0
    %4979 = vmatprep.subr.mxu0 0.0
    %4980 = vmatpush1.msra.mxu0 0.0
    %4981 = vmatprep.subr.mxu0 0.0
    %4982 = vmatpush1.msra.mxu0 0.0
    %4983 = vmatprep.subr.mxu0 0.0
    %4984 = vmatpush1.msra.mxu0 0.0
    %4985 = vmatprep.subr.mxu0 0.0
    %4986 = vmatpush1.msra.mxu0 0.0
    %4987 = vmatprep.subr.mxu0 0.0
    %4988 = vmatpush1.msra.mxu0 0.0
    %4989 = vmatprep.subr.mxu0 0.0
    %4990 = vmatpush1.msra.mxu0 0.0
    %4991 = vmatprep.subr.mxu0 0.0
    %4992 = vmatpush1.msra.mxu0 0.0
    %4993 = vmatprep.subr.mxu0 0.0
    %4994 = vmatpush1.msra.mxu0 0.0
    %4995 = vmatprep.subr.mxu0 0.0
    %4996 = vmatpush1.msra.mxu0 0.0
    %4997 = vmatprep.subr.mxu0 0.0
    %4998 = vmatpush1.msra.mxu0 0.0
    %4999 = vmatprep.subr.mxu0 0.0
    %5000 = vmatpush1.msra.mxu0 0.0
    %5001 = vmatprep.subr.mxu0 0.0
    %5002 = vmatpush1.msra.mxu0 0.0
    %5003 = vmatprep.subr.mxu0 0.0
    %5004 = vmatpush1.msra.mxu0 0.0
    %5005 = vmatprep.subr.mxu0 0.0
    %5006 = vmatpush1.msra.mxu0 0.0
    %5007 = vmatprep.subr.mxu0 0.0
    %5008 = vmatpush1.msra.mxu0 0.0
    %5009 = vmatprep.subr.mxu0 0.0
    %5010 = vmatpush1.msra.mxu0 0.0
    %5011 = vmatprep.subr.mxu0 0.0
    %5012 = vmatpush1.msra.mxu0 0.0
    %5013 = vmatprep.subr.mxu0 0.0
    %5014 = vmatpush1.msra.mxu0 0.0
    %5015 = vmatprep.subr.mxu0 0.0
    %5016 = vmatpush1.msra.mxu0 0.0
    %5017 = vmatprep.subr.mxu0 0.0
    %5018 = vmatpush1.msra.mxu0 0.0
    %5019 = vmatprep.subr.mxu0 0.0
    %5020 = vmatpush1.msra.mxu0 0.0
    %5021 = vmatprep.subr.mxu0 0.0
    %5022 = vmatpush1.msra.mxu0 0.0
    %5023 = vmatprep.subr.mxu0 0.0
    %5024 = vmatpush1.msra.mxu0 0.0
    %5025 = vmatprep.subr.mxu0 0.0
    %5026 = vmatpush1.msra.mxu0 0.0
    %5027 = vmatprep.mubr.f32.mxu0 0.0
    %5028 = vmatmul.mubr.f32.gmra.mrb[0].mxu0 %v4602
    %v5029 = vpop.f32.mrb[0].mxu0
    %v5030 = vadd.f32 0.0, %v5029
    %v5031 = vpop.f32.mrb[0].mxu0
    %5032 = vdwg.mxu0
    %v5033 = vadd.f32 %v4748, %v5030
    %v5034 = vadd.f32 %v5033, %v177
    %5035 = vmatprep.subr.mxu0 0.0
    %5036 = vmatpush1.msra.mxu0 %v105
    %5037 = vmatprep.subr.mxu0 0.0
    %5038 = vmatpush1.msra.mxu0 %v106
    %5039 = vmatprep.subr.mxu0 0.0
    %5040 = vmatpush1.msra.mxu0 %v107
    %5041 = vmatprep.subr.mxu0 0.0
    %5042 = vmatpush1.msra.mxu0 %v108
    %5043 = vmatprep.subr.mxu0 0.0
    %5044 = vmatpush1.msra.mxu0 0.0
    %5045 = vmatprep.subr.mxu0 0.0
    %5046 = vmatpush1.msra.mxu0 0.0
    %5047 = vmatprep.subr.mxu0 0.0
    %5048 = vmatpush1.msra.mxu0 0.0
    %5049 = vmatprep.subr.mxu0 0.0
    %5050 = vmatpush1.msra.mxu0 0.0
    %5051 = vmatprep.subr.mxu0 0.0
    %5052 = vmatpush1.msra.mxu0 0.0
    %5053 = vmatprep.subr.mxu0 0.0
    %5054 = vmatpush1.msra.mxu0 0.0
    %5055 = vmatprep.subr.mxu0 0.0
    %5056 = vmatpush1.msra.mxu0 0.0
    %5057 = vmatprep.subr.mxu0 0.0
    %5058 = vmatpush1.msra.mxu0 0.0
    %5059 = vmatprep.subr.mxu0 0.0
    %5060 = vmatpush1.msra.mxu0 0.0
    %5061 = vmatprep.subr.mxu0 0.0
    %5062 = vmatpush1.msra.mxu0 0.0
    %5063 = vmatprep.subr.mxu0 0.0
    %5064 = vmatpush1.msra.mxu0 0.0
    %5065 = vmatprep.subr.mxu0 0.0
    %5066 = vmatpush1.msra.mxu0 0.0
    %5067 = vmatprep.subr.mxu0 0.0
    %5068 = vmatpush1.msra.mxu0 0.0
    %5069 = vmatprep.subr.mxu0 0.0
    %5070 = vmatpush1.msra.mxu0 0.0
    %5071 = vmatprep.subr.mxu0 0.0
    %5072 = vmatpush1.msra.mxu0 0.0
    %5073 = vmatprep.subr.mxu0 0.0
    %5074 = vmatpush1.msra.mxu0 0.0
    %5075 = vmatprep.subr.mxu0 0.0
    %5076 = vmatpush1.msra.mxu0 0.0
    %5077 = vmatprep.subr.mxu0 0.0
    %5078 = vmatpush1.msra.mxu0 0.0
    %5079 = vmatprep.subr.mxu0 0.0
    %5080 = vmatpush1.msra.mxu0 0.0
    %5081 = vmatprep.subr.mxu0 0.0
    %5082 = vmatpush1.msra.mxu0 0.0
    %5083 = vmatprep.subr.mxu0 0.0
    %5084 = vmatpush1.msra.mxu0 0.0
    %5085 = vmatprep.subr.mxu0 0.0
    %5086 = vmatpush1.msra.mxu0 0.0
    %5087 = vmatprep.subr.mxu0 0.0
    %5088 = vmatpush1.msra.mxu0 0.0
    %5089 = vmatprep.subr.mxu0 0.0
    %5090 = vmatpush1.msra.mxu0 0.0
    %5091 = vmatprep.subr.mxu0 0.0
    %5092 = vmatpush1.msra.mxu0 0.0
    %5093 = vmatprep.subr.mxu0 0.0
    %5094 = vmatpush1.msra.mxu0 0.0
    %5095 = vmatprep.subr.mxu0 0.0
    %5096 = vmatpush1.msra.mxu0 0.0
    %5097 = vmatprep.subr.mxu0 0.0
    %5098 = vmatpush1.msra.mxu0 0.0
    %5099 = vmatprep.mubr.f32.mxu0 0.0
    %5100 = vmatmul.mubr.f32.gmra.mrb[0].mxu0 %v4602
    %v5101 = vpop.f32.mrb[0].mxu0
    %v5102 = vadd.f32 0.0, %v5101
    %v5103 = vpop.f32.mrb[0].mxu0
    %5104 = vdwg.mxu0
    %v5105 = vadd.f32 %v4819, %v5102
    %v5106 = vadd.f32 %v5105, %v185
    %5107 = vmatprep.subr.mxu0 0.0
    %5108 = vmatpush1.msra.mxu0 %v110
    %5109 = vmatprep.subr.mxu0 0.0
    %5110 = vmatpush1.msra.mxu0 %v111
    %5111 = vmatprep.subr.mxu0 0.0
    %5112 = vmatpush1.msra.mxu0 %v112
    %5113 = vmatprep.subr.mxu0 0.0
    %5114 = vmatpush1.msra.mxu0 %v113
    %5115 = vmatprep.subr.mxu0 0.0
    %5116 = vmatpush1.msra.mxu0 0.0
    %5117 = vmatprep.subr.mxu0 0.0
    %5118 = vmatpush1.msra.mxu0 0.0
    %5119 = vmatprep.subr.mxu0 0.0
    %5120 = vmatpush1.msra.mxu0 0.0
    %5121 = vmatprep.subr.mxu0 0.0
    %5122 = vmatpush1.msra.mxu0 0.0
    %5123 = vmatprep.subr.mxu0 0.0
    %5124 = vmatpush1.msra.mxu0 0.0
    %5125 = vmatprep.subr.mxu0 0.0
    %5126 = vmatpush1.msra.mxu0 0.0
    %5127 = vmatprep.subr.mxu0 0.0
    %5128 = vmatpush1.msra.mxu0 0.0
    %5129 = vmatprep.subr.mxu0 0.0
    %5130 = vmatpush1.msra.mxu0 0.0
    %5131 = vmatprep.subr.mxu0 0.0
    %5132 = vmatpush1.msra.mxu0 0.0
    %5133 = vmatprep.subr.mxu0 0.0
    %5134 = vmatpush1.msra.mxu0 0.0
    %5135 = vmatprep.subr.mxu0 0.0
    %5136 = vmatpush1.msra.mxu0 0.0
    %5137 = vmatprep.subr.mxu0 0.0
    %5138 = vmatpush1.msra.mxu0 0.0
    %5139 = vmatprep.subr.mxu0 0.0
    %5140 = vmatpush1.msra.mxu0 0.0
    %5141 = vmatprep.subr.mxu0 0.0
    %5142 = vmatpush1.msra.mxu0 0.0
    %5143 = vmatprep.subr.mxu0 0.0
    %5144 = vmatpush1.msra.mxu0 0.0
    %5145 = vmatprep.subr.mxu0 0.0
    %5146 = vmatpush1.msra.mxu0 0.0
    %5147 = vmatprep.subr.mxu0 0.0
    %5148 = vmatpush1.msra.mxu0 0.0
    %5149 = vmatprep.subr.mxu0 0.0
    %5150 = vmatpush1.msra.mxu0 0.0
    %5151 = vmatprep.subr.mxu0 0.0
    %5152 = vmatpush1.msra.mxu0 0.0
    %5153 = vmatprep.subr.mxu0 0.0
    %5154 = vmatpush1.msra.mxu0 0.0
    %5155 = vmatprep.subr.mxu0 0.0
    %5156 = vmatpush1.msra.mxu0 0.0
    %5157 = vmatprep.subr.mxu0 0.0
    %5158 = vmatpush1.msra.mxu0 0.0
    %5159 = vmatprep.subr.mxu0 0.0
    %5160 = vmatpush1.msra.mxu0 0.0
    %5161 = vmatprep.subr.mxu0 0.0
    %5162 = vmatpush1.msra.mxu0 0.0
    %5163 = vmatprep.subr.mxu0 0.0
    %5164 = vmatpush1.msra.mxu0 0.0
    %5165 = vmatprep.subr.mxu0 0.0
    %5166 = vmatpush1.msra.mxu0 0.0
    %5167 = vmatprep.subr.mxu0 0.0
    %5168 = vmatpush1.msra.mxu0 0.0
    %5169 = vmatprep.subr.mxu0 0.0
    %5170 = vmatpush1.msra.mxu0 0.0
    %5171 = vmatprep.mubr.f32.mxu0 0.0
    %5172 = vmatmul.mubr.f32.gmra.mrb[0].mxu0 %v4602
    %v5173 = vpop.f32.mrb[0].mxu0
    %v5174 = vadd.f32 0.0, %v5173
    %v5175 = vpop.f32.mrb[0].mxu0
    %5176 = vdwg.mxu0
    %v5177 = vadd.f32 %v4890, %v5174
    %v5178 = vadd.f32 %v5177, %v193
    %v5179 = vxor.u32 %v4962, 2147483648
    %v5180 = vmul.f32 %v5179, 1.442695
    %v5181 = vpow.pop %v5180
    %v5182 = vadd.f32 %v5181, 1.0
    %v5183 = vrcp.pop %v5182
    %v5184 = vmul.f32 1.0, %v5183
    %v5185 = vxor.u32 %v5034, 2147483648
    %v5186 = vmul.f32 %v5185, 1.442695
    %v5187 = vpow.pop %v5186
    %v5188 = vadd.f32 %v5187, 1.0
    %v5189 = vrcp.pop %v5188
    %v5190 = vmul.f32 1.0, %v5189
    %v5191 = vtanh.pop %v5106
    %v5192 = vxor.u32 %v5178, 2147483648
    %v5193 = vmul.f32 %v5192, 1.442695
    %v5194 = vpow.pop %v5193
    %v5195 = vadd.f32 %v5194, 1.0
    %v5196 = vrcp.pop %v5195
    %v5197 = vmul.f32 1.0, %v5196
    %v5198 = vmul.f32 %v5190, %v4596
    %v5199 = vmul.f32 %v5184, %v5191
    %v5200 = vadd.f32 %v5198, %v5199
    %v5201 = vtanh.pop %v5200
    %v5202 = vmul.f32 %v5197, %v5201
    %s5203 = sld [smem:[#allocation3 + $0x3]]
    %p5204 = scmp.ne.s32.totalorder %s5203, 0
    %v5206 = vsel %vm1167, %v5202, 0
    %5208 = vmatprep.subr.mxu0 0.0
    %5209 = vmatpush1.msra.mxu0 %v114
    %5210 = vmatprep.subr.mxu0 0.0
    %5211 = vmatpush1.msra.mxu0 %v115
    %5212 = vmatprep.subr.mxu0 0.0
    %5213 = vmatpush1.msra.mxu0 %v116
    %5214 = vmatprep.subr.mxu0 0.0
    %5215 = vmatpush1.msra.mxu0 %v117
    %5216 = vmatprep.subr.mxu0 0.0
    %5217 = vmatpush1.msra.mxu0 0.0
    %5218 = vmatprep.subr.mxu0 0.0
    %5219 = vmatpush1.msra.mxu0 0.0
    %5220 = vmatprep.subr.mxu0 0.0
    %5221 = vmatpush1.msra.mxu0 0.0
    %5222 = vmatprep.subr.mxu0 0.0
    %5223 = vmatpush1.msra.mxu0 0.0
    %5224 = vmatprep.subr.mxu0 0.0
    %5225 = vmatpush1.msra.mxu0 0.0
    %5226 = vmatprep.subr.mxu0 0.0
    %5227 = vmatpush1.msra.mxu0 0.0
    %5228 = vmatprep.subr.mxu0 0.0
    %5229 = vmatpush1.msra.mxu0 0.0
    %5230 = vmatprep.subr.mxu0 0.0
    %5231 = vmatpush1.msra.mxu0 0.0
    %5232 = vmatprep.subr.mxu0 0.0
    %5233 = vmatpush1.msra.mxu0 0.0
    %5234 = vmatprep.subr.mxu0 0.0
    %5235 = vmatpush1.msra.mxu0 0.0
    %5236 = vmatprep.subr.mxu0 0.0
    %5237 = vmatpush1.msra.mxu0 0.0
    %5238 = vmatprep.subr.mxu0 0.0
    %5239 = vmatpush1.msra.mxu0 0.0
    %5240 = vmatprep.subr.mxu0 0.0
    %5241 = vmatpush1.msra.mxu0 0.0
    %5242 = vmatprep.subr.mxu0 0.0
    %5243 = vmatpush1.msra.mxu0 0.0
    %5244 = vmatprep.subr.mxu0 0.0
    %5245 = vmatpush1.msra.mxu0 0.0
    %5246 = vmatprep.subr.mxu0 0.0
    %5247 = vmatpush1.msra.mxu0 0.0
    %5248 = vmatprep.subr.mxu0 0.0
    %5249 = vmatpush1.msra.mxu0 0.0
    %5250 = vmatprep.subr.mxu0 0.0
    %5251 = vmatpush1.msra.mxu0 0.0
    %5252 = vmatprep.subr.mxu0 0.0
    %5253 = vmatpush1.msra.mxu0 0.0
    %5254 = vmatprep.subr.mxu0 0.0
    %5255 = vmatpush1.msra.mxu0 0.0
    %5256 = vmatprep.subr.mxu0 0.0
    %5257 = vmatpush1.msra.mxu0 0.0
    %5258 = vmatprep.subr.mxu0 0.0
    %5259 = vmatpush1.msra.mxu0 0.0
    %5260 = vmatprep.subr.mxu0 0.0
    %5261 = vmatpush1.msra.mxu0 0.0
    %5262 = vmatprep.subr.mxu0 0.0
    %5263 = vmatpush1.msra.mxu0 0.0
    %5264 = vmatprep.subr.mxu0 0.0
    %5265 = vmatpush1.msra.mxu0 0.0
    %5266 = vmatprep.subr.mxu0 0.0
    %5267 = vmatpush1.msra.mxu0 0.0
    %5268 = vmatprep.subr.mxu0 0.0
    %5269 = vmatpush1.msra.mxu0 0.0
    %5270 = vmatprep.subr.mxu0 0.0
    %5271 = vmatpush1.msra.mxu0 0.0
    %5272 = vmatprep.mubr.f32.mxu0 0.0
    %5273 = vmatmul.mubr.f32.gmra.mrb[0].mxu0 %v5206
    %v5274 = vpop.f32.mrb[0].mxu0
    %v5275 = vadd.f32 %v200, %v5274
    %v5276 = vpop.f32.mrb[0].mxu0
    %5277 = vdwg.mxu0
    %s5278 = scalar_select %p5204, 1, 0
    %v5279 = vstv %s5278
    %vm5280 = vcmp.eq.s32.totalorder %v5279, 1
    %v5281 = vsel %vm5280, %v821, %v5275
    %5282 = vmatprep.subr.mxu0 0.0
    %5283 = vmatpush1.msra.mxu0 %v119
    %5284 = vmatprep.subr.mxu0 0.0
    %5285 = vmatpush1.msra.mxu0 %v120
    %5286 = vmatprep.subr.mxu0 0.0
    %5287 = vmatpush1.msra.mxu0 %v121
    %5288 = vmatprep.subr.mxu0 0.0
    %5289 = vmatpush1.msra.mxu0 %v122
    %5290 = vmatprep.subr.mxu0 0.0
    %5291 = vmatpush1.msra.mxu0 0.0
    %5292 = vmatprep.subr.mxu0 0.0
    %5293 = vmatpush1.msra.mxu0 0.0
    %5294 = vmatprep.subr.mxu0 0.0
    %5295 = vmatpush1.msra.mxu0 0.0
    %5296 = vmatprep.subr.mxu0 0.0
    %5297 = vmatpush1.msra.mxu0 0.0
    %5298 = vmatprep.subr.mxu0 0.0
    %5299 = vmatpush1.msra.mxu0 0.0
    %5300 = vmatprep.subr.mxu0 0.0
    %5301 = vmatpush1.msra.mxu0 0.0
    %5302 = vmatprep.subr.mxu0 0.0
    %5303 = vmatpush1.msra.mxu0 0.0
    %5304 = vmatprep.subr.mxu0 0.0
    %5305 = vmatpush1.msra.mxu0 0.0
    %5306 = vmatprep.subr.mxu0 0.0
    %5307 = vmatpush1.msra.mxu0 0.0
    %5308 = vmatprep.subr.mxu0 0.0
    %5309 = vmatpush1.msra.mxu0 0.0
    %5310 = vmatprep.subr.mxu0 0.0
    %5311 = vmatpush1.msra.mxu0 0.0
    %5312 = vmatprep.subr.mxu0 0.0
    %5313 = vmatpush1.msra.mxu0 0.0
    %5314 = vmatprep.subr.mxu0 0.0
    %5315 = vmatpush1.msra.mxu0 0.0
    %5316 = vmatprep.subr.mxu0 0.0
    %5317 = vmatpush1.msra.mxu0 0.0
    %5318 = vmatprep.subr.mxu0 0.0
    %5319 = vmatpush1.msra.mxu0 0.0
    %5320 = vmatprep.subr.mxu0 0.0
    %5321 = vmatpush1.msra.mxu0 0.0
    %5322 = vmatprep.subr.mxu0 0.0
    %5323 = vmatpush1.msra.mxu0 0.0
    %5324 = vmatprep.subr.mxu0 0.0
    %5325 = vmatpush1.msra.mxu0 0.0
    %5326 = vmatprep.subr.mxu0 0.0
    %5327 = vmatpush1.msra.mxu0 0.0
    %5328 = vmatprep.subr.mxu0 0.0
    %5329 = vmatpush1.msra.mxu0 0.0
    %5330 = vmatprep.subr.mxu0 0.0
    %5331 = vmatpush1.msra.mxu0 0.0
    %5332 = vmatprep.subr.mxu0 0.0
    %5333 = vmatpush1.msra.mxu0 0.0
    %5334 = vmatprep.subr.mxu0 0.0
    %5335 = vmatpush1.msra.mxu0 0.0
    %5336 = vmatprep.subr.mxu0 0.0
    %5337 = vmatpush1.msra.mxu0 0.0
    %5338 = vmatprep.subr.mxu0 0.0
    %5339 = vmatpush1.msra.mxu0 0.0
    %5340 = vmatprep.subr.mxu0 0.0
    %5341 = vmatpush1.msra.mxu0 0.0
    %5342 = vmatprep.subr.mxu0 0.0
    %5343 = vmatpush1.msra.mxu0 0.0
    %5344 = vmatprep.subr.mxu0 0.0
    %5345 = vmatpush1.msra.mxu0 0.0
    %5346 = vmatprep.mubr.f32.mxu0 0.0
    %5347 = vmatmul.mubr.f32.gmra.mrb[0].mxu0 %v5206
    %v5348 = vpop.f32.mrb[0].mxu0
    %v5349 = vadd.f32 %v208, %v5348
    %v5350 = vpop.f32.mrb[0].mxu0
    %5351 = vdwg.mxu0
    %v5352 = vsel %vm5280, %v929, %v5349
    %5353 = vmatprep.subr.mxu0 0.0
    %5354 = vmatpush1.msra.mxu0 %v124
    %5355 = vmatprep.subr.mxu0 0.0
    %5356 = vmatpush1.msra.mxu0 %v125
    %5357 = vmatprep.subr.mxu0 0.0
    %5358 = vmatpush1.msra.mxu0 %v126
    %5359 = vmatprep.subr.mxu0 0.0
    %5360 = vmatpush1.msra.mxu0 %v127
    %5361 = vmatprep.subr.mxu0 0.0
    %5362 = vmatpush1.msra.mxu0 0.0
    %5363 = vmatprep.subr.mxu0 0.0
    %5364 = vmatpush1.msra.mxu0 0.0
    %5365 = vmatprep.subr.mxu0 0.0
    %5366 = vmatpush1.msra.mxu0 0.0
    %5367 = vmatprep.subr.mxu0 0.0
    %5368 = vmatpush1.msra.mxu0 0.0
    %5369 = vmatprep.subr.mxu0 0.0
    %5370 = vmatpush1.msra.mxu0 0.0
    %5371 = vmatprep.subr.mxu0 0.0
    %5372 = vmatpush1.msra.mxu0 0.0
    %5373 = vmatprep.subr.mxu0 0.0
    %5374 = vmatpush1.msra.mxu0 0.0
    %5375 = vmatprep.subr.mxu0 0.0
    %5376 = vmatpush1.msra.mxu0 0.0
    %5377 = vmatprep.subr.mxu0 0.0
    %5378 = vmatpush1.msra.mxu0 0.0
    %5379 = vmatprep.subr.mxu0 0.0
    %5380 = vmatpush1.msra.mxu0 0.0
    %5381 = vmatprep.subr.mxu0 0.0
    %5382 = vmatpush1.msra.mxu0 0.0
    %5383 = vmatprep.subr.mxu0 0.0
    %5384 = vmatpush1.msra.mxu0 0.0
    %5385 = vmatprep.subr.mxu0 0.0
    %5386 = vmatpush1.msra.mxu0 0.0
    %5387 = vmatprep.subr.mxu0 0.0
    %5388 = vmatpush1.msra.mxu0 0.0
    %5389 = vmatprep.subr.mxu0 0.0
    %5390 = vmatpush1.msra.mxu0 0.0
    %5391 = vmatprep.subr.mxu0 0.0
    %5392 = vmatpush1.msra.mxu0 0.0
    %5393 = vmatprep.subr.mxu0 0.0
    %5394 = vmatpush1.msra.mxu0 0.0
    %5395 = vmatprep.subr.mxu0 0.0
    %5396 = vmatpush1.msra.mxu0 0.0
    %5397 = vmatprep.subr.mxu0 0.0
    %5398 = vmatpush1.msra.mxu0 0.0
    %5399 = vmatprep.subr.mxu0 0.0
    %5400 = vmatpush1.msra.mxu0 0.0
    %5401 = vmatprep.subr.mxu0 0.0
    %5402 = vmatpush1.msra.mxu0 0.0
    %5403 = vmatprep.subr.mxu0 0.0
    %5404 = vmatpush1.msra.mxu0 0.0
    %5405 = vmatprep.subr.mxu0 0.0
    %5406 = vmatpush1.msra.mxu0 0.0
    %5407 = vmatprep.subr.mxu0 0.0
    %5408 = vmatpush1.msra.mxu0 0.0
    %5409 = vmatprep.subr.mxu0 0.0
    %5410 = vmatpush1.msra.mxu0 0.0
    %5411 = vmatprep.subr.mxu0 0.0
    %5412 = vmatpush1.msra.mxu0 0.0
    %5413 = vmatprep.subr.mxu0 0.0
    %5414 = vmatpush1.msra.mxu0 0.0
    %5415 = vmatprep.subr.mxu0 0.0
    %5416 = vmatpush1.msra.mxu0 0.0
    %5417 = vmatprep.mubr.f32.mxu0 0.0
    %5418 = vmatmul.mubr.f32.gmra.mrb[0].mxu0 %v5206
    %v5419 = vpop.f32.mrb[0].mxu0
    %v5420 = vadd.f32 %v216, %v5419
    %v5421 = vpop.f32.mrb[0].mxu0
    %5422 = vdwg.mxu0
    %v5423 = vsel %vm5280, %v1037, %v5420
    %5424 = vmatprep.subr.mxu0 0.0
    %5425 = vmatpush1.msra.mxu0 %v129
    %5426 = vmatprep.subr.mxu0 0.0
    %5427 = vmatpush1.msra.mxu0 %v130
    %5428 = vmatprep.subr.mxu0 0.0
    %5429 = vmatpush1.msra.mxu0 %v131
    %5430 = vmatprep.subr.mxu0 0.0
    %5431 = vmatpush1.msra.mxu0 %v132
    %5432 = vmatprep.subr.mxu0 0.0
    %5433 = vmatpush1.msra.mxu0 0.0
    %5434 = vmatprep.subr.mxu0 0.0
    %5435 = vmatpush1.msra.mxu0 0.0
    %5436 = vmatprep.subr.mxu0 0.0
    %5437 = vmatpush1.msra.mxu0 0.0
    %5438 = vmatprep.subr.mxu0 0.0
    %5439 = vmatpush1.msra.mxu0 0.0
    %5440 = vmatprep.subr.mxu0 0.0
    %5441 = vmatpush1.msra.mxu0 0.0
    %5442 = vmatprep.subr.mxu0 0.0
    %5443 = vmatpush1.msra.mxu0 0.0
    %5444 = vmatprep.subr.mxu0 0.0
    %5445 = vmatpush1.msra.mxu0 0.0
    %5446 = vmatprep.subr.mxu0 0.0
    %5447 = vmatpush1.msra.mxu0 0.0
    %5448 = vmatprep.subr.mxu0 0.0
    %5449 = vmatpush1.msra.mxu0 0.0
    %5450 = vmatprep.subr.mxu0 0.0
    %5451 = vmatpush1.msra.mxu0 0.0
    %5452 = vmatprep.subr.mxu0 0.0
    %5453 = vmatpush1.msra.mxu0 0.0
    %5454 = vmatprep.subr.mxu0 0.0
    %5455 = vmatpush1.msra.mxu0 0.0
    %5456 = vmatprep.subr.mxu0 0.0
    %5457 = vmatpush1.msra.mxu0 0.0
    %5458 = vmatprep.subr.mxu0 0.0
    %5459 = vmatpush1.msra.mxu0 0.0
    %5460 = vmatprep.subr.mxu0 0.0
    %5461 = vmatpush1.msra.mxu0 0.0
    %5462 = vmatprep.subr.mxu0 0.0
    %5463 = vmatpush1.msra.mxu0 0.0
    %5464 = vmatprep.subr.mxu0 0.0
    %5465 = vmatpush1.msra.mxu0 0.0
    %5466 = vmatprep.subr.mxu0 0.0
    %5467 = vmatpush1.msra.mxu0 0.0
    %5468 = vmatprep.subr.mxu0 0.0
    %5469 = vmatpush1.msra.mxu0 0.0
    %5470 = vmatprep.subr.mxu0 0.0
    %5471 = vmatpush1.msra.mxu0 0.0
    %5472 = vmatprep.subr.mxu0 0.0
    %5473 = vmatpush1.msra.mxu0 0.0
    %5474 = vmatprep.subr.mxu0 0.0
    %5475 = vmatpush1.msra.mxu0 0.0
    %5476 = vmatprep.subr.mxu0 0.0
    %5477 = vmatpush1.msra.mxu0 0.0
    %5478 = vmatprep.subr.mxu0 0.0
    %5479 = vmatpush1.msra.mxu0 0.0
    %5480 = vmatprep.subr.mxu0 0.0
    %5481 = vmatpush1.msra.mxu0 0.0
    %5482 = vmatprep.subr.mxu0 0.0
    %5483 = vmatpush1.msra.mxu0 0.0
    %5484 = vmatprep.subr.mxu0 0.0
    %5485 = vmatpush1.msra.mxu0 0.0
    %5486 = vmatprep.subr.mxu0 0.0
    %5487 = vmatpush1.msra.mxu0 0.0
    %5488 = vmatprep.mubr.f32.mxu0 0.0
    %5489 = vmatmul.mubr.f32.gmra.mrb[0].mxu0 %v5206
    %v5490 = vpop.f32.mrb[0].mxu0
    %v5491 = vadd.f32 %v224, %v5490
    %v5492 = vpop.f32.mrb[0].mxu0
    %5493 = vdwg.mxu0
    %v5494 = vsel %vm5280, %v1145, %v5491
    %5495 = vmatprep.subr.mxu0 0.0
    %5496 = vmatpush1.msra.mxu0 %v95
    %5497 = vmatprep.subr.mxu0 0.0
    %5498 = vmatpush1.msra.mxu0 %v96
    %5499 = vmatprep.subr.mxu0 0.0
    %5500 = vmatpush1.msra.mxu0 %v97
    %5501 = vmatprep.subr.mxu0 0.0
    %5502 = vmatpush1.msra.mxu0 %v98
    %5503 = vmatprep.subr.mxu0 0.0
    %5504 = vmatpush1.msra.mxu0 0.0
    %5505 = vmatprep.subr.mxu0 0.0
    %5506 = vmatpush1.msra.mxu0 0.0
    %5507 = vmatprep.subr.mxu0 0.0
    %5508 = vmatpush1.msra.mxu0 0.0
    %5509 = vmatprep.subr.mxu0 0.0
    %5510 = vmatpush1.msra.mxu0 0.0
    %5511 = vmatprep.subr.mxu0 0.0
    %5512 = vmatpush1.msra.mxu0 0.0
    %5513 = vmatprep.subr.mxu0 0.0
    %5514 = vmatpush1.msra.mxu0 0.0
    %5515 = vmatprep.subr.mxu0 0.0
    %5516 = vmatpush1.msra.mxu0 0.0
    %5517 = vmatprep.subr.mxu0 0.0
    %5518 = vmatpush1.msra.mxu0 0.0
    %5519 = vmatprep.subr.mxu0 0.0
    %5520 = vmatpush1.msra.mxu0 0.0
    %5521 = vmatprep.subr.mxu0 0.0
    %5522 = vmatpush1.msra.mxu0 0.0
    %5523 = vmatprep.subr.mxu0 0.0
    %5524 = vmatpush1.msra.mxu0 0.0
    %5525 = vmatprep.subr.mxu0 0.0
    %5526 = vmatpush1.msra.mxu0 0.0
    %5527 = vmatprep.subr.mxu0 0.0
    %5528 = vmatpush1.msra.mxu0 0.0
    %5529 = vmatprep.subr.mxu0 0.0
    %5530 = vmatpush1.msra.mxu0 0.0
    %5531 = vmatprep.subr.mxu0 0.0
    %5532 = vmatpush1.msra.mxu0 0.0
    %5533 = vmatprep.subr.mxu0 0.0
    %5534 = vmatpush1.msra.mxu0 0.0
    %5535 = vmatprep.subr.mxu0 0.0
    %5536 = vmatpush1.msra.mxu0 0.0
    %5537 = vmatprep.subr.mxu0 0.0
    %5538 = vmatpush1.msra.mxu0 0.0
    %5539 = vmatprep.subr.mxu0 0.0
    %5540 = vmatpush1.msra.mxu0 0.0
    %5541 = vmatprep.subr.mxu0 0.0
    %5542 = vmatpush1.msra.mxu0 0.0
    %5543 = vmatprep.subr.mxu0 0.0
    %5544 = vmatpush1.msra.mxu0 0.0
    %5545 = vmatprep.subr.mxu0 0.0
    %5546 = vmatpush1.msra.mxu0 0.0
    %5547 = vmatprep.subr.mxu0 0.0
    %5548 = vmatpush1.msra.mxu0 0.0
    %5549 = vmatprep.subr.mxu0 0.0
    %5550 = vmatpush1.msra.mxu0 0.0
    %5551 = vmatprep.subr.mxu0 0.0
    %5552 = vmatpush1.msra.mxu0 0.0
    %5553 = vmatprep.subr.mxu0 0.0
    %5554 = vmatpush1.msra.mxu0 0.0
    %5555 = vmatprep.subr.mxu0 0.0
    %5556 = vmatpush1.msra.mxu0 0.0
    %5557 = vmatprep.subr.mxu0 0.0
    %5558 = vmatpush1.msra.mxu0 0.0
    %5559 = vmatprep.mubr.f32.mxu0 0.0
    %5560 = vmatmul.mubr.f32.gmra.mrb[0].mxu0 %v5206
    %v5561 = vpop.f32.mrb[0].mxu0
    %v5562 = vadd.f32 0.0, %v5561
    %v5563 = vpop.f32.mrb[0].mxu0
    %5564 = vdwg.mxu0
    %v5565 = vadd.f32 %v5281, %v5562
    %v5566 = vadd.f32 %v5565, %v169
    %5567 = vmatprep.subr.mxu0 0.0
    %5568 = vmatpush1.msra.mxu0 %v100
    %5569 = vmatprep.subr.mxu0 0.0
    %5570 = vmatpush1.msra.mxu0 %v101
    %5571 = vmatprep.subr.mxu0 0.0
    %5572 = vmatpush1.msra.mxu0 %v102
    %5573 = vmatprep.subr.mxu0 0.0
    %5574 = vmatpush1.msra.mxu0 %v103
    %5575 = vmatprep.subr.mxu0 0.0
    %5576 = vmatpush1.msra.mxu0 0.0
    %5577 = vmatprep.subr.mxu0 0.0
    %5578 = vmatpush1.msra.mxu0 0.0
    %5579 = vmatprep.subr.mxu0 0.0
    %5580 = vmatpush1.msra.mxu0 0.0
    %5581 = vmatprep.subr.mxu0 0.0
    %5582 = vmatpush1.msra.mxu0 0.0
    %5583 = vmatprep.subr.mxu0 0.0
    %5584 = vmatpush1.msra.mxu0 0.0
    %5585 = vmatprep.subr.mxu0 0.0
    %5586 = vmatpush1.msra.mxu0 0.0
    %5587 = vmatprep.subr.mxu0 0.0
    %5588 = vmatpush1.msra.mxu0 0.0
    %5589 = vmatprep.subr.mxu0 0.0
    %5590 = vmatpush1.msra.mxu0 0.0
    %5591 = vmatprep.subr.mxu0 0.0
    %5592 = vmatpush1.msra.mxu0 0.0
    %5593 = vmatprep.subr.mxu0 0.0
    %5594 = vmatpush1.msra.mxu0 0.0
    %5595 = vmatprep.subr.mxu0 0.0
    %5596 = vmatpush1.msra.mxu0 0.0
    %5597 = vmatprep.subr.mxu0 0.0
    %5598 = vmatpush1.msra.mxu0 0.0
    %5599 = vmatprep.subr.mxu0 0.0
    %5600 = vmatpush1.msra.mxu0 0.0
    %5601 = vmatprep.subr.mxu0 0.0
    %5602 = vmatpush1.msra.mxu0 0.0
    %5603 = vmatprep.subr.mxu0 0.0
    %5604 = vmatpush1.msra.mxu0 0.0
    %5605 = vmatprep.subr.mxu0 0.0
    %5606 = vmatpush1.msra.mxu0 0.0
    %5607 = vmatprep.subr.mxu0 0.0
    %5608 = vmatpush1.msra.mxu0 0.0
    %5609 = vmatprep.subr.mxu0 0.0
    %5610 = vmatpush1.msra.mxu0 0.0
    %5611 = vmatprep.subr.mxu0 0.0
    %5612 = vmatpush1.msra.mxu0 0.0
    %5613 = vmatprep.subr.mxu0 0.0
    %5614 = vmatpush1.msra.mxu0 0.0
    %5615 = vmatprep.subr.mxu0 0.0
    %5616 = vmatpush1.msra.mxu0 0.0
    %5617 = vmatprep.subr.mxu0 0.0
    %5618 = vmatpush1.msra.mxu0 0.0
    %5619 = vmatprep.subr.mxu0 0.0
    %5620 = vmatpush1.msra.mxu0 0.0
    %5621 = vmatprep.subr.mxu0 0.0
    %5622 = vmatpush1.msra.mxu0 0.0
    %5623 = vmatprep.subr.mxu0 0.0
    %5624 = vmatpush1.msra.mxu0 0.0
    %5625 = vmatprep.subr.mxu0 0.0
    %5626 = vmatpush1.msra.mxu0 0.0
    %5627 = vmatprep.subr.mxu0 0.0
    %5628 = vmatpush1.msra.mxu0 0.0
    %5629 = vmatprep.subr.mxu0 0.0
    %5630 = vmatpush1.msra.mxu0 0.0
    %5631 = vmatprep.mubr.f32.mxu0 0.0
    %5632 = vmatmul.mubr.f32.gmra.mrb[0].mxu0 %v5206
    %v5633 = vpop.f32.mrb[0].mxu0
    %v5634 = vadd.f32 0.0, %v5633
    %v5635 = vpop.f32.mrb[0].mxu0
    %5636 = vdwg.mxu0
    %v5637 = vadd.f32 %v5352, %v5634
    %v5638 = vadd.f32 %v5637, %v177
    %5639 = vmatprep.subr.mxu0 0.0
    %5640 = vmatpush1.msra.mxu0 %v105
    %5641 = vmatprep.subr.mxu0 0.0
    %5642 = vmatpush1.msra.mxu0 %v106
    %5643 = vmatprep.subr.mxu0 0.0
    %5644 = vmatpush1.msra.mxu0 %v107
    %5645 = vmatprep.subr.mxu0 0.0
    %5646 = vmatpush1.msra.mxu0 %v108
    %5647 = vmatprep.subr.mxu0 0.0
    %5648 = vmatpush1.msra.mxu0 0.0
    %5649 = vmatprep.subr.mxu0 0.0
    %5650 = vmatpush1.msra.mxu0 0.0
    %5651 = vmatprep.subr.mxu0 0.0
    %5652 = vmatpush1.msra.mxu0 0.0
    %5653 = vmatprep.subr.mxu0 0.0
    %5654 = vmatpush1.msra.mxu0 0.0
    %5655 = vmatprep.subr.mxu0 0.0
    %5656 = vmatpush1.msra.mxu0 0.0
    %5657 = vmatprep.subr.mxu0 0.0
    %5658 = vmatpush1.msra.mxu0 0.0
    %5659 = vmatprep.subr.mxu0 0.0
    %5660 = vmatpush1.msra.mxu0 0.0
    %5661 = vmatprep.subr.mxu0 0.0
    %5662 = vmatpush1.msra.mxu0 0.0
    %5663 = vmatprep.subr.mxu0 0.0
    %5664 = vmatpush1.msra.mxu0 0.0
    %5665 = vmatprep.subr.mxu0 0.0
    %5666 = vmatpush1.msra.mxu0 0.0
    %5667 = vmatprep.subr.mxu0 0.0
    %5668 = vmatpush1.msra.mxu0 0.0
    %5669 = vmatprep.subr.mxu0 0.0
    %5670 = vmatpush1.msra.mxu0 0.0
    %5671 = vmatprep.subr.mxu0 0.0
    %5672 = vmatpush1.msra.mxu0 0.0
    %5673 = vmatprep.subr.mxu0 0.0
    %5674 = vmatpush1.msra.mxu0 0.0
    %5675 = vmatprep.subr.mxu0 0.0
    %5676 = vmatpush1.msra.mxu0 0.0
    %5677 = vmatprep.subr.mxu0 0.0
    %5678 = vmatpush1.msra.mxu0 0.0
    %5679 = vmatprep.subr.mxu0 0.0
    %5680 = vmatpush1.msra.mxu0 0.0
    %5681 = vmatprep.subr.mxu0 0.0
    %5682 = vmatpush1.msra.mxu0 0.0
    %5683 = vmatprep.subr.mxu0 0.0
    %5684 = vmatpush1.msra.mxu0 0.0
    %5685 = vmatprep.subr.mxu0 0.0
    %5686 = vmatpush1.msra.mxu0 0.0
    %5687 = vmatprep.subr.mxu0 0.0
    %5688 = vmatpush1.msra.mxu0 0.0
    %5689 = vmatprep.subr.mxu0 0.0
    %5690 = vmatpush1.msra.mxu0 0.0
    %5691 = vmatprep.subr.mxu0 0.0
    %5692 = vmatpush1.msra.mxu0 0.0
    %5693 = vmatprep.subr.mxu0 0.0
    %5694 = vmatpush1.msra.mxu0 0.0
    %5695 = vmatprep.subr.mxu0 0.0
    %5696 = vmatpush1.msra.mxu0 0.0
    %5697 = vmatprep.subr.mxu0 0.0
    %5698 = vmatpush1.msra.mxu0 0.0
    %5699 = vmatprep.subr.mxu0 0.0
    %5700 = vmatpush1.msra.mxu0 0.0
    %5701 = vmatprep.subr.mxu0 0.0
    %5702 = vmatpush1.msra.mxu0 0.0
    %5703 = vmatprep.mubr.f32.mxu0 0.0
    %5704 = vmatmul.mubr.f32.gmra.mrb[0].mxu0 %v5206
    %v5705 = vpop.f32.mrb[0].mxu0
    %v5706 = vadd.f32 0.0, %v5705
    %v5707 = vpop.f32.mrb[0].mxu0
    %5708 = vdwg.mxu0
    %v5709 = vadd.f32 %v5423, %v5706
    %v5710 = vadd.f32 %v5709, %v185
    %5711 = vmatprep.subr.mxu0 0.0
    %5712 = vmatpush1.msra.mxu0 %v110
    %5713 = vmatprep.subr.mxu0 0.0
    %5714 = vmatpush1.msra.mxu0 %v111
    %5715 = vmatprep.subr.mxu0 0.0
    %5716 = vmatpush1.msra.mxu0 %v112
    %5717 = vmatprep.subr.mxu0 0.0
    %5718 = vmatpush1.msra.mxu0 %v113
    %5719 = vmatprep.subr.mxu0 0.0
    %5720 = vmatpush1.msra.mxu0 0.0
    %5721 = vmatprep.subr.mxu0 0.0
    %5722 = vmatpush1.msra.mxu0 0.0
    %5723 = vmatprep.subr.mxu0 0.0
    %5724 = vmatpush1.msra.mxu0 0.0
    %5725 = vmatprep.subr.mxu0 0.0
    %5726 = vmatpush1.msra.mxu0 0.0
    %5727 = vmatprep.subr.mxu0 0.0
    %5728 = vmatpush1.msra.mxu0 0.0
    %5729 = vmatprep.subr.mxu0 0.0
    %5730 = vmatpush1.msra.mxu0 0.0
    %5731 = vmatprep.subr.mxu0 0.0
    %5732 = vmatpush1.msra.mxu0 0.0
    %5733 = vmatprep.subr.mxu0 0.0
    %5734 = vmatpush1.msra.mxu0 0.0
    %5735 = vmatprep.subr.mxu0 0.0
    %5736 = vmatpush1.msra.mxu0 0.0
    %5737 = vmatprep.subr.mxu0 0.0
    %5738 = vmatpush1.msra.mxu0 0.0
    %5739 = vmatprep.subr.mxu0 0.0
    %5740 = vmatpush1.msra.mxu0 0.0
    %5741 = vmatprep.subr.mxu0 0.0
    %5742 = vmatpush1.msra.mxu0 0.0
    %5743 = vmatprep.subr.mxu0 0.0
    %5744 = vmatpush1.msra.mxu0 0.0
    %5745 = vmatprep.subr.mxu0 0.0
    %5746 = vmatpush1.msra.mxu0 0.0
    %5747 = vmatprep.subr.mxu0 0.0
    %5748 = vmatpush1.msra.mxu0 0.0
    %5749 = vmatprep.subr.mxu0 0.0
    %5750 = vmatpush1.msra.mxu0 0.0
    %5751 = vmatprep.subr.mxu0 0.0
    %5752 = vmatpush1.msra.mxu0 0.0
    %5753 = vmatprep.subr.mxu0 0.0
    %5754 = vmatpush1.msra.mxu0 0.0
    %5755 = vmatprep.subr.mxu0 0.0
    %5756 = vmatpush1.msra.mxu0 0.0
    %5757 = vmatprep.subr.mxu0 0.0
    %5758 = vmatpush1.msra.mxu0 0.0
    %5759 = vmatprep.subr.mxu0 0.0
    %5760 = vmatpush1.msra.mxu0 0.0
    %5761 = vmatprep.subr.mxu0 0.0
    %5762 = vmatpush1.msra.mxu0 0.0
    %5763 = vmatprep.subr.mxu0 0.0
    %5764 = vmatpush1.msra.mxu0 0.0
    %5765 = vmatprep.subr.mxu0 0.0
    %5766 = vmatpush1.msra.mxu0 0.0
    %5767 = vmatprep.subr.mxu0 0.0
    %5768 = vmatpush1.msra.mxu0 0.0
    %5769 = vmatprep.subr.mxu0 0.0
    %5770 = vmatpush1.msra.mxu0 0.0
    %5771 = vmatprep.subr.mxu0 0.0
    %5772 = vmatpush1.msra.mxu0 0.0
    %5773 = vmatprep.subr.mxu0 0.0
    %5774 = vmatpush1.msra.mxu0 0.0
    %5775 = vmatprep.mubr.f32.mxu0 0.0
    %5776 = vmatmul.mubr.f32.gmra.mrb[0].mxu0 %v5206
    %v5777 = vpop.f32.mrb[0].mxu0
    %v5778 = vadd.f32 0.0, %v5777
    %v5779 = vpop.f32.mrb[0].mxu0
    %5780 = vdwg.mxu0
    %v5781 = vadd.f32 %v5494, %v5778
    %v5782 = vadd.f32 %v5781, %v193
    %v5783 = vxor.u32 %v5566, 2147483648
    %v5784 = vmul.f32 %v5783, 1.442695
    %v5785 = vpow.pop %v5784
    %v5786 = vadd.f32 %v5785, 1.0
    %v5787 = vrcp.pop %v5786
    %v5788 = vmul.f32 1.0, %v5787
    %v5789 = vxor.u32 %v5638, 2147483648
    %v5790 = vmul.f32 %v5789, 1.442695
    %v5791 = vpow.pop %v5790
    %v5792 = vadd.f32 %v5791, 1.0
    %v5793 = vrcp.pop %v5792
    %v5794 = vmul.f32 1.0, %v5793
    %v5795 = vtanh.pop %v5710
    %v5796 = vxor.u32 %v5782, 2147483648
    %v5797 = vmul.f32 %v5796, 1.442695
    %v5798 = vpow.pop %v5797
    %v5799 = vadd.f32 %v5798, 1.0
    %v5800 = vrcp.pop %v5799
    %v5801 = vmul.f32 1.0, %v5800
    %v5802 = vmul.f32 %v5794, %v5200
    %v5803 = vmul.f32 %v5788, %v5795
    %v5804 = vadd.f32 %v5802, %v5803
    %v5805 = vtanh.pop %v5804
    %v5806 = vmul.f32 %v5801, %v5805
    %s5807 = sld [smem:[#allocation3 + $0x4]]
    %p5808 = scmp.ne.s32.totalorder %s5807, 0
    %v5810 = vsel %vm1167, %v5806, 0
    %5812 = vmatprep.subr.mxu0 0.0
    %5813 = vmatpush1.msra.mxu0 %v114
    %5814 = vmatprep.subr.mxu0 0.0
    %5815 = vmatpush1.msra.mxu0 %v115
    %5816 = vmatprep.subr.mxu0 0.0
    %5817 = vmatpush1.msra.mxu0 %v116
    %5818 = vmatprep.subr.mxu0 0.0
    %5819 = vmatpush1.msra.mxu0 %v117
    %5820 = vmatprep.subr.mxu0 0.0
    %5821 = vmatpush1.msra.mxu0 0.0
    %5822 = vmatprep.subr.mxu0 0.0
    %5823 = vmatpush1.msra.mxu0 0.0
    %5824 = vmatprep.subr.mxu0 0.0
    %5825 = vmatpush1.msra.mxu0 0.0
    %5826 = vmatprep.subr.mxu0 0.0
    %5827 = vmatpush1.msra.mxu0 0.0
    %5828 = vmatprep.subr.mxu0 0.0
    %5829 = vmatpush1.msra.mxu0 0.0
    %5830 = vmatprep.subr.mxu0 0.0
    %5831 = vmatpush1.msra.mxu0 0.0
    %5832 = vmatprep.subr.mxu0 0.0
    %5833 = vmatpush1.msra.mxu0 0.0
    %5834 = vmatprep.subr.mxu0 0.0
    %5835 = vmatpush1.msra.mxu0 0.0
    %5836 = vmatprep.subr.mxu0 0.0
    %5837 = vmatpush1.msra.mxu0 0.0
    %5838 = vmatprep.subr.mxu0 0.0
    %5839 = vmatpush1.msra.mxu0 0.0
    %5840 = vmatprep.subr.mxu0 0.0
    %5841 = vmatpush1.msra.mxu0 0.0
    %5842 = vmatprep.subr.mxu0 0.0
    %5843 = vmatpush1.msra.mxu0 0.0
    %5844 = vmatprep.subr.mxu0 0.0
    %5845 = vmatpush1.msra.mxu0 0.0
    %5846 = vmatprep.subr.mxu0 0.0
    %5847 = vmatpush1.msra.mxu0 0.0
    %5848 = vmatprep.subr.mxu0 0.0
    %5849 = vmatpush1.msra.mxu0 0.0
    %5850 = vmatprep.subr.mxu0 0.0
    %5851 = vmatpush1.msra.mxu0 0.0
    %5852 = vmatprep.subr.mxu0 0.0
    %5853 = vmatpush1.msra.mxu0 0.0
    %5854 = vmatprep.subr.mxu0 0.0
    %5855 = vmatpush1.msra.mxu0 0.0
    %5856 = vmatprep.subr.mxu0 0.0
    %5857 = vmatpush1.msra.mxu0 0.0
    %5858 = vmatprep.subr.mxu0 0.0
    %5859 = vmatpush1.msra.mxu0 0.0
    %5860 = vmatprep.subr.mxu0 0.0
    %5861 = vmatpush1.msra.mxu0 0.0
    %5862 = vmatprep.subr.mxu0 0.0
    %5863 = vmatpush1.msra.mxu0 0.0
    %5864 = vmatprep.subr.mxu0 0.0
    %5865 = vmatpush1.msra.mxu0 0.0
    %5866 = vmatprep.subr.mxu0 0.0
    %5867 = vmatpush1.msra.mxu0 0.0
    %5868 = vmatprep.subr.mxu0 0.0
    %5869 = vmatpush1.msra.mxu0 0.0
    %5870 = vmatprep.subr.mxu0 0.0
    %5871 = vmatpush1.msra.mxu0 0.0
    %5872 = vmatprep.subr.mxu0 0.0
    %5873 = vmatpush1.msra.mxu0 0.0
    %5874 = vmatprep.subr.mxu0 0.0
    %5875 = vmatpush1.msra.mxu0 0.0
    %5876 = vmatprep.mubr.f32.mxu0 0.0
    %5877 = vmatmul.mubr.f32.gmra.mrb[0].mxu0 %v5810
    %v5878 = vpop.f32.mrb[0].mxu0
    %v5879 = vadd.f32 %v200, %v5878
    %v5880 = vpop.f32.mrb[0].mxu0
    %5881 = vdwg.mxu0
    %s5882 = scalar_select %p5808, 1, 0
    %v5883 = vstv %s5882
    %vm5884 = vcmp.eq.s32.totalorder %v5883, 1
    %v5885 = vsel %vm5884, %v826, %v5879
    %5886 = vmatprep.subr.mxu0 0.0
    %5887 = vmatpush1.msra.mxu0 %v119
    %5888 = vmatprep.subr.mxu0 0.0
    %5889 = vmatpush1.msra.mxu0 %v120
    %5890 = vmatprep.subr.mxu0 0.0
    %5891 = vmatpush1.msra.mxu0 %v121
    %5892 = vmatprep.subr.mxu0 0.0
    %5893 = vmatpush1.msra.mxu0 %v122
    %5894 = vmatprep.subr.mxu0 0.0
    %5895 = vmatpush1.msra.mxu0 0.0
    %5896 = vmatprep.subr.mxu0 0.0
    %5897 = vmatpush1.msra.mxu0 0.0
    %5898 = vmatprep.subr.mxu0 0.0
    %5899 = vmatpush1.msra.mxu0 0.0
    %5900 = vmatprep.subr.mxu0 0.0
    %5901 = vmatpush1.msra.mxu0 0.0
    %5902 = vmatprep.subr.mxu0 0.0
    %5903 = vmatpush1.msra.mxu0 0.0
    %5904 = vmatprep.subr.mxu0 0.0
    %5905 = vmatpush1.msra.mxu0 0.0
    %5906 = vmatprep.subr.mxu0 0.0
    %5907 = vmatpush1.msra.mxu0 0.0
    %5908 = vmatprep.subr.mxu0 0.0
    %5909 = vmatpush1.msra.mxu0 0.0
    %5910 = vmatprep.subr.mxu0 0.0
    %5911 = vmatpush1.msra.mxu0 0.0
    %5912 = vmatprep.subr.mxu0 0.0
    %5913 = vmatpush1.msra.mxu0 0.0
    %5914 = vmatprep.subr.mxu0 0.0
    %5915 = vmatpush1.msra.mxu0 0.0
    %5916 = vmatprep.subr.mxu0 0.0
    %5917 = vmatpush1.msra.mxu0 0.0
    %5918 = vmatprep.subr.mxu0 0.0
    %5919 = vmatpush1.msra.mxu0 0.0
    %5920 = vmatprep.subr.mxu0 0.0
    %5921 = vmatpush1.msra.mxu0 0.0
    %5922 = vmatprep.subr.mxu0 0.0
    %5923 = vmatpush1.msra.mxu0 0.0
    %5924 = vmatprep.subr.mxu0 0.0
    %5925 = vmatpush1.msra.mxu0 0.0
    %5926 = vmatprep.subr.mxu0 0.0
    %5927 = vmatpush1.msra.mxu0 0.0
    %5928 = vmatprep.subr.mxu0 0.0
    %5929 = vmatpush1.msra.mxu0 0.0
    %5930 = vmatprep.subr.mxu0 0.0
    %5931 = vmatpush1.msra.mxu0 0.0
    %5932 = vmatprep.subr.mxu0 0.0
    %5933 = vmatpush1.msra.mxu0 0.0
    %5934 = vmatprep.subr.mxu0 0.0
    %5935 = vmatpush1.msra.mxu0 0.0
    %5936 = vmatprep.subr.mxu0 0.0
    %5937 = vmatpush1.msra.mxu0 0.0
    %5938 = vmatprep.subr.mxu0 0.0
    %5939 = vmatpush1.msra.mxu0 0.0
    %5940 = vmatprep.subr.mxu0 0.0
    %5941 = vmatpush1.msra.mxu0 0.0
    %5942 = vmatprep.subr.mxu0 0.0
    %5943 = vmatpush1.msra.mxu0 0.0
    %5944 = vmatprep.subr.mxu0 0.0
    %5945 = vmatpush1.msra.mxu0 0.0
    %5946 = vmatprep.subr.mxu0 0.0
    %5947 = vmatpush1.msra.mxu0 0.0
    %5948 = vmatprep.subr.mxu0 0.0
    %5949 = vmatpush1.msra.mxu0 0.0
    %5950 = vmatprep.mubr.f32.mxu0 0.0
    %5951 = vmatmul.mubr.f32.gmra.mrb[0].mxu0 %v5810
    %v5952 = vpop.f32.mrb[0].mxu0
    %v5953 = vadd.f32 %v208, %v5952
    %v5954 = vpop.f32.mrb[0].mxu0
    %5955 = vdwg.mxu0
    %v5956 = vsel %vm5884, %v934, %v5953
    %5957 = vmatprep.subr.mxu0 0.0
    %5958 = vmatpush1.msra.mxu0 %v124
    %5959 = vmatprep.subr.mxu0 0.0
    %5960 = vmatpush1.msra.mxu0 %v125
    %5961 = vmatprep.subr.mxu0 0.0
    %5962 = vmatpush1.msra.mxu0 %v126
    %5963 = vmatprep.subr.mxu0 0.0
    %5964 = vmatpush1.msra.mxu0 %v127
    %5965 = vmatprep.subr.mxu0 0.0
    %5966 = vmatpush1.msra.mxu0 0.0
    %5967 = vmatprep.subr.mxu0 0.0
    %5968 = vmatpush1.msra.mxu0 0.0
    %5969 = vmatprep.subr.mxu0 0.0
    %5970 = vmatpush1.msra.mxu0 0.0
    %5971 = vmatprep.subr.mxu0 0.0
    %5972 = vmatpush1.msra.mxu0 0.0
    %5973 = vmatprep.subr.mxu0 0.0
    %5974 = vmatpush1.msra.mxu0 0.0
    %5975 = vmatprep.subr.mxu0 0.0
    %5976 = vmatpush1.msra.mxu0 0.0
    %5977 = vmatprep.subr.mxu0 0.0
    %5978 = vmatpush1.msra.mxu0 0.0
    %5979 = vmatprep.subr.mxu0 0.0
    %5980 = vmatpush1.msra.mxu0 0.0
    %5981 = vmatprep.subr.mxu0 0.0
    %5982 = vmatpush1.msra.mxu0 0.0
    %5983 = vmatprep.subr.mxu0 0.0
    %5984 = vmatpush1.msra.mxu0 0.0
    %5985 = vmatprep.subr.mxu0 0.0
    %5986 = vmatpush1.msra.mxu0 0.0
    %5987 = vmatprep.subr.mxu0 0.0
    %5988 = vmatpush1.msra.mxu0 0.0
    %5989 = vmatprep.subr.mxu0 0.0
    %5990 = vmatpush1.msra.mxu0 0.0
    %5991 = vmatprep.subr.mxu0 0.0
    %5992 = vmatpush1.msra.mxu0 0.0
    %5993 = vmatprep.subr.mxu0 0.0
    %5994 = vmatpush1.msra.mxu0 0.0
    %5995 = vmatprep.subr.mxu0 0.0
    %5996 = vmatpush1.msra.mxu0 0.0
    %5997 = vmatprep.subr.mxu0 0.0
    %5998 = vmatpush1.msra.mxu0 0.0
    %5999 = vmatprep.subr.mxu0 0.0
    %6000 = vmatpush1.msra.mxu0 0.0
    %6001 = vmatprep.subr.mxu0 0.0
    %6002 = vmatpush1.msra.mxu0 0.0
    %6003 = vmatprep.subr.mxu0 0.0
    %6004 = vmatpush1.msra.mxu0 0.0
    %6005 = vmatprep.subr.mxu0 0.0
    %6006 = vmatpush1.msra.mxu0 0.0
    %6007 = vmatprep.subr.mxu0 0.0
    %6008 = vmatpush1.msra.mxu0 0.0
    %6009 = vmatprep.subr.mxu0 0.0
    %6010 = vmatpush1.msra.mxu0 0.0
    %6011 = vmatprep.subr.mxu0 0.0
    %6012 = vmatpush1.msra.mxu0 0.0
    %6013 = vmatprep.subr.mxu0 0.0
    %6014 = vmatpush1.msra.mxu0 0.0
    %6015 = vmatprep.subr.mxu0 0.0
    %6016 = vmatpush1.msra.mxu0 0.0
    %6017 = vmatprep.subr.mxu0 0.0
    %6018 = vmatpush1.msra.mxu0 0.0
    %6019 = vmatprep.subr.mxu0 0.0
    %6020 = vmatpush1.msra.mxu0 0.0
    %6021 = vmatprep.mubr.f32.mxu0 0.0
    %6022 = vmatmul.mubr.f32.gmra.mrb[0].mxu0 %v5810
    %v6023 = vpop.f32.mrb[0].mxu0
    %v6024 = vadd.f32 %v216, %v6023
    %v6025 = vpop.f32.mrb[0].mxu0
    %6026 = vdwg.mxu0
    %v6027 = vsel %vm5884, %v1042, %v6024
    %6028 = vmatprep.subr.mxu0 0.0
    %6029 = vmatpush1.msra.mxu0 %v129
    %6030 = vmatprep.subr.mxu0 0.0
    %6031 = vmatpush1.msra.mxu0 %v130
    %6032 = vmatprep.subr.mxu0 0.0
    %6033 = vmatpush1.msra.mxu0 %v131
    %6034 = vmatprep.subr.mxu0 0.0
    %6035 = vmatpush1.msra.mxu0 %v132
    %6036 = vmatprep.subr.mxu0 0.0
    %6037 = vmatpush1.msra.mxu0 0.0
    %6038 = vmatprep.subr.mxu0 0.0
    %6039 = vmatpush1.msra.mxu0 0.0
    %6040 = vmatprep.subr.mxu0 0.0
    %6041 = vmatpush1.msra.mxu0 0.0
    %6042 = vmatprep.subr.mxu0 0.0
    %6043 = vmatpush1.msra.mxu0 0.0
    %6044 = vmatprep.subr.mxu0 0.0
    %6045 = vmatpush1.msra.mxu0 0.0
    %6046 = vmatprep.subr.mxu0 0.0
    %6047 = vmatpush1.msra.mxu0 0.0
    %6048 = vmatprep.subr.mxu0 0.0
    %6049 = vmatpush1.msra.mxu0 0.0
    %6050 = vmatprep.subr.mxu0 0.0
    %6051 = vmatpush1.msra.mxu0 0.0
    %6052 = vmatprep.subr.mxu0 0.0
    %6053 = vmatpush1.msra.mxu0 0.0
    %6054 = vmatprep.subr.mxu0 0.0
    %6055 = vmatpush1.msra.mxu0 0.0
    %6056 = vmatprep.subr.mxu0 0.0
    %6057 = vmatpush1.msra.mxu0 0.0
    %6058 = vmatprep.subr.mxu0 0.0
    %6059 = vmatpush1.msra.mxu0 0.0
    %6060 = vmatprep.subr.mxu0 0.0
    %6061 = vmatpush1.msra.mxu0 0.0
    %6062 = vmatprep.subr.mxu0 0.0
    %6063 = vmatpush1.msra.mxu0 0.0
    %6064 = vmatprep.subr.mxu0 0.0
    %6065 = vmatpush1.msra.mxu0 0.0
    %6066 = vmatprep.subr.mxu0 0.0
    %6067 = vmatpush1.msra.mxu0 0.0
    %6068 = vmatprep.subr.mxu0 0.0
    %6069 = vmatpush1.msra.mxu0 0.0
    %6070 = vmatprep.subr.mxu0 0.0
    %6071 = vmatpush1.msra.mxu0 0.0
    %6072 = vmatprep.subr.mxu0 0.0
    %6073 = vmatpush1.msra.mxu0 0.0
    %6074 = vmatprep.subr.mxu0 0.0
    %6075 = vmatpush1.msra.mxu0 0.0
    %6076 = vmatprep.subr.mxu0 0.0
    %6077 = vmatpush1.msra.mxu0 0.0
    %6078 = vmatprep.subr.mxu0 0.0
    %6079 = vmatpush1.msra.mxu0 0.0
    %6080 = vmatprep.subr.mxu0 0.0
    %6081 = vmatpush1.msra.mxu0 0.0
    %6082 = vmatprep.subr.mxu0 0.0
    %6083 = vmatpush1.msra.mxu0 0.0
    %6084 = vmatprep.subr.mxu0 0.0
    %6085 = vmatpush1.msra.mxu0 0.0
    %6086 = vmatprep.subr.mxu0 0.0
    %6087 = vmatpush1.msra.mxu0 0.0
    %6088 = vmatprep.subr.mxu0 0.0
    %6089 = vmatpush1.msra.mxu0 0.0
    %6090 = vmatprep.subr.mxu0 0.0
    %6091 = vmatpush1.msra.mxu0 0.0
    %6092 = vmatprep.mubr.f32.mxu0 0.0
    %6093 = vmatmul.mubr.f32.gmra.mrb[0].mxu0 %v5810
    %v6094 = vpop.f32.mrb[0].mxu0
    %v6095 = vadd.f32 %v224, %v6094
    %v6096 = vpop.f32.mrb[0].mxu0
    %6097 = vdwg.mxu0
    %v6098 = vsel %vm5884, %v1150, %v6095
    %6099 = vmatprep.subr.mxu0 0.0
    %6100 = vmatpush1.msra.mxu0 %v95
    %6101 = vmatprep.subr.mxu0 0.0
    %6102 = vmatpush1.msra.mxu0 %v96
    %6103 = vmatprep.subr.mxu0 0.0
    %6104 = vmatpush1.msra.mxu0 %v97
    %6105 = vmatprep.subr.mxu0 0.0
    %6106 = vmatpush1.msra.mxu0 %v98
    %6107 = vmatprep.subr.mxu0 0.0
    %6108 = vmatpush1.msra.mxu0 0.0
    %6109 = vmatprep.subr.mxu0 0.0
    %6110 = vmatpush1.msra.mxu0 0.0
    %6111 = vmatprep.subr.mxu0 0.0
    %6112 = vmatpush1.msra.mxu0 0.0
    %6113 = vmatprep.subr.mxu0 0.0
    %6114 = vmatpush1.msra.mxu0 0.0
    %6115 = vmatprep.subr.mxu0 0.0
    %6116 = vmatpush1.msra.mxu0 0.0
    %6117 = vmatprep.subr.mxu0 0.0
    %6118 = vmatpush1.msra.mxu0 0.0
    %6119 = vmatprep.subr.mxu0 0.0
    %6120 = vmatpush1.msra.mxu0 0.0
    %6121 = vmatprep.subr.mxu0 0.0
    %6122 = vmatpush1.msra.mxu0 0.0
    %6123 = vmatprep.subr.mxu0 0.0
    %6124 = vmatpush1.msra.mxu0 0.0
    %6125 = vmatprep.subr.mxu0 0.0
    %6126 = vmatpush1.msra.mxu0 0.0
    %6127 = vmatprep.subr.mxu0 0.0
    %6128 = vmatpush1.msra.mxu0 0.0
    %6129 = vmatprep.subr.mxu0 0.0
    %6130 = vmatpush1.msra.mxu0 0.0
    %6131 = vmatprep.subr.mxu0 0.0
    %6132 = vmatpush1.msra.mxu0 0.0
    %6133 = vmatprep.subr.mxu0 0.0
    %6134 = vmatpush1.msra.mxu0 0.0
    %6135 = vmatprep.subr.mxu0 0.0
    %6136 = vmatpush1.msra.mxu0 0.0
    %6137 = vmatprep.subr.mxu0 0.0
    %6138 = vmatpush1.msra.mxu0 0.0
    %6139 = vmatprep.subr.mxu0 0.0
    %6140 = vmatpush1.msra.mxu0 0.0
    %6141 = vmatprep.subr.mxu0 0.0
    %6142 = vmatpush1.msra.mxu0 0.0
    %6143 = vmatprep.subr.mxu0 0.0
    %6144 = vmatpush1.msra.mxu0 0.0
    %6145 = vmatprep.subr.mxu0 0.0
    %6146 = vmatpush1.msra.mxu0 0.0
    %6147 = vmatprep.subr.mxu0 0.0
    %6148 = vmatpush1.msra.mxu0 0.0
    %6149 = vmatprep.subr.mxu0 0.0
    %6150 = vmatpush1.msra.mxu0 0.0
    %6151 = vmatprep.subr.mxu0 0.0
    %6152 = vmatpush1.msra.mxu0 0.0
    %6153 = vmatprep.subr.mxu0 0.0
    %6154 = vmatpush1.msra.mxu0 0.0
    %6155 = vmatprep.subr.mxu0 0.0
    %6156 = vmatpush1.msra.mxu0 0.0
    %6157 = vmatprep.subr.mxu0 0.0
    %6158 = vmatpush1.msra.mxu0 0.0
    %6159 = vmatprep.subr.mxu0 0.0
    %6160 = vmatpush1.msra.mxu0 0.0
    %6161 = vmatprep.subr.mxu0 0.0
    %6162 = vmatpush1.msra.mxu0 0.0
    %6163 = vmatprep.mubr.f32.mxu0 0.0
    %6164 = vmatmul.mubr.f32.gmra.mrb[0].mxu0 %v5810
    %v6165 = vpop.f32.mrb[0].mxu0
    %v6166 = vadd.f32 0.0, %v6165
    %v6167 = vpop.f32.mrb[0].mxu0
    %6168 = vdwg.mxu0
    %v6169 = vadd.f32 %v5885, %v6166
    %v6170 = vadd.f32 %v6169, %v169
    %6171 = vmatprep.subr.mxu0 0.0
    %6172 = vmatpush1.msra.mxu0 %v100
    %6173 = vmatprep.subr.mxu0 0.0
    %6174 = vmatpush1.msra.mxu0 %v101
    %6175 = vmatprep.subr.mxu0 0.0
    %6176 = vmatpush1.msra.mxu0 %v102
    %6177 = vmatprep.subr.mxu0 0.0
    %6178 = vmatpush1.msra.mxu0 %v103
    %6179 = vmatprep.subr.mxu0 0.0
    %6180 = vmatpush1.msra.mxu0 0.0
    %6181 = vmatprep.subr.mxu0 0.0
    %6182 = vmatpush1.msra.mxu0 0.0
    %6183 = vmatprep.subr.mxu0 0.0
    %6184 = vmatpush1.msra.mxu0 0.0
    %6185 = vmatprep.subr.mxu0 0.0
    %6186 = vmatpush1.msra.mxu0 0.0
    %6187 = vmatprep.subr.mxu0 0.0
    %6188 = vmatpush1.msra.mxu0 0.0
    %6189 = vmatprep.subr.mxu0 0.0
    %6190 = vmatpush1.msra.mxu0 0.0
    %6191 = vmatprep.subr.mxu0 0.0
    %6192 = vmatpush1.msra.mxu0 0.0
    %6193 = vmatprep.subr.mxu0 0.0
    %6194 = vmatpush1.msra.mxu0 0.0
    %6195 = vmatprep.subr.mxu0 0.0
    %6196 = vmatpush1.msra.mxu0 0.0
    %6197 = vmatprep.subr.mxu0 0.0
    %6198 = vmatpush1.msra.mxu0 0.0
    %6199 = vmatprep.subr.mxu0 0.0
    %6200 = vmatpush1.msra.mxu0 0.0
    %6201 = vmatprep.subr.mxu0 0.0
    %6202 = vmatpush1.msra.mxu0 0.0
    %6203 = vmatprep.subr.mxu0 0.0
    %6204 = vmatpush1.msra.mxu0 0.0
    %6205 = vmatprep.subr.mxu0 0.0
    %6206 = vmatpush1.msra.mxu0 0.0
    %6207 = vmatprep.subr.mxu0 0.0
    %6208 = vmatpush1.msra.mxu0 0.0
    %6209 = vmatprep.subr.mxu0 0.0
    %6210 = vmatpush1.msra.mxu0 0.0
    %6211 = vmatprep.subr.mxu0 0.0
    %6212 = vmatpush1.msra.mxu0 0.0
    %6213 = vmatprep.subr.mxu0 0.0
    %6214 = vmatpush1.msra.mxu0 0.0
    %6215 = vmatprep.subr.mxu0 0.0
    %6216 = vmatpush1.msra.mxu0 0.0
    %6217 = vmatprep.subr.mxu0 0.0
    %6218 = vmatpush1.msra.mxu0 0.0
    %6219 = vmatprep.subr.mxu0 0.0
    %6220 = vmatpush1.msra.mxu0 0.0
    %6221 = vmatprep.subr.mxu0 0.0
    %6222 = vmatpush1.msra.mxu0 0.0
    %6223 = vmatprep.subr.mxu0 0.0
    %6224 = vmatpush1.msra.mxu0 0.0
    %6225 = vmatprep.subr.mxu0 0.0
    %6226 = vmatpush1.msra.mxu0 0.0
    %6227 = vmatprep.subr.mxu0 0.0
    %6228 = vmatpush1.msra.mxu0 0.0
    %6229 = vmatprep.subr.mxu0 0.0
    %6230 = vmatpush1.msra.mxu0 0.0
    %6231 = vmatprep.subr.mxu0 0.0
    %6232 = vmatpush1.msra.mxu0 0.0
    %6233 = vmatprep.subr.mxu0 0.0
    %6234 = vmatpush1.msra.mxu0 0.0
    %6235 = vmatprep.mubr.f32.mxu0 0.0
    %6236 = vmatmul.mubr.f32.gmra.mrb[0].mxu0 %v5810
    %v6237 = vpop.f32.mrb[0].mxu0
    %v6238 = vadd.f32 0.0, %v6237
    %v6239 = vpop.f32.mrb[0].mxu0
    %6240 = vdwg.mxu0
    %v6241 = vadd.f32 %v5956, %v6238
    %v6242 = vadd.f32 %v6241, %v177
    %6243 = vmatprep.subr.mxu0 0.0
    %6244 = vmatpush1.msra.mxu0 %v105
    %6245 = vmatprep.subr.mxu0 0.0
    %6246 = vmatpush1.msra.mxu0 %v106
    %6247 = vmatprep.subr.mxu0 0.0
    %6248 = vmatpush1.msra.mxu0 %v107
    %6249 = vmatprep.subr.mxu0 0.0
    %6250 = vmatpush1.msra.mxu0 %v108
    %6251 = vmatprep.subr.mxu0 0.0
    %6252 = vmatpush1.msra.mxu0 0.0
    %6253 = vmatprep.subr.mxu0 0.0
    %6254 = vmatpush1.msra.mxu0 0.0
    %6255 = vmatprep.subr.mxu0 0.0
    %6256 = vmatpush1.msra.mxu0 0.0
    %6257 = vmatprep.subr.mxu0 0.0
    %6258 = vmatpush1.msra.mxu0 0.0
    %6259 = vmatprep.subr.mxu0 0.0
    %6260 = vmatpush1.msra.mxu0 0.0
    %6261 = vmatprep.subr.mxu0 0.0
    %6262 = vmatpush1.msra.mxu0 0.0
    %6263 = vmatprep.subr.mxu0 0.0
    %6264 = vmatpush1.msra.mxu0 0.0
    %6265 = vmatprep.subr.mxu0 0.0
    %6266 = vmatpush1.msra.mxu0 0.0
    %6267 = vmatprep.subr.mxu0 0.0
    %6268 = vmatpush1.msra.mxu0 0.0
    %6269 = vmatprep.subr.mxu0 0.0
    %6270 = vmatpush1.msra.mxu0 0.0
    %6271 = vmatprep.subr.mxu0 0.0
    %6272 = vmatpush1.msra.mxu0 0.0
    %6273 = vmatprep.subr.mxu0 0.0
    %6274 = vmatpush1.msra.mxu0 0.0
    %6275 = vmatprep.subr.mxu0 0.0
    %6276 = vmatpush1.msra.mxu0 0.0
    %6277 = vmatprep.subr.mxu0 0.0
    %6278 = vmatpush1.msra.mxu0 0.0
    %6279 = vmatprep.subr.mxu0 0.0
    %6280 = vmatpush1.msra.mxu0 0.0
    %6281 = vmatprep.subr.mxu0 0.0
    %6282 = vmatpush1.msra.mxu0 0.0
    %6283 = vmatprep.subr.mxu0 0.0
    %6284 = vmatpush1.msra.mxu0 0.0
    %6285 = vmatprep.subr.mxu0 0.0
    %6286 = vmatpush1.msra.mxu0 0.0
    %6287 = vmatprep.subr.mxu0 0.0
    %6288 = vmatpush1.msra.mxu0 0.0
    %6289 = vmatprep.subr.mxu0 0.0
    %6290 = vmatpush1.msra.mxu0 0.0
    %6291 = vmatprep.subr.mxu0 0.0
    %6292 = vmatpush1.msra.mxu0 0.0
    %6293 = vmatprep.subr.mxu0 0.0
    %6294 = vmatpush1.msra.mxu0 0.0
    %6295 = vmatprep.subr.mxu0 0.0
    %6296 = vmatpush1.msra.mxu0 0.0
    %6297 = vmatprep.subr.mxu0 0.0
    %6298 = vmatpush1.msra.mxu0 0.0
    %6299 = vmatprep.subr.mxu0 0.0
    %6300 = vmatpush1.msra.mxu0 0.0
    %6301 = vmatprep.subr.mxu0 0.0
    %6302 = vmatpush1.msra.mxu0 0.0
    %6303 = vmatprep.subr.mxu0 0.0
    %6304 = vmatpush1.msra.mxu0 0.0
    %6305 = vmatprep.subr.mxu0 0.0
    %6306 = vmatpush1.msra.mxu0 0.0
    %6307 = vmatprep.mubr.f32.mxu0 0.0
    %6308 = vmatmul.mubr.f32.gmra.mrb[0].mxu0 %v5810
    %v6309 = vpop.f32.mrb[0].mxu0
    %v6310 = vadd.f32 0.0, %v6309
    %v6311 = vpop.f32.mrb[0].mxu0
    %6312 = vdwg.mxu0
    %v6313 = vadd.f32 %v6027, %v6310
    %v6314 = vadd.f32 %v6313, %v185
    %6315 = vmatprep.subr.mxu0 0.0
    %6316 = vmatpush1.msra.mxu0 %v110
    %6317 = vmatprep.subr.mxu0 0.0
    %6318 = vmatpush1.msra.mxu0 %v111
    %6319 = vmatprep.subr.mxu0 0.0
    %6320 = vmatpush1.msra.mxu0 %v112
    %6321 = vmatprep.subr.mxu0 0.0
    %6322 = vmatpush1.msra.mxu0 %v113
    %6323 = vmatprep.subr.mxu0 0.0
    %6324 = vmatpush1.msra.mxu0 0.0
    %6325 = vmatprep.subr.mxu0 0.0
    %6326 = vmatpush1.msra.mxu0 0.0
    %6327 = vmatprep.subr.mxu0 0.0
    %6328 = vmatpush1.msra.mxu0 0.0
    %6329 = vmatprep.subr.mxu0 0.0
    %6330 = vmatpush1.msra.mxu0 0.0
    %6331 = vmatprep.subr.mxu0 0.0
    %6332 = vmatpush1.msra.mxu0 0.0
    %6333 = vmatprep.subr.mxu0 0.0
    %6334 = vmatpush1.msra.mxu0 0.0
    %6335 = vmatprep.subr.mxu0 0.0
    %6336 = vmatpush1.msra.mxu0 0.0
    %6337 = vmatprep.subr.mxu0 0.0
    %6338 = vmatpush1.msra.mxu0 0.0
    %6339 = vmatprep.subr.mxu0 0.0
    %6340 = vmatpush1.msra.mxu0 0.0
    %6341 = vmatprep.subr.mxu0 0.0
    %6342 = vmatpush1.msra.mxu0 0.0
    %6343 = vmatprep.subr.mxu0 0.0
    %6344 = vmatpush1.msra.mxu0 0.0
    %6345 = vmatprep.subr.mxu0 0.0
    %6346 = vmatpush1.msra.mxu0 0.0
    %6347 = vmatprep.subr.mxu0 0.0
    %6348 = vmatpush1.msra.mxu0 0.0
    %6349 = vmatprep.subr.mxu0 0.0
    %6350 = vmatpush1.msra.mxu0 0.0
    %6351 = vmatprep.subr.mxu0 0.0
    %6352 = vmatpush1.msra.mxu0 0.0
    %6353 = vmatprep.subr.mxu0 0.0
    %6354 = vmatpush1.msra.mxu0 0.0
    %6355 = vmatprep.subr.mxu0 0.0
    %6356 = vmatpush1.msra.mxu0 0.0
    %6357 = vmatprep.subr.mxu0 0.0
    %6358 = vmatpush1.msra.mxu0 0.0
    %6359 = vmatprep.subr.mxu0 0.0
    %6360 = vmatpush1.msra.mxu0 0.0
    %6361 = vmatprep.subr.mxu0 0.0
    %6362 = vmatpush1.msra.mxu0 0.0
    %6363 = vmatprep.subr.mxu0 0.0
    %6364 = vmatpush1.msra.mxu0 0.0
    %6365 = vmatprep.subr.mxu0 0.0
    %6366 = vmatpush1.msra.mxu0 0.0
    %6367 = vmatprep.subr.mxu0 0.0
    %6368 = vmatpush1.msra.mxu0 0.0
    %6369 = vmatprep.subr.mxu0 0.0
    %6370 = vmatpush1.msra.mxu0 0.0
    %6371 = vmatprep.subr.mxu0 0.0
    %6372 = vmatpush1.msra.mxu0 0.0
    %6373 = vmatprep.subr.mxu0 0.0
    %6374 = vmatpush1.msra.mxu0 0.0
    %6375 = vmatprep.subr.mxu0 0.0
    %6376 = vmatpush1.msra.mxu0 0.0
    %6377 = vmatprep.subr.mxu0 0.0
    %6378 = vmatpush1.msra.mxu0 0.0
    %6379 = vmatprep.mubr.f32.mxu0 0.0
    %6380 = vmatmul.mubr.f32.gmra.mrb[0].mxu0 %v5810
    %v6381 = vpop.f32.mrb[0].mxu0
    %v6382 = vadd.f32 0.0, %v6381
    %v6383 = vpop.f32.mrb[0].mxu0
    %6384 = vdwg.mxu0
    %v6385 = vadd.f32 %v6098, %v6382
    %v6386 = vadd.f32 %v6385, %v193
    %v6387 = vxor.u32 %v6170, 2147483648
    %v6388 = vmul.f32 %v6387, 1.442695
    %v6389 = vpow.pop %v6388
    %v6390 = vadd.f32 %v6389, 1.0
    %v6391 = vrcp.pop %v6390
    %v6392 = vmul.f32 1.0, %v6391
    %v6393 = vxor.u32 %v6242, 2147483648
    %v6394 = vmul.f32 %v6393, 1.442695
    %v6395 = vpow.pop %v6394
    %v6396 = vadd.f32 %v6395, 1.0
    %v6397 = vrcp.pop %v6396
    %v6398 = vmul.f32 1.0, %v6397
    %v6399 = vtanh.pop %v6314
    %v6400 = vxor.u32 %v6386, 2147483648
    %v6401 = vmul.f32 %v6400, 1.442695
    %v6402 = vpow.pop %v6401
    %v6403 = vadd.f32 %v6402, 1.0
    %v6404 = vrcp.pop %v6403
    %v6405 = vmul.f32 1.0, %v6404
    %v6406 = vmul.f32 %v6398, %v5804
    %v6407 = vmul.f32 %v6392, %v6399
    %v6408 = vadd.f32 %v6406, %v6407
    %v6409 = vtanh.pop %v6408
    %v6410 = vmul.f32 %v6405, %v6409
    %s6411 = sld [smem:[#allocation3 + $0x5]]
    %p6412 = scmp.ne.s32.totalorder %s6411, 0
    %v6414 = vsel %vm1167, %v6410, 0
    %6416 = vmatprep.subr.mxu0 0.0
    %6417 = vmatpush1.msra.mxu0 %v114
    %6418 = vmatprep.subr.mxu0 0.0
    %6419 = vmatpush1.msra.mxu0 %v115
    %6420 = vmatprep.subr.mxu0 0.0
    %6421 = vmatpush1.msra.mxu0 %v116
    %6422 = vmatprep.subr.mxu0 0.0
    %6423 = vmatpush1.msra.mxu0 %v117
    %6424 = vmatprep.subr.mxu0 0.0
    %6425 = vmatpush1.msra.mxu0 0.0
    %6426 = vmatprep.subr.mxu0 0.0
    %6427 = vmatpush1.msra.mxu0 0.0
    %6428 = vmatprep.subr.mxu0 0.0
    %6429 = vmatpush1.msra.mxu0 0.0
    %6430 = vmatprep.subr.mxu0 0.0
    %6431 = vmatpush1.msra.mxu0 0.0
    %6432 = vmatprep.subr.mxu0 0.0
    %6433 = vmatpush1.msra.mxu0 0.0
    %6434 = vmatprep.subr.mxu0 0.0
    %6435 = vmatpush1.msra.mxu0 0.0
    %6436 = vmatprep.subr.mxu0 0.0
    %6437 = vmatpush1.msra.mxu0 0.0
    %6438 = vmatprep.subr.mxu0 0.0
    %6439 = vmatpush1.msra.mxu0 0.0
    %6440 = vmatprep.subr.mxu0 0.0
    %6441 = vmatpush1.msra.mxu0 0.0
    %6442 = vmatprep.subr.mxu0 0.0
    %6443 = vmatpush1.msra.mxu0 0.0
    %6444 = vmatprep.subr.mxu0 0.0
    %6445 = vmatpush1.msra.mxu0 0.0
    %6446 = vmatprep.subr.mxu0 0.0
    %6447 = vmatpush1.msra.mxu0 0.0
    %6448 = vmatprep.subr.mxu0 0.0
    %6449 = vmatpush1.msra.mxu0 0.0
    %6450 = vmatprep.subr.mxu0 0.0
    %6451 = vmatpush1.msra.mxu0 0.0
    %6452 = vmatprep.subr.mxu0 0.0
    %6453 = vmatpush1.msra.mxu0 0.0
    %6454 = vmatprep.subr.mxu0 0.0
    %6455 = vmatpush1.msra.mxu0 0.0
    %6456 = vmatprep.subr.mxu0 0.0
    %6457 = vmatpush1.msra.mxu0 0.0
    %6458 = vmatprep.subr.mxu0 0.0
    %6459 = vmatpush1.msra.mxu0 0.0
    %6460 = vmatprep.subr.mxu0 0.0
    %6461 = vmatpush1.msra.mxu0 0.0
    %6462 = vmatprep.subr.mxu0 0.0
    %6463 = vmatpush1.msra.mxu0 0.0
    %6464 = vmatprep.subr.mxu0 0.0
    %6465 = vmatpush1.msra.mxu0 0.0
    %6466 = vmatprep.subr.mxu0 0.0
    %6467 = vmatpush1.msra.mxu0 0.0
    %6468 = vmatprep.subr.mxu0 0.0
    %6469 = vmatpush1.msra.mxu0 0.0
    %6470 = vmatprep.subr.mxu0 0.0
    %6471 = vmatpush1.msra.mxu0 0.0
    %6472 = vmatprep.subr.mxu0 0.0
    %6473 = vmatpush1.msra.mxu0 0.0
    %6474 = vmatprep.subr.mxu0 0.0
    %6475 = vmatpush1.msra.mxu0 0.0
    %6476 = vmatprep.subr.mxu0 0.0
    %6477 = vmatpush1.msra.mxu0 0.0
    %6478 = vmatprep.subr.mxu0 0.0
    %6479 = vmatpush1.msra.mxu0 0.0
    %6480 = vmatprep.mubr.f32.mxu0 0.0
    %6481 = vmatmul.mubr.f32.gmra.mrb[0].mxu0 %v6414
    %v6482 = vpop.f32.mrb[0].mxu0
    %v6483 = vadd.f32 %v200, %v6482
    %v6484 = vpop.f32.mrb[0].mxu0
    %6485 = vdwg.mxu0
    %s6486 = scalar_select %p6412, 1, 0
    %v6487 = vstv %s6486
    %vm6488 = vcmp.eq.s32.totalorder %v6487, 1
    %v6489 = vsel %vm6488, %v831, %v6483
    %6490 = vmatprep.subr.mxu0 0.0
    %6491 = vmatpush1.msra.mxu0 %v119
    %6492 = vmatprep.subr.mxu0 0.0
    %6493 = vmatpush1.msra.mxu0 %v120
    %6494 = vmatprep.subr.mxu0 0.0
    %6495 = vmatpush1.msra.mxu0 %v121
    %6496 = vmatprep.subr.mxu0 0.0
    %6497 = vmatpush1.msra.mxu0 %v122
    %6498 = vmatprep.subr.mxu0 0.0
    %6499 = vmatpush1.msra.mxu0 0.0
    %6500 = vmatprep.subr.mxu0 0.0
    %6501 = vmatpush1.msra.mxu0 0.0
    %6502 = vmatprep.subr.mxu0 0.0
    %6503 = vmatpush1.msra.mxu0 0.0
    %6504 = vmatprep.subr.mxu0 0.0
    %6505 = vmatpush1.msra.mxu0 0.0
    %6506 = vmatprep.subr.mxu0 0.0
    %6507 = vmatpush1.msra.mxu0 0.0
    %6508 = vmatprep.subr.mxu0 0.0
    %6509 = vmatpush1.msra.mxu0 0.0
    %6510 = vmatprep.subr.mxu0 0.0
    %6511 = vmatpush1.msra.mxu0 0.0
    %6512 = vmatprep.subr.mxu0 0.0
    %6513 = vmatpush1.msra.mxu0 0.0
    %6514 = vmatprep.subr.mxu0 0.0
    %6515 = vmatpush1.msra.mxu0 0.0
    %6516 = vmatprep.subr.mxu0 0.0
    %6517 = vmatpush1.msra.mxu0 0.0
    %6518 = vmatprep.subr.mxu0 0.0
    %6519 = vmatpush1.msra.mxu0 0.0
    %6520 = vmatprep.subr.mxu0 0.0
    %6521 = vmatpush1.msra.mxu0 0.0
    %6522 = vmatprep.subr.mxu0 0.0
    %6523 = vmatpush1.msra.mxu0 0.0
    %6524 = vmatprep.subr.mxu0 0.0
    %6525 = vmatpush1.msra.mxu0 0.0
    %6526 = vmatprep.subr.mxu0 0.0
    %6527 = vmatpush1.msra.mxu0 0.0
    %6528 = vmatprep.subr.mxu0 0.0
    %6529 = vmatpush1.msra.mxu0 0.0
    %6530 = vmatprep.subr.mxu0 0.0
    %6531 = vmatpush1.msra.mxu0 0.0
    %6532 = vmatprep.subr.mxu0 0.0
    %6533 = vmatpush1.msra.mxu0 0.0
    %6534 = vmatprep.subr.mxu0 0.0
    %6535 = vmatpush1.msra.mxu0 0.0
    %6536 = vmatprep.subr.mxu0 0.0
    %6537 = vmatpush1.msra.mxu0 0.0
    %6538 = vmatprep.subr.mxu0 0.0
    %6539 = vmatpush1.msra.mxu0 0.0
    %6540 = vmatprep.subr.mxu0 0.0
    %6541 = vmatpush1.msra.mxu0 0.0
    %6542 = vmatprep.subr.mxu0 0.0
    %6543 = vmatpush1.msra.mxu0 0.0
    %6544 = vmatprep.subr.mxu0 0.0
    %6545 = vmatpush1.msra.mxu0 0.0
    %6546 = vmatprep.subr.mxu0 0.0
    %6547 = vmatpush1.msra.mxu0 0.0
    %6548 = vmatprep.subr.mxu0 0.0
    %6549 = vmatpush1.msra.mxu0 0.0
    %6550 = vmatprep.subr.mxu0 0.0
    %6551 = vmatpush1.msra.mxu0 0.0
    %6552 = vmatprep.subr.mxu0 0.0
    %6553 = vmatpush1.msra.mxu0 0.0
    %6554 = vmatprep.mubr.f32.mxu0 0.0
    %6555 = vmatmul.mubr.f32.gmra.mrb[0].mxu0 %v6414
    %v6556 = vpop.f32.mrb[0].mxu0
    %v6557 = vadd.f32 %v208, %v6556
    %v6558 = vpop.f32.mrb[0].mxu0
    %6559 = vdwg.mxu0
    %v6560 = vsel %vm6488, %v939, %v6557
    %6561 = vmatprep.subr.mxu0 0.0
    %6562 = vmatpush1.msra.mxu0 %v124
    %6563 = vmatprep.subr.mxu0 0.0
    %6564 = vmatpush1.msra.mxu0 %v125
    %6565 = vmatprep.subr.mxu0 0.0
    %6566 = vmatpush1.msra.mxu0 %v126
    %6567 = vmatprep.subr.mxu0 0.0
    %6568 = vmatpush1.msra.mxu0 %v127
    %6569 = vmatprep.subr.mxu0 0.0
    %6570 = vmatpush1.msra.mxu0 0.0
    %6571 = vmatprep.subr.mxu0 0.0
    %6572 = vmatpush1.msra.mxu0 0.0
    %6573 = vmatprep.subr.mxu0 0.0
    %6574 = vmatpush1.msra.mxu0 0.0
    %6575 = vmatprep.subr.mxu0 0.0
    %6576 = vmatpush1.msra.mxu0 0.0
    %6577 = vmatprep.subr.mxu0 0.0
    %6578 = vmatpush1.msra.mxu0 0.0
    %6579 = vmatprep.subr.mxu0 0.0
    %6580 = vmatpush1.msra.mxu0 0.0
    %6581 = vmatprep.subr.mxu0 0.0
    %6582 = vmatpush1.msra.mxu0 0.0
    %6583 = vmatprep.subr.mxu0 0.0
    %6584 = vmatpush1.msra.mxu0 0.0
    %6585 = vmatprep.subr.mxu0 0.0
    %6586 = vmatpush1.msra.mxu0 0.0
    %6587 = vmatprep.subr.mxu0 0.0
    %6588 = vmatpush1.msra.mxu0 0.0
    %6589 = vmatprep.subr.mxu0 0.0
    %6590 = vmatpush1.msra.mxu0 0.0
    %6591 = vmatprep.subr.mxu0 0.0
    %6592 = vmatpush1.msra.mxu0 0.0
    %6593 = vmatprep.subr.mxu0 0.0
    %6594 = vmatpush1.msra.mxu0 0.0
    %6595 = vmatprep.subr.mxu0 0.0
    %6596 = vmatpush1.msra.mxu0 0.0
    %6597 = vmatprep.subr.mxu0 0.0
    %6598 = vmatpush1.msra.mxu0 0.0
    %6599 = vmatprep.subr.mxu0 0.0
    %6600 = vmatpush1.msra.mxu0 0.0
    %6601 = vmatprep.subr.mxu0 0.0
    %6602 = vmatpush1.msra.mxu0 0.0
    %6603 = vmatprep.subr.mxu0 0.0
    %6604 = vmatpush1.msra.mxu0 0.0
    %6605 = vmatprep.subr.mxu0 0.0
    %6606 = vmatpush1.msra.mxu0 0.0
    %6607 = vmatprep.subr.mxu0 0.0
    %6608 = vmatpush1.msra.mxu0 0.0
    %6609 = vmatprep.subr.mxu0 0.0
    %6610 = vmatpush1.msra.mxu0 0.0
    %6611 = vmatprep.subr.mxu0 0.0
    %6612 = vmatpush1.msra.mxu0 0.0
    %6613 = vmatprep.subr.mxu0 0.0
    %6614 = vmatpush1.msra.mxu0 0.0
    %6615 = vmatprep.subr.mxu0 0.0
    %6616 = vmatpush1.msra.mxu0 0.0
    %6617 = vmatprep.subr.mxu0 0.0
    %6618 = vmatpush1.msra.mxu0 0.0
    %6619 = vmatprep.subr.mxu0 0.0
    %6620 = vmatpush1.msra.mxu0 0.0
    %6621 = vmatprep.subr.mxu0 0.0
    %6622 = vmatpush1.msra.mxu0 0.0
    %6623 = vmatprep.subr.mxu0 0.0
    %6624 = vmatpush1.msra.mxu0 0.0
    %6625 = vmatprep.mubr.f32.mxu0 0.0
    %6626 = vmatmul.mubr.f32.gmra.mrb[0].mxu0 %v6414
    %v6627 = vpop.f32.mrb[0].mxu0
    %v6628 = vadd.f32 %v216, %v6627
    %v6629 = vpop.f32.mrb[0].mxu0
    %6630 = vdwg.mxu0
    %v6631 = vsel %vm6488, %v1047, %v6628
    %6632 = vmatprep.subr.mxu0 0.0
    %6633 = vmatpush1.msra.mxu0 %v129
    %6634 = vmatprep.subr.mxu0 0.0
    %6635 = vmatpush1.msra.mxu0 %v130
    %6636 = vmatprep.subr.mxu0 0.0
    %6637 = vmatpush1.msra.mxu0 %v131
    %6638 = vmatprep.subr.mxu0 0.0
    %6639 = vmatpush1.msra.mxu0 %v132
    %6640 = vmatprep.subr.mxu0 0.0
    %6641 = vmatpush1.msra.mxu0 0.0
    %6642 = vmatprep.subr.mxu0 0.0
    %6643 = vmatpush1.msra.mxu0 0.0
    %6644 = vmatprep.subr.mxu0 0.0
    %6645 = vmatpush1.msra.mxu0 0.0
    %6646 = vmatprep.subr.mxu0 0.0
    %6647 = vmatpush1.msra.mxu0 0.0
    %6648 = vmatprep.subr.mxu0 0.0
    %6649 = vmatpush1.msra.mxu0 0.0
    %6650 = vmatprep.subr.mxu0 0.0
    %6651 = vmatpush1.msra.mxu0 0.0
    %6652 = vmatprep.subr.mxu0 0.0
    %6653 = vmatpush1.msra.mxu0 0.0
    %6654 = vmatprep.subr.mxu0 0.0
    %6655 = vmatpush1.msra.mxu0 0.0
    %6656 = vmatprep.subr.mxu0 0.0
    %6657 = vmatpush1.msra.mxu0 0.0
    %6658 = vmatprep.subr.mxu0 0.0
    %6659 = vmatpush1.msra.mxu0 0.0
    %6660 = vmatprep.subr.mxu0 0.0
    %6661 = vmatpush1.msra.mxu0 0.0
    %6662 = vmatprep.subr.mxu0 0.0
    %6663 = vmatpush1.msra.mxu0 0.0
    %6664 = vmatprep.subr.mxu0 0.0
    %6665 = vmatpush1.msra.mxu0 0.0
    %6666 = vmatprep.subr.mxu0 0.0
    %6667 = vmatpush1.msra.mxu0 0.0
    %6668 = vmatprep.subr.mxu0 0.0
    %6669 = vmatpush1.msra.mxu0 0.0
    %6670 = vmatprep.subr.mxu0 0.0
    %6671 = vmatpush1.msra.mxu0 0.0
    %6672 = vmatprep.subr.mxu0 0.0
    %6673 = vmatpush1.msra.mxu0 0.0
    %6674 = vmatprep.subr.mxu0 0.0
    %6675 = vmatpush1.msra.mxu0 0.0
    %6676 = vmatprep.subr.mxu0 0.0
    %6677 = vmatpush1.msra.mxu0 0.0
    %6678 = vmatprep.subr.mxu0 0.0
    %6679 = vmatpush1.msra.mxu0 0.0
    %6680 = vmatprep.subr.mxu0 0.0
    %6681 = vmatpush1.msra.mxu0 0.0
    %6682 = vmatprep.subr.mxu0 0.0
    %6683 = vmatpush1.msra.mxu0 0.0
    %6684 = vmatprep.subr.mxu0 0.0
    %6685 = vmatpush1.msra.mxu0 0.0
    %6686 = vmatprep.subr.mxu0 0.0
    %6687 = vmatpush1.msra.mxu0 0.0
    %6688 = vmatprep.subr.mxu0 0.0
    %6689 = vmatpush1.msra.mxu0 0.0
    %6690 = vmatprep.subr.mxu0 0.0
    %6691 = vmatpush1.msra.mxu0 0.0
    %6692 = vmatprep.subr.mxu0 0.0
    %6693 = vmatpush1.msra.mxu0 0.0
    %6694 = vmatprep.subr.mxu0 0.0
    %6695 = vmatpush1.msra.mxu0 0.0
    %6696 = vmatprep.mubr.f32.mxu0 0.0
    %6697 = vmatmul.mubr.f32.gmra.mrb[0].mxu0 %v6414
    %v6698 = vpop.f32.mrb[0].mxu0
    %v6699 = vadd.f32 %v224, %v6698
    %v6700 = vpop.f32.mrb[0].mxu0
    %6701 = vdwg.mxu0
    %v6702 = vsel %vm6488, %v1155, %v6699
    %6703 = vmatprep.subr.mxu0 0.0
    %6704 = vmatpush1.msra.mxu0 %v95
    %6705 = vmatprep.subr.mxu0 0.0
    %6706 = vmatpush1.msra.mxu0 %v96
    %6707 = vmatprep.subr.mxu0 0.0
    %6708 = vmatpush1.msra.mxu0 %v97
    %6709 = vmatprep.subr.mxu0 0.0
    %6710 = vmatpush1.msra.mxu0 %v98
    %6711 = vmatprep.subr.mxu0 0.0
    %6712 = vmatpush1.msra.mxu0 0.0
    %6713 = vmatprep.subr.mxu0 0.0
    %6714 = vmatpush1.msra.mxu0 0.0
    %6715 = vmatprep.subr.mxu0 0.0
    %6716 = vmatpush1.msra.mxu0 0.0
    %6717 = vmatprep.subr.mxu0 0.0
    %6718 = vmatpush1.msra.mxu0 0.0
    %6719 = vmatprep.subr.mxu0 0.0
    %6720 = vmatpush1.msra.mxu0 0.0
    %6721 = vmatprep.subr.mxu0 0.0
    %6722 = vmatpush1.msra.mxu0 0.0
    %6723 = vmatprep.subr.mxu0 0.0
    %6724 = vmatpush1.msra.mxu0 0.0
    %6725 = vmatprep.subr.mxu0 0.0
    %6726 = vmatpush1.msra.mxu0 0.0
    %6727 = vmatprep.subr.mxu0 0.0
    %6728 = vmatpush1.msra.mxu0 0.0
    %6729 = vmatprep.subr.mxu0 0.0
    %6730 = vmatpush1.msra.mxu0 0.0
    %6731 = vmatprep.subr.mxu0 0.0
    %6732 = vmatpush1.msra.mxu0 0.0
    %6733 = vmatprep.subr.mxu0 0.0
    %6734 = vmatpush1.msra.mxu0 0.0
    %6735 = vmatprep.subr.mxu0 0.0
    %6736 = vmatpush1.msra.mxu0 0.0
    %6737 = vmatprep.subr.mxu0 0.0
    %6738 = vmatpush1.msra.mxu0 0.0
    %6739 = vmatprep.subr.mxu0 0.0
    %6740 = vmatpush1.msra.mxu0 0.0
    %6741 = vmatprep.subr.mxu0 0.0
    %6742 = vmatpush1.msra.mxu0 0.0
    %6743 = vmatprep.subr.mxu0 0.0
    %6744 = vmatpush1.msra.mxu0 0.0
    %6745 = vmatprep.subr.mxu0 0.0
    %6746 = vmatpush1.msra.mxu0 0.0
    %6747 = vmatprep.subr.mxu0 0.0
    %6748 = vmatpush1.msra.mxu0 0.0
    %6749 = vmatprep.subr.mxu0 0.0
    %6750 = vmatpush1.msra.mxu0 0.0
    %6751 = vmatprep.subr.mxu0 0.0
    %6752 = vmatpush1.msra.mxu0 0.0
    %6753 = vmatprep.subr.mxu0 0.0
    %6754 = vmatpush1.msra.mxu0 0.0
    %6755 = vmatprep.subr.mxu0 0.0
    %6756 = vmatpush1.msra.mxu0 0.0
    %6757 = vmatprep.subr.mxu0 0.0
    %6758 = vmatpush1.msra.mxu0 0.0
    %6759 = vmatprep.subr.mxu0 0.0
    %6760 = vmatpush1.msra.mxu0 0.0
    %6761 = vmatprep.subr.mxu0 0.0
    %6762 = vmatpush1.msra.mxu0 0.0
    %6763 = vmatprep.subr.mxu0 0.0
    %6764 = vmatpush1.msra.mxu0 0.0
    %6765 = vmatprep.subr.mxu0 0.0
    %6766 = vmatpush1.msra.mxu0 0.0
    %6767 = vmatprep.mubr.f32.mxu0 0.0
    %6768 = vmatmul.mubr.f32.gmra.mrb[0].mxu0 %v6414
    %v6769 = vpop.f32.mrb[0].mxu0
    %v6770 = vadd.f32 0.0, %v6769
    %v6771 = vpop.f32.mrb[0].mxu0
    %6772 = vdwg.mxu0
    %v6773 = vadd.f32 %v6489, %v6770
    %v6774 = vadd.f32 %v6773, %v169
    %6775 = vmatprep.subr.mxu0 0.0
    %6776 = vmatpush1.msra.mxu0 %v100
    %6777 = vmatprep.subr.mxu0 0.0
    %6778 = vmatpush1.msra.mxu0 %v101
    %6779 = vmatprep.subr.mxu0 0.0
    %6780 = vmatpush1.msra.mxu0 %v102
    %6781 = vmatprep.subr.mxu0 0.0
    %6782 = vmatpush1.msra.mxu0 %v103
    %6783 = vmatprep.subr.mxu0 0.0
    %6784 = vmatpush1.msra.mxu0 0.0
    %6785 = vmatprep.subr.mxu0 0.0
    %6786 = vmatpush1.msra.mxu0 0.0
    %6787 = vmatprep.subr.mxu0 0.0
    %6788 = vmatpush1.msra.mxu0 0.0
    %6789 = vmatprep.subr.mxu0 0.0
    %6790 = vmatpush1.msra.mxu0 0.0
    %6791 = vmatprep.subr.mxu0 0.0
    %6792 = vmatpush1.msra.mxu0 0.0
    %6793 = vmatprep.subr.mxu0 0.0
    %6794 = vmatpush1.msra.mxu0 0.0
    %6795 = vmatprep.subr.mxu0 0.0
    %6796 = vmatpush1.msra.mxu0 0.0
    %6797 = vmatprep.subr.mxu0 0.0
    %6798 = vmatpush1.msra.mxu0 0.0
    %6799 = vmatprep.subr.mxu0 0.0
    %6800 = vmatpush1.msra.mxu0 0.0
    %6801 = vmatprep.subr.mxu0 0.0
    %6802 = vmatpush1.msra.mxu0 0.0
    %6803 = vmatprep.subr.mxu0 0.0
    %6804 = vmatpush1.msra.mxu0 0.0
    %6805 = vmatprep.subr.mxu0 0.0
    %6806 = vmatpush1.msra.mxu0 0.0
    %6807 = vmatprep.subr.mxu0 0.0
    %6808 = vmatpush1.msra.mxu0 0.0
    %6809 = vmatprep.subr.mxu0 0.0
    %6810 = vmatpush1.msra.mxu0 0.0
    %6811 = vmatprep.subr.mxu0 0.0
    %6812 = vmatpush1.msra.mxu0 0.0
    %6813 = vmatprep.subr.mxu0 0.0
    %6814 = vmatpush1.msra.mxu0 0.0
    %6815 = vmatprep.subr.mxu0 0.0
    %6816 = vmatpush1.msra.mxu0 0.0
    %6817 = vmatprep.subr.mxu0 0.0
    %6818 = vmatpush1.msra.mxu0 0.0
    %6819 = vmatprep.subr.mxu0 0.0
    %6820 = vmatpush1.msra.mxu0 0.0
    %6821 = vmatprep.subr.mxu0 0.0
    %6822 = vmatpush1.msra.mxu0 0.0
    %6823 = vmatprep.subr.mxu0 0.0
    %6824 = vmatpush1.msra.mxu0 0.0
    %6825 = vmatprep.subr.mxu0 0.0
    %6826 = vmatpush1.msra.mxu0 0.0
    %6827 = vmatprep.subr.mxu0 0.0
    %6828 = vmatpush1.msra.mxu0 0.0
    %6829 = vmatprep.subr.mxu0 0.0
    %6830 = vmatpush1.msra.mxu0 0.0
    %6831 = vmatprep.subr.mxu0 0.0
    %6832 = vmatpush1.msra.mxu0 0.0
    %6833 = vmatprep.subr.mxu0 0.0
    %6834 = vmatpush1.msra.mxu0 0.0
    %6835 = vmatprep.subr.mxu0 0.0
    %6836 = vmatpush1.msra.mxu0 0.0
    %6837 = vmatprep.subr.mxu0 0.0
    %6838 = vmatpush1.msra.mxu0 0.0
    %6839 = vmatprep.mubr.f32.mxu0 0.0
    %6840 = vmatmul.mubr.f32.gmra.mrb[0].mxu0 %v6414
    %v6841 = vpop.f32.mrb[0].mxu0
    %v6842 = vadd.f32 0.0, %v6841
    %v6843 = vpop.f32.mrb[0].mxu0
    %6844 = vdwg.mxu0
    %v6845 = vadd.f32 %v6560, %v6842
    %v6846 = vadd.f32 %v6845, %v177
    %6847 = vmatprep.subr.mxu0 0.0
    %6848 = vmatpush1.msra.mxu0 %v105
    %6849 = vmatprep.subr.mxu0 0.0
    %6850 = vmatpush1.msra.mxu0 %v106
    %6851 = vmatprep.subr.mxu0 0.0
    %6852 = vmatpush1.msra.mxu0 %v107
    %6853 = vmatprep.subr.mxu0 0.0
    %6854 = vmatpush1.msra.mxu0 %v108
    %6855 = vmatprep.subr.mxu0 0.0
    %6856 = vmatpush1.msra.mxu0 0.0
    %6857 = vmatprep.subr.mxu0 0.0
    %6858 = vmatpush1.msra.mxu0 0.0
    %6859 = vmatprep.subr.mxu0 0.0
    %6860 = vmatpush1.msra.mxu0 0.0
    %6861 = vmatprep.subr.mxu0 0.0
    %6862 = vmatpush1.msra.mxu0 0.0
    %6863 = vmatprep.subr.mxu0 0.0
    %6864 = vmatpush1.msra.mxu0 0.0
    %6865 = vmatprep.subr.mxu0 0.0
    %6866 = vmatpush1.msra.mxu0 0.0
    %6867 = vmatprep.subr.mxu0 0.0
    %6868 = vmatpush1.msra.mxu0 0.0
    %6869 = vmatprep.subr.mxu0 0.0
    %6870 = vmatpush1.msra.mxu0 0.0
    %6871 = vmatprep.subr.mxu0 0.0
    %6872 = vmatpush1.msra.mxu0 0.0
    %6873 = vmatprep.subr.mxu0 0.0
    %6874 = vmatpush1.msra.mxu0 0.0
    %6875 = vmatprep.subr.mxu0 0.0
    %6876 = vmatpush1.msra.mxu0 0.0
    %6877 = vmatprep.subr.mxu0 0.0
    %6878 = vmatpush1.msra.mxu0 0.0
    %6879 = vmatprep.subr.mxu0 0.0
    %6880 = vmatpush1.msra.mxu0 0.0
    %6881 = vmatprep.subr.mxu0 0.0
    %6882 = vmatpush1.msra.mxu0 0.0
    %6883 = vmatprep.subr.mxu0 0.0
    %6884 = vmatpush1.msra.mxu0 0.0
    %6885 = vmatprep.subr.mxu0 0.0
    %6886 = vmatpush1.msra.mxu0 0.0
    %6887 = vmatprep.subr.mxu0 0.0
    %6888 = vmatpush1.msra.mxu0 0.0
    %6889 = vmatprep.subr.mxu0 0.0
    %6890 = vmatpush1.msra.mxu0 0.0
    %6891 = vmatprep.subr.mxu0 0.0
    %6892 = vmatpush1.msra.mxu0 0.0
    %6893 = vmatprep.subr.mxu0 0.0
    %6894 = vmatpush1.msra.mxu0 0.0
    %6895 = vmatprep.subr.mxu0 0.0
    %6896 = vmatpush1.msra.mxu0 0.0
    %6897 = vmatprep.subr.mxu0 0.0
    %6898 = vmatpush1.msra.mxu0 0.0
    %6899 = vmatprep.subr.mxu0 0.0
    %6900 = vmatpush1.msra.mxu0 0.0
    %6901 = vmatprep.subr.mxu0 0.0
    %6902 = vmatpush1.msra.mxu0 0.0
    %6903 = vmatprep.subr.mxu0 0.0
    %6904 = vmatpush1.msra.mxu0 0.0
    %6905 = vmatprep.subr.mxu0 0.0
    %6906 = vmatpush1.msra.mxu0 0.0
    %6907 = vmatprep.subr.mxu0 0.0
    %6908 = vmatpush1.msra.mxu0 0.0
    %6909 = vmatprep.subr.mxu0 0.0
    %6910 = vmatpush1.msra.mxu0 0.0
    %6911 = vmatprep.mubr.f32.mxu0 0.0
    %6912 = vmatmul.mubr.f32.gmra.mrb[0].mxu0 %v6414
    %v6913 = vpop.f32.mrb[0].mxu0
    %v6914 = vadd.f32 0.0, %v6913
    %v6915 = vpop.f32.mrb[0].mxu0
    %6916 = vdwg.mxu0
    %v6917 = vadd.f32 %v6631, %v6914
    %v6918 = vadd.f32 %v6917, %v185
    %6919 = vmatprep.subr.mxu0 0.0
    %6920 = vmatpush1.msra.mxu0 %v110
    %6921 = vmatprep.subr.mxu0 0.0
    %6922 = vmatpush1.msra.mxu0 %v111
    %6923 = vmatprep.subr.mxu0 0.0
    %6924 = vmatpush1.msra.mxu0 %v112
    %6925 = vmatprep.subr.mxu0 0.0
    %6926 = vmatpush1.msra.mxu0 %v113
    %6927 = vmatprep.subr.mxu0 0.0
    %6928 = vmatpush1.msra.mxu0 0.0
    %6929 = vmatprep.subr.mxu0 0.0
    %6930 = vmatpush1.msra.mxu0 0.0
    %6931 = vmatprep.subr.mxu0 0.0
    %6932 = vmatpush1.msra.mxu0 0.0
    %6933 = vmatprep.subr.mxu0 0.0
    %6934 = vmatpush1.msra.mxu0 0.0
    %6935 = vmatprep.subr.mxu0 0.0
    %6936 = vmatpush1.msra.mxu0 0.0
    %6937 = vmatprep.subr.mxu0 0.0
    %6938 = vmatpush1.msra.mxu0 0.0
    %6939 = vmatprep.subr.mxu0 0.0
    %6940 = vmatpush1.msra.mxu0 0.0
    %6941 = vmatprep.subr.mxu0 0.0
    %6942 = vmatpush1.msra.mxu0 0.0
    %6943 = vmatprep.subr.mxu0 0.0
    %6944 = vmatpush1.msra.mxu0 0.0
    %6945 = vmatprep.subr.mxu0 0.0
    %6946 = vmatpush1.msra.mxu0 0.0
    %6947 = vmatprep.subr.mxu0 0.0
    %6948 = vmatpush1.msra.mxu0 0.0
    %6949 = vmatprep.subr.mxu0 0.0
    %6950 = vmatpush1.msra.mxu0 0.0
    %6951 = vmatprep.subr.mxu0 0.0
    %6952 = vmatpush1.msra.mxu0 0.0
    %6953 = vmatprep.subr.mxu0 0.0
    %6954 = vmatpush1.msra.mxu0 0.0
    %6955 = vmatprep.subr.mxu0 0.0
    %6956 = vmatpush1.msra.mxu0 0.0
    %6957 = vmatprep.subr.mxu0 0.0
    %6958 = vmatpush1.msra.mxu0 0.0
    %6959 = vmatprep.subr.mxu0 0.0
    %6960 = vmatpush1.msra.mxu0 0.0
    %6961 = vmatprep.subr.mxu0 0.0
    %6962 = vmatpush1.msra.mxu0 0.0
    %6963 = vmatprep.subr.mxu0 0.0
    %6964 = vmatpush1.msra.mxu0 0.0
    %6965 = vmatprep.subr.mxu0 0.0
    %6966 = vmatpush1.msra.mxu0 0.0
    %6967 = vmatprep.subr.mxu0 0.0
    %6968 = vmatpush1.msra.mxu0 0.0
    %6969 = vmatprep.subr.mxu0 0.0
    %6970 = vmatpush1.msra.mxu0 0.0
    %6971 = vmatprep.subr.mxu0 0.0
    %6972 = vmatpush1.msra.mxu0 0.0
    %6973 = vmatprep.subr.mxu0 0.0
    %6974 = vmatpush1.msra.mxu0 0.0
    %6975 = vmatprep.subr.mxu0 0.0
    %6976 = vmatpush1.msra.mxu0 0.0
    %6977 = vmatprep.subr.mxu0 0.0
    %6978 = vmatpush1.msra.mxu0 0.0
    %6979 = vmatprep.subr.mxu0 0.0
    %6980 = vmatpush1.msra.mxu0 0.0
    %6981 = vmatprep.subr.mxu0 0.0
    %6982 = vmatpush1.msra.mxu0 0.0
    %6983 = vmatprep.mubr.f32.mxu0 0.0
    %6984 = vmatmul.mubr.f32.gmra.mrb[0].mxu0 %v6414
    %v6985 = vpop.f32.mrb[0].mxu0
    %v6986 = vadd.f32 0.0, %v6985
    %v6987 = vpop.f32.mrb[0].mxu0
    %6988 = vdwg.mxu0
    %v6989 = vadd.f32 %v6702, %v6986
    %v6990 = vadd.f32 %v6989, %v193
    %v6991 = vxor.u32 %v6774, 2147483648
    %v6992 = vmul.f32 %v6991, 1.442695
    %v6993 = vpow.pop %v6992
    %v6994 = vadd.f32 %v6993, 1.0
    %v6995 = vrcp.pop %v6994
    %v6996 = vmul.f32 1.0, %v6995
    %v6997 = vxor.u32 %v6846, 2147483648
    %v6998 = vmul.f32 %v6997, 1.442695
    %v6999 = vpow.pop %v6998
    %v7000 = vadd.f32 %v6999, 1.0
    %v7001 = vrcp.pop %v7000
    %v7002 = vmul.f32 1.0, %v7001
    %v7003 = vtanh.pop %v6918
    %v7004 = vxor.u32 %v6990, 2147483648
    %v7005 = vmul.f32 %v7004, 1.442695
    %v7006 = vpow.pop %v7005
    %v7007 = vadd.f32 %v7006, 1.0
    %v7008 = vrcp.pop %v7007
    %v7009 = vmul.f32 1.0, %v7008
    %v7010 = vmul.f32 %v7002, %v6408
    %v7011 = vmul.f32 %v6996, %v7003
    %v7012 = vadd.f32 %v7010, %v7011
    %v7013 = vtanh.pop %v7012
    %v7014 = vmul.f32 %v7009, %v7013
    %s7015 = sld [smem:[#allocation3 + $0x6]]
    %p7016 = scmp.ne.s32.totalorder %s7015, 0
    %v7018 = vsel %vm1167, %v7014, 0
    %7020 = vmatprep.subr.mxu0 0.0
    %7021 = vmatpush1.msra.mxu0 %v114
    %7022 = vmatprep.subr.mxu0 0.0
    %7023 = vmatpush1.msra.mxu0 %v115
    %7024 = vmatprep.subr.mxu0 0.0
    %7025 = vmatpush1.msra.mxu0 %v116
    %7026 = vmatprep.subr.mxu0 0.0
    %7027 = vmatpush1.msra.mxu0 %v117
    %7028 = vmatprep.subr.mxu0 0.0
    %7029 = vmatpush1.msra.mxu0 0.0
    %7030 = vmatprep.subr.mxu0 0.0
    %7031 = vmatpush1.msra.mxu0 0.0
    %7032 = vmatprep.subr.mxu0 0.0
    %7033 = vmatpush1.msra.mxu0 0.0
    %7034 = vmatprep.subr.mxu0 0.0
    %7035 = vmatpush1.msra.mxu0 0.0
    %7036 = vmatprep.subr.mxu0 0.0
    %7037 = vmatpush1.msra.mxu0 0.0
    %7038 = vmatprep.subr.mxu0 0.0
    %7039 = vmatpush1.msra.mxu0 0.0
    %7040 = vmatprep.subr.mxu0 0.0
    %7041 = vmatpush1.msra.mxu0 0.0
    %7042 = vmatprep.subr.mxu0 0.0
    %7043 = vmatpush1.msra.mxu0 0.0
    %7044 = vmatprep.subr.mxu0 0.0
    %7045 = vmatpush1.msra.mxu0 0.0
    %7046 = vmatprep.subr.mxu0 0.0
    %7047 = vmatpush1.msra.mxu0 0.0
    %7048 = vmatprep.subr.mxu0 0.0
    %7049 = vmatpush1.msra.mxu0 0.0
    %7050 = vmatprep.subr.mxu0 0.0
    %7051 = vmatpush1.msra.mxu0 0.0
    %7052 = vmatprep.subr.mxu0 0.0
    %7053 = vmatpush1.msra.mxu0 0.0
    %7054 = vmatprep.subr.mxu0 0.0
    %7055 = vmatpush1.msra.mxu0 0.0
    %7056 = vmatprep.subr.mxu0 0.0
    %7057 = vmatpush1.msra.mxu0 0.0
    %7058 = vmatprep.subr.mxu0 0.0
    %7059 = vmatpush1.msra.mxu0 0.0
    %7060 = vmatprep.subr.mxu0 0.0
    %7061 = vmatpush1.msra.mxu0 0.0
    %7062 = vmatprep.subr.mxu0 0.0
    %7063 = vmatpush1.msra.mxu0 0.0
    %7064 = vmatprep.subr.mxu0 0.0
    %7065 = vmatpush1.msra.mxu0 0.0
    %7066 = vmatprep.subr.mxu0 0.0
    %7067 = vmatpush1.msra.mxu0 0.0
    %7068 = vmatprep.subr.mxu0 0.0
    %7069 = vmatpush1.msra.mxu0 0.0
    %7070 = vmatprep.subr.mxu0 0.0
    %7071 = vmatpush1.msra.mxu0 0.0
    %7072 = vmatprep.subr.mxu0 0.0
    %7073 = vmatpush1.msra.mxu0 0.0
    %7074 = vmatprep.subr.mxu0 0.0
    %7075 = vmatpush1.msra.mxu0 0.0
    %7076 = vmatprep.subr.mxu0 0.0
    %7077 = vmatpush1.msra.mxu0 0.0
    %7078 = vmatprep.subr.mxu0 0.0
    %7079 = vmatpush1.msra.mxu0 0.0
    %7080 = vmatprep.subr.mxu0 0.0
    %7081 = vmatpush1.msra.mxu0 0.0
    %7082 = vmatprep.subr.mxu0 0.0
    %7083 = vmatpush1.msra.mxu0 0.0
    %7084 = vmatprep.mubr.f32.mxu0 0.0
    %7085 = vmatmul.mubr.f32.gmra.mrb[0].mxu0 %v7018
    %v7086 = vpop.f32.mrb[0].mxu0
    %v7087 = vadd.f32 %v200, %v7086
    %v7088 = vpop.f32.mrb[0].mxu0
    %7089 = vdwg.mxu0
    %s7090 = scalar_select %p7016, 1, 0
    %v7091 = vstv %s7090
    %vm7092 = vcmp.eq.s32.totalorder %v7091, 1
    %v7093 = vsel %vm7092, %v836, %v7087
    %7094 = vmatprep.subr.mxu0 0.0
    %7095 = vmatpush1.msra.mxu0 %v119
    %7096 = vmatprep.subr.mxu0 0.0
    %7097 = vmatpush1.msra.mxu0 %v120
    %7098 = vmatprep.subr.mxu0 0.0
    %7099 = vmatpush1.msra.mxu0 %v121
    %7100 = vmatprep.subr.mxu0 0.0
    %7101 = vmatpush1.msra.mxu0 %v122
    %7102 = vmatprep.subr.mxu0 0.0
    %7103 = vmatpush1.msra.mxu0 0.0
    %7104 = vmatprep.subr.mxu0 0.0
    %7105 = vmatpush1.msra.mxu0 0.0
    %7106 = vmatprep.subr.mxu0 0.0
    %7107 = vmatpush1.msra.mxu0 0.0
    %7108 = vmatprep.subr.mxu0 0.0
    %7109 = vmatpush1.msra.mxu0 0.0
    %7110 = vmatprep.subr.mxu0 0.0
    %7111 = vmatpush1.msra.mxu0 0.0
    %7112 = vmatprep.subr.mxu0 0.0
    %7113 = vmatpush1.msra.mxu0 0.0
    %7114 = vmatprep.subr.mxu0 0.0
    %7115 = vmatpush1.msra.mxu0 0.0
    %7116 = vmatprep.subr.mxu0 0.0
    %7117 = vmatpush1.msra.mxu0 0.0
    %7118 = vmatprep.subr.mxu0 0.0
    %7119 = vmatpush1.msra.mxu0 0.0
    %7120 = vmatprep.subr.mxu0 0.0
    %7121 = vmatpush1.msra.mxu0 0.0
    %7122 = vmatprep.subr.mxu0 0.0
    %7123 = vmatpush1.msra.mxu0 0.0
    %7124 = vmatprep.subr.mxu0 0.0
    %7125 = vmatpush1.msra.mxu0 0.0
    %7126 = vmatprep.subr.mxu0 0.0
    %7127 = vmatpush1.msra.mxu0 0.0
    %7128 = vmatprep.subr.mxu0 0.0
    %7129 = vmatpush1.msra.mxu0 0.0
    %7130 = vmatprep.subr.mxu0 0.0
    %7131 = vmatpush1.msra.mxu0 0.0
    %7132 = vmatprep.subr.mxu0 0.0
    %7133 = vmatpush1.msra.mxu0 0.0
    %7134 = vmatprep.subr.mxu0 0.0
    %7135 = vmatpush1.msra.mxu0 0.0
    %7136 = vmatprep.subr.mxu0 0.0
    %7137 = vmatpush1.msra.mxu0 0.0
    %7138 = vmatprep.subr.mxu0 0.0
    %7139 = vmatpush1.msra.mxu0 0.0
    %7140 = vmatprep.subr.mxu0 0.0
    %7141 = vmatpush1.msra.mxu0 0.0
    %7142 = vmatprep.subr.mxu0 0.0
    %7143 = vmatpush1.msra.mxu0 0.0
    %7144 = vmatprep.subr.mxu0 0.0
    %7145 = vmatpush1.msra.mxu0 0.0
    %7146 = vmatprep.subr.mxu0 0.0
    %7147 = vmatpush1.msra.mxu0 0.0
    %7148 = vmatprep.subr.mxu0 0.0
    %7149 = vmatpush1.msra.mxu0 0.0
    %7150 = vmatprep.subr.mxu0 0.0
    %7151 = vmatpush1.msra.mxu0 0.0
    %7152 = vmatprep.subr.mxu0 0.0
    %7153 = vmatpush1.msra.mxu0 0.0
    %7154 = vmatprep.subr.mxu0 0.0
    %7155 = vmatpush1.msra.mxu0 0.0
    %7156 = vmatprep.subr.mxu0 0.0
    %7157 = vmatpush1.msra.mxu0 0.0
    %7158 = vmatprep.mubr.f32.mxu0 0.0
    %7159 = vmatmul.mubr.f32.gmra.mrb[0].mxu0 %v7018
    %v7160 = vpop.f32.mrb[0].mxu0
    %v7161 = vadd.f32 %v208, %v7160
    %v7162 = vpop.f32.mrb[0].mxu0
    %7163 = vdwg.mxu0
    %v7164 = vsel %vm7092, %v944, %v7161
    %7165 = vmatprep.subr.mxu0 0.0
    %7166 = vmatpush1.msra.mxu0 %v124
    %7167 = vmatprep.subr.mxu0 0.0
    %7168 = vmatpush1.msra.mxu0 %v125
    %7169 = vmatprep.subr.mxu0 0.0
    %7170 = vmatpush1.msra.mxu0 %v126
    %7171 = vmatprep.subr.mxu0 0.0
    %7172 = vmatpush1.msra.mxu0 %v127
    %7173 = vmatprep.subr.mxu0 0.0
    %7174 = vmatpush1.msra.mxu0 0.0
    %7175 = vmatprep.subr.mxu0 0.0
    %7176 = vmatpush1.msra.mxu0 0.0
    %7177 = vmatprep.subr.mxu0 0.0
    %7178 = vmatpush1.msra.mxu0 0.0
    %7179 = vmatprep.subr.mxu0 0.0
    %7180 = vmatpush1.msra.mxu0 0.0
    %7181 = vmatprep.subr.mxu0 0.0
    %7182 = vmatpush1.msra.mxu0 0.0
    %7183 = vmatprep.subr.mxu0 0.0
    %7184 = vmatpush1.msra.mxu0 0.0
    %7185 = vmatprep.subr.mxu0 0.0
    %7186 = vmatpush1.msra.mxu0 0.0
    %7187 = vmatprep.subr.mxu0 0.0
    %7188 = vmatpush1.msra.mxu0 0.0
    %7189 = vmatprep.subr.mxu0 0.0
    %7190 = vmatpush1.msra.mxu0 0.0
    %7191 = vmatprep.subr.mxu0 0.0
    %7192 = vmatpush1.msra.mxu0 0.0
    %7193 = vmatprep.subr.mxu0 0.0
    %7194 = vmatpush1.msra.mxu0 0.0
    %7195 = vmatprep.subr.mxu0 0.0
    %7196 = vmatpush1.msra.mxu0 0.0
    %7197 = vmatprep.subr.mxu0 0.0
    %7198 = vmatpush1.msra.mxu0 0.0
    %7199 = vmatprep.subr.mxu0 0.0
    %7200 = vmatpush1.msra.mxu0 0.0
    %7201 = vmatprep.subr.mxu0 0.0
    %7202 = vmatpush1.msra.mxu0 0.0
    %7203 = vmatprep.subr.mxu0 0.0
    %7204 = vmatpush1.msra.mxu0 0.0
    %7205 = vmatprep.subr.mxu0 0.0
    %7206 = vmatpush1.msra.mxu0 0.0
    %7207 = vmatprep.subr.mxu0 0.0
    %7208 = vmatpush1.msra.mxu0 0.0
    %7209 = vmatprep.subr.mxu0 0.0
    %7210 = vmatpush1.msra.mxu0 0.0
    %7211 = vmatprep.subr.mxu0 0.0
    %7212 = vmatpush1.msra.mxu0 0.0
    %7213 = vmatprep.subr.mxu0 0.0
    %7214 = vmatpush1.msra.mxu0 0.0
    %7215 = vmatprep.subr.mxu0 0.0
    %7216 = vmatpush1.msra.mxu0 0.0
    %7217 = vmatprep.subr.mxu0 0.0
    %7218 = vmatpush1.msra.mxu0 0.0
    %7219 = vmatprep.subr.mxu0 0.0
    %7220 = vmatpush1.msra.mxu0 0.0
    %7221 = vmatprep.subr.mxu0 0.0
    %7222 = vmatpush1.msra.mxu0 0.0
    %7223 = vmatprep.subr.mxu0 0.0
    %7224 = vmatpush1.msra.mxu0 0.0
    %7225 = vmatprep.subr.mxu0 0.0
    %7226 = vmatpush1.msra.mxu0 0.0
    %7227 = vmatprep.subr.mxu0 0.0
    %7228 = vmatpush1.msra.mxu0 0.0
    %7229 = vmatprep.mubr.f32.mxu0 0.0
    %7230 = vmatmul.mubr.f32.gmra.mrb[0].mxu0 %v7018
    %v7231 = vpop.f32.mrb[0].mxu0
    %v7232 = vadd.f32 %v216, %v7231
    %v7233 = vpop.f32.mrb[0].mxu0
    %7234 = vdwg.mxu0
    %v7235 = vsel %vm7092, %v1052, %v7232
    %7236 = vmatprep.subr.mxu0 0.0
    %7237 = vmatpush1.msra.mxu0 %v129
    %7238 = vmatprep.subr.mxu0 0.0
    %7239 = vmatpush1.msra.mxu0 %v130
    %7240 = vmatprep.subr.mxu0 0.0
    %7241 = vmatpush1.msra.mxu0 %v131
    %7242 = vmatprep.subr.mxu0 0.0
    %7243 = vmatpush1.msra.mxu0 %v132
    %7244 = vmatprep.subr.mxu0 0.0
    %7245 = vmatpush1.msra.mxu0 0.0
    %7246 = vmatprep.subr.mxu0 0.0
    %7247 = vmatpush1.msra.mxu0 0.0
    %7248 = vmatprep.subr.mxu0 0.0
    %7249 = vmatpush1.msra.mxu0 0.0
    %7250 = vmatprep.subr.mxu0 0.0
    %7251 = vmatpush1.msra.mxu0 0.0
    %7252 = vmatprep.subr.mxu0 0.0
    %7253 = vmatpush1.msra.mxu0 0.0
    %7254 = vmatprep.subr.mxu0 0.0
    %7255 = vmatpush1.msra.mxu0 0.0
    %7256 = vmatprep.subr.mxu0 0.0
    %7257 = vmatpush1.msra.mxu0 0.0
    %7258 = vmatprep.subr.mxu0 0.0
    %7259 = vmatpush1.msra.mxu0 0.0
    %7260 = vmatprep.subr.mxu0 0.0
    %7261 = vmatpush1.msra.mxu0 0.0
    %7262 = vmatprep.subr.mxu0 0.0
    %7263 = vmatpush1.msra.mxu0 0.0
    %7264 = vmatprep.subr.mxu0 0.0
    %7265 = vmatpush1.msra.mxu0 0.0
    %7266 = vmatprep.subr.mxu0 0.0
    %7267 = vmatpush1.msra.mxu0 0.0
    %7268 = vmatprep.subr.mxu0 0.0
    %7269 = vmatpush1.msra.mxu0 0.0
    %7270 = vmatprep.subr.mxu0 0.0
    %7271 = vmatpush1.msra.mxu0 0.0
    %7272 = vmatprep.subr.mxu0 0.0
    %7273 = vmatpush1.msra.mxu0 0.0
    %7274 = vmatprep.subr.mxu0 0.0
    %7275 = vmatpush1.msra.mxu0 0.0
    %7276 = vmatprep.subr.mxu0 0.0
    %7277 = vmatpush1.msra.mxu0 0.0
    %7278 = vmatprep.subr.mxu0 0.0
    %7279 = vmatpush1.msra.mxu0 0.0
    %7280 = vmatprep.subr.mxu0 0.0
    %7281 = vmatpush1.msra.mxu0 0.0
    %7282 = vmatprep.subr.mxu0 0.0
    %7283 = vmatpush1.msra.mxu0 0.0
    %7284 = vmatprep.subr.mxu0 0.0
    %7285 = vmatpush1.msra.mxu0 0.0
    %7286 = vmatprep.subr.mxu0 0.0
    %7287 = vmatpush1.msra.mxu0 0.0
    %7288 = vmatprep.subr.mxu0 0.0
    %7289 = vmatpush1.msra.mxu0 0.0
    %7290 = vmatprep.subr.mxu0 0.0
    %7291 = vmatpush1.msra.mxu0 0.0
    %7292 = vmatprep.subr.mxu0 0.0
    %7293 = vmatpush1.msra.mxu0 0.0
    %7294 = vmatprep.subr.mxu0 0.0
    %7295 = vmatpush1.msra.mxu0 0.0
    %7296 = vmatprep.subr.mxu0 0.0
    %7297 = vmatpush1.msra.mxu0 0.0
    %7298 = vmatprep.subr.mxu0 0.0
    %7299 = vmatpush1.msra.mxu0 0.0
    %7300 = vmatprep.mubr.f32.mxu0 0.0
    %7301 = vmatmul.mubr.f32.gmra.mrb[0].mxu0 %v7018
    %v7302 = vpop.f32.mrb[0].mxu0
    %v7303 = vadd.f32 %v224, %v7302
    %v7304 = vpop.f32.mrb[0].mxu0
    %7305 = vdwg.mxu0
    %v7306 = vsel %vm7092, %v1160, %v7303
    %7307 = vmatprep.subr.mxu0 0.0
    %7308 = vmatpush1.msra.mxu0 %v95
    %7309 = vmatprep.subr.mxu0 0.0
    %7310 = vmatpush1.msra.mxu0 %v96
    %7311 = vmatprep.subr.mxu0 0.0
    %7312 = vmatpush1.msra.mxu0 %v97
    %7313 = vmatprep.subr.mxu0 0.0
    %7314 = vmatpush1.msra.mxu0 %v98
    %7315 = vmatprep.subr.mxu0 0.0
    %7316 = vmatpush1.msra.mxu0 0.0
    %7317 = vmatprep.subr.mxu0 0.0
    %7318 = vmatpush1.msra.mxu0 0.0
    %7319 = vmatprep.subr.mxu0 0.0
    %7320 = vmatpush1.msra.mxu0 0.0
    %7321 = vmatprep.subr.mxu0 0.0
    %7322 = vmatpush1.msra.mxu0 0.0
    %7323 = vmatprep.subr.mxu0 0.0
    %7324 = vmatpush1.msra.mxu0 0.0
    %7325 = vmatprep.subr.mxu0 0.0
    %7326 = vmatpush1.msra.mxu0 0.0
    %7327 = vmatprep.subr.mxu0 0.0
    %7328 = vmatpush1.msra.mxu0 0.0
    %7329 = vmatprep.subr.mxu0 0.0
    %7330 = vmatpush1.msra.mxu0 0.0
    %7331 = vmatprep.subr.mxu0 0.0
    %7332 = vmatpush1.msra.mxu0 0.0
    %7333 = vmatprep.subr.mxu0 0.0
    %7334 = vmatpush1.msra.mxu0 0.0
    %7335 = vmatprep.subr.mxu0 0.0
    %7336 = vmatpush1.msra.mxu0 0.0
    %7337 = vmatprep.subr.mxu0 0.0
    %7338 = vmatpush1.msra.mxu0 0.0
    %7339 = vmatprep.subr.mxu0 0.0
    %7340 = vmatpush1.msra.mxu0 0.0
    %7341 = vmatprep.subr.mxu0 0.0
    %7342 = vmatpush1.msra.mxu0 0.0
    %7343 = vmatprep.subr.mxu0 0.0
    %7344 = vmatpush1.msra.mxu0 0.0
    %7345 = vmatprep.subr.mxu0 0.0
    %7346 = vmatpush1.msra.mxu0 0.0
    %7347 = vmatprep.subr.mxu0 0.0
    %7348 = vmatpush1.msra.mxu0 0.0
    %7349 = vmatprep.subr.mxu0 0.0
    %7350 = vmatpush1.msra.mxu0 0.0
    %7351 = vmatprep.subr.mxu0 0.0
    %7352 = vmatpush1.msra.mxu0 0.0
    %7353 = vmatprep.subr.mxu0 0.0
    %7354 = vmatpush1.msra.mxu0 0.0
    %7355 = vmatprep.subr.mxu0 0.0
    %7356 = vmatpush1.msra.mxu0 0.0
    %7357 = vmatprep.subr.mxu0 0.0
    %7358 = vmatpush1.msra.mxu0 0.0
    %7359 = vmatprep.subr.mxu0 0.0
    %7360 = vmatpush1.msra.mxu0 0.0
    %7361 = vmatprep.subr.mxu0 0.0
    %7362 = vmatpush1.msra.mxu0 0.0
    %7363 = vmatprep.subr.mxu0 0.0
    %7364 = vmatpush1.msra.mxu0 0.0
    %7365 = vmatprep.subr.mxu0 0.0
    %7366 = vmatpush1.msra.mxu0 0.0
    %7367 = vmatprep.subr.mxu0 0.0
    %7368 = vmatpush1.msra.mxu0 0.0
    %7369 = vmatprep.subr.mxu0 0.0
    %7370 = vmatpush1.msra.mxu0 0.0
    %7371 = vmatprep.mubr.f32.mxu0 0.0
    %7372 = vmatmul.mubr.f32.gmra.mrb[0].mxu0 %v7018
    %v7373 = vpop.f32.mrb[0].mxu0
    %v7374 = vadd.f32 0.0, %v7373
    %v7375 = vpop.f32.mrb[0].mxu0
    %7376 = vdwg.mxu0
    %v7377 = vadd.f32 %v7093, %v7374
    %v7378 = vadd.f32 %v7377, %v169
    %7379 = vmatprep.subr.mxu0 0.0
    %7380 = vmatpush1.msra.mxu0 %v100
    %7381 = vmatprep.subr.mxu0 0.0
    %7382 = vmatpush1.msra.mxu0 %v101
    %7383 = vmatprep.subr.mxu0 0.0
    %7384 = vmatpush1.msra.mxu0 %v102
    %7385 = vmatprep.subr.mxu0 0.0
    %7386 = vmatpush1.msra.mxu0 %v103
    %7387 = vmatprep.subr.mxu0 0.0
    %7388 = vmatpush1.msra.mxu0 0.0
    %7389 = vmatprep.subr.mxu0 0.0
    %7390 = vmatpush1.msra.mxu0 0.0
    %7391 = vmatprep.subr.mxu0 0.0
    %7392 = vmatpush1.msra.mxu0 0.0
    %7393 = vmatprep.subr.mxu0 0.0
    %7394 = vmatpush1.msra.mxu0 0.0
    %7395 = vmatprep.subr.mxu0 0.0
    %7396 = vmatpush1.msra.mxu0 0.0
    %7397 = vmatprep.subr.mxu0 0.0
    %7398 = vmatpush1.msra.mxu0 0.0
    %7399 = vmatprep.subr.mxu0 0.0
    %7400 = vmatpush1.msra.mxu0 0.0
    %7401 = vmatprep.subr.mxu0 0.0
    %7402 = vmatpush1.msra.mxu0 0.0
    %7403 = vmatprep.subr.mxu0 0.0
    %7404 = vmatpush1.msra.mxu0 0.0
    %7405 = vmatprep.subr.mxu0 0.0
    %7406 = vmatpush1.msra.mxu0 0.0
    %7407 = vmatprep.subr.mxu0 0.0
    %7408 = vmatpush1.msra.mxu0 0.0
    %7409 = vmatprep.subr.mxu0 0.0
    %7410 = vmatpush1.msra.mxu0 0.0
    %7411 = vmatprep.subr.mxu0 0.0
    %7412 = vmatpush1.msra.mxu0 0.0
    %7413 = vmatprep.subr.mxu0 0.0
    %7414 = vmatpush1.msra.mxu0 0.0
    %7415 = vmatprep.subr.mxu0 0.0
    %7416 = vmatpush1.msra.mxu0 0.0
    %7417 = vmatprep.subr.mxu0 0.0
    %7418 = vmatpush1.msra.mxu0 0.0
    %7419 = vmatprep.subr.mxu0 0.0
    %7420 = vmatpush1.msra.mxu0 0.0
    %7421 = vmatprep.subr.mxu0 0.0
    %7422 = vmatpush1.msra.mxu0 0.0
    %7423 = vmatprep.subr.mxu0 0.0
    %7424 = vmatpush1.msra.mxu0 0.0
    %7425 = vmatprep.subr.mxu0 0.0
    %7426 = vmatpush1.msra.mxu0 0.0
    %7427 = vmatprep.subr.mxu0 0.0
    %7428 = vmatpush1.msra.mxu0 0.0
    %7429 = vmatprep.subr.mxu0 0.0
    %7430 = vmatpush1.msra.mxu0 0.0
    %7431 = vmatprep.subr.mxu0 0.0
    %7432 = vmatpush1.msra.mxu0 0.0
    %7433 = vmatprep.subr.mxu0 0.0
    %7434 = vmatpush1.msra.mxu0 0.0
    %7435 = vmatprep.subr.mxu0 0.0
    %7436 = vmatpush1.msra.mxu0 0.0
    %7437 = vmatprep.subr.mxu0 0.0
    %7438 = vmatpush1.msra.mxu0 0.0
    %7439 = vmatprep.subr.mxu0 0.0
    %7440 = vmatpush1.msra.mxu0 0.0
    %7441 = vmatprep.subr.mxu0 0.0
    %7442 = vmatpush1.msra.mxu0 0.0
    %7443 = vmatprep.mubr.f32.mxu0 0.0
    %7444 = vmatmul.mubr.f32.gmra.mrb[0].mxu0 %v7018
    %v7445 = vpop.f32.mrb[0].mxu0
    %v7446 = vadd.f32 0.0, %v7445
    %v7447 = vpop.f32.mrb[0].mxu0
    %7448 = vdwg.mxu0
    %v7449 = vadd.f32 %v7164, %v7446
    %v7450 = vadd.f32 %v7449, %v177
    %7451 = vmatprep.subr.mxu0 0.0
    %7452 = vmatpush1.msra.mxu0 %v105
    %7453 = vmatprep.subr.mxu0 0.0
    %7454 = vmatpush1.msra.mxu0 %v106
    %7455 = vmatprep.subr.mxu0 0.0
    %7456 = vmatpush1.msra.mxu0 %v107
    %7457 = vmatprep.subr.mxu0 0.0
    %7458 = vmatpush1.msra.mxu0 %v108
    %7459 = vmatprep.subr.mxu0 0.0
    %7460 = vmatpush1.msra.mxu0 0.0
    %7461 = vmatprep.subr.mxu0 0.0
    %7462 = vmatpush1.msra.mxu0 0.0
    %7463 = vmatprep.subr.mxu0 0.0
    %7464 = vmatpush1.msra.mxu0 0.0
    %7465 = vmatprep.subr.mxu0 0.0
    %7466 = vmatpush1.msra.mxu0 0.0
    %7467 = vmatprep.subr.mxu0 0.0
    %7468 = vmatpush1.msra.mxu0 0.0
    %7469 = vmatprep.subr.mxu0 0.0
    %7470 = vmatpush1.msra.mxu0 0.0
    %7471 = vmatprep.subr.mxu0 0.0
    %7472 = vmatpush1.msra.mxu0 0.0
    %7473 = vmatprep.subr.mxu0 0.0
    %7474 = vmatpush1.msra.mxu0 0.0
    %7475 = vmatprep.subr.mxu0 0.0
    %7476 = vmatpush1.msra.mxu0 0.0
    %7477 = vmatprep.subr.mxu0 0.0
    %7478 = vmatpush1.msra.mxu0 0.0
    %7479 = vmatprep.subr.mxu0 0.0
    %7480 = vmatpush1.msra.mxu0 0.0
    %7481 = vmatprep.subr.mxu0 0.0
    %7482 = vmatpush1.msra.mxu0 0.0
    %7483 = vmatprep.subr.mxu0 0.0
    %7484 = vmatpush1.msra.mxu0 0.0
    %7485 = vmatprep.subr.mxu0 0.0
    %7486 = vmatpush1.msra.mxu0 0.0
    %7487 = vmatprep.subr.mxu0 0.0
    %7488 = vmatpush1.msra.mxu0 0.0
    %7489 = vmatprep.subr.mxu0 0.0
    %7490 = vmatpush1.msra.mxu0 0.0
    %7491 = vmatprep.subr.mxu0 0.0
    %7492 = vmatpush1.msra.mxu0 0.0
    %7493 = vmatprep.subr.mxu0 0.0
    %7494 = vmatpush1.msra.mxu0 0.0
    %7495 = vmatprep.subr.mxu0 0.0
    %7496 = vmatpush1.msra.mxu0 0.0
    %7497 = vmatprep.subr.mxu0 0.0
    %7498 = vmatpush1.msra.mxu0 0.0
    %7499 = vmatprep.subr.mxu0 0.0
    %7500 = vmatpush1.msra.mxu0 0.0
    %7501 = vmatprep.subr.mxu0 0.0
    %7502 = vmatpush1.msra.mxu0 0.0
    %7503 = vmatprep.subr.mxu0 0.0
    %7504 = vmatpush1.msra.mxu0 0.0
    %7505 = vmatprep.subr.mxu0 0.0
    %7506 = vmatpush1.msra.mxu0 0.0
    %7507 = vmatprep.subr.mxu0 0.0
    %7508 = vmatpush1.msra.mxu0 0.0
    %7509 = vmatprep.subr.mxu0 0.0
    %7510 = vmatpush1.msra.mxu0 0.0
    %7511 = vmatprep.subr.mxu0 0.0
    %7512 = vmatpush1.msra.mxu0 0.0
    %7513 = vmatprep.subr.mxu0 0.0
    %7514 = vmatpush1.msra.mxu0 0.0
    %7515 = vmatprep.mubr.f32.mxu0 0.0
    %7516 = vmatmul.mubr.f32.gmra.mrb[0].mxu0 %v7018
    %v7517 = vpop.f32.mrb[0].mxu0
    %v7518 = vadd.f32 0.0, %v7517
    %v7519 = vpop.f32.mrb[0].mxu0
    %7520 = vdwg.mxu0
    %v7521 = vadd.f32 %v7235, %v7518
    %v7522 = vadd.f32 %v7521, %v185
    %7523 = vmatprep.subr.mxu0 0.0
    %7524 = vmatpush1.msra.mxu0 %v110
    %7525 = vmatprep.subr.mxu0 0.0
    %7526 = vmatpush1.msra.mxu0 %v111
    %7527 = vmatprep.subr.mxu0 0.0
    %7528 = vmatpush1.msra.mxu0 %v112
    %7529 = vmatprep.subr.mxu0 0.0
    %7530 = vmatpush1.msra.mxu0 %v113
    %7531 = vmatprep.subr.mxu0 0.0
    %7532 = vmatpush1.msra.mxu0 0.0
    %7533 = vmatprep.subr.mxu0 0.0
    %7534 = vmatpush1.msra.mxu0 0.0
    %7535 = vmatprep.subr.mxu0 0.0
    %7536 = vmatpush1.msra.mxu0 0.0
    %7537 = vmatprep.subr.mxu0 0.0
    %7538 = vmatpush1.msra.mxu0 0.0
    %7539 = vmatprep.subr.mxu0 0.0
    %7540 = vmatpush1.msra.mxu0 0.0
    %7541 = vmatprep.subr.mxu0 0.0
    %7542 = vmatpush1.msra.mxu0 0.0
    %7543 = vmatprep.subr.mxu0 0.0
    %7544 = vmatpush1.msra.mxu0 0.0
    %7545 = vmatprep.subr.mxu0 0.0
    %7546 = vmatpush1.msra.mxu0 0.0
    %7547 = vmatprep.subr.mxu0 0.0
    %7548 = vmatpush1.msra.mxu0 0.0
    %7549 = vmatprep.subr.mxu0 0.0
    %7550 = vmatpush1.msra.mxu0 0.0
    %7551 = vmatprep.subr.mxu0 0.0
    %7552 = vmatpush1.msra.mxu0 0.0
    %7553 = vmatprep.subr.mxu0 0.0
    %7554 = vmatpush1.msra.mxu0 0.0
    %7555 = vmatprep.subr.mxu0 0.0
    %7556 = vmatpush1.msra.mxu0 0.0
    %7557 = vmatprep.subr.mxu0 0.0
    %7558 = vmatpush1.msra.mxu0 0.0
    %7559 = vmatprep.subr.mxu0 0.0
    %7560 = vmatpush1.msra.mxu0 0.0
    %7561 = vmatprep.subr.mxu0 0.0
    %7562 = vmatpush1.msra.mxu0 0.0
    %7563 = vmatprep.subr.mxu0 0.0
    %7564 = vmatpush1.msra.mxu0 0.0
    %7565 = vmatprep.subr.mxu0 0.0
    %7566 = vmatpush1.msra.mxu0 0.0
    %7567 = vmatprep.subr.mxu0 0.0
    %7568 = vmatpush1.msra.mxu0 0.0
    %7569 = vmatprep.subr.mxu0 0.0
    %7570 = vmatpush1.msra.mxu0 0.0
    %7571 = vmatprep.subr.mxu0 0.0
    %7572 = vmatpush1.msra.mxu0 0.0
    %7573 = vmatprep.subr.mxu0 0.0
    %7574 = vmatpush1.msra.mxu0 0.0
    %7575 = vmatprep.subr.mxu0 0.0
    %7576 = vmatpush1.msra.mxu0 0.0
    %7577 = vmatprep.subr.mxu0 0.0
    %7578 = vmatpush1.msra.mxu0 0.0
    %7579 = vmatprep.subr.mxu0 0.0
    %7580 = vmatpush1.msra.mxu0 0.0
    %7581 = vmatprep.subr.mxu0 0.0
    %7582 = vmatpush1.msra.mxu0 0.0
    %7583 = vmatprep.subr.mxu0 0.0
    %7584 = vmatpush1.msra.mxu0 0.0
    %7585 = vmatprep.subr.mxu0 0.0
    %7586 = vmatpush1.msra.mxu0 0.0
    %7587 = vmatprep.mubr.f32.mxu0 0.0
    %7588 = vmatmul.mubr.f32.gmra.mrb[0].mxu0 %v7018
    %v7589 = vpop.f32.mrb[0].mxu0
    %v7590 = vadd.f32 0.0, %v7589
    %v7591 = vpop.f32.mrb[0].mxu0
    %7592 = vdwg.mxu0
    %v7593 = vadd.f32 %v7306, %v7590
    %v7594 = vadd.f32 %v7593, %v193
    %v7595 = vxor.u32 %v7378, 2147483648
    %v7596 = vmul.f32 %v7595, 1.442695
    %v7597 = vpow.pop %v7596
    %v7598 = vadd.f32 %v7597, 1.0
    %v7599 = vrcp.pop %v7598
    %v7600 = vmul.f32 1.0, %v7599
    %v7601 = vxor.u32 %v7450, 2147483648
    %v7602 = vmul.f32 %v7601, 1.442695
    %v7603 = vpow.pop %v7602
    %v7604 = vadd.f32 %v7603, 1.0
    %v7605 = vrcp.pop %v7604
    %v7606 = vmul.f32 1.0, %v7605
    %v7607 = vtanh.pop %v7522
    %v7608 = vxor.u32 %v7594, 2147483648
    %v7609 = vmul.f32 %v7608, 1.442695
    %v7610 = vpow.pop %v7609
    %v7611 = vadd.f32 %v7610, 1.0
    %v7612 = vrcp.pop %v7611
    %v7613 = vmul.f32 1.0, %v7612
    %v7614 = vmul.f32 %v7606, %v7012
    %v7615 = vmul.f32 %v7600, %v7607
    %v7616 = vadd.f32 %v7614, %v7615
    %v7617 = vtanh.pop %v7616
    %v7618 = vmul.f32 %v7613, %v7617
    %v7620 = vlaneseq
    %v7621 = vshrl.u32 %v7620, 7
    %v7622 = vsub.s32 0, %v7621
    %v7623 = vrot.slane %v230, %v7622
    %v7626 = vsel %vm1167, %v7618, 0
    %7628 = vmatprep.subr.mxu0 0.0
    %7629 = vmatpush1.msra.mxu0 %v226
    %7630 = vmatprep.subr.mxu0 0.0
    %7631 = vmatpush1.msra.mxu0 %v227
    %7632 = vmatprep.subr.mxu0 0.0
    %7633 = vmatpush1.msra.mxu0 %v228
    %7634 = vmatprep.subr.mxu0 0.0
    %7635 = vmatpush1.msra.mxu0 %v229
    %7636 = vmatprep.subr.mxu0 0.0
    %7637 = vmatpush1.msra.mxu0 0.0
    %7638 = vmatprep.subr.mxu0 0.0
    %7639 = vmatpush1.msra.mxu0 0.0
    %7640 = vmatprep.subr.mxu0 0.0
    %7641 = vmatpush1.msra.mxu0 0.0
    %7642 = vmatprep.subr.mxu0 0.0
    %7643 = vmatpush1.msra.mxu0 0.0
    %7644 = vmatprep.subr.mxu0 0.0
    %7645 = vmatpush1.msra.mxu0 0.0
    %7646 = vmatprep.subr.mxu0 0.0
    %7647 = vmatpush1.msra.mxu0 0.0
    %7648 = vmatprep.subr.mxu0 0.0
    %7649 = vmatpush1.msra.mxu0 0.0
    %7650 = vmatprep.subr.mxu0 0.0
    %7651 = vmatpush1.msra.mxu0 0.0
    %7652 = vmatprep.subr.mxu0 0.0
    %7653 = vmatpush1.msra.mxu0 0.0
    %7654 = vmatprep.subr.mxu0 0.0
    %7655 = vmatpush1.msra.mxu0 0.0
    %7656 = vmatprep.subr.mxu0 0.0
    %7657 = vmatpush1.msra.mxu0 0.0
    %7658 = vmatprep.subr.mxu0 0.0
    %7659 = vmatpush1.msra.mxu0 0.0
    %7660 = vmatprep.subr.mxu0 0.0
    %7661 = vmatpush1.msra.mxu0 0.0
    %7662 = vmatprep.subr.mxu0 0.0
    %7663 = vmatpush1.msra.mxu0 0.0
    %7664 = vmatprep.subr.mxu0 0.0
    %7665 = vmatpush1.msra.mxu0 0.0
    %7666 = vmatprep.subr.mxu0 0.0
    %7667 = vmatpush1.msra.mxu0 0.0
    %7668 = vmatprep.subr.mxu0 0.0
    %7669 = vmatpush1.msra.mxu0 0.0
    %7670 = vmatprep.subr.mxu0 0.0
    %7671 = vmatpush1.msra.mxu0 0.0
    %7672 = vmatprep.subr.mxu0 0.0
    %7673 = vmatpush1.msra.mxu0 0.0
    %7674 = vmatprep.subr.mxu0 0.0
    %7675 = vmatpush1.msra.mxu0 0.0
    %7676 = vmatprep.subr.mxu0 0.0
    %7677 = vmatpush1.msra.mxu0 0.0
    %7678 = vmatprep.subr.mxu0 0.0
    %7679 = vmatpush1.msra.mxu0 0.0
    %7680 = vmatprep.subr.mxu0 0.0
    %7681 = vmatpush1.msra.mxu0 0.0
    %7682 = vmatprep.subr.mxu0 0.0
    %7683 = vmatpush1.msra.mxu0 0.0
    %7684 = vmatprep.subr.mxu0 0.0
    %7685 = vmatpush1.msra.mxu0 0.0
    %7686 = vmatprep.subr.mxu0 0.0
    %7687 = vmatpush1.msra.mxu0 0.0
    %7688 = vmatprep.subr.mxu0 0.0
    %7689 = vmatpush1.msra.mxu0 0.0
    %7690 = vmatprep.subr.mxu0 0.0
    %7691 = vmatpush1.msra.mxu0 0.0
    %7692 = vmatprep.mubr.f32.mxu0 0.0
    %7693 = vmatmul.mubr.f32.gmra.mrb[0].mxu0 %v3998
    %v7694 = vpop.f32.mrb[0].mxu0
    %v7695 = vadd.f32 %v7623, %v7694
    %v7696 = vpop.f32.mrb[0].mxu0
    %7697 = vmatprep.mubr.f32.mxu0 0.0
    %7698 = vmatmul.mubr.f32.gmra.mrb[0].mxu0 %v4602
    %v7699 = vpop.f32.mrb[0].mxu0
    %v7700 = vadd.f32 %v7623, %v7699
    %v7701 = vpop.f32.mrb[0].mxu0
    %7702 = vmatprep.mubr.f32.mxu0 0.0
    %7703 = vmatmul.mubr.f32.gmra.mrb[0].mxu0 %v5206
    %v7704 = vpop.f32.mrb[0].mxu0
    %v7705 = vadd.f32 %v7623, %v7704
    %v7706 = vpop.f32.mrb[0].mxu0
    %7707 = vmatprep.mubr.f32.mxu0 0.0
    %7708 = vmatmul.mubr.f32.gmra.mrb[0].mxu0 %v5810
    %v7709 = vpop.f32.mrb[0].mxu0
    %v7710 = vadd.f32 %v7623, %v7709
    %v7711 = vpop.f32.mrb[0].mxu0
    %7712 = vmatprep.mubr.f32.mxu0 0.0
    %7713 = vmatmul.mubr.f32.gmra.mrb[0].mxu0 %v6414
    %v7714 = vpop.f32.mrb[0].mxu0
    %v7715 = vadd.f32 %v7623, %v7714
    %v7716 = vpop.f32.mrb[0].mxu0
    %7717 = vmatprep.mubr.f32.mxu0 0.0
    %7718 = vmatmul.mubr.f32.gmra.mrb[0].mxu0 %v7018
    %v7719 = vpop.f32.mrb[0].mxu0
    %v7720 = vadd.f32 %v7623, %v7719
    %v7721 = vpop.f32.mrb[0].mxu0
    %7722 = vmatprep.mubr.f32.mxu0 0.0
    %7723 = vmatmul.mubr.f32.gmra.mrb[0].mxu0 %v7626
    %v7724 = vpop.f32.mrb[0].mxu0
    %v7725 = vadd.f32 %v7623, %v7724
    %v7726 = vpop.f32.mrb[0].mxu0
    %7727 = vdwg.mxu0
    %7728 = vst.msk [vmem:[%s13] sm:$0xff] %vm248, 0.0
    %7729 = vst.msk [vmem:[%s13 + $0x8] sm:$0xff] %vm248, %v7695
    %7730 = vst.msk [vmem:[%s13 + $0x10] sm:$0xff] %vm248, %v7700
    %7731 = vst.msk [vmem:[%s13 + $0x18] sm:$0xff] %vm248, %v7705
    %7732 = vst.msk [vmem:[%s13 + $0x20] sm:$0xff] %vm248, %v7710
    %7733 = vst.msk [vmem:[%s13 + $0x28] sm:$0xff] %vm248, %v7715
    %7734 = vst.msk [vmem:[%s13 + $0x30] sm:$0xff] %vm248, %v7720
    %7735 = vst.msk [vmem:[%s13 + $0x38] sm:$0xff] %vm248, %v7725
    // Predicated region
    $region58: #{tpu_custom_call.1} parent=1 // pred_check
      _
    $region59: #{tpu_custom_call.1} parent=1 // pred_check_branch
      %7737 = sbr.rel (0) target = $region61
    $region60: #{tpu_custom_call.1} parent=1 // pred_region
      _
    $region61: #{tpu_custom_call.1} parent=1 // pred_fallthru
      _
    // Predicated region
    $region62: #{tpu_custom_call.1} parent=1 // pred_check
      _
    $region63: #{tpu_custom_call.1} parent=1 // pred_check_branch
      %7739 = sbr.rel (0) target = $region65
    $region64: #{tpu_custom_call.1} parent=1 // pred_region
      _
    $region65: #{tpu_custom_call.1} parent=1 // pred_fallthru
      _
    %7740 = vsyncpa [#allocation5], 1
    %7741 = vsyncpa [#allocation7], 1

</llo_original>
